<compile_context>
chip_gen: v6e
topology: v6e:2x2x1
jax: 0.10.0
libtpu: 0.0.40
codegen_flags: <defaults>
</compile_context>

<pallas_src>
import jax
import jax.numpy as jnp
import numpy as np
from jax.experimental import pallas as pl
from jax.experimental.pallas import tpu as pltpu


# ----------------------------- fused encoder kernel -----------------------------

def _make_encoder_kernel(n_conv, K, T, B, H, L):
    S = 2 * H                                            # Encoder.Size (= fwd|bwd LSTM width)
    G = 8 * H                                            # fused gate width (4 gates x 2 dirs)
    pad = (K - 1) // 2
    bf16 = jnp.bfloat16
    f32 = jnp.float32

    def kernel(*refs):
        x_ref = refs[0]                                  # (B, T, C0) f32
        conv_w = refs[1:1 + n_conv]                      # each (K, Cin_i, S) bf16, BN scale folded
        conv_b = refs[1 + n_conv:1 + 2 * n_conv]         # each (1, S) f32 (folded BN bias)
        wih_f_ref, wih_b_ref, whh_ref, bias_ref, rev_ref = refs[1 + 2 * n_conv:1 + 2 * n_conv + 5]
        o_ref = refs[1 + 2 * n_conv + 5]                 # (B, T, S) f32
        hbuf_ref = refs[1 + 2 * n_conv + 6]              # VMEM scratch (B, T, S) f32

        # ---------- Conv1d + folded BatchNorm + ReLU: K-tap matmul accumulation ----------
        h = x_ref[...].astype(f32)                       # (B, T, C0)
        for li in range(n_conv):
            cin = conv_w[li].shape[1]
            zp = jnp.zeros((B, pad, cin), bf16)
            hp = jnp.concatenate([zp, h.astype(bf16), zp], axis=1)      # (B, T+2p, Cin), 'same' pad
            y = conv_b[li][...]                                          # (1, S) f32, broadcasts
            for k in range(K):                           # sum_k x(t+k-p) @ W_k  (MXU, bf16 operands)
                y = y + jnp.dot(hp[:, k:k + T, :].reshape(B * T, cin), conv_w[li][k],
                                preferred_element_type=f32)
            h = jnp.maximum(y, 0.0).reshape(B, T, S)     # ReLU
            # TODO(synk): Dropout is identity at inference; training-mode dropout not implemented.

        # ---------- Bidirectional LSTM stack ----------
        rev = rev_ref[...]                               # (B*T, B*T) bf16 block-diag time reversal
        for l in range(L):
            whh_l = whh_ref[l]                           # (S, G) bf16, block-diag over directions
            b_l = bias_ref[l]                            # (1, G) f32

            # Hoisted input projection over all (B*T) rows. Backward lanes get the time-reversed
            # input via a permutation matmul + direction-masked weights (no per-step selects).
            h2 = h.reshape(B * T, S).astype(bf16)
            h2r = jnp.dot(rev, h2, preferred_element_type=f32).astype(bf16)   # exact permutation
            gx = (jnp.dot(h2, wih_f_ref[l], preferred_element_type=f32)
                  + jnp.dot(h2r, wih_b_ref[l], preferred_element_type=f32)
                  + b_l).reshape(B, T, G)                # row t: fwd lanes see x(t), bwd lanes x(T-1-t)

            hh = jnp.zeros((B, S), f32)                  # [h_fwd | h_bwd]
            cc = jnp.zeros((B, S), f32)                  # [c_fwd | c_bwd]
            for t in range(T):                           # fully unrolled recurrence
                gates = gx[:, t, :] + jnp.dot(hh.astype(bf16), whh_l,
                                              preferred_element_type=f32)     # (B, G)
                # single 128-lane tanh; i/f/o columns were pre-scaled by 0.5 so
                # sigmoid(z) = 0.5*tanh(z/2)+0.5 is just an fma on the VPU.
                a = jnp.tanh(gates)
                i_g = 0.5 * a[:, 0 * S:1 * S] + 0.5
                f_g = 0.5 * a[:, 1 * S:2 * S] + 0.5
                g_g = a[:, 2 * S:3 * S]
                o_g = 0.5 * a[:, 3 * S:4 * S] + 0.5
                cc = f_g * cc + i_g * g_g
                hh = o_g * jnp.tanh(cc)
                # store fwd half at time t, bwd half at its real time T-1-t -> no epilogue flip
                hbuf_ref[:, t:t + 1, 0:H] = hh[:, None, 0:H]
                hbuf_ref[:, T - 1 - t:T - t, H:S] = hh[:, None, H:S]

            h = hbuf_ref[...]                            # (B, T, S): row t = [h_fwd(t) | h_bwd(t)]

        o_ref[...] = h.astype(o_ref.dtype)

    return kernel


# ----------------------------- one-time parameter preparation -----------------------------

def prepare_params(conv_ws, bn_gamma, bn_beta, bn_mean, bn_var,
                   wih, whh, b_ih, b_hh, eps=1e-5):
    """Run ONCE (host/numpy), outside the jitted forward:
       * fold BatchNorm eval affine (gamma/beta/running stats) into conv weight + bias,
       * fuse LSTM directions into one 8H gate tile (block-diagonal recurrent weight),
         reorder columns so each gate (i,f,g,o) is a contiguous 2H block,
       * pre-scale i/f/o gate columns by 0.5 (tanh-as-sigmoid trick),
       * cast all matmul operands to bf16 (f32 accumulation inside the kernel)."""
    wih = np.asarray(wih, np.float32)                    # (L, 2, S, 4H), gate order i,f,g,o
    whh = np.asarray(whh, np.float32)                    # (L, 2, H, 4H)
    b_sum = np.asarray(b_ih, np.float32) + np.asarray(b_hh, np.float32)   # (L, 2, 4H)
    L, _, S, H4 = wih.shape
    H = H4 // 4

    conv_mats, conv_bvecs = [], []
    for w, g, be, mu, var in zip(conv_ws, bn_gamma, bn_beta, bn_mean, bn_var):
        w = np.asarray(w, np.float32)                    # (K, Cin, Cout)
        scale = np.asarray(g, np.float32) / np.sqrt(np.asarray(var, np.float32) + eps)
        bias = np.asarray(be, np.float32) - np.asarray(mu, np.float32) * scale
        conv_mats.append(jnp.asarray(w * scale.reshape(1, 1, -1), jnp.bfloat16))
        conv_bvecs.append(jnp.asarray(bias.reshape(1, -1), jnp.float32))
    # TODO(synk): training-mode BatchNorm (batch statistics) is not implemented; eval stats only.

    wih_f = np.zeros((L, S, 8 * H), np.float32)          # forward-direction columns only
    wih_b = np.zeros((L, S, 8 * H), np.float32)          # backward-direction columns only
    whh_bd = np.zeros((L, S, 8 * H), np.float32)         # block-diagonal over directions
    b_cat = np.zeros((L, 1, 8 * H), np.float32)
    for l in range(L):
        for d in range(2):                               # 0 = forward, 1 = backward
            for g4 in range(4):                          # PyTorch gate order i, f, g, o
                cols = slice(2 * g4 * H + d * H, 2 * g4 * H + (d + 1) * H)
                sc = 1.0 if g4 == 2 else 0.5             # tanh-as-sigmoid pre-scale on i,f,o
                tgt = wih_f if d == 0 else wih_b
                tgt[l, :, cols] = wih[l, d, :, g4 * H:(g4 + 1) * H] * sc
                whh_bd[l, d * H:(d + 1) * H, cols] = whh[l, d, :, g4 * H:(g4 + 1) * H] * sc
                b_cat[l, 0, cols] = b_sum[l, d, g4 * H:(g4 + 1) * H] * sc

    return (tuple(conv_mats), tuple(conv_bvecs),
            jnp.asarray(wih_f, jnp.bfloat16), jnp.asarray(wih_b, jnp.bfloat16),
            jnp.asarray(whh_bd, jnp.bfloat16), jnp.asarray(b_cat, jnp.float32))


# ----------------------------- forward wrapper (jitted, no param prep) -----------------------------

@jax.jit
def encoder_forward(x_bct, params):
    conv_mats, conv_bvecs, wih_f, wih_b, whh_bd, b_cat = params
    B, _, T = x_bct.shape
    L, S, G = whh_bd.shape
    H = G // 8
    n_conv = len(conv_mats)
    K = conv_mats[0].shape[0]
    assert K % 2 == 1 and S == 2 * H and conv_mats[0].shape[2] == S

    # Block-diagonal time-reversal permutation (per batch element). Built with numpy at trace
    # time -> a compile-time constant, zero per-call XLA ops.
    rev = jnp.asarray(np.kron(np.eye(B, dtype=np.float32),
                              np.flipud(np.eye(T, dtype=np.float32))), jnp.bfloat16)

    x_btc = jnp.transpose(x_bct, (0, 2, 1))              # [B, T, C]: time on sublanes, channels on lanes

    kernel = _make_encoder_kernel(n_conv, K, T, B, H, L)
    n_in = 1 + 2 * n_conv + 5
    out_bts = pl.pallas_call(
        kernel,
        out_shape=jax.ShapeDtypeStruct((B, T, S), jnp.float32),
        in_specs=[pl.BlockSpec(memory_space=pltpu.MemorySpace.VMEM)] * n_in,
        out_specs=pl.BlockSpec(memory_space=pltpu.MemorySpace.VMEM),
        scratch_shapes=[pltpu.VMEM((B, T, S), jnp.float32)],
    )(x_btc, *conv_mats, *conv_bvecs, wih_f, wih_b, whh_bd, b_cat, rev)

    return jnp.transpose(out_bts, (0, 2, 1))             # [B, Size, T] (matches PyTorch output)


# ----------------------------- pure-JAX f32 reference -----------------------------

def ref_forward(x, conv_ws, bn_gamma, bn_beta, bn_mean, bn_var, wih, whh, b_ih, b_hh, eps=1e-5):
    hi = jax.lax.Precision.HIGHEST
    h = jnp.transpose(x, (0, 2, 1))
    for w, g, be, mu, var in zip(conv_ws, bn_gamma, bn_beta, bn_mean, bn_var):
        K = w.shape[0]
        pad = (K - 1) // 2
        xp = jnp.pad(h, ((0, 0), (pad, pad), (0, 0)))
        T_out = xp.shape[1] - K + 1
        acc = sum(jnp.einsum('btc,co->bto', xp[:, k:k + T_out, :], w[k], precision=hi)
                  for k in range(K))
        scale = g / jnp.sqrt(var + eps)
        h = jnp.maximum(acc * scale[None, None, :] + (be - mu * scale)[None, None, :], 0.0)
    B, T, _ = h.shape
    L = wih.shape[0]
    H = whh.shape[2]
    b = b_ih + b_hh
    inp = h
    for l in range(L):
        halves = []
        for d in range(2):
            hs = jnp.zeros((B, H))
            cs = jnp.zeros((B, H))
            outs = [None] * T
            trange = range(T) if d == 0 else range(T - 1, -1, -1)
            for t in trange:
                gates = (jnp.dot(inp[:, t, :], wih[l, d], precision=hi)
                         + jnp.dot(hs, whh[l, d], precision=hi) + b[l, d])
                i_g = jax.nn.sigmoid(gates[:, :H])
                f_g = jax.nn.sigmoid(gates[:, H:2 * H])
                g_g = jnp.tanh(gates[:, 2 * H:3 * H])
                o_g = jax.nn.sigmoid(gates[:, 3 * H:])
                cs = f_g * cs + i_g * g_g
                hs = o_g * jnp.tanh(cs)
                outs[t] = hs
            halves.append(jnp.stack(outs, axis=1))
        inp = jnp.concatenate(halves, axis=-1)
    return jnp.transpose(inp, (0, 2, 1))


# ----------------------------------- main -----------------------------------

if __name__ == "__main__":
    # Hyper-parameters: Feature_Type='Mel', Mel_Dim=16, Encoder.Size=32 (even),
    # Conv.Stack=2, Conv.Kernel_Size=5, Conv.Dropout (identity at inference), LSTM_Stack=2.
    B, T = 2, 16
    feat = 16
    size = 32
    K = 5
    stack = 2
    lstm_stack = 2
    H = size // 2

    key = jax.random.PRNGKey(0)
    k_x, k_conv, k_bn, k_ih, k_hh, k_bih, k_bhh = jax.random.split(key, 7)

    x = jax.random.normal(k_x, (B, feat, T), jnp.float32)   # [Batch, Feature, Time]

    # Conv weights: kaiming_uniform (relu gain), stored as [K, Cin, Cout]; bias=False.
    conv_ws = []
    bn_gamma, bn_beta, bn_mean, bn_var = [], [], [], []
    cin = feat
    conv_keys = jax.random.split(k_conv, stack)
    bn_keys = jax.random.split(k_bn, stack)
    for i in range(stack):
        fan_in = cin * K
        bound = (2.0 ** 0.5) * (3.0 / fan_in) ** 0.5
        conv_ws.append(jax.random.uniform(conv_keys[i], (K, cin, size), jnp.float32, -bound, bound))
        # BatchNorm1d eval-mode parameters / running stats (non-trivial, to exercise the fold).
        kg, kb, km, kv = jax.random.split(bn_keys[i], 4)
        bn_gamma.append(jax.random.uniform(kg, (size,), jnp.float32, 0.5, 1.5))
        bn_beta.append(0.1 * jax.random.normal(kb, (size,), jnp.float32))
        bn_mean.append(0.1 * jax.random.normal(km, (size,), jnp.float32))
        bn_var.append(jax.random.uniform(kv, (size,), jnp.float32, 0.5, 1.5))
        cin = size

    # LSTM params (PyTorch init U(-1/sqrt(H), 1/sqrt(H))), stored transposed: [.., in, 4H], gates i,f,g,o.
    stdv = 1.0 / (H ** 0.5)
    wih = jax.random.uniform(k_ih, (lstm_stack, 2, size, 4 * H), jnp.float32, -stdv, stdv)
    whh = jax.random.uniform(k_hh, (lstm_stack, 2, H, 4 * H), jnp.float32, -stdv, stdv)
    b_ih = jax.random.uniform(k_bih, (lstm_stack, 2, 4 * H), jnp.float32, -stdv, stdv)
    b_hh = jax.random.uniform(k_bhh, (lstm_stack, 2, 4 * H), jnp.float32, -stdv, stdv)

    # One-time parameter prep (BN fold + direction fuse + gate reorder + bf16 cast) — outside the forward.
    params = prepare_params(conv_ws, bn_gamma, bn_beta, bn_mean, bn_var, wih, whh, b_ih, b_hh)

    out = encoder_forward(x, params)
    out = jax.block_until_ready(out)
    assert out.shape == (B, size, T), out.shape

    ref = ref_forward(x, conv_ws, bn_gamma, bn_beta, bn_mean, bn_var, wih, whh, b_ih, b_hh)
    max_err = float(jnp.max(jnp.abs(out - ref)))
    # Tolerance accounts for bf16 MXU operands (f32 accumulation) through the conv stack and a
    # 2-layer, 16-step recurrence, validated against an f32 highest-precision reference.
    assert max_err < 3e-2, f"max abs err {max_err}"

    print("KERNEL_OK")
</pallas_src>

<mosaic_0001>
module attributes {stable_mosaic.version = 11 : i64} {
  func.func @kernel(%arg0: memref<2x16x16xf32, #tpu.memory_space<vmem>>, %arg1: memref<5x16x32xbf16, #tpu.memory_space<vmem>>, %arg2: memref<5x32x32xbf16, #tpu.memory_space<vmem>>, %arg3: memref<1x32xf32, #tpu.memory_space<vmem>>, %arg4: memref<1x32xf32, #tpu.memory_space<vmem>>, %arg5: memref<2x32x128xbf16, #tpu.memory_space<vmem>>, %arg6: memref<2x32x128xbf16, #tpu.memory_space<vmem>>, %arg7: memref<2x32x128xbf16, #tpu.memory_space<vmem>>, %arg8: memref<2x1x128xf32, #tpu.memory_space<vmem>>, %arg9: memref<32x32xbf16, #tpu.memory_space<vmem>>, %arg10: memref<2x16x32xf32, #tpu.memory_space<vmem>>, %arg11: memref<2x16x32xf32, #tpu.memory_space<vmem>>) attributes {dimension_semantics = [], scalar_prefetch = 0 : i64, scratch_operands = 1 : i64, tpu.core_type = #tpu.core_type<tc>} {
    %c0 = arith.constant 0 : index
    %c0_0 = arith.constant 0 : index
    %c0_1 = arith.constant 0 : index
    %0 = vector.load %arg0[%c0, %c0_0, %c0_1] : memref<2x16x16xf32, #tpu.memory_space<vmem>>, vector<2x16x16xf32>
    %cst = arith.constant 0.000000e+00 : bf16
    %1 = vector.broadcast %cst : bf16 to vector<2x2x16xbf16>
    %2 = arith.truncf %0 : vector<2x16x16xf32> to vector<2x16x16xbf16>
    %3 = tpu.concatenate %1, %2, %1 in 1 : vector<2x2x16xbf16>, vector<2x16x16xbf16>, vector<2x2x16xbf16> -> vector<2x20x16xbf16>
    %c0_2 = arith.constant 0 : index
    %c0_3 = arith.constant 0 : index
    %4 = vector.load %arg3[%c0_2, %c0_3] : memref<1x32xf32, #tpu.memory_space<vmem>>, vector<1x32xf32>
    %5 = vector.extract_strided_slice %3 {offsets = [0, 0, 0], sizes = [2, 16, 16], strides = [1, 1, 1]} : vector<2x20x16xbf16> to vector<2x16x16xbf16>
    %6 = vector.shape_cast %5 : vector<2x16x16xbf16> to vector<32x16xbf16>
    %c0_4 = arith.constant 0 : index
    %c0_5 = arith.constant 0 : index
    %c0_6 = arith.constant 0 : index
    %7 = vector.load %arg1[%c0_4, %c0_5, %c0_6] : memref<5x16x32xbf16, #tpu.memory_space<vmem>>, vector<1x16x32xbf16>
    %8 = vector.shape_cast %7 : vector<1x16x32xbf16> to vector<16x32xbf16>
    %cst_7 = arith.constant dense<0.000000e+00> : vector<32x32xf32>
    %9 = tpu.matmul %6, %8, %cst_7 {dimension_numbers = #tpu.dot_dimension_numbers<[1], [0], [0], [1], [0, 0, 1, 1], [], []>} : vector<32x16xbf16>, vector<16x32xbf16>, vector<32x32xf32> -> vector<32x32xf32>
    %10 = vector.broadcast %4 : vector<1x32xf32> to vector<32x32xf32>
    %11 = arith.addf %10, %9 : vector<32x32xf32>
    %12 = vector.extract_strided_slice %3 {offsets = [0, 1, 0], sizes = [2, 16, 16], strides = [1, 1, 1]} : vector<2x20x16xbf16> to vector<2x16x16xbf16>
    %13 = vector.shape_cast %12 : vector<2x16x16xbf16> to vector<32x16xbf16>
    %c1 = arith.constant 1 : index
    %c0_8 = arith.constant 0 : index
    %c0_9 = arith.constant 0 : index
    %14 = vector.load %arg1[%c1, %c0_8, %c0_9] : memref<5x16x32xbf16, #tpu.memory_space<vmem>>, vector<1x16x32xbf16>
    %15 = vector.shape_cast %14 : vector<1x16x32xbf16> to vector<16x32xbf16>
    %cst_10 = arith.constant dense<0.000000e+00> : vector<32x32xf32>
    %16 = tpu.matmul %13, %15, %cst_10 {dimension_numbers = #tpu.dot_dimension_numbers<[1], [0], [0], [1], [0, 0, 1, 1], [], []>} : vector<32x16xbf16>, vector<16x32xbf16>, vector<32x32xf32> -> vector<32x32xf32>
    %17 = arith.addf %11, %16 : vector<32x32xf32>
    %18 = vector.extract_strided_slice %3 {offsets = [0, 2, 0], sizes = [2, 16, 16], strides = [1, 1, 1]} : vector<2x20x16xbf16> to vector<2x16x16xbf16>
    %19 = vector.shape_cast %18 : vector<2x16x16xbf16> to vector<32x16xbf16>
    %c2 = arith.constant 2 : index
    %c0_11 = arith.constant 0 : index
    %c0_12 = arith.constant 0 : index
    %20 = vector.load %arg1[%c2, %c0_11, %c0_12] : memref<5x16x32xbf16, #tpu.memory_space<vmem>>, vector<1x16x32xbf16>
    %21 = vector.shape_cast %20 : vector<1x16x32xbf16> to vector<16x32xbf16>
    %cst_13 = arith.constant dense<0.000000e+00> : vector<32x32xf32>
    %22 = tpu.matmul %19, %21, %cst_13 {dimension_numbers = #tpu.dot_dimension_numbers<[1], [0], [0], [1], [0, 0, 1, 1], [], []>} : vector<32x16xbf16>, vector<16x32xbf16>, vector<32x32xf32> -> vector<32x32xf32>
    %23 = arith.addf %17, %22 : vector<32x32xf32>
    %24 = vector.extract_strided_slice %3 {offsets = [0, 3, 0], sizes = [2, 16, 16], strides = [1, 1, 1]} : vector<2x20x16xbf16> to vector<2x16x16xbf16>
    %25 = vector.shape_cast %24 : vector<2x16x16xbf16> to vector<32x16xbf16>
    %c3 = arith.constant 3 : index
    %c0_14 = arith.constant 0 : index
    %c0_15 = arith.constant 0 : index
    %26 = vector.load %arg1[%c3, %c0_14, %c0_15] : memref<5x16x32xbf16, #tpu.memory_space<vmem>>, vector<1x16x32xbf16>
    %27 = vector.shape_cast %26 : vector<1x16x32xbf16> to vector<16x32xbf16>
    %cst_16 = arith.constant dense<0.000000e+00> : vector<32x32xf32>
    %28 = tpu.matmul %25, %27, %cst_16 {dimension_numbers = #tpu.dot_dimension_numbers<[1], [0], [0], [1], [0, 0, 1, 1], [], []>} : vector<32x16xbf16>, vector<16x32xbf16>, vector<32x32xf32> -> vector<32x32xf32>
    %29 = arith.addf %23, %28 : vector<32x32xf32>
    %30 = vector.extract_strided_slice %3 {offsets = [0, 4, 0], sizes = [2, 16, 16], strides = [1, 1, 1]} : vector<2x20x16xbf16> to vector<2x16x16xbf16>
    %31 = vector.shape_cast %30 : vector<2x16x16xbf16> to vector<32x16xbf16>
    %c4 = arith.constant 4 : index
    %c0_17 = arith.constant 0 : index
    %c0_18 = arith.constant 0 : index
    %32 = vector.load %arg1[%c4, %c0_17, %c0_18] : memref<5x16x32xbf16, #tpu.memory_space<vmem>>, vector<1x16x32xbf16>
    %33 = vector.shape_cast %32 : vector<1x16x32xbf16> to vector<16x32xbf16>
    %cst_19 = arith.constant dense<0.000000e+00> : vector<32x32xf32>
    %34 = tpu.matmul %31, %33, %cst_19 {dimension_numbers = #tpu.dot_dimension_numbers<[1], [0], [0], [1], [0, 0, 1, 1], [], []>} : vector<32x16xbf16>, vector<16x32xbf16>, vector<32x32xf32> -> vector<32x32xf32>
    %35 = arith.addf %29, %34 : vector<32x32xf32>
    %cst_20 = arith.constant 0.000000e+00 : f32
    %36 = vector.broadcast %cst_20 : f32 to vector<32x32xf32>
    %37 = arith.maximumf %35, %36 : vector<32x32xf32>
    %38 = vector.shape_cast %37 : vector<32x32xf32> to vector<2x16x32xf32>
    %cst_21 = arith.constant 0.000000e+00 : bf16
    %39 = vector.broadcast %cst_21 : bf16 to vector<2x2x32xbf16>
    %40 = arith.truncf %38 : vector<2x16x32xf32> to vector<2x16x32xbf16>
    %41 = tpu.concatenate %39, %40, %39 in 1 : vector<2x2x32xbf16>, vector<2x16x32xbf16>, vector<2x2x32xbf16> -> vector<2x20x32xbf16>
    %c0_22 = arith.constant 0 : index
    %c0_23 = arith.constant 0 : index
    %42 = vector.load %arg4[%c0_22, %c0_23] : memref<1x32xf32, #tpu.memory_space<vmem>>, vector<1x32xf32>
    %43 = vector.extract_strided_slice %41 {offsets = [0, 0, 0], sizes = [2, 16, 32], strides = [1, 1, 1]} : vector<2x20x32xbf16> to vector<2x16x32xbf16>
    %44 = vector.shape_cast %43 : vector<2x16x32xbf16> to vector<32x32xbf16>
    %c0_24 = arith.constant 0 : index
    %c0_25 = arith.constant 0 : index
    %c0_26 = arith.constant 0 : index
    %45 = vector.load %arg2[%c0_24, %c0_25, %c0_26] : memref<5x32x32xbf16, #tpu.memory_space<vmem>>, vector<1x32x32xbf16>
    %46 = vector.shape_cast %45 : vector<1x32x32xbf16> to vector<32x32xbf16>
    %cst_27 = arith.constant dense<0.000000e+00> : vector<32x32xf32>
    %47 = tpu.matmul %44, %46, %cst_27 {dimension_numbers = #tpu.dot_dimension_numbers<[1], [0], [0], [1], [0, 0, 1, 1], [], []>} : vector<32x32xbf16>, vector<32x32xbf16>, vector<32x32xf32> -> vector<32x32xf32>
    %48 = vector.broadcast %42 : vector<1x32xf32> to vector<32x32xf32>
    %49 = arith.addf %48, %47 : vector<32x32xf32>
    %50 = vector.extract_strided_slice %41 {offsets = [0, 1, 0], sizes = [2, 16, 32], strides = [1, 1, 1]} : vector<2x20x32xbf16> to vector<2x16x32xbf16>
    %51 = vector.shape_cast %50 : vector<2x16x32xbf16> to vector<32x32xbf16>
    %c1_28 = arith.constant 1 : index
    %c0_29 = arith.constant 0 : index
    %c0_30 = arith.constant 0 : index
    %52 = vector.load %arg2[%c1_28, %c0_29, %c0_30] : memref<5x32x32xbf16, #tpu.memory_space<vmem>>, vector<1x32x32xbf16>
    %53 = vector.shape_cast %52 : vector<1x32x32xbf16> to vector<32x32xbf16>
    %cst_31 = arith.constant dense<0.000000e+00> : vector<32x32xf32>
    %54 = tpu.matmul %51, %53, %cst_31 {dimension_numbers = #tpu.dot_dimension_numbers<[1], [0], [0], [1], [0, 0, 1, 1], [], []>} : vector<32x32xbf16>, vector<32x32xbf16>, vector<32x32xf32> -> vector<32x32xf32>
    %55 = arith.addf %49, %54 : vector<32x32xf32>
    %56 = vector.extract_strided_slice %41 {offsets = [0, 2, 0], sizes = [2, 16, 32], strides = [1, 1, 1]} : vector<2x20x32xbf16> to vector<2x16x32xbf16>
    %57 = vector.shape_cast %56 : vector<2x16x32xbf16> to vector<32x32xbf16>
    %c2_32 = arith.constant 2 : index
    %c0_33 = arith.constant 0 : index
    %c0_34 = arith.constant 0 : index
    %58 = vector.load %arg2[%c2_32, %c0_33, %c0_34] : memref<5x32x32xbf16, #tpu.memory_space<vmem>>, vector<1x32x32xbf16>
    %59 = vector.shape_cast %58 : vector<1x32x32xbf16> to vector<32x32xbf16>
    %cst_35 = arith.constant dense<0.000000e+00> : vector<32x32xf32>
    %60 = tpu.matmul %57, %59, %cst_35 {dimension_numbers = #tpu.dot_dimension_numbers<[1], [0], [0], [1], [0, 0, 1, 1], [], []>} : vector<32x32xbf16>, vector<32x32xbf16>, vector<32x32xf32> -> vector<32x32xf32>
    %61 = arith.addf %55, %60 : vector<32x32xf32>
    %62 = vector.extract_strided_slice %41 {offsets = [0, 3, 0], sizes = [2, 16, 32], strides = [1, 1, 1]} : vector<2x20x32xbf16> to vector<2x16x32xbf16>
    %63 = vector.shape_cast %62 : vector<2x16x32xbf16> to vector<32x32xbf16>
    %c3_36 = arith.constant 3 : index
    %c0_37 = arith.constant 0 : index
    %c0_38 = arith.constant 0 : index
    %64 = vector.load %arg2[%c3_36, %c0_37, %c0_38] : memref<5x32x32xbf16, #tpu.memory_space<vmem>>, vector<1x32x32xbf16>
    %65 = vector.shape_cast %64 : vector<1x32x32xbf16> to vector<32x32xbf16>
    %cst_39 = arith.constant dense<0.000000e+00> : vector<32x32xf32>
    %66 = tpu.matmul %63, %65, %cst_39 {dimension_numbers = #tpu.dot_dimension_numbers<[1], [0], [0], [1], [0, 0, 1, 1], [], []>} : vector<32x32xbf16>, vector<32x32xbf16>, vector<32x32xf32> -> vector<32x32xf32>
    %67 = arith.addf %61, %66 : vector<32x32xf32>
    %68 = vector.extract_strided_slice %41 {offsets = [0, 4, 0], sizes = [2, 16, 32], strides = [1, 1, 1]} : vector<2x20x32xbf16> to vector<2x16x32xbf16>
    %69 = vector.shape_cast %68 : vector<2x16x32xbf16> to vector<32x32xbf16>
    %c4_40 = arith.constant 4 : index
    %c0_41 = arith.constant 0 : index
    %c0_42 = arith.constant 0 : index
    %70 = vector.load %arg2[%c4_40, %c0_41, %c0_42] : memref<5x32x32xbf16, #tpu.memory_space<vmem>>, vector<1x32x32xbf16>
    %71 = vector.shape_cast %70 : vector<1x32x32xbf16> to vector<32x32xbf16>
    %cst_43 = arith.constant dense<0.000000e+00> : vector<32x32xf32>
    %72 = tpu.matmul %69, %71, %cst_43 {dimension_numbers = #tpu.dot_dimension_numbers<[1], [0], [0], [1], [0, 0, 1, 1], [], []>} : vector<32x32xbf16>, vector<32x32xbf16>, vector<32x32xf32> -> vector<32x32xf32>
    %73 = arith.addf %67, %72 : vector<32x32xf32>
    %cst_44 = arith.constant 0.000000e+00 : f32
    %74 = vector.broadcast %cst_44 : f32 to vector<32x32xf32>
    %75 = arith.maximumf %73, %74 : vector<32x32xf32>
    %76 = vector.shape_cast %75 : vector<32x32xf32> to vector<2x16x32xf32>
    %c0_45 = arith.constant 0 : index
    %c0_46 = arith.constant 0 : index
    %77 = vector.load %arg9[%c0_45, %c0_46] : memref<32x32xbf16, #tpu.memory_space<vmem>>, vector<32x32xbf16>
    %c0_47 = arith.constant 0 : index
    %c0_48 = arith.constant 0 : index
    %c0_49 = arith.constant 0 : index
    %78 = vector.load %arg7[%c0_47, %c0_48, %c0_49] : memref<2x32x128xbf16, #tpu.memory_space<vmem>>, vector<1x32x128xbf16>
    %79 = vector.shape_cast %78 : vector<1x32x128xbf16> to vector<32x128xbf16>
    %c0_50 = arith.constant 0 : index
    %c0_51 = arith.constant 0 : index
    %c0_52 = arith.constant 0 : index
    %80 = vector.load %arg8[%c0_50, %c0_51, %c0_52] : memref<2x1x128xf32, #tpu.memory_space<vmem>>, vector<1x1x128xf32>
    %81 = vector.shape_cast %80 : vector<1x1x128xf32> to vector<1x128xf32>
    %82 = vector.shape_cast %76 : vector<2x16x32xf32> to vector<32x32xf32>
    %83 = arith.truncf %82 : vector<32x32xf32> to vector<32x32xbf16>
    %cst_53 = arith.constant dense<0.000000e+00> : vector<32x32xf32>
    %84 = tpu.matmul %77, %83, %cst_53 {dimension_numbers = #tpu.dot_dimension_numbers<[1], [0], [0], [1], [0, 0, 1, 1], [], []>} : vector<32x32xbf16>, vector<32x32xbf16>, vector<32x32xf32> -> vector<32x32xf32>
    %85 = arith.truncf %84 : vector<32x32xf32> to vector<32x32xbf16>
    %c0_54 = arith.constant 0 : index
    %c0_55 = arith.constant 0 : index
    %c0_56 = arith.constant 0 : index
    %86 = vector.load %arg5[%c0_54, %c0_55, %c0_56] : memref<2x32x128xbf16, #tpu.memory_space<vmem>>, vector<1x32x128xbf16>
    %87 = vector.shape_cast %86 : vector<1x32x128xbf16> to vector<32x128xbf16>
    %cst_57 = arith.constant dense<0.000000e+00> : vector<32x128xf32>
    %88 = tpu.matmul %83, %87, %cst_57 {dimension_numbers = #tpu.dot_dimension_numbers<[1], [0], [0], [1], [0, 0, 1, 1], [], []>} : vector<32x32xbf16>, vector<32x128xbf16>, vector<32x128xf32> -> vector<32x128xf32>
    %c0_58 = arith.constant 0 : index
    %c0_59 = arith.constant 0 : index
    %c0_60 = arith.constant 0 : index
    %89 = vector.load %arg6[%c0_58, %c0_59, %c0_60] : memref<2x32x128xbf16, #tpu.memory_space<vmem>>, vector<1x32x128xbf16>
    %90 = vector.shape_cast %89 : vector<1x32x128xbf16> to vector<32x128xbf16>
    %cst_61 = arith.constant dense<0.000000e+00> : vector<32x128xf32>
    %91 = tpu.matmul %85, %90, %cst_61 {dimension_numbers = #tpu.dot_dimension_numbers<[1], [0], [0], [1], [0, 0, 1, 1], [], []>} : vector<32x32xbf16>, vector<32x128xbf16>, vector<32x128xf32> -> vector<32x128xf32>
    %92 = arith.addf %88, %91 : vector<32x128xf32>
    %93 = vector.broadcast %81 : vector<1x128xf32> to vector<32x128xf32>
    %94 = arith.addf %92, %93 : vector<32x128xf32>
    %95 = vector.shape_cast %94 : vector<32x128xf32> to vector<2x16x128xf32>
    %cst_62 = arith.constant 0.000000e+00 : f32
    %96 = vector.broadcast %cst_62 : f32 to vector<2x32xf32>
    %cst_63 = arith.constant 0.000000e+00 : f32
    %97 = vector.broadcast %cst_63 : f32 to vector<2x32xf32>
    %98 = vector.extract_strided_slice %95 {offsets = [0, 0, 0], sizes = [2, 1, 128], strides = [1, 1, 1]} : vector<2x16x128xf32> to vector<2x1x128xf32>
    %99 = vector.shape_cast %98 : vector<2x1x128xf32> to vector<2x128xf32>
    %100 = arith.truncf %96 : vector<2x32xf32> to vector<2x32xbf16>
    %cst_64 = arith.constant dense<0.000000e+00> : vector<2x128xf32>
    %101 = tpu.matmul %100, %79, %cst_64 {dimension_numbers = #tpu.dot_dimension_numbers<[1], [0], [0], [1], [0, 0, 1, 1], [], []>} : vector<2x32xbf16>, vector<32x128xbf16>, vector<2x128xf32> -> vector<2x128xf32>
    %102 = arith.addf %99, %101 : vector<2x128xf32>
    %103 = math.tanh %102 : vector<2x128xf32>
    %104 = vector.extract_strided_slice %103 {offsets = [0, 0], sizes = [2, 32], strides = [1, 1]} : vector<2x128xf32> to vector<2x32xf32>
    %cst_65 = arith.constant 5.000000e-01 : f32
    %105 = vector.broadcast %cst_65 : f32 to vector<2x32xf32>
    %106 = arith.mulf %105, %104 : vector<2x32xf32>
    %cst_66 = arith.constant 5.000000e-01 : f32
    %107 = vector.broadcast %cst_66 : f32 to vector<2x32xf32>
    %108 = arith.addf %106, %107 : vector<2x32xf32>
    %109 = vector.extract_strided_slice %103 {offsets = [0, 32], sizes = [2, 32], strides = [1, 1]} : vector<2x128xf32> to vector<2x32xf32>
    %cst_67 = arith.constant 5.000000e-01 : f32
    %110 = vector.broadcast %cst_67 : f32 to vector<2x32xf32>
    %111 = arith.mulf %110, %109 : vector<2x32xf32>
    %cst_68 = arith.constant 5.000000e-01 : f32
    %112 = vector.broadcast %cst_68 : f32 to vector<2x32xf32>
    %113 = arith.addf %111, %112 : vector<2x32xf32>
    %114 = vector.extract_strided_slice %103 {offsets = [0, 64], sizes = [2, 32], strides = [1, 1]} : vector<2x128xf32> to vector<2x32xf32>
    %115 = vector.extract_strided_slice %103 {offsets = [0, 96], sizes = [2, 32], strides = [1, 1]} : vector<2x128xf32> to vector<2x32xf32>
    %cst_69 = arith.constant 5.000000e-01 : f32
    %116 = vector.broadcast %cst_69 : f32 to vector<2x32xf32>
    %117 = arith.mulf %116, %115 : vector<2x32xf32>
    %cst_70 = arith.constant 5.000000e-01 : f32
    %118 = vector.broadcast %cst_70 : f32 to vector<2x32xf32>
    %119 = arith.addf %117, %118 : vector<2x32xf32>
    %120 = arith.mulf %113, %97 : vector<2x32xf32>
    %121 = arith.mulf %108, %114 : vector<2x32xf32>
    %122 = arith.addf %120, %121 : vector<2x32xf32>
    %123 = math.tanh %122 : vector<2x32xf32>
    %124 = arith.mulf %119, %123 : vector<2x32xf32>
    %125 = vector.extract_strided_slice %124 {offsets = [0, 0], sizes = [2, 16], strides = [1, 1]} : vector<2x32xf32> to vector<2x16xf32>
    %126 = vector.shape_cast %125 : vector<2x16xf32> to vector<2x1x16xf32>
    %c0_71 = arith.constant 0 : index
    %c0_72 = arith.constant 0 : index
    %c0_73 = arith.constant 0 : index
    %127 = vector.load %arg11[%c0_71, %c0_72, %c0_73] : memref<2x16x32xf32, #tpu.memory_space<vmem>>, vector<2x1x16xf32>
    tpu.vector_store %arg11[%c0_71, %c0_72, %c0_73], %126 {strides = array<i32>} : memref<2x16x32xf32, #tpu.memory_space<vmem>>, vector<2x1x16xf32>,
    %128 = vector.extract_strided_slice %124 {offsets = [0, 16], sizes = [2, 16], strides = [1, 1]} : vector<2x32xf32> to vector<2x16xf32>
    %129 = vector.shape_cast %128 : vector<2x16xf32> to vector<2x1x16xf32>
    %c0_74 = arith.constant 0 : index
    %c15 = arith.constant 15 : index
    %c16 = arith.constant 16 : index
    %130 = vector.load %arg11[%c0_74, %c15, %c16] : memref<2x16x32xf32, #tpu.memory_space<vmem>>, vector<2x1x16xf32>
    tpu.vector_store %arg11[%c0_74, %c15, %c16], %129 {strides = array<i32>} : memref<2x16x32xf32, #tpu.memory_space<vmem>>, vector<2x1x16xf32>,
    %131 = vector.extract_strided_slice %95 {offsets = [0, 1, 0], sizes = [2, 1, 128], strides = [1, 1, 1]} : vector<2x16x128xf32> to vector<2x1x128xf32>
    %132 = vector.shape_cast %131 : vector<2x1x128xf32> to vector<2x128xf32>
    %133 = arith.truncf %124 : vector<2x32xf32> to vector<2x32xbf16>
    %cst_75 = arith.constant dense<0.000000e+00> : vector<2x128xf32>
    %134 = tpu.matmul %133, %79, %cst_75 {dimension_numbers = #tpu.dot_dimension_numbers<[1], [0], [0], [1], [0, 0, 1, 1], [], []>} : vector<2x32xbf16>, vector<32x128xbf16>, vector<2x128xf32> -> vector<2x128xf32>
    %135 = arith.addf %132, %134 : vector<2x128xf32>
    %136 = math.tanh %135 : vector<2x128xf32>
    %137 = vector.extract_strided_slice %136 {offsets = [0, 0], sizes = [2, 32], strides = [1, 1]} : vector<2x128xf32> to vector<2x32xf32>
    %cst_76 = arith.constant 5.000000e-01 : f32
    %138 = vector.broadcast %cst_76 : f32 to vector<2x32xf32>
    %139 = arith.mulf %138, %137 : vector<2x32xf32>
    %cst_77 = arith.constant 5.000000e-01 : f32
    %140 = vector.broadcast %cst_77 : f32 to vector<2x32xf32>
    %141 = arith.addf %139, %140 : vector<2x32xf32>
    %142 = vector.extract_strided_slice %136 {offsets = [0, 32], sizes = [2, 32], strides = [1, 1]} : vector<2x128xf32> to vector<2x32xf32>
    %cst_78 = arith.constant 5.000000e-01 : f32
    %143 = vector.broadcast %cst_78 : f32 to vector<2x32xf32>
    %144 = arith.mulf %143, %142 : vector<2x32xf32>
    %cst_79 = arith.constant 5.000000e-01 : f32
    %145 = vector.broadcast %cst_79 : f32 to vector<2x32xf32>
    %146 = arith.addf %144, %145 : vector<2x32xf32>
    %147 = vector.extract_strided_slice %136 {offsets = [0, 64], sizes = [2, 32], strides = [1, 1]} : vector<2x128xf32> to vector<2x32xf32>
    %148 = vector.extract_strided_slice %136 {offsets = [0, 96], sizes = [2, 32], strides = [1, 1]} : vector<2x128xf32> to vector<2x32xf32>
    %cst_80 = arith.constant 5.000000e-01 : f32
    %149 = vector.broadcast %cst_80 : f32 to vector<2x32xf32>
    %150 = arith.mulf %149, %148 : vector<2x32xf32>
    %cst_81 = arith.constant 5.000000e-01 : f32
    %151 = vector.broadcast %cst_81 : f32 to vector<2x32xf32>
    %152 = arith.addf %150, %151 : vector<2x32xf32>
    %153 = arith.mulf %146, %122 : vector<2x32xf32>
    %154 = arith.mulf %141, %147 : vector<2x32xf32>
    %155 = arith.addf %153, %154 : vector<2x32xf32>
    %156 = math.tanh %155 : vector<2x32xf32>
    %157 = arith.mulf %152, %156 : vector<2x32xf32>
    %158 = vector.extract_strided_slice %157 {offsets = [0, 0], sizes = [2, 16], strides = [1, 1]} : vector<2x32xf32> to vector<2x16xf32>
    %159 = vector.shape_cast %158 : vector<2x16xf32> to vector<2x1x16xf32>
    %c0_82 = arith.constant 0 : index
    %c1_83 = arith.constant 1 : index
    %c0_84 = arith.constant 0 : index
    %160 = vector.load %arg11[%c0_82, %c1_83, %c0_84] : memref<2x16x32xf32, #tpu.memory_space<vmem>>, vector<2x1x16xf32>
    tpu.vector_store %arg11[%c0_82, %c1_83, %c0_84], %159 {strides = array<i32>} : memref<2x16x32xf32, #tpu.memory_space<vmem>>, vector<2x1x16xf32>,
    %161 = vector.extract_strided_slice %157 {offsets = [0, 16], sizes = [2, 16], strides = [1, 1]} : vector<2x32xf32> to vector<2x16xf32>
    %162 = vector.shape_cast %161 : vector<2x16xf32> to vector<2x1x16xf32>
    %c0_85 = arith.constant 0 : index
    %c14 = arith.constant 14 : index
    %c16_86 = arith.constant 16 : index
    %163 = vector.load %arg11[%c0_85, %c14, %c16_86] : memref<2x16x32xf32, #tpu.memory_space<vmem>>, vector<2x1x16xf32>
    tpu.vector_store %arg11[%c0_85, %c14, %c16_86], %162 {strides = array<i32>} : memref<2x16x32xf32, #tpu.memory_space<vmem>>, vector<2x1x16xf32>,
    %164 = vector.extract_strided_slice %95 {offsets = [0, 2, 0], sizes = [2, 1, 128], strides = [1, 1, 1]} : vector<2x16x128xf32> to vector<2x1x128xf32>
    %165 = vector.shape_cast %164 : vector<2x1x128xf32> to vector<2x128xf32>
    %166 = arith.truncf %157 : vector<2x32xf32> to vector<2x32xbf16>
    %cst_87 = arith.constant dense<0.000000e+00> : vector<2x128xf32>
    %167 = tpu.matmul %166, %79, %cst_87 {dimension_numbers = #tpu.dot_dimension_numbers<[1], [0], [0], [1], [0, 0, 1, 1], [], []>} : vector<2x32xbf16>, vector<32x128xbf16>, vector<2x128xf32> -> vector<2x128xf32>
    %168 = arith.addf %165, %167 : vector<2x128xf32>
    %169 = math.tanh %168 : vector<2x128xf32>
    %170 = vector.extract_strided_slice %169 {offsets = [0, 0], sizes = [2, 32], strides = [1, 1]} : vector<2x128xf32> to vector<2x32xf32>
    %cst_88 = arith.constant 5.000000e-01 : f32
    %171 = vector.broadcast %cst_88 : f32 to vector<2x32xf32>
    %172 = arith.mulf %171, %170 : vector<2x32xf32>
    %cst_89 = arith.constant 5.000000e-01 : f32
    %173 = vector.broadcast %cst_89 : f32 to vector<2x32xf32>
    %174 = arith.addf %172, %173 : vector<2x32xf32>
    %175 = vector.extract_strided_slice %169 {offsets = [0, 32], sizes = [2, 32], strides = [1, 1]} : vector<2x128xf32> to vector<2x32xf32>
    %cst_90 = arith.constant 5.000000e-01 : f32
    %176 = vector.broadcast %cst_90 : f32 to vector<2x32xf32>
    %177 = arith.mulf %176, %175 : vector<2x32xf32>
    %cst_91 = arith.constant 5.000000e-01 : f32
    %178 = vector.broadcast %cst_91 : f32 to vector<2x32xf32>
    %179 = arith.addf %177, %178 : vector<2x32xf32>
    %180 = vector.extract_strided_slice %169 {offsets = [0, 64], sizes = [2, 32], strides = [1, 1]} : vector<2x128xf32> to vector<2x32xf32>
    %181 = vector.extract_strided_slice %169 {offsets = [0, 96], sizes = [2, 32], strides = [1, 1]} : vector<2x128xf32> to vector<2x32xf32>
    %cst_92 = arith.constant 5.000000e-01 : f32
    %182 = vector.broadcast %cst_92 : f32 to vector<2x32xf32>
    %183 = arith.mulf %182, %181 : vector<2x32xf32>
    %cst_93 = arith.constant 5.000000e-01 : f32
    %184 = vector.broadcast %cst_93 : f32 to vector<2x32xf32>
    %185 = arith.addf %183, %184 : vector<2x32xf32>
    %186 = arith.mulf %179, %155 : vector<2x32xf32>
    %187 = arith.mulf %174, %180 : vector<2x32xf32>
    %188 = arith.addf %186, %187 : vector<2x32xf32>
    %189 = math.tanh %188 : vector<2x32xf32>
    %190 = arith.mulf %185, %189 : vector<2x32xf32>
    %191 = vector.extract_strided_slice %190 {offsets = [0, 0], sizes = [2, 16], strides = [1, 1]} : vector<2x32xf32> to vector<2x16xf32>
    %192 = vector.shape_cast %191 : vector<2x16xf32> to vector<2x1x16xf32>
    %c0_94 = arith.constant 0 : index
    %c2_95 = arith.constant 2 : index
    %c0_96 = arith.constant 0 : index
    %193 = vector.load %arg11[%c0_94, %c2_95, %c0_96] : memref<2x16x32xf32, #tpu.memory_space<vmem>>, vector<2x1x16xf32>
    tpu.vector_store %arg11[%c0_94, %c2_95, %c0_96], %192 {strides = array<i32>} : memref<2x16x32xf32, #tpu.memory_space<vmem>>, vector<2x1x16xf32>,
    %194 = vector.extract_strided_slice %190 {offsets = [0, 16], sizes = [2, 16], strides = [1, 1]} : vector<2x32xf32> to vector<2x16xf32>
    %195 = vector.shape_cast %194 : vector<2x16xf32> to vector<2x1x16xf32>
    %c0_97 = arith.constant 0 : index
    %c13 = arith.constant 13 : index
    %c16_98 = arith.constant 16 : index
    %196 = vector.load %arg11[%c0_97, %c13, %c16_98] : memref<2x16x32xf32, #tpu.memory_space<vmem>>, vector<2x1x16xf32>
    tpu.vector_store %arg11[%c0_97, %c13, %c16_98], %195 {strides = array<i32>} : memref<2x16x32xf32, #tpu.memory_space<vmem>>, vector<2x1x16xf32>,
    %197 = vector.extract_strided_slice %95 {offsets = [0, 3, 0], sizes = [2, 1, 128], strides = [1, 1, 1]} : vector<2x16x128xf32> to vector<2x1x128xf32>
    %198 = vector.shape_cast %197 : vector<2x1x128xf32> to vector<2x128xf32>
    %199 = arith.truncf %190 : vector<2x32xf32> to vector<2x32xbf16>
    %cst_99 = arith.constant dense<0.000000e+00> : vector<2x128xf32>
    %200 = tpu.matmul %199, %79, %cst_99 {dimension_numbers = #tpu.dot_dimension_numbers<[1], [0], [0], [1], [0, 0, 1, 1], [], []>} : vector<2x32xbf16>, vector<32x128xbf16>, vector<2x128xf32> -> vector<2x128xf32>
    %201 = arith.addf %198, %200 : vector<2x128xf32>
    %202 = math.tanh %201 : vector<2x128xf32>
    %203 = vector.extract_strided_slice %202 {offsets = [0, 0], sizes = [2, 32], strides = [1, 1]} : vector<2x128xf32> to vector<2x32xf32>
    %cst_100 = arith.constant 5.000000e-01 : f32
    %204 = vector.broadcast %cst_100 : f32 to vector<2x32xf32>
    %205 = arith.mulf %204, %203 : vector<2x32xf32>
    %cst_101 = arith.constant 5.000000e-01 : f32
    %206 = vector.broadcast %cst_101 : f32 to vector<2x32xf32>
    %207 = arith.addf %205, %206 : vector<2x32xf32>
    %208 = vector.extract_strided_slice %202 {offsets = [0, 32], sizes = [2, 32], strides = [1, 1]} : vector<2x128xf32> to vector<2x32xf32>
    %cst_102 = arith.constant 5.000000e-01 : f32
    %209 = vector.broadcast %cst_102 : f32 to vector<2x32xf32>
    %210 = arith.mulf %209, %208 : vector<2x32xf32>
    %cst_103 = arith.constant 5.000000e-01 : f32
    %211 = vector.broadcast %cst_103 : f32 to vector<2x32xf32>
    %212 = arith.addf %210, %211 : vector<2x32xf32>
    %213 = vector.extract_strided_slice %202 {offsets = [0, 64], sizes = [2, 32], strides = [1, 1]} : vector<2x128xf32> to vector<2x32xf32>
    %214 = vector.extract_strided_slice %202 {offsets = [0, 96], sizes = [2, 32], strides = [1, 1]} : vector<2x128xf32> to vector<2x32xf32>
    %cst_104 = arith.constant 5.000000e-01 : f32
    %215 = vector.broadcast %cst_104 : f32 to vector<2x32xf32>
    %216 = arith.mulf %215, %214 : vector<2x32xf32>
    %cst_105 = arith.constant 5.000000e-01 : f32
    %217 = vector.broadcast %cst_105 : f32 to vector<2x32xf32>
    %218 = arith.addf %216, %217 : vector<2x32xf32>
    %219 = arith.mulf %212, %188 : vector<2x32xf32>
    %220 = arith.mulf %207, %213 : vector<2x32xf32>
    %221 = arith.addf %219, %220 : vector<2x32xf32>
    %222 = math.tanh %221 : vector<2x32xf32>
    %223 = arith.mulf %218, %222 : vector<2x32xf32>
    %224 = vector.extract_strided_slice %223 {offsets = [0, 0], sizes = [2, 16], strides = [1, 1]} : vector<2x32xf32> to vector<2x16xf32>
    %225 = vector.shape_cast %224 : vector<2x16xf32> to vector<2x1x16xf32>
    %c0_106 = arith.constant 0 : index
    %c3_107 = arith.constant 3 : index
    %c0_108 = arith.constant 0 : index
    %226 = vector.load %arg11[%c0_106, %c3_107, %c0_108] : memref<2x16x32xf32, #tpu.memory_space<vmem>>, vector<2x1x16xf32>
    tpu.vector_store %arg11[%c0_106, %c3_107, %c0_108], %225 {strides = array<i32>} : memref<2x16x32xf32, #tpu.memory_space<vmem>>, vector<2x1x16xf32>,
    %227 = vector.extract_strided_slice %223 {offsets = [0, 16], sizes = [2, 16], strides = [1, 1]} : vector<2x32xf32> to vector<2x16xf32>
    %228 = vector.shape_cast %227 : vector<2x16xf32> to vector<2x1x16xf32>
    %c0_109 = arith.constant 0 : index
    %c12 = arith.constant 12 : index
    %c16_110 = arith.constant 16 : index
    %229 = vector.load %arg11[%c0_109, %c12, %c16_110] : memref<2x16x32xf32, #tpu.memory_space<vmem>>, vector<2x1x16xf32>
    tpu.vector_store %arg11[%c0_109, %c12, %c16_110], %228 {strides = array<i32>} : memref<2x16x32xf32, #tpu.memory_space<vmem>>, vector<2x1x16xf32>,
    %230 = vector.extract_strided_slice %95 {offsets = [0, 4, 0], sizes = [2, 1, 128], strides = [1, 1, 1]} : vector<2x16x128xf32> to vector<2x1x128xf32>
    %231 = vector.shape_cast %230 : vector<2x1x128xf32> to vector<2x128xf32>
    %232 = arith.truncf %223 : vector<2x32xf32> to vector<2x32xbf16>
    %cst_111 = arith.constant dense<0.000000e+00> : vector<2x128xf32>
    %233 = tpu.matmul %232, %79, %cst_111 {dimension_numbers = #tpu.dot_dimension_numbers<[1], [0], [0], [1], [0, 0, 1, 1], [], []>} : vector<2x32xbf16>, vector<32x128xbf16>, vector<2x128xf32> -> vector<2x128xf32>
    %234 = arith.addf %231, %233 : vector<2x128xf32>
    %235 = math.tanh %234 : vector<2x128xf32>
    %236 = vector.extract_strided_slice %235 {offsets = [0, 0], sizes = [2, 32], strides = [1, 1]} : vector<2x128xf32> to vector<2x32xf32>
    %cst_112 = arith.constant 5.000000e-01 : f32
    %237 = vector.broadcast %cst_112 : f32 to vector<2x32xf32>
    %238 = arith.mulf %237, %236 : vector<2x32xf32>
    %cst_113 = arith.constant 5.000000e-01 : f32
    %239 = vector.broadcast %cst_113 : f32 to vector<2x32xf32>
    %240 = arith.addf %238, %239 : vector<2x32xf32>
    %241 = vector.extract_strided_slice %235 {offsets = [0, 32], sizes = [2, 32], strides = [1, 1]} : vector<2x128xf32> to vector<2x32xf32>
    %cst_114 = arith.constant 5.000000e-01 : f32
    %242 = vector.broadcast %cst_114 : f32 to vector<2x32xf32>
    %243 = arith.mulf %242, %241 : vector<2x32xf32>
    %cst_115 = arith.constant 5.000000e-01 : f32
    %244 = vector.broadcast %cst_115 : f32 to vector<2x32xf32>
    %245 = arith.addf %243, %244 : vector<2x32xf32>
    %246 = vector.extract_strided_slice %235 {offsets = [0, 64], sizes = [2, 32], strides = [1, 1]} : vector<2x128xf32> to vector<2x32xf32>
    %247 = vector.extract_strided_slice %235 {offsets = [0, 96], sizes = [2, 32], strides = [1, 1]} : vector<2x128xf32> to vector<2x32xf32>
    %cst_116 = arith.constant 5.000000e-01 : f32
    %248 = vector.broadcast %cst_116 : f32 to vector<2x32xf32>
    %249 = arith.mulf %248, %247 : vector<2x32xf32>
    %cst_117 = arith.constant 5.000000e-01 : f32
    %250 = vector.broadcast %cst_117 : f32 to vector<2x32xf32>
    %251 = arith.addf %249, %250 : vector<2x32xf32>
    %252 = arith.mulf %245, %221 : vector<2x32xf32>
    %253 = arith.mulf %240, %246 : vector<2x32xf32>
    %254 = arith.addf %252, %253 : vector<2x32xf32>
    %255 = math.tanh %254 : vector<2x32xf32>
    %256 = arith.mulf %251, %255 : vector<2x32xf32>
    %257 = vector.extract_strided_slice %256 {offsets = [0, 0], sizes = [2, 16], strides = [1, 1]} : vector<2x32xf32> to vector<2x16xf32>
    %258 = vector.shape_cast %257 : vector<2x16xf32> to vector<2x1x16xf32>
    %c0_118 = arith.constant 0 : index
    %c4_119 = arith.constant 4 : index
    %c0_120 = arith.constant 0 : index
    %259 = vector.load %arg11[%c0_118, %c4_119, %c0_120] : memref<2x16x32xf32, #tpu.memory_space<vmem>>, vector<2x1x16xf32>
    tpu.vector_store %arg11[%c0_118, %c4_119, %c0_120], %258 {strides = array<i32>} : memref<2x16x32xf32, #tpu.memory_space<vmem>>, vector<2x1x16xf32>,
    %260 = vector.extract_strided_slice %256 {offsets = [0, 16], sizes = [2, 16], strides = [1, 1]} : vector<2x32xf32> to vector<2x16xf32>
    %261 = vector.shape_cast %260 : vector<2x16xf32> to vector<2x1x16xf32>
    %c0_121 = arith.constant 0 : index
    %c11 = arith.constant 11 : index
    %c16_122 = arith.constant 16 : index
    %262 = vector.load %arg11[%c0_121, %c11, %c16_122] : memref<2x16x32xf32, #tpu.memory_space<vmem>>, vector<2x1x16xf32>
    tpu.vector_store %arg11[%c0_121, %c11, %c16_122], %261 {strides = array<i32>} : memref<2x16x32xf32, #tpu.memory_space<vmem>>, vector<2x1x16xf32>,
    %263 = vector.extract_strided_slice %95 {offsets = [0, 5, 0], sizes = [2, 1, 128], strides = [1, 1, 1]} : vector<2x16x128xf32> to vector<2x1x128xf32>
    %264 = vector.shape_cast %263 : vector<2x1x128xf32> to vector<2x128xf32>
    %265 = arith.truncf %256 : vector<2x32xf32> to vector<2x32xbf16>
    %cst_123 = arith.constant dense<0.000000e+00> : vector<2x128xf32>
    %266 = tpu.matmul %265, %79, %cst_123 {dimension_numbers = #tpu.dot_dimension_numbers<[1], [0], [0], [1], [0, 0, 1, 1], [], []>} : vector<2x32xbf16>, vector<32x128xbf16>, vector<2x128xf32> -> vector<2x128xf32>
    %267 = arith.addf %264, %266 : vector<2x128xf32>
    %268 = math.tanh %267 : vector<2x128xf32>
    %269 = vector.extract_strided_slice %268 {offsets = [0, 0], sizes = [2, 32], strides = [1, 1]} : vector<2x128xf32> to vector<2x32xf32>
    %cst_124 = arith.constant 5.000000e-01 : f32
    %270 = vector.broadcast %cst_124 : f32 to vector<2x32xf32>
    %271 = arith.mulf %270, %269 : vector<2x32xf32>
    %cst_125 = arith.constant 5.000000e-01 : f32
    %272 = vector.broadcast %cst_125 : f32 to vector<2x32xf32>
    %273 = arith.addf %271, %272 : vector<2x32xf32>
    %274 = vector.extract_strided_slice %268 {offsets = [0, 32], sizes = [2, 32], strides = [1, 1]} : vector<2x128xf32> to vector<2x32xf32>
    %cst_126 = arith.constant 5.000000e-01 : f32
    %275 = vector.broadcast %cst_126 : f32 to vector<2x32xf32>
    %276 = arith.mulf %275, %274 : vector<2x32xf32>
    %cst_127 = arith.constant 5.000000e-01 : f32
    %277 = vector.broadcast %cst_127 : f32 to vector<2x32xf32>
    %278 = arith.addf %276, %277 : vector<2x32xf32>
    %279 = vector.extract_strided_slice %268 {offsets = [0, 64], sizes = [2, 32], strides = [1, 1]} : vector<2x128xf32> to vector<2x32xf32>
    %280 = vector.extract_strided_slice %268 {offsets = [0, 96], sizes = [2, 32], strides = [1, 1]} : vector<2x128xf32> to vector<2x32xf32>
    %cst_128 = arith.constant 5.000000e-01 : f32
    %281 = vector.broadcast %cst_128 : f32 to vector<2x32xf32>
    %282 = arith.mulf %281, %280 : vector<2x32xf32>
    %cst_129 = arith.constant 5.000000e-01 : f32
    %283 = vector.broadcast %cst_129 : f32 to vector<2x32xf32>
    %284 = arith.addf %282, %283 : vector<2x32xf32>
    %285 = arith.mulf %278, %254 : vector<2x32xf32>
    %286 = arith.mulf %273, %279 : vector<2x32xf32>
    %287 = arith.addf %285, %286 : vector<2x32xf32>
    %288 = math.tanh %287 : vector<2x32xf32>
    %289 = arith.mulf %284, %288 : vector<2x32xf32>
    %290 = vector.extract_strided_slice %289 {offsets = [0, 0], sizes = [2, 16], strides = [1, 1]} : vector<2x32xf32> to vector<2x16xf32>
    %291 = vector.shape_cast %290 : vector<2x16xf32> to vector<2x1x16xf32>
    %c0_130 = arith.constant 0 : index
    %c5 = arith.constant 5 : index
    %c0_131 = arith.constant 0 : index
    %292 = vector.load %arg11[%c0_130, %c5, %c0_131] : memref<2x16x32xf32, #tpu.memory_space<vmem>>, vector<2x1x16xf32>
    tpu.vector_store %arg11[%c0_130, %c5, %c0_131], %291 {strides = array<i32>} : memref<2x16x32xf32, #tpu.memory_space<vmem>>, vector<2x1x16xf32>,
    %293 = vector.extract_strided_slice %289 {offsets = [0, 16], sizes = [2, 16], strides = [1, 1]} : vector<2x32xf32> to vector<2x16xf32>
    %294 = vector.shape_cast %293 : vector<2x16xf32> to vector<2x1x16xf32>
    %c0_132 = arith.constant 0 : index
    %c10 = arith.constant 10 : index
    %c16_133 = arith.constant 16 : index
    %295 = vector.load %arg11[%c0_132, %c10, %c16_133] : memref<2x16x32xf32, #tpu.memory_space<vmem>>, vector<2x1x16xf32>
    tpu.vector_store %arg11[%c0_132, %c10, %c16_133], %294 {strides = array<i32>} : memref<2x16x32xf32, #tpu.memory_space<vmem>>, vector<2x1x16xf32>,
    %296 = vector.extract_strided_slice %95 {offsets = [0, 6, 0], sizes = [2, 1, 128], strides = [1, 1, 1]} : vector<2x16x128xf32> to vector<2x1x128xf32>
    %297 = vector.shape_cast %296 : vector<2x1x128xf32> to vector<2x128xf32>
    %298 = arith.truncf %289 : vector<2x32xf32> to vector<2x32xbf16>
    %cst_134 = arith.constant dense<0.000000e+00> : vector<2x128xf32>
    %299 = tpu.matmul %298, %79, %cst_134 {dimension_numbers = #tpu.dot_dimension_numbers<[1], [0], [0], [1], [0, 0, 1, 1], [], []>} : vector<2x32xbf16>, vector<32x128xbf16>, vector<2x128xf32> -> vector<2x128xf32>
    %300 = arith.addf %297, %299 : vector<2x128xf32>
    %301 = math.tanh %300 : vector<2x128xf32>
    %302 = vector.extract_strided_slice %301 {offsets = [0, 0], sizes = [2, 32], strides = [1, 1]} : vector<2x128xf32> to vector<2x32xf32>
    %cst_135 = arith.constant 5.000000e-01 : f32
    %303 = vector.broadcast %cst_135 : f32 to vector<2x32xf32>
    %304 = arith.mulf %303, %302 : vector<2x32xf32>
    %cst_136 = arith.constant 5.000000e-01 : f32
    %305 = vector.broadcast %cst_136 : f32 to vector<2x32xf32>
    %306 = arith.addf %304, %305 : vector<2x32xf32>
    %307 = vector.extract_strided_slice %301 {offsets = [0, 32], sizes = [2, 32], strides = [1, 1]} : vector<2x128xf32> to vector<2x32xf32>
    %cst_137 = arith.constant 5.000000e-01 : f32
    %308 = vector.broadcast %cst_137 : f32 to vector<2x32xf32>
    %309 = arith.mulf %308, %307 : vector<2x32xf32>
    %cst_138 = arith.constant 5.000000e-01 : f32
    %310 = vector.broadcast %cst_138 : f32 to vector<2x32xf32>
    %311 = arith.addf %309, %310 : vector<2x32xf32>
    %312 = vector.extract_strided_slice %301 {offsets = [0, 64], sizes = [2, 32], strides = [1, 1]} : vector<2x128xf32> to vector<2x32xf32>
    %313 = vector.extract_strided_slice %301 {offsets = [0, 96], sizes = [2, 32], strides = [1, 1]} : vector<2x128xf32> to vector<2x32xf32>
    %cst_139 = arith.constant 5.000000e-01 : f32
    %314 = vector.broadcast %cst_139 : f32 to vector<2x32xf32>
    %315 = arith.mulf %314, %313 : vector<2x32xf32>
    %cst_140 = arith.constant 5.000000e-01 : f32
    %316 = vector.broadcast %cst_140 : f32 to vector<2x32xf32>
    %317 = arith.addf %315, %316 : vector<2x32xf32>
    %318 = arith.mulf %311, %287 : vector<2x32xf32>
    %319 = arith.mulf %306, %312 : vector<2x32xf32>
    %320 = arith.addf %318, %319 : vector<2x32xf32>
    %321 = math.tanh %320 : vector<2x32xf32>
    %322 = arith.mulf %317, %321 : vector<2x32xf32>
    %323 = vector.extract_strided_slice %322 {offsets = [0, 0], sizes = [2, 16], strides = [1, 1]} : vector<2x32xf32> to vector<2x16xf32>
    %324 = vector.shape_cast %323 : vector<2x16xf32> to vector<2x1x16xf32>
    %c0_141 = arith.constant 0 : index
    %c6 = arith.constant 6 : index
    %c0_142 = arith.constant 0 : index
    %325 = vector.load %arg11[%c0_141, %c6, %c0_142] : memref<2x16x32xf32, #tpu.memory_space<vmem>>, vector<2x1x16xf32>
    tpu.vector_store %arg11[%c0_141, %c6, %c0_142], %324 {strides = array<i32>} : memref<2x16x32xf32, #tpu.memory_space<vmem>>, vector<2x1x16xf32>,
    %326 = vector.extract_strided_slice %322 {offsets = [0, 16], sizes = [2, 16], strides = [1, 1]} : vector<2x32xf32> to vector<2x16xf32>
    %327 = vector.shape_cast %326 : vector<2x16xf32> to vector<2x1x16xf32>
    %c0_143 = arith.constant 0 : index
    %c9 = arith.constant 9 : index
    %c16_144 = arith.constant 16 : index
    %328 = vector.load %arg11[%c0_143, %c9, %c16_144] : memref<2x16x32xf32, #tpu.memory_space<vmem>>, vector<2x1x16xf32>
    tpu.vector_store %arg11[%c0_143, %c9, %c16_144], %327 {strides = array<i32>} : memref<2x16x32xf32, #tpu.memory_space<vmem>>, vector<2x1x16xf32>,
    %329 = vector.extract_strided_slice %95 {offsets = [0, 7, 0], sizes = [2, 1, 128], strides = [1, 1, 1]} : vector<2x16x128xf32> to vector<2x1x128xf32>
    %330 = vector.shape_cast %329 : vector<2x1x128xf32> to vector<2x128xf32>
    %331 = arith.truncf %322 : vector<2x32xf32> to vector<2x32xbf16>
    %cst_145 = arith.constant dense<0.000000e+00> : vector<2x128xf32>
    %332 = tpu.matmul %331, %79, %cst_145 {dimension_numbers = #tpu.dot_dimension_numbers<[1], [0], [0], [1], [0, 0, 1, 1], [], []>} : vector<2x32xbf16>, vector<32x128xbf16>, vector<2x128xf32> -> vector<2x128xf32>
    %333 = arith.addf %330, %332 : vector<2x128xf32>
    %334 = math.tanh %333 : vector<2x128xf32>
    %335 = vector.extract_strided_slice %334 {offsets = [0, 0], sizes = [2, 32], strides = [1, 1]} : vector<2x128xf32> to vector<2x32xf32>
    %cst_146 = arith.constant 5.000000e-01 : f32
    %336 = vector.broadcast %cst_146 : f32 to vector<2x32xf32>
    %337 = arith.mulf %336, %335 : vector<2x32xf32>
    %cst_147 = arith.constant 5.000000e-01 : f32
    %338 = vector.broadcast %cst_147 : f32 to vector<2x32xf32>
    %339 = arith.addf %337, %338 : vector<2x32xf32>
    %340 = vector.extract_strided_slice %334 {offsets = [0, 32], sizes = [2, 32], strides = [1, 1]} : vector<2x128xf32> to vector<2x32xf32>
    %cst_148 = arith.constant 5.000000e-01 : f32
    %341 = vector.broadcast %cst_148 : f32 to vector<2x32xf32>
    %342 = arith.mulf %341, %340 : vector<2x32xf32>
    %cst_149 = arith.constant 5.000000e-01 : f32
    %343 = vector.broadcast %cst_149 : f32 to vector<2x32xf32>
    %344 = arith.addf %342, %343 : vector<2x32xf32>
    %345 = vector.extract_strided_slice %334 {offsets = [0, 64], sizes = [2, 32], strides = [1, 1]} : vector<2x128xf32> to vector<2x32xf32>
    %346 = vector.extract_strided_slice %334 {offsets = [0, 96], sizes = [2, 32], strides = [1, 1]} : vector<2x128xf32> to vector<2x32xf32>
    %cst_150 = arith.constant 5.000000e-01 : f32
    %347 = vector.broadcast %cst_150 : f32 to vector<2x32xf32>
    %348 = arith.mulf %347, %346 : vector<2x32xf32>
    %cst_151 = arith.constant 5.000000e-01 : f32
    %349 = vector.broadcast %cst_151 : f32 to vector<2x32xf32>
    %350 = arith.addf %348, %349 : vector<2x32xf32>
    %351 = arith.mulf %344, %320 : vector<2x32xf32>
    %352 = arith.mulf %339, %345 : vector<2x32xf32>
    %353 = arith.addf %351, %352 : vector<2x32xf32>
    %354 = math.tanh %353 : vector<2x32xf32>
    %355 = arith.mulf %350, %354 : vector<2x32xf32>
    %356 = vector.extract_strided_slice %355 {offsets = [0, 0], sizes = [2, 16], strides = [1, 1]} : vector<2x32xf32> to vector<2x16xf32>
    %357 = vector.shape_cast %356 : vector<2x16xf32> to vector<2x1x16xf32>
    %c0_152 = arith.constant 0 : index
    %c7 = arith.constant 7 : index
    %c0_153 = arith.constant 0 : index
    %358 = vector.load %arg11[%c0_152, %c7, %c0_153] : memref<2x16x32xf32, #tpu.memory_space<vmem>>, vector<2x1x16xf32>
    tpu.vector_store %arg11[%c0_152, %c7, %c0_153], %357 {strides = array<i32>} : memref<2x16x32xf32, #tpu.memory_space<vmem>>, vector<2x1x16xf32>,
    %359 = vector.extract_strided_slice %355 {offsets = [0, 16], sizes = [2, 16], strides = [1, 1]} : vector<2x32xf32> to vector<2x16xf32>
    %360 = vector.shape_cast %359 : vector<2x16xf32> to vector<2x1x16xf32>
    %c0_154 = arith.constant 0 : index
    %c8 = arith.constant 8 : index
    %c16_155 = arith.constant 16 : index
    %361 = vector.load %arg11[%c0_154, %c8, %c16_155] : memref<2x16x32xf32, #tpu.memory_space<vmem>>, vector<2x1x16xf32>
    tpu.vector_store %arg11[%c0_154, %c8, %c16_155], %360 {strides = array<i32>} : memref<2x16x32xf32, #tpu.memory_space<vmem>>, vector<2x1x16xf32>,
    %362 = vector.extract_strided_slice %95 {offsets = [0, 8, 0], sizes = [2, 1, 128], strides = [1, 1, 1]} : vector<2x16x128xf32> to vector<2x1x128xf32>
    %363 = vector.shape_cast %362 : vector<2x1x128xf32> to vector<2x128xf32>
    %364 = arith.truncf %355 : vector<2x32xf32> to vector<2x32xbf16>
    %cst_156 = arith.constant dense<0.000000e+00> : vector<2x128xf32>
    %365 = tpu.matmul %364, %79, %cst_156 {dimension_numbers = #tpu.dot_dimension_numbers<[1], [0], [0], [1], [0, 0, 1, 1], [], []>} : vector<2x32xbf16>, vector<32x128xbf16>, vector<2x128xf32> -> vector<2x128xf32>
    %366 = arith.addf %363, %365 : vector<2x128xf32>
    %367 = math.tanh %366 : vector<2x128xf32>
    %368 = vector.extract_strided_slice %367 {offsets = [0, 0], sizes = [2, 32], strides = [1, 1]} : vector<2x128xf32> to vector<2x32xf32>
    %cst_157 = arith.constant 5.000000e-01 : f32
    %369 = vector.broadcast %cst_157 : f32 to vector<2x32xf32>
    %370 = arith.mulf %369, %368 : vector<2x32xf32>
    %cst_158 = arith.constant 5.000000e-01 : f32
    %371 = vector.broadcast %cst_158 : f32 to vector<2x32xf32>
    %372 = arith.addf %370, %371 : vector<2x32xf32>
    %373 = vector.extract_strided_slice %367 {offsets = [0, 32], sizes = [2, 32], strides = [1, 1]} : vector<2x128xf32> to vector<2x32xf32>
    %cst_159 = arith.constant 5.000000e-01 : f32
    %374 = vector.broadcast %cst_159 : f32 to vector<2x32xf32>
    %375 = arith.mulf %374, %373 : vector<2x32xf32>
    %cst_160 = arith.constant 5.000000e-01 : f32
    %376 = vector.broadcast %cst_160 : f32 to vector<2x32xf32>
    %377 = arith.addf %375, %376 : vector<2x32xf32>
    %378 = vector.extract_strided_slice %367 {offsets = [0, 64], sizes = [2, 32], strides = [1, 1]} : vector<2x128xf32> to vector<2x32xf32>
    %379 = vector.extract_strided_slice %367 {offsets = [0, 96], sizes = [2, 32], strides = [1, 1]} : vector<2x128xf32> to vector<2x32xf32>
    %cst_161 = arith.constant 5.000000e-01 : f32
    %380 = vector.broadcast %cst_161 : f32 to vector<2x32xf32>
    %381 = arith.mulf %380, %379 : vector<2x32xf32>
    %cst_162 = arith.constant 5.000000e-01 : f32
    %382 = vector.broadcast %cst_162 : f32 to vector<2x32xf32>
    %383 = arith.addf %381, %382 : vector<2x32xf32>
    %384 = arith.mulf %377, %353 : vector<2x32xf32>
    %385 = arith.mulf %372, %378 : vector<2x32xf32>
    %386 = arith.addf %384, %385 : vector<2x32xf32>
    %387 = math.tanh %386 : vector<2x32xf32>
    %388 = arith.mulf %383, %387 : vector<2x32xf32>
    %389 = vector.extract_strided_slice %388 {offsets = [0, 0], sizes = [2, 16], strides = [1, 1]} : vector<2x32xf32> to vector<2x16xf32>
    %390 = vector.shape_cast %389 : vector<2x16xf32> to vector<2x1x16xf32>
    %c0_163 = arith.constant 0 : index
    %c8_164 = arith.constant 8 : index
    %c0_165 = arith.constant 0 : index
    %391 = vector.load %arg11[%c0_163, %c8_164, %c0_165] : memref<2x16x32xf32, #tpu.memory_space<vmem>>, vector<2x1x16xf32>
    tpu.vector_store %arg11[%c0_163, %c8_164, %c0_165], %390 {strides = array<i32>} : memref<2x16x32xf32, #tpu.memory_space<vmem>>, vector<2x1x16xf32>,
    %392 = vector.extract_strided_slice %388 {offsets = [0, 16], sizes = [2, 16], strides = [1, 1]} : vector<2x32xf32> to vector<2x16xf32>
    %393 = vector.shape_cast %392 : vector<2x16xf32> to vector<2x1x16xf32>
    %c0_166 = arith.constant 0 : index
    %c7_167 = arith.constant 7 : index
    %c16_168 = arith.constant 16 : index
    %394 = vector.load %arg11[%c0_166, %c7_167, %c16_168] : memref<2x16x32xf32, #tpu.memory_space<vmem>>, vector<2x1x16xf32>
    tpu.vector_store %arg11[%c0_166, %c7_167, %c16_168], %393 {strides = array<i32>} : memref<2x16x32xf32, #tpu.memory_space<vmem>>, vector<2x1x16xf32>,
    %395 = vector.extract_strided_slice %95 {offsets = [0, 9, 0], sizes = [2, 1, 128], strides = [1, 1, 1]} : vector<2x16x128xf32> to vector<2x1x128xf32>
    %396 = vector.shape_cast %395 : vector<2x1x128xf32> to vector<2x128xf32>
    %397 = arith.truncf %388 : vector<2x32xf32> to vector<2x32xbf16>
    %cst_169 = arith.constant dense<0.000000e+00> : vector<2x128xf32>
    %398 = tpu.matmul %397, %79, %cst_169 {dimension_numbers = #tpu.dot_dimension_numbers<[1], [0], [0], [1], [0, 0, 1, 1], [], []>} : vector<2x32xbf16>, vector<32x128xbf16>, vector<2x128xf32> -> vector<2x128xf32>
    %399 = arith.addf %396, %398 : vector<2x128xf32>
    %400 = math.tanh %399 : vector<2x128xf32>
    %401 = vector.extract_strided_slice %400 {offsets = [0, 0], sizes = [2, 32], strides = [1, 1]} : vector<2x128xf32> to vector<2x32xf32>
    %cst_170 = arith.constant 5.000000e-01 : f32
    %402 = vector.broadcast %cst_170 : f32 to vector<2x32xf32>
    %403 = arith.mulf %402, %401 : vector<2x32xf32>
    %cst_171 = arith.constant 5.000000e-01 : f32
    %404 = vector.broadcast %cst_171 : f32 to vector<2x32xf32>
    %405 = arith.addf %403, %404 : vector<2x32xf32>
    %406 = vector.extract_strided_slice %400 {offsets = [0, 32], sizes = [2, 32], strides = [1, 1]} : vector<2x128xf32> to vector<2x32xf32>
    %cst_172 = arith.constant 5.000000e-01 : f32
    %407 = vector.broadcast %cst_172 : f32 to vector<2x32xf32>
    %408 = arith.mulf %407, %406 : vector<2x32xf32>
    %cst_173 = arith.constant 5.000000e-01 : f32
    %409 = vector.broadcast %cst_173 : f32 to vector<2x32xf32>
    %410 = arith.addf %408, %409 : vector<2x32xf32>
    %411 = vector.extract_strided_slice %400 {offsets = [0, 64], sizes = [2, 32], strides = [1, 1]} : vector<2x128xf32> to vector<2x32xf32>
    %412 = vector.extract_strided_slice %400 {offsets = [0, 96], sizes = [2, 32], strides = [1, 1]} : vector<2x128xf32> to vector<2x32xf32>
    %cst_174 = arith.constant 5.000000e-01 : f32
    %413 = vector.broadcast %cst_174 : f32 to vector<2x32xf32>
    %414 = arith.mulf %413, %412 : vector<2x32xf32>
    %cst_175 = arith.constant 5.000000e-01 : f32
    %415 = vector.broadcast %cst_175 : f32 to vector<2x32xf32>
    %416 = arith.addf %414, %415 : vector<2x32xf32>
    %417 = arith.mulf %410, %386 : vector<2x32xf32>
    %418 = arith.mulf %405, %411 : vector<2x32xf32>
    %419 = arith.addf %417, %418 : vector<2x32xf32>
    %420 = math.tanh %419 : vector<2x32xf32>
    %421 = arith.mulf %416, %420 : vector<2x32xf32>
    %422 = vector.extract_strided_slice %421 {offsets = [0, 0], sizes = [2, 16], strides = [1, 1]} : vector<2x32xf32> to vector<2x16xf32>
    %423 = vector.shape_cast %422 : vector<2x16xf32> to vector<2x1x16xf32>
    %c0_176 = arith.constant 0 : index
    %c9_177 = arith.constant 9 : index
    %c0_178 = arith.constant 0 : index
    %424 = vector.load %arg11[%c0_176, %c9_177, %c0_178] : memref<2x16x32xf32, #tpu.memory_space<vmem>>, vector<2x1x16xf32>
    tpu.vector_store %arg11[%c0_176, %c9_177, %c0_178], %423 {strides = array<i32>} : memref<2x16x32xf32, #tpu.memory_space<vmem>>, vector<2x1x16xf32>,
    %425 = vector.extract_strided_slice %421 {offsets = [0, 16], sizes = [2, 16], strides = [1, 1]} : vector<2x32xf32> to vector<2x16xf32>
    %426 = vector.shape_cast %425 : vector<2x16xf32> to vector<2x1x16xf32>
    %c0_179 = arith.constant 0 : index
    %c6_180 = arith.constant 6 : index
    %c16_181 = arith.constant 16 : index
    %427 = vector.load %arg11[%c0_179, %c6_180, %c16_181] : memref<2x16x32xf32, #tpu.memory_space<vmem>>, vector<2x1x16xf32>
    tpu.vector_store %arg11[%c0_179, %c6_180, %c16_181], %426 {strides = array<i32>} : memref<2x16x32xf32, #tpu.memory_space<vmem>>, vector<2x1x16xf32>,
    %428 = vector.extract_strided_slice %95 {offsets = [0, 10, 0], sizes = [2, 1, 128], strides = [1, 1, 1]} : vector<2x16x128xf32> to vector<2x1x128xf32>
    %429 = vector.shape_cast %428 : vector<2x1x128xf32> to vector<2x128xf32>
    %430 = arith.truncf %421 : vector<2x32xf32> to vector<2x32xbf16>
    %cst_182 = arith.constant dense<0.000000e+00> : vector<2x128xf32>
    %431 = tpu.matmul %430, %79, %cst_182 {dimension_numbers = #tpu.dot_dimension_numbers<[1], [0], [0], [1], [0, 0, 1, 1], [], []>} : vector<2x32xbf16>, vector<32x128xbf16>, vector<2x128xf32> -> vector<2x128xf32>
    %432 = arith.addf %429, %431 : vector<2x128xf32>
    %433 = math.tanh %432 : vector<2x128xf32>
    %434 = vector.extract_strided_slice %433 {offsets = [0, 0], sizes = [2, 32], strides = [1, 1]} : vector<2x128xf32> to vector<2x32xf32>
    %cst_183 = arith.constant 5.000000e-01 : f32
    %435 = vector.broadcast %cst_183 : f32 to vector<2x32xf32>
    %436 = arith.mulf %435, %434 : vector<2x32xf32>
    %cst_184 = arith.constant 5.000000e-01 : f32
    %437 = vector.broadcast %cst_184 : f32 to vector<2x32xf32>
    %438 = arith.addf %436, %437 : vector<2x32xf32>
    %439 = vector.extract_strided_slice %433 {offsets = [0, 32], sizes = [2, 32], strides = [1, 1]} : vector<2x128xf32> to vector<2x32xf32>
    %cst_185 = arith.constant 5.000000e-01 : f32
    %440 = vector.broadcast %cst_185 : f32 to vector<2x32xf32>
    %441 = arith.mulf %440, %439 : vector<2x32xf32>
    %cst_186 = arith.constant 5.000000e-01 : f32
    %442 = vector.broadcast %cst_186 : f32 to vector<2x32xf32>
    %443 = arith.addf %441, %442 : vector<2x32xf32>
    %444 = vector.extract_strided_slice %433 {offsets = [0, 64], sizes = [2, 32], strides = [1, 1]} : vector<2x128xf32> to vector<2x32xf32>
    %445 = vector.extract_strided_slice %433 {offsets = [0, 96], sizes = [2, 32], strides = [1, 1]} : vector<2x128xf32> to vector<2x32xf32>
    %cst_187 = arith.constant 5.000000e-01 : f32
    %446 = vector.broadcast %cst_187 : f32 to vector<2x32xf32>
    %447 = arith.mulf %446, %445 : vector<2x32xf32>
    %cst_188 = arith.constant 5.000000e-01 : f32
    %448 = vector.broadcast %cst_188 : f32 to vector<2x32xf32>
    %449 = arith.addf %447, %448 : vector<2x32xf32>
    %450 = arith.mulf %443, %419 : vector<2x32xf32>
    %451 = arith.mulf %438, %444 : vector<2x32xf32>
    %452 = arith.addf %450, %451 : vector<2x32xf32>
    %453 = math.tanh %452 : vector<2x32xf32>
    %454 = arith.mulf %449, %453 : vector<2x32xf32>
    %455 = vector.extract_strided_slice %454 {offsets = [0, 0], sizes = [2, 16], strides = [1, 1]} : vector<2x32xf32> to vector<2x16xf32>
    %456 = vector.shape_cast %455 : vector<2x16xf32> to vector<2x1x16xf32>
    %c0_189 = arith.constant 0 : index
    %c10_190 = arith.constant 10 : index
    %c0_191 = arith.constant 0 : index
    %457 = vector.load %arg11[%c0_189, %c10_190, %c0_191] : memref<2x16x32xf32, #tpu.memory_space<vmem>>, vector<2x1x16xf32>
    tpu.vector_store %arg11[%c0_189, %c10_190, %c0_191], %456 {strides = array<i32>} : memref<2x16x32xf32, #tpu.memory_space<vmem>>, vector<2x1x16xf32>,
    %458 = vector.extract_strided_slice %454 {offsets = [0, 16], sizes = [2, 16], strides = [1, 1]} : vector<2x32xf32> to vector<2x16xf32>
    %459 = vector.shape_cast %458 : vector<2x16xf32> to vector<2x1x16xf32>
    %c0_192 = arith.constant 0 : index
    %c5_193 = arith.constant 5 : index
    %c16_194 = arith.constant 16 : index
    %460 = vector.load %arg11[%c0_192, %c5_193, %c16_194] : memref<2x16x32xf32, #tpu.memory_space<vmem>>, vector<2x1x16xf32>
    tpu.vector_store %arg11[%c0_192, %c5_193, %c16_194], %459 {strides = array<i32>} : memref<2x16x32xf32, #tpu.memory_space<vmem>>, vector<2x1x16xf32>,
    %461 = vector.extract_strided_slice %95 {offsets = [0, 11, 0], sizes = [2, 1, 128], strides = [1, 1, 1]} : vector<2x16x128xf32> to vector<2x1x128xf32>
    %462 = vector.shape_cast %461 : vector<2x1x128xf32> to vector<2x128xf32>
    %463 = arith.truncf %454 : vector<2x32xf32> to vector<2x32xbf16>
    %cst_195 = arith.constant dense<0.000000e+00> : vector<2x128xf32>
    %464 = tpu.matmul %463, %79, %cst_195 {dimension_numbers = #tpu.dot_dimension_numbers<[1], [0], [0], [1], [0, 0, 1, 1], [], []>} : vector<2x32xbf16>, vector<32x128xbf16>, vector<2x128xf32> -> vector<2x128xf32>
    %465 = arith.addf %462, %464 : vector<2x128xf32>
    %466 = math.tanh %465 : vector<2x128xf32>
    %467 = vector.extract_strided_slice %466 {offsets = [0, 0], sizes = [2, 32], strides = [1, 1]} : vector<2x128xf32> to vector<2x32xf32>
    %cst_196 = arith.constant 5.000000e-01 : f32
    %468 = vector.broadcast %cst_196 : f32 to vector<2x32xf32>
    %469 = arith.mulf %468, %467 : vector<2x32xf32>
    %cst_197 = arith.constant 5.000000e-01 : f32
    %470 = vector.broadcast %cst_197 : f32 to vector<2x32xf32>
    %471 = arith.addf %469, %470 : vector<2x32xf32>
    %472 = vector.extract_strided_slice %466 {offsets = [0, 32], sizes = [2, 32], strides = [1, 1]} : vector<2x128xf32> to vector<2x32xf32>
    %cst_198 = arith.constant 5.000000e-01 : f32
    %473 = vector.broadcast %cst_198 : f32 to vector<2x32xf32>
    %474 = arith.mulf %473, %472 : vector<2x32xf32>
    %cst_199 = arith.constant 5.000000e-01 : f32
    %475 = vector.broadcast %cst_199 : f32 to vector<2x32xf32>
    %476 = arith.addf %474, %475 : vector<2x32xf32>
    %477 = vector.extract_strided_slice %466 {offsets = [0, 64], sizes = [2, 32], strides = [1, 1]} : vector<2x128xf32> to vector<2x32xf32>
    %478 = vector.extract_strided_slice %466 {offsets = [0, 96], sizes = [2, 32], strides = [1, 1]} : vector<2x128xf32> to vector<2x32xf32>
    %cst_200 = arith.constant 5.000000e-01 : f32
    %479 = vector.broadcast %cst_200 : f32 to vector<2x32xf32>
    %480 = arith.mulf %479, %478 : vector<2x32xf32>
    %cst_201 = arith.constant 5.000000e-01 : f32
    %481 = vector.broadcast %cst_201 : f32 to vector<2x32xf32>
    %482 = arith.addf %480, %481 : vector<2x32xf32>
    %483 = arith.mulf %476, %452 : vector<2x32xf32>
    %484 = arith.mulf %471, %477 : vector<2x32xf32>
    %485 = arith.addf %483, %484 : vector<2x32xf32>
    %486 = math.tanh %485 : vector<2x32xf32>
    %487 = arith.mulf %482, %486 : vector<2x32xf32>
    %488 = vector.extract_strided_slice %487 {offsets = [0, 0], sizes = [2, 16], strides = [1, 1]} : vector<2x32xf32> to vector<2x16xf32>
    %489 = vector.shape_cast %488 : vector<2x16xf32> to vector<2x1x16xf32>
    %c0_202 = arith.constant 0 : index
    %c11_203 = arith.constant 11 : index
    %c0_204 = arith.constant 0 : index
    %490 = vector.load %arg11[%c0_202, %c11_203, %c0_204] : memref<2x16x32xf32, #tpu.memory_space<vmem>>, vector<2x1x16xf32>
    tpu.vector_store %arg11[%c0_202, %c11_203, %c0_204], %489 {strides = array<i32>} : memref<2x16x32xf32, #tpu.memory_space<vmem>>, vector<2x1x16xf32>,
    %491 = vector.extract_strided_slice %487 {offsets = [0, 16], sizes = [2, 16], strides = [1, 1]} : vector<2x32xf32> to vector<2x16xf32>
    %492 = vector.shape_cast %491 : vector<2x16xf32> to vector<2x1x16xf32>
    %c0_205 = arith.constant 0 : index
    %c4_206 = arith.constant 4 : index
    %c16_207 = arith.constant 16 : index
    %493 = vector.load %arg11[%c0_205, %c4_206, %c16_207] : memref<2x16x32xf32, #tpu.memory_space<vmem>>, vector<2x1x16xf32>
    tpu.vector_store %arg11[%c0_205, %c4_206, %c16_207], %492 {strides = array<i32>} : memref<2x16x32xf32, #tpu.memory_space<vmem>>, vector<2x1x16xf32>,
    %494 = vector.extract_strided_slice %95 {offsets = [0, 12, 0], sizes = [2, 1, 128], strides = [1, 1, 1]} : vector<2x16x128xf32> to vector<2x1x128xf32>
    %495 = vector.shape_cast %494 : vector<2x1x128xf32> to vector<2x128xf32>
    %496 = arith.truncf %487 : vector<2x32xf32> to vector<2x32xbf16>
    %cst_208 = arith.constant dense<0.000000e+00> : vector<2x128xf32>
    %497 = tpu.matmul %496, %79, %cst_208 {dimension_numbers = #tpu.dot_dimension_numbers<[1], [0], [0], [1], [0, 0, 1, 1], [], []>} : vector<2x32xbf16>, vector<32x128xbf16>, vector<2x128xf32> -> vector<2x128xf32>
    %498 = arith.addf %495, %497 : vector<2x128xf32>
    %499 = math.tanh %498 : vector<2x128xf32>
    %500 = vector.extract_strided_slice %499 {offsets = [0, 0], sizes = [2, 32], strides = [1, 1]} : vector<2x128xf32> to vector<2x32xf32>
    %cst_209 = arith.constant 5.000000e-01 : f32
    %501 = vector.broadcast %cst_209 : f32 to vector<2x32xf32>
    %502 = arith.mulf %501, %500 : vector<2x32xf32>
    %cst_210 = arith.constant 5.000000e-01 : f32
    %503 = vector.broadcast %cst_210 : f32 to vector<2x32xf32>
    %504 = arith.addf %502, %503 : vector<2x32xf32>
    %505 = vector.extract_strided_slice %499 {offsets = [0, 32], sizes = [2, 32], strides = [1, 1]} : vector<2x128xf32> to vector<2x32xf32>
    %cst_211 = arith.constant 5.000000e-01 : f32
    %506 = vector.broadcast %cst_211 : f32 to vector<2x32xf32>
    %507 = arith.mulf %506, %505 : vector<2x32xf32>
    %cst_212 = arith.constant 5.000000e-01 : f32
    %508 = vector.broadcast %cst_212 : f32 to vector<2x32xf32>
    %509 = arith.addf %507, %508 : vector<2x32xf32>
    %510 = vector.extract_strided_slice %499 {offsets = [0, 64], sizes = [2, 32], strides = [1, 1]} : vector<2x128xf32> to vector<2x32xf32>
    %511 = vector.extract_strided_slice %499 {offsets = [0, 96], sizes = [2, 32], strides = [1, 1]} : vector<2x128xf32> to vector<2x32xf32>
    %cst_213 = arith.constant 5.000000e-01 : f32
    %512 = vector.broadcast %cst_213 : f32 to vector<2x32xf32>
    %513 = arith.mulf %512, %511 : vector<2x32xf32>
    %cst_214 = arith.constant 5.000000e-01 : f32
    %514 = vector.broadcast %cst_214 : f32 to vector<2x32xf32>
    %515 = arith.addf %513, %514 : vector<2x32xf32>
    %516 = arith.mulf %509, %485 : vector<2x32xf32>
    %517 = arith.mulf %504, %510 : vector<2x32xf32>
    %518 = arith.addf %516, %517 : vector<2x32xf32>
    %519 = math.tanh %518 : vector<2x32xf32>
    %520 = arith.mulf %515, %519 : vector<2x32xf32>
    %521 = vector.extract_strided_slice %520 {offsets = [0, 0], sizes = [2, 16], strides = [1, 1]} : vector<2x32xf32> to vector<2x16xf32>
    %522 = vector.shape_cast %521 : vector<2x16xf32> to vector<2x1x16xf32>
    %c0_215 = arith.constant 0 : index
    %c12_216 = arith.constant 12 : index
    %c0_217 = arith.constant 0 : index
    %523 = vector.load %arg11[%c0_215, %c12_216, %c0_217] : memref<2x16x32xf32, #tpu.memory_space<vmem>>, vector<2x1x16xf32>
    tpu.vector_store %arg11[%c0_215, %c12_216, %c0_217], %522 {strides = array<i32>} : memref<2x16x32xf32, #tpu.memory_space<vmem>>, vector<2x1x16xf32>,
    %524 = vector.extract_strided_slice %520 {offsets = [0, 16], sizes = [2, 16], strides = [1, 1]} : vector<2x32xf32> to vector<2x16xf32>
    %525 = vector.shape_cast %524 : vector<2x16xf32> to vector<2x1x16xf32>
    %c0_218 = arith.constant 0 : index
    %c3_219 = arith.constant 3 : index
    %c16_220 = arith.constant 16 : index
    %526 = vector.load %arg11[%c0_218, %c3_219, %c16_220] : memref<2x16x32xf32, #tpu.memory_space<vmem>>, vector<2x1x16xf32>
    tpu.vector_store %arg11[%c0_218, %c3_219, %c16_220], %525 {strides = array<i32>} : memref<2x16x32xf32, #tpu.memory_space<vmem>>, vector<2x1x16xf32>,
    %527 = vector.extract_strided_slice %95 {offsets = [0, 13, 0], sizes = [2, 1, 128], strides = [1, 1, 1]} : vector<2x16x128xf32> to vector<2x1x128xf32>
    %528 = vector.shape_cast %527 : vector<2x1x128xf32> to vector<2x128xf32>
    %529 = arith.truncf %520 : vector<2x32xf32> to vector<2x32xbf16>
    %cst_221 = arith.constant dense<0.000000e+00> : vector<2x128xf32>
    %530 = tpu.matmul %529, %79, %cst_221 {dimension_numbers = #tpu.dot_dimension_numbers<[1], [0], [0], [1], [0, 0, 1, 1], [], []>} : vector<2x32xbf16>, vector<32x128xbf16>, vector<2x128xf32> -> vector<2x128xf32>
    %531 = arith.addf %528, %530 : vector<2x128xf32>
    %532 = math.tanh %531 : vector<2x128xf32>
    %533 = vector.extract_strided_slice %532 {offsets = [0, 0], sizes = [2, 32], strides = [1, 1]} : vector<2x128xf32> to vector<2x32xf32>
    %cst_222 = arith.constant 5.000000e-01 : f32
    %534 = vector.broadcast %cst_222 : f32 to vector<2x32xf32>
    %535 = arith.mulf %534, %533 : vector<2x32xf32>
    %cst_223 = arith.constant 5.000000e-01 : f32
    %536 = vector.broadcast %cst_223 : f32 to vector<2x32xf32>
    %537 = arith.addf %535, %536 : vector<2x32xf32>
    %538 = vector.extract_strided_slice %532 {offsets = [0, 32], sizes = [2, 32], strides = [1, 1]} : vector<2x128xf32> to vector<2x32xf32>
    %cst_224 = arith.constant 5.000000e-01 : f32
    %539 = vector.broadcast %cst_224 : f32 to vector<2x32xf32>
    %540 = arith.mulf %539, %538 : vector<2x32xf32>
    %cst_225 = arith.constant 5.000000e-01 : f32
    %541 = vector.broadcast %cst_225 : f32 to vector<2x32xf32>
    %542 = arith.addf %540, %541 : vector<2x32xf32>
    %543 = vector.extract_strided_slice %532 {offsets = [0, 64], sizes = [2, 32], strides = [1, 1]} : vector<2x128xf32> to vector<2x32xf32>
    %544 = vector.extract_strided_slice %532 {offsets = [0, 96], sizes = [2, 32], strides = [1, 1]} : vector<2x128xf32> to vector<2x32xf32>
    %cst_226 = arith.constant 5.000000e-01 : f32
    %545 = vector.broadcast %cst_226 : f32 to vector<2x32xf32>
    %546 = arith.mulf %545, %544 : vector<2x32xf32>
    %cst_227 = arith.constant 5.000000e-01 : f32
    %547 = vector.broadcast %cst_227 : f32 to vector<2x32xf32>
    %548 = arith.addf %546, %547 : vector<2x32xf32>
    %549 = arith.mulf %542, %518 : vector<2x32xf32>
    %550 = arith.mulf %537, %543 : vector<2x32xf32>
    %551 = arith.addf %549, %550 : vector<2x32xf32>
    %552 = math.tanh %551 : vector<2x32xf32>
    %553 = arith.mulf %548, %552 : vector<2x32xf32>
    %554 = vector.extract_strided_slice %553 {offsets = [0, 0], sizes = [2, 16], strides = [1, 1]} : vector<2x32xf32> to vector<2x16xf32>
    %555 = vector.shape_cast %554 : vector<2x16xf32> to vector<2x1x16xf32>
    %c0_228 = arith.constant 0 : index
    %c13_229 = arith.constant 13 : index
    %c0_230 = arith.constant 0 : index
    %556 = vector.load %arg11[%c0_228, %c13_229, %c0_230] : memref<2x16x32xf32, #tpu.memory_space<vmem>>, vector<2x1x16xf32>
    tpu.vector_store %arg11[%c0_228, %c13_229, %c0_230], %555 {strides = array<i32>} : memref<2x16x32xf32, #tpu.memory_space<vmem>>, vector<2x1x16xf32>,
    %557 = vector.extract_strided_slice %553 {offsets = [0, 16], sizes = [2, 16], strides = [1, 1]} : vector<2x32xf32> to vector<2x16xf32>
    %558 = vector.shape_cast %557 : vector<2x16xf32> to vector<2x1x16xf32>
    %c0_231 = arith.constant 0 : index
    %c2_232 = arith.constant 2 : index
    %c16_233 = arith.constant 16 : index
    %559 = vector.load %arg11[%c0_231, %c2_232, %c16_233] : memref<2x16x32xf32, #tpu.memory_space<vmem>>, vector<2x1x16xf32>
    tpu.vector_store %arg11[%c0_231, %c2_232, %c16_233], %558 {strides = array<i32>} : memref<2x16x32xf32, #tpu.memory_space<vmem>>, vector<2x1x16xf32>,
    %560 = vector.extract_strided_slice %95 {offsets = [0, 14, 0], sizes = [2, 1, 128], strides = [1, 1, 1]} : vector<2x16x128xf32> to vector<2x1x128xf32>
    %561 = vector.shape_cast %560 : vector<2x1x128xf32> to vector<2x128xf32>
    %562 = arith.truncf %553 : vector<2x32xf32> to vector<2x32xbf16>
    %cst_234 = arith.constant dense<0.000000e+00> : vector<2x128xf32>
    %563 = tpu.matmul %562, %79, %cst_234 {dimension_numbers = #tpu.dot_dimension_numbers<[1], [0], [0], [1], [0, 0, 1, 1], [], []>} : vector<2x32xbf16>, vector<32x128xbf16>, vector<2x128xf32> -> vector<2x128xf32>
    %564 = arith.addf %561, %563 : vector<2x128xf32>
    %565 = math.tanh %564 : vector<2x128xf32>
    %566 = vector.extract_strided_slice %565 {offsets = [0, 0], sizes = [2, 32], strides = [1, 1]} : vector<2x128xf32> to vector<2x32xf32>
    %cst_235 = arith.constant 5.000000e-01 : f32
    %567 = vector.broadcast %cst_235 : f32 to vector<2x32xf32>
    %568 = arith.mulf %567, %566 : vector<2x32xf32>
    %cst_236 = arith.constant 5.000000e-01 : f32
    %569 = vector.broadcast %cst_236 : f32 to vector<2x32xf32>
    %570 = arith.addf %568, %569 : vector<2x32xf32>
    %571 = vector.extract_strided_slice %565 {offsets = [0, 32], sizes = [2, 32], strides = [1, 1]} : vector<2x128xf32> to vector<2x32xf32>
    %cst_237 = arith.constant 5.000000e-01 : f32
    %572 = vector.broadcast %cst_237 : f32 to vector<2x32xf32>
    %573 = arith.mulf %572, %571 : vector<2x32xf32>
    %cst_238 = arith.constant 5.000000e-01 : f32
    %574 = vector.broadcast %cst_238 : f32 to vector<2x32xf32>
    %575 = arith.addf %573, %574 : vector<2x32xf32>
    %576 = vector.extract_strided_slice %565 {offsets = [0, 64], sizes = [2, 32], strides = [1, 1]} : vector<2x128xf32> to vector<2x32xf32>
    %577 = vector.extract_strided_slice %565 {offsets = [0, 96], sizes = [2, 32], strides = [1, 1]} : vector<2x128xf32> to vector<2x32xf32>
    %cst_239 = arith.constant 5.000000e-01 : f32
    %578 = vector.broadcast %cst_239 : f32 to vector<2x32xf32>
    %579 = arith.mulf %578, %577 : vector<2x32xf32>
    %cst_240 = arith.constant 5.000000e-01 : f32
    %580 = vector.broadcast %cst_240 : f32 to vector<2x32xf32>
    %581 = arith.addf %579, %580 : vector<2x32xf32>
    %582 = arith.mulf %575, %551 : vector<2x32xf32>
    %583 = arith.mulf %570, %576 : vector<2x32xf32>
    %584 = arith.addf %582, %583 : vector<2x32xf32>
    %585 = math.tanh %584 : vector<2x32xf32>
    %586 = arith.mulf %581, %585 : vector<2x32xf32>
    %587 = vector.extract_strided_slice %586 {offsets = [0, 0], sizes = [2, 16], strides = [1, 1]} : vector<2x32xf32> to vector<2x16xf32>
    %588 = vector.shape_cast %587 : vector<2x16xf32> to vector<2x1x16xf32>
    %c0_241 = arith.constant 0 : index
    %c14_242 = arith.constant 14 : index
    %c0_243 = arith.constant 0 : index
    %589 = vector.load %arg11[%c0_241, %c14_242, %c0_243] : memref<2x16x32xf32, #tpu.memory_space<vmem>>, vector<2x1x16xf32>
    tpu.vector_store %arg11[%c0_241, %c14_242, %c0_243], %588 {strides = array<i32>} : memref<2x16x32xf32, #tpu.memory_space<vmem>>, vector<2x1x16xf32>,
    %590 = vector.extract_strided_slice %586 {offsets = [0, 16], sizes = [2, 16], strides = [1, 1]} : vector<2x32xf32> to vector<2x16xf32>
    %591 = vector.shape_cast %590 : vector<2x16xf32> to vector<2x1x16xf32>
    %c0_244 = arith.constant 0 : index
    %c1_245 = arith.constant 1 : index
    %c16_246 = arith.constant 16 : index
    %592 = vector.load %arg11[%c0_244, %c1_245, %c16_246] : memref<2x16x32xf32, #tpu.memory_space<vmem>>, vector<2x1x16xf32>
    tpu.vector_store %arg11[%c0_244, %c1_245, %c16_246], %591 {strides = array<i32>} : memref<2x16x32xf32, #tpu.memory_space<vmem>>, vector<2x1x16xf32>,
    %593 = vector.extract_strided_slice %95 {offsets = [0, 15, 0], sizes = [2, 1, 128], strides = [1, 1, 1]} : vector<2x16x128xf32> to vector<2x1x128xf32>
    %594 = vector.shape_cast %593 : vector<2x1x128xf32> to vector<2x128xf32>
    %595 = arith.truncf %586 : vector<2x32xf32> to vector<2x32xbf16>
    %cst_247 = arith.constant dense<0.000000e+00> : vector<2x128xf32>
    %596 = tpu.matmul %595, %79, %cst_247 {dimension_numbers = #tpu.dot_dimension_numbers<[1], [0], [0], [1], [0, 0, 1, 1], [], []>} : vector<2x32xbf16>, vector<32x128xbf16>, vector<2x128xf32> -> vector<2x128xf32>
    %597 = arith.addf %594, %596 : vector<2x128xf32>
    %598 = math.tanh %597 : vector<2x128xf32>
    %599 = vector.extract_strided_slice %598 {offsets = [0, 0], sizes = [2, 32], strides = [1, 1]} : vector<2x128xf32> to vector<2x32xf32>
    %cst_248 = arith.constant 5.000000e-01 : f32
    %600 = vector.broadcast %cst_248 : f32 to vector<2x32xf32>
    %601 = arith.mulf %600, %599 : vector<2x32xf32>
    %cst_249 = arith.constant 5.000000e-01 : f32
    %602 = vector.broadcast %cst_249 : f32 to vector<2x32xf32>
    %603 = arith.addf %601, %602 : vector<2x32xf32>
    %604 = vector.extract_strided_slice %598 {offsets = [0, 32], sizes = [2, 32], strides = [1, 1]} : vector<2x128xf32> to vector<2x32xf32>
    %cst_250 = arith.constant 5.000000e-01 : f32
    %605 = vector.broadcast %cst_250 : f32 to vector<2x32xf32>
    %606 = arith.mulf %605, %604 : vector<2x32xf32>
    %cst_251 = arith.constant 5.000000e-01 : f32
    %607 = vector.broadcast %cst_251 : f32 to vector<2x32xf32>
    %608 = arith.addf %606, %607 : vector<2x32xf32>
    %609 = vector.extract_strided_slice %598 {offsets = [0, 64], sizes = [2, 32], strides = [1, 1]} : vector<2x128xf32> to vector<2x32xf32>
    %610 = vector.extract_strided_slice %598 {offsets = [0, 96], sizes = [2, 32], strides = [1, 1]} : vector<2x128xf32> to vector<2x32xf32>
    %cst_252 = arith.constant 5.000000e-01 : f32
    %611 = vector.broadcast %cst_252 : f32 to vector<2x32xf32>
    %612 = arith.mulf %611, %610 : vector<2x32xf32>
    %cst_253 = arith.constant 5.000000e-01 : f32
    %613 = vector.broadcast %cst_253 : f32 to vector<2x32xf32>
    %614 = arith.addf %612, %613 : vector<2x32xf32>
    %615 = arith.mulf %608, %584 : vector<2x32xf32>
    %616 = arith.mulf %603, %609 : vector<2x32xf32>
    %617 = arith.addf %615, %616 : vector<2x32xf32>
    %618 = math.tanh %617 : vector<2x32xf32>
    %619 = arith.mulf %614, %618 : vector<2x32xf32>
    %620 = vector.extract_strided_slice %619 {offsets = [0, 0], sizes = [2, 16], strides = [1, 1]} : vector<2x32xf32> to vector<2x16xf32>
    %621 = vector.shape_cast %620 : vector<2x16xf32> to vector<2x1x16xf32>
    %c0_254 = arith.constant 0 : index
    %c15_255 = arith.constant 15 : index
    %c0_256 = arith.constant 0 : index
    %622 = vector.load %arg11[%c0_254, %c15_255, %c0_256] : memref<2x16x32xf32, #tpu.memory_space<vmem>>, vector<2x1x16xf32>
    tpu.vector_store %arg11[%c0_254, %c15_255, %c0_256], %621 {strides = array<i32>} : memref<2x16x32xf32, #tpu.memory_space<vmem>>, vector<2x1x16xf32>,
    %623 = vector.extract_strided_slice %619 {offsets = [0, 16], sizes = [2, 16], strides = [1, 1]} : vector<2x32xf32> to vector<2x16xf32>
    %624 = vector.shape_cast %623 : vector<2x16xf32> to vector<2x1x16xf32>
    %c0_257 = arith.constant 0 : index
    %c0_258 = arith.constant 0 : index
    %c16_259 = arith.constant 16 : index
    %625 = vector.load %arg11[%c0_257, %c0_258, %c16_259] : memref<2x16x32xf32, #tpu.memory_space<vmem>>, vector<2x1x16xf32>
    tpu.vector_store %arg11[%c0_257, %c0_258, %c16_259], %624 {strides = array<i32>} : memref<2x16x32xf32, #tpu.memory_space<vmem>>, vector<2x1x16xf32>,
    %c0_260 = arith.constant 0 : index
    %c0_261 = arith.constant 0 : index
    %c0_262 = arith.constant 0 : index
    %626 = vector.load %arg11[%c0_260, %c0_261, %c0_262] : memref<2x16x32xf32, #tpu.memory_space<vmem>>, vector<2x16x32xf32>
    %c1_263 = arith.constant 1 : index
    %c0_264 = arith.constant 0 : index
    %c0_265 = arith.constant 0 : index
    %627 = vector.load %arg7[%c1_263, %c0_264, %c0_265] : memref<2x32x128xbf16, #tpu.memory_space<vmem>>, vector<1x32x128xbf16>
    %628 = vector.shape_cast %627 : vector<1x32x128xbf16> to vector<32x128xbf16>
    %c1_266 = arith.constant 1 : index
    %c0_267 = arith.constant 0 : index
    %c0_268 = arith.constant 0 : index
    %629 = vector.load %arg8[%c1_266, %c0_267, %c0_268] : memref<2x1x128xf32, #tpu.memory_space<vmem>>, vector<1x1x128xf32>
    %630 = vector.shape_cast %629 : vector<1x1x128xf32> to vector<1x128xf32>
    %631 = vector.shape_cast %626 : vector<2x16x32xf32> to vector<32x32xf32>
    %632 = arith.truncf %631 : vector<32x32xf32> to vector<32x32xbf16>
    %cst_269 = arith.constant dense<0.000000e+00> : vector<32x32xf32>
    %633 = tpu.matmul %77, %632, %cst_269 {dimension_numbers = #tpu.dot_dimension_numbers<[1], [0], [0], [1], [0, 0, 1, 1], [], []>} : vector<32x32xbf16>, vector<32x32xbf16>, vector<32x32xf32> -> vector<32x32xf32>
    %634 = arith.truncf %633 : vector<32x32xf32> to vector<32x32xbf16>
    %c1_270 = arith.constant 1 : index
    %c0_271 = arith.constant 0 : index
    %c0_272 = arith.constant 0 : index
    %635 = vector.load %arg5[%c1_270, %c0_271, %c0_272] : memref<2x32x128xbf16, #tpu.memory_space<vmem>>, vector<1x32x128xbf16>
    %636 = vector.shape_cast %635 : vector<1x32x128xbf16> to vector<32x128xbf16>
    %cst_273 = arith.constant dense<0.000000e+00> : vector<32x128xf32>
    %637 = tpu.matmul %632, %636, %cst_273 {dimension_numbers = #tpu.dot_dimension_numbers<[1], [0], [0], [1], [0, 0, 1, 1], [], []>} : vector<32x32xbf16>, vector<32x128xbf16>, vector<32x128xf32> -> vector<32x128xf32>
    %c1_274 = arith.constant 1 : index
    %c0_275 = arith.constant 0 : index
    %c0_276 = arith.constant 0 : index
    %638 = vector.load %arg6[%c1_274, %c0_275, %c0_276] : memref<2x32x128xbf16, #tpu.memory_space<vmem>>, vector<1x32x128xbf16>
    %639 = vector.shape_cast %638 : vector<1x32x128xbf16> to vector<32x128xbf16>
    %cst_277 = arith.constant dense<0.000000e+00> : vector<32x128xf32>
    %640 = tpu.matmul %634, %639, %cst_277 {dimension_numbers = #tpu.dot_dimension_numbers<[1], [0], [0], [1], [0, 0, 1, 1], [], []>} : vector<32x32xbf16>, vector<32x128xbf16>, vector<32x128xf32> -> vector<32x128xf32>
    %641 = arith.addf %637, %640 : vector<32x128xf32>
    %642 = vector.broadcast %630 : vector<1x128xf32> to vector<32x128xf32>
    %643 = arith.addf %641, %642 : vector<32x128xf32>
    %644 = vector.shape_cast %643 : vector<32x128xf32> to vector<2x16x128xf32>
    %cst_278 = arith.constant 0.000000e+00 : f32
    %645 = vector.broadcast %cst_278 : f32 to vector<2x32xf32>
    %cst_279 = arith.constant 0.000000e+00 : f32
    %646 = vector.broadcast %cst_279 : f32 to vector<2x32xf32>
    %647 = vector.extract_strided_slice %644 {offsets = [0, 0, 0], sizes = [2, 1, 128], strides = [1, 1, 1]} : vector<2x16x128xf32> to vector<2x1x128xf32>
    %648 = vector.shape_cast %647 : vector<2x1x128xf32> to vector<2x128xf32>
    %649 = arith.truncf %645 : vector<2x32xf32> to vector<2x32xbf16>
    %cst_280 = arith.constant dense<0.000000e+00> : vector<2x128xf32>
    %650 = tpu.matmul %649, %628, %cst_280 {dimension_numbers = #tpu.dot_dimension_numbers<[1], [0], [0], [1], [0, 0, 1, 1], [], []>} : vector<2x32xbf16>, vector<32x128xbf16>, vector<2x128xf32> -> vector<2x128xf32>
    %651 = arith.addf %648, %650 : vector<2x128xf32>
    %652 = math.tanh %651 : vector<2x128xf32>
    %653 = vector.extract_strided_slice %652 {offsets = [0, 0], sizes = [2, 32], strides = [1, 1]} : vector<2x128xf32> to vector<2x32xf32>
    %cst_281 = arith.constant 5.000000e-01 : f32
    %654 = vector.broadcast %cst_281 : f32 to vector<2x32xf32>
    %655 = arith.mulf %654, %653 : vector<2x32xf32>
    %cst_282 = arith.constant 5.000000e-01 : f32
    %656 = vector.broadcast %cst_282 : f32 to vector<2x32xf32>
    %657 = arith.addf %655, %656 : vector<2x32xf32>
    %658 = vector.extract_strided_slice %652 {offsets = [0, 32], sizes = [2, 32], strides = [1, 1]} : vector<2x128xf32> to vector<2x32xf32>
    %cst_283 = arith.constant 5.000000e-01 : f32
    %659 = vector.broadcast %cst_283 : f32 to vector<2x32xf32>
    %660 = arith.mulf %659, %658 : vector<2x32xf32>
    %cst_284 = arith.constant 5.000000e-01 : f32
    %661 = vector.broadcast %cst_284 : f32 to vector<2x32xf32>
    %662 = arith.addf %660, %661 : vector<2x32xf32>
    %663 = vector.extract_strided_slice %652 {offsets = [0, 64], sizes = [2, 32], strides = [1, 1]} : vector<2x128xf32> to vector<2x32xf32>
    %664 = vector.extract_strided_slice %652 {offsets = [0, 96], sizes = [2, 32], strides = [1, 1]} : vector<2x128xf32> to vector<2x32xf32>
    %cst_285 = arith.constant 5.000000e-01 : f32
    %665 = vector.broadcast %cst_285 : f32 to vector<2x32xf32>
    %666 = arith.mulf %665, %664 : vector<2x32xf32>
    %cst_286 = arith.constant 5.000000e-01 : f32
    %667 = vector.broadcast %cst_286 : f32 to vector<2x32xf32>
    %668 = arith.addf %666, %667 : vector<2x32xf32>
    %669 = arith.mulf %662, %646 : vector<2x32xf32>
    %670 = arith.mulf %657, %663 : vector<2x32xf32>
    %671 = arith.addf %669, %670 : vector<2x32xf32>
    %672 = math.tanh %671 : vector<2x32xf32>
    %673 = arith.mulf %668, %672 : vector<2x32xf32>
    %674 = vector.extract_strided_slice %673 {offsets = [0, 0], sizes = [2, 16], strides = [1, 1]} : vector<2x32xf32> to vector<2x16xf32>
    %675 = vector.shape_cast %674 : vector<2x16xf32> to vector<2x1x16xf32>
    %c0_287 = arith.constant 0 : index
    %c0_288 = arith.constant 0 : index
    %c0_289 = arith.constant 0 : index
    %676 = vector.load %arg11[%c0_287, %c0_288, %c0_289] : memref<2x16x32xf32, #tpu.memory_space<vmem>>, vector<2x1x16xf32>
    tpu.vector_store %arg11[%c0_287, %c0_288, %c0_289], %675 {strides = array<i32>} : memref<2x16x32xf32, #tpu.memory_space<vmem>>, vector<2x1x16xf32>,
    %677 = vector.extract_strided_slice %673 {offsets = [0, 16], sizes = [2, 16], strides = [1, 1]} : vector<2x32xf32> to vector<2x16xf32>
    %678 = vector.shape_cast %677 : vector<2x16xf32> to vector<2x1x16xf32>
    %c0_290 = arith.constant 0 : index
    %c15_291 = arith.constant 15 : index
    %c16_292 = arith.constant 16 : index
    %679 = vector.load %arg11[%c0_290, %c15_291, %c16_292] : memref<2x16x32xf32, #tpu.memory_space<vmem>>, vector<2x1x16xf32>
    tpu.vector_store %arg11[%c0_290, %c15_291, %c16_292], %678 {strides = array<i32>} : memref<2x16x32xf32, #tpu.memory_space<vmem>>, vector<2x1x16xf32>,
    %680 = vector.extract_strided_slice %644 {offsets = [0, 1, 0], sizes = [2, 1, 128], strides = [1, 1, 1]} : vector<2x16x128xf32> to vector<2x1x128xf32>
    %681 = vector.shape_cast %680 : vector<2x1x128xf32> to vector<2x128xf32>
    %682 = arith.truncf %673 : vector<2x32xf32> to vector<2x32xbf16>
    %cst_293 = arith.constant dense<0.000000e+00> : vector<2x128xf32>
    %683 = tpu.matmul %682, %628, %cst_293 {dimension_numbers = #tpu.dot_dimension_numbers<[1], [0], [0], [1], [0, 0, 1, 1], [], []>} : vector<2x32xbf16>, vector<32x128xbf16>, vector<2x128xf32> -> vector<2x128xf32>
    %684 = arith.addf %681, %683 : vector<2x128xf32>
    %685 = math.tanh %684 : vector<2x128xf32>
    %686 = vector.extract_strided_slice %685 {offsets = [0, 0], sizes = [2, 32], strides = [1, 1]} : vector<2x128xf32> to vector<2x32xf32>
    %cst_294 = arith.constant 5.000000e-01 : f32
    %687 = vector.broadcast %cst_294 : f32 to vector<2x32xf32>
    %688 = arith.mulf %687, %686 : vector<2x32xf32>
    %cst_295 = arith.constant 5.000000e-01 : f32
    %689 = vector.broadcast %cst_295 : f32 to vector<2x32xf32>
    %690 = arith.addf %688, %689 : vector<2x32xf32>
    %691 = vector.extract_strided_slice %685 {offsets = [0, 32], sizes = [2, 32], strides = [1, 1]} : vector<2x128xf32> to vector<2x32xf32>
    %cst_296 = arith.constant 5.000000e-01 : f32
    %692 = vector.broadcast %cst_296 : f32 to vector<2x32xf32>
    %693 = arith.mulf %692, %691 : vector<2x32xf32>
    %cst_297 = arith.constant 5.000000e-01 : f32
    %694 = vector.broadcast %cst_297 : f32 to vector<2x32xf32>
    %695 = arith.addf %693, %694 : vector<2x32xf32>
    %696 = vector.extract_strided_slice %685 {offsets = [0, 64], sizes = [2, 32], strides = [1, 1]} : vector<2x128xf32> to vector<2x32xf32>
    %697 = vector.extract_strided_slice %685 {offsets = [0, 96], sizes = [2, 32], strides = [1, 1]} : vector<2x128xf32> to vector<2x32xf32>
    %cst_298 = arith.constant 5.000000e-01 : f32
    %698 = vector.broadcast %cst_298 : f32 to vector<2x32xf32>
    %699 = arith.mulf %698, %697 : vector<2x32xf32>
    %cst_299 = arith.constant 5.000000e-01 : f32
    %700 = vector.broadcast %cst_299 : f32 to vector<2x32xf32>
    %701 = arith.addf %699, %700 : vector<2x32xf32>
    %702 = arith.mulf %695, %671 : vector<2x32xf32>
    %703 = arith.mulf %690, %696 : vector<2x32xf32>
    %704 = arith.addf %702, %703 : vector<2x32xf32>
    %705 = math.tanh %704 : vector<2x32xf32>
    %706 = arith.mulf %701, %705 : vector<2x32xf32>
    %707 = vector.extract_strided_slice %706 {offsets = [0, 0], sizes = [2, 16], strides = [1, 1]} : vector<2x32xf32> to vector<2x16xf32>
    %708 = vector.shape_cast %707 : vector<2x16xf32> to vector<2x1x16xf32>
    %c0_300 = arith.constant 0 : index
    %c1_301 = arith.constant 1 : index
    %c0_302 = arith.constant 0 : index
    %709 = vector.load %arg11[%c0_300, %c1_301, %c0_302] : memref<2x16x32xf32, #tpu.memory_space<vmem>>, vector<2x1x16xf32>
    tpu.vector_store %arg11[%c0_300, %c1_301, %c0_302], %708 {strides = array<i32>} : memref<2x16x32xf32, #tpu.memory_space<vmem>>, vector<2x1x16xf32>,
    %710 = vector.extract_strided_slice %706 {offsets = [0, 16], sizes = [2, 16], strides = [1, 1]} : vector<2x32xf32> to vector<2x16xf32>
    %711 = vector.shape_cast %710 : vector<2x16xf32> to vector<2x1x16xf32>
    %c0_303 = arith.constant 0 : index
    %c14_304 = arith.constant 14 : index
    %c16_305 = arith.constant 16 : index
    %712 = vector.load %arg11[%c0_303, %c14_304, %c16_305] : memref<2x16x32xf32, #tpu.memory_space<vmem>>, vector<2x1x16xf32>
    tpu.vector_store %arg11[%c0_303, %c14_304, %c16_305], %711 {strides = array<i32>} : memref<2x16x32xf32, #tpu.memory_space<vmem>>, vector<2x1x16xf32>,
    %713 = vector.extract_strided_slice %644 {offsets = [0, 2, 0], sizes = [2, 1, 128], strides = [1, 1, 1]} : vector<2x16x128xf32> to vector<2x1x128xf32>
    %714 = vector.shape_cast %713 : vector<2x1x128xf32> to vector<2x128xf32>
    %715 = arith.truncf %706 : vector<2x32xf32> to vector<2x32xbf16>
    %cst_306 = arith.constant dense<0.000000e+00> : vector<2x128xf32>
    %716 = tpu.matmul %715, %628, %cst_306 {dimension_numbers = #tpu.dot_dimension_numbers<[1], [0], [0], [1], [0, 0, 1, 1], [], []>} : vector<2x32xbf16>, vector<32x128xbf16>, vector<2x128xf32> -> vector<2x128xf32>
    %717 = arith.addf %714, %716 : vector<2x128xf32>
    %718 = math.tanh %717 : vector<2x128xf32>
    %719 = vector.extract_strided_slice %718 {offsets = [0, 0], sizes = [2, 32], strides = [1, 1]} : vector<2x128xf32> to vector<2x32xf32>
    %cst_307 = arith.constant 5.000000e-01 : f32
    %720 = vector.broadcast %cst_307 : f32 to vector<2x32xf32>
    %721 = arith.mulf %720, %719 : vector<2x32xf32>
    %cst_308 = arith.constant 5.000000e-01 : f32
    %722 = vector.broadcast %cst_308 : f32 to vector<2x32xf32>
    %723 = arith.addf %721, %722 : vector<2x32xf32>
    %724 = vector.extract_strided_slice %718 {offsets = [0, 32], sizes = [2, 32], strides = [1, 1]} : vector<2x128xf32> to vector<2x32xf32>
    %cst_309 = arith.constant 5.000000e-01 : f32
    %725 = vector.broadcast %cst_309 : f32 to vector<2x32xf32>
    %726 = arith.mulf %725, %724 : vector<2x32xf32>
    %cst_310 = arith.constant 5.000000e-01 : f32
    %727 = vector.broadcast %cst_310 : f32 to vector<2x32xf32>
    %728 = arith.addf %726, %727 : vector<2x32xf32>
    %729 = vector.extract_strided_slice %718 {offsets = [0, 64], sizes = [2, 32], strides = [1, 1]} : vector<2x128xf32> to vector<2x32xf32>
    %730 = vector.extract_strided_slice %718 {offsets = [0, 96], sizes = [2, 32], strides = [1, 1]} : vector<2x128xf32> to vector<2x32xf32>
    %cst_311 = arith.constant 5.000000e-01 : f32
    %731 = vector.broadcast %cst_311 : f32 to vector<2x32xf32>
    %732 = arith.mulf %731, %730 : vector<2x32xf32>
    %cst_312 = arith.constant 5.000000e-01 : f32
    %733 = vector.broadcast %cst_312 : f32 to vector<2x32xf32>
    %734 = arith.addf %732, %733 : vector<2x32xf32>
    %735 = arith.mulf %728, %704 : vector<2x32xf32>
    %736 = arith.mulf %723, %729 : vector<2x32xf32>
    %737 = arith.addf %735, %736 : vector<2x32xf32>
    %738 = math.tanh %737 : vector<2x32xf32>
    %739 = arith.mulf %734, %738 : vector<2x32xf32>
    %740 = vector.extract_strided_slice %739 {offsets = [0, 0], sizes = [2, 16], strides = [1, 1]} : vector<2x32xf32> to vector<2x16xf32>
    %741 = vector.shape_cast %740 : vector<2x16xf32> to vector<2x1x16xf32>
    %c0_313 = arith.constant 0 : index
    %c2_314 = arith.constant 2 : index
    %c0_315 = arith.constant 0 : index
    %742 = vector.load %arg11[%c0_313, %c2_314, %c0_315] : memref<2x16x32xf32, #tpu.memory_space<vmem>>, vector<2x1x16xf32>
    tpu.vector_store %arg11[%c0_313, %c2_314, %c0_315], %741 {strides = array<i32>} : memref<2x16x32xf32, #tpu.memory_space<vmem>>, vector<2x1x16xf32>,
    %743 = vector.extract_strided_slice %739 {offsets = [0, 16], sizes = [2, 16], strides = [1, 1]} : vector<2x32xf32> to vector<2x16xf32>
    %744 = vector.shape_cast %743 : vector<2x16xf32> to vector<2x1x16xf32>
    %c0_316 = arith.constant 0 : index
    %c13_317 = arith.constant 13 : index
    %c16_318 = arith.constant 16 : index
    %745 = vector.load %arg11[%c0_316, %c13_317, %c16_318] : memref<2x16x32xf32, #tpu.memory_space<vmem>>, vector<2x1x16xf32>
    tpu.vector_store %arg11[%c0_316, %c13_317, %c16_318], %744 {strides = array<i32>} : memref<2x16x32xf32, #tpu.memory_space<vmem>>, vector<2x1x16xf32>,
    %746 = vector.extract_strided_slice %644 {offsets = [0, 3, 0], sizes = [2, 1, 128], strides = [1, 1, 1]} : vector<2x16x128xf32> to vector<2x1x128xf32>
    %747 = vector.shape_cast %746 : vector<2x1x128xf32> to vector<2x128xf32>
    %748 = arith.truncf %739 : vector<2x32xf32> to vector<2x32xbf16>
    %cst_319 = arith.constant dense<0.000000e+00> : vector<2x128xf32>
    %749 = tpu.matmul %748, %628, %cst_319 {dimension_numbers = #tpu.dot_dimension_numbers<[1], [0], [0], [1], [0, 0, 1, 1], [], []>} : vector<2x32xbf16>, vector<32x128xbf16>, vector<2x128xf32> -> vector<2x128xf32>
    %750 = arith.addf %747, %749 : vector<2x128xf32>
    %751 = math.tanh %750 : vector<2x128xf32>
    %752 = vector.extract_strided_slice %751 {offsets = [0, 0], sizes = [2, 32], strides = [1, 1]} : vector<2x128xf32> to vector<2x32xf32>
    %cst_320 = arith.constant 5.000000e-01 : f32
    %753 = vector.broadcast %cst_320 : f32 to vector<2x32xf32>
    %754 = arith.mulf %753, %752 : vector<2x32xf32>
    %cst_321 = arith.constant 5.000000e-01 : f32
    %755 = vector.broadcast %cst_321 : f32 to vector<2x32xf32>
    %756 = arith.addf %754, %755 : vector<2x32xf32>
    %757 = vector.extract_strided_slice %751 {offsets = [0, 32], sizes = [2, 32], strides = [1, 1]} : vector<2x128xf32> to vector<2x32xf32>
    %cst_322 = arith.constant 5.000000e-01 : f32
    %758 = vector.broadcast %cst_322 : f32 to vector<2x32xf32>
    %759 = arith.mulf %758, %757 : vector<2x32xf32>
    %cst_323 = arith.constant 5.000000e-01 : f32
    %760 = vector.broadcast %cst_323 : f32 to vector<2x32xf32>
    %761 = arith.addf %759, %760 : vector<2x32xf32>
    %762 = vector.extract_strided_slice %751 {offsets = [0, 64], sizes = [2, 32], strides = [1, 1]} : vector<2x128xf32> to vector<2x32xf32>
    %763 = vector.extract_strided_slice %751 {offsets = [0, 96], sizes = [2, 32], strides = [1, 1]} : vector<2x128xf32> to vector<2x32xf32>
    %cst_324 = arith.constant 5.000000e-01 : f32
    %764 = vector.broadcast %cst_324 : f32 to vector<2x32xf32>
    %765 = arith.mulf %764, %763 : vector<2x32xf32>
    %cst_325 = arith.constant 5.000000e-01 : f32
    %766 = vector.broadcast %cst_325 : f32 to vector<2x32xf32>
    %767 = arith.addf %765, %766 : vector<2x32xf32>
    %768 = arith.mulf %761, %737 : vector<2x32xf32>
    %769 = arith.mulf %756, %762 : vector<2x32xf32>
    %770 = arith.addf %768, %769 : vector<2x32xf32>
    %771 = math.tanh %770 : vector<2x32xf32>
    %772 = arith.mulf %767, %771 : vector<2x32xf32>
    %773 = vector.extract_strided_slice %772 {offsets = [0, 0], sizes = [2, 16], strides = [1, 1]} : vector<2x32xf32> to vector<2x16xf32>
    %774 = vector.shape_cast %773 : vector<2x16xf32> to vector<2x1x16xf32>
    %c0_326 = arith.constant 0 : index
    %c3_327 = arith.constant 3 : index
    %c0_328 = arith.constant 0 : index
    %775 = vector.load %arg11[%c0_326, %c3_327, %c0_328] : memref<2x16x32xf32, #tpu.memory_space<vmem>>, vector<2x1x16xf32>
    tpu.vector_store %arg11[%c0_326, %c3_327, %c0_328], %774 {strides = array<i32>} : memref<2x16x32xf32, #tpu.memory_space<vmem>>, vector<2x1x16xf32>,
    %776 = vector.extract_strided_slice %772 {offsets = [0, 16], sizes = [2, 16], strides = [1, 1]} : vector<2x32xf32> to vector<2x16xf32>
    %777 = vector.shape_cast %776 : vector<2x16xf32> to vector<2x1x16xf32>
    %c0_329 = arith.constant 0 : index
    %c12_330 = arith.constant 12 : index
    %c16_331 = arith.constant 16 : index
    %778 = vector.load %arg11[%c0_329, %c12_330, %c16_331] : memref<2x16x32xf32, #tpu.memory_space<vmem>>, vector<2x1x16xf32>
    tpu.vector_store %arg11[%c0_329, %c12_330, %c16_331], %777 {strides = array<i32>} : memref<2x16x32xf32, #tpu.memory_space<vmem>>, vector<2x1x16xf32>,
    %779 = vector.extract_strided_slice %644 {offsets = [0, 4, 0], sizes = [2, 1, 128], strides = [1, 1, 1]} : vector<2x16x128xf32> to vector<2x1x128xf32>
    %780 = vector.shape_cast %779 : vector<2x1x128xf32> to vector<2x128xf32>
    %781 = arith.truncf %772 : vector<2x32xf32> to vector<2x32xbf16>
    %cst_332 = arith.constant dense<0.000000e+00> : vector<2x128xf32>
    %782 = tpu.matmul %781, %628, %cst_332 {dimension_numbers = #tpu.dot_dimension_numbers<[1], [0], [0], [1], [0, 0, 1, 1], [], []>} : vector<2x32xbf16>, vector<32x128xbf16>, vector<2x128xf32> -> vector<2x128xf32>
    %783 = arith.addf %780, %782 : vector<2x128xf32>
    %784 = math.tanh %783 : vector<2x128xf32>
    %785 = vector.extract_strided_slice %784 {offsets = [0, 0], sizes = [2, 32], strides = [1, 1]} : vector<2x128xf32> to vector<2x32xf32>
    %cst_333 = arith.constant 5.000000e-01 : f32
    %786 = vector.broadcast %cst_333 : f32 to vector<2x32xf32>
    %787 = arith.mulf %786, %785 : vector<2x32xf32>
    %cst_334 = arith.constant 5.000000e-01 : f32
    %788 = vector.broadcast %cst_334 : f32 to vector<2x32xf32>
    %789 = arith.addf %787, %788 : vector<2x32xf32>
    %790 = vector.extract_strided_slice %784 {offsets = [0, 32], sizes = [2, 32], strides = [1, 1]} : vector<2x128xf32> to vector<2x32xf32>
    %cst_335 = arith.constant 5.000000e-01 : f32
    %791 = vector.broadcast %cst_335 : f32 to vector<2x32xf32>
    %792 = arith.mulf %791, %790 : vector<2x32xf32>
    %cst_336 = arith.constant 5.000000e-01 : f32
    %793 = vector.broadcast %cst_336 : f32 to vector<2x32xf32>
    %794 = arith.addf %792, %793 : vector<2x32xf32>
    %795 = vector.extract_strided_slice %784 {offsets = [0, 64], sizes = [2, 32], strides = [1, 1]} : vector<2x128xf32> to vector<2x32xf32>
    %796 = vector.extract_strided_slice %784 {offsets = [0, 96], sizes = [2, 32], strides = [1, 1]} : vector<2x128xf32> to vector<2x32xf32>
    %cst_337 = arith.constant 5.000000e-01 : f32
    %797 = vector.broadcast %cst_337 : f32 to vector<2x32xf32>
    %798 = arith.mulf %797, %796 : vector<2x32xf32>
    %cst_338 = arith.constant 5.000000e-01 : f32
    %799 = vector.broadcast %cst_338 : f32 to vector<2x32xf32>
    %800 = arith.addf %798, %799 : vector<2x32xf32>
    %801 = arith.mulf %794, %770 : vector<2x32xf32>
    %802 = arith.mulf %789, %795 : vector<2x32xf32>
    %803 = arith.addf %801, %802 : vector<2x32xf32>
    %804 = math.tanh %803 : vector<2x32xf32>
    %805 = arith.mulf %800, %804 : vector<2x32xf32>
    %806 = vector.extract_strided_slice %805 {offsets = [0, 0], sizes = [2, 16], strides = [1, 1]} : vector<2x32xf32> to vector<2x16xf32>
    %807 = vector.shape_cast %806 : vector<2x16xf32> to vector<2x1x16xf32>
    %c0_339 = arith.constant 0 : index
    %c4_340 = arith.constant 4 : index
    %c0_341 = arith.constant 0 : index
    %808 = vector.load %arg11[%c0_339, %c4_340, %c0_341] : memref<2x16x32xf32, #tpu.memory_space<vmem>>, vector<2x1x16xf32>
    tpu.vector_store %arg11[%c0_339, %c4_340, %c0_341], %807 {strides = array<i32>} : memref<2x16x32xf32, #tpu.memory_space<vmem>>, vector<2x1x16xf32>,
    %809 = vector.extract_strided_slice %805 {offsets = [0, 16], sizes = [2, 16], strides = [1, 1]} : vector<2x32xf32> to vector<2x16xf32>
    %810 = vector.shape_cast %809 : vector<2x16xf32> to vector<2x1x16xf32>
    %c0_342 = arith.constant 0 : index
    %c11_343 = arith.constant 11 : index
    %c16_344 = arith.constant 16 : index
    %811 = vector.load %arg11[%c0_342, %c11_343, %c16_344] : memref<2x16x32xf32, #tpu.memory_space<vmem>>, vector<2x1x16xf32>
    tpu.vector_store %arg11[%c0_342, %c11_343, %c16_344], %810 {strides = array<i32>} : memref<2x16x32xf32, #tpu.memory_space<vmem>>, vector<2x1x16xf32>,
    %812 = vector.extract_strided_slice %644 {offsets = [0, 5, 0], sizes = [2, 1, 128], strides = [1, 1, 1]} : vector<2x16x128xf32> to vector<2x1x128xf32>
    %813 = vector.shape_cast %812 : vector<2x1x128xf32> to vector<2x128xf32>
    %814 = arith.truncf %805 : vector<2x32xf32> to vector<2x32xbf16>
    %cst_345 = arith.constant dense<0.000000e+00> : vector<2x128xf32>
    %815 = tpu.matmul %814, %628, %cst_345 {dimension_numbers = #tpu.dot_dimension_numbers<[1], [0], [0], [1], [0, 0, 1, 1], [], []>} : vector<2x32xbf16>, vector<32x128xbf16>, vector<2x128xf32> -> vector<2x128xf32>
    %816 = arith.addf %813, %815 : vector<2x128xf32>
    %817 = math.tanh %816 : vector<2x128xf32>
    %818 = vector.extract_strided_slice %817 {offsets = [0, 0], sizes = [2, 32], strides = [1, 1]} : vector<2x128xf32> to vector<2x32xf32>
    %cst_346 = arith.constant 5.000000e-01 : f32
    %819 = vector.broadcast %cst_346 : f32 to vector<2x32xf32>
    %820 = arith.mulf %819, %818 : vector<2x32xf32>
    %cst_347 = arith.constant 5.000000e-01 : f32
    %821 = vector.broadcast %cst_347 : f32 to vector<2x32xf32>
    %822 = arith.addf %820, %821 : vector<2x32xf32>
    %823 = vector.extract_strided_slice %817 {offsets = [0, 32], sizes = [2, 32], strides = [1, 1]} : vector<2x128xf32> to vector<2x32xf32>
    %cst_348 = arith.constant 5.000000e-01 : f32
    %824 = vector.broadcast %cst_348 : f32 to vector<2x32xf32>
    %825 = arith.mulf %824, %823 : vector<2x32xf32>
    %cst_349 = arith.constant 5.000000e-01 : f32
    %826 = vector.broadcast %cst_349 : f32 to vector<2x32xf32>
    %827 = arith.addf %825, %826 : vector<2x32xf32>
    %828 = vector.extract_strided_slice %817 {offsets = [0, 64], sizes = [2, 32], strides = [1, 1]} : vector<2x128xf32> to vector<2x32xf32>
    %829 = vector.extract_strided_slice %817 {offsets = [0, 96], sizes = [2, 32], strides = [1, 1]} : vector<2x128xf32> to vector<2x32xf32>
    %cst_350 = arith.constant 5.000000e-01 : f32
    %830 = vector.broadcast %cst_350 : f32 to vector<2x32xf32>
    %831 = arith.mulf %830, %829 : vector<2x32xf32>
    %cst_351 = arith.constant 5.000000e-01 : f32
    %832 = vector.broadcast %cst_351 : f32 to vector<2x32xf32>
    %833 = arith.addf %831, %832 : vector<2x32xf32>
    %834 = arith.mulf %827, %803 : vector<2x32xf32>
    %835 = arith.mulf %822, %828 : vector<2x32xf32>
    %836 = arith.addf %834, %835 : vector<2x32xf32>
    %837 = math.tanh %836 : vector<2x32xf32>
    %838 = arith.mulf %833, %837 : vector<2x32xf32>
    %839 = vector.extract_strided_slice %838 {offsets = [0, 0], sizes = [2, 16], strides = [1, 1]} : vector<2x32xf32> to vector<2x16xf32>
    %840 = vector.shape_cast %839 : vector<2x16xf32> to vector<2x1x16xf32>
    %c0_352 = arith.constant 0 : index
    %c5_353 = arith.constant 5 : index
    %c0_354 = arith.constant 0 : index
    %841 = vector.load %arg11[%c0_352, %c5_353, %c0_354] : memref<2x16x32xf32, #tpu.memory_space<vmem>>, vector<2x1x16xf32>
    tpu.vector_store %arg11[%c0_352, %c5_353, %c0_354], %840 {strides = array<i32>} : memref<2x16x32xf32, #tpu.memory_space<vmem>>, vector<2x1x16xf32>,
    %842 = vector.extract_strided_slice %838 {offsets = [0, 16], sizes = [2, 16], strides = [1, 1]} : vector<2x32xf32> to vector<2x16xf32>
    %843 = vector.shape_cast %842 : vector<2x16xf32> to vector<2x1x16xf32>
    %c0_355 = arith.constant 0 : index
    %c10_356 = arith.constant 10 : index
    %c16_357 = arith.constant 16 : index
    %844 = vector.load %arg11[%c0_355, %c10_356, %c16_357] : memref<2x16x32xf32, #tpu.memory_space<vmem>>, vector<2x1x16xf32>
    tpu.vector_store %arg11[%c0_355, %c10_356, %c16_357], %843 {strides = array<i32>} : memref<2x16x32xf32, #tpu.memory_space<vmem>>, vector<2x1x16xf32>,
    %845 = vector.extract_strided_slice %644 {offsets = [0, 6, 0], sizes = [2, 1, 128], strides = [1, 1, 1]} : vector<2x16x128xf32> to vector<2x1x128xf32>
    %846 = vector.shape_cast %845 : vector<2x1x128xf32> to vector<2x128xf32>
    %847 = arith.truncf %838 : vector<2x32xf32> to vector<2x32xbf16>
    %cst_358 = arith.constant dense<0.000000e+00> : vector<2x128xf32>
    %848 = tpu.matmul %847, %628, %cst_358 {dimension_numbers = #tpu.dot_dimension_numbers<[1], [0], [0], [1], [0, 0, 1, 1], [], []>} : vector<2x32xbf16>, vector<32x128xbf16>, vector<2x128xf32> -> vector<2x128xf32>
    %849 = arith.addf %846, %848 : vector<2x128xf32>
    %850 = math.tanh %849 : vector<2x128xf32>
    %851 = vector.extract_strided_slice %850 {offsets = [0, 0], sizes = [2, 32], strides = [1, 1]} : vector<2x128xf32> to vector<2x32xf32>
    %cst_359 = arith.constant 5.000000e-01 : f32
    %852 = vector.broadcast %cst_359 : f32 to vector<2x32xf32>
    %853 = arith.mulf %852, %851 : vector<2x32xf32>
    %cst_360 = arith.constant 5.000000e-01 : f32
    %854 = vector.broadcast %cst_360 : f32 to vector<2x32xf32>
    %855 = arith.addf %853, %854 : vector<2x32xf32>
    %856 = vector.extract_strided_slice %850 {offsets = [0, 32], sizes = [2, 32], strides = [1, 1]} : vector<2x128xf32> to vector<2x32xf32>
    %cst_361 = arith.constant 5.000000e-01 : f32
    %857 = vector.broadcast %cst_361 : f32 to vector<2x32xf32>
    %858 = arith.mulf %857, %856 : vector<2x32xf32>
    %cst_362 = arith.constant 5.000000e-01 : f32
    %859 = vector.broadcast %cst_362 : f32 to vector<2x32xf32>
    %860 = arith.addf %858, %859 : vector<2x32xf32>
    %861 = vector.extract_strided_slice %850 {offsets = [0, 64], sizes = [2, 32], strides = [1, 1]} : vector<2x128xf32> to vector<2x32xf32>
    %862 = vector.extract_strided_slice %850 {offsets = [0, 96], sizes = [2, 32], strides = [1, 1]} : vector<2x128xf32> to vector<2x32xf32>
    %cst_363 = arith.constant 5.000000e-01 : f32
    %863 = vector.broadcast %cst_363 : f32 to vector<2x32xf32>
    %864 = arith.mulf %863, %862 : vector<2x32xf32>
    %cst_364 = arith.constant 5.000000e-01 : f32
    %865 = vector.broadcast %cst_364 : f32 to vector<2x32xf32>
    %866 = arith.addf %864, %865 : vector<2x32xf32>
    %867 = arith.mulf %860, %836 : vector<2x32xf32>
    %868 = arith.mulf %855, %861 : vector<2x32xf32>
    %869 = arith.addf %867, %868 : vector<2x32xf32>
    %870 = math.tanh %869 : vector<2x32xf32>
    %871 = arith.mulf %866, %870 : vector<2x32xf32>
    %872 = vector.extract_strided_slice %871 {offsets = [0, 0], sizes = [2, 16], strides = [1, 1]} : vector<2x32xf32> to vector<2x16xf32>
    %873 = vector.shape_cast %872 : vector<2x16xf32> to vector<2x1x16xf32>
    %c0_365 = arith.constant 0 : index
    %c6_366 = arith.constant 6 : index
    %c0_367 = arith.constant 0 : index
    %874 = vector.load %arg11[%c0_365, %c6_366, %c0_367] : memref<2x16x32xf32, #tpu.memory_space<vmem>>, vector<2x1x16xf32>
    tpu.vector_store %arg11[%c0_365, %c6_366, %c0_367], %873 {strides = array<i32>} : memref<2x16x32xf32, #tpu.memory_space<vmem>>, vector<2x1x16xf32>,
    %875 = vector.extract_strided_slice %871 {offsets = [0, 16], sizes = [2, 16], strides = [1, 1]} : vector<2x32xf32> to vector<2x16xf32>
    %876 = vector.shape_cast %875 : vector<2x16xf32> to vector<2x1x16xf32>
    %c0_368 = arith.constant 0 : index
    %c9_369 = arith.constant 9 : index
    %c16_370 = arith.constant 16 : index
    %877 = vector.load %arg11[%c0_368, %c9_369, %c16_370] : memref<2x16x32xf32, #tpu.memory_space<vmem>>, vector<2x1x16xf32>
    tpu.vector_store %arg11[%c0_368, %c9_369, %c16_370], %876 {strides = array<i32>} : memref<2x16x32xf32, #tpu.memory_space<vmem>>, vector<2x1x16xf32>,
    %878 = vector.extract_strided_slice %644 {offsets = [0, 7, 0], sizes = [2, 1, 128], strides = [1, 1, 1]} : vector<2x16x128xf32> to vector<2x1x128xf32>
    %879 = vector.shape_cast %878 : vector<2x1x128xf32> to vector<2x128xf32>
    %880 = arith.truncf %871 : vector<2x32xf32> to vector<2x32xbf16>
    %cst_371 = arith.constant dense<0.000000e+00> : vector<2x128xf32>
    %881 = tpu.matmul %880, %628, %cst_371 {dimension_numbers = #tpu.dot_dimension_numbers<[1], [0], [0], [1], [0, 0, 1, 1], [], []>} : vector<2x32xbf16>, vector<32x128xbf16>, vector<2x128xf32> -> vector<2x128xf32>
    %882 = arith.addf %879, %881 : vector<2x128xf32>
    %883 = math.tanh %882 : vector<2x128xf32>
    %884 = vector.extract_strided_slice %883 {offsets = [0, 0], sizes = [2, 32], strides = [1, 1]} : vector<2x128xf32> to vector<2x32xf32>
    %cst_372 = arith.constant 5.000000e-01 : f32
    %885 = vector.broadcast %cst_372 : f32 to vector<2x32xf32>
    %886 = arith.mulf %885, %884 : vector<2x32xf32>
    %cst_373 = arith.constant 5.000000e-01 : f32
    %887 = vector.broadcast %cst_373 : f32 to vector<2x32xf32>
    %888 = arith.addf %886, %887 : vector<2x32xf32>
    %889 = vector.extract_strided_slice %883 {offsets = [0, 32], sizes = [2, 32], strides = [1, 1]} : vector<2x128xf32> to vector<2x32xf32>
    %cst_374 = arith.constant 5.000000e-01 : f32
    %890 = vector.broadcast %cst_374 : f32 to vector<2x32xf32>
    %891 = arith.mulf %890, %889 : vector<2x32xf32>
    %cst_375 = arith.constant 5.000000e-01 : f32
    %892 = vector.broadcast %cst_375 : f32 to vector<2x32xf32>
    %893 = arith.addf %891, %892 : vector<2x32xf32>
    %894 = vector.extract_strided_slice %883 {offsets = [0, 64], sizes = [2, 32], strides = [1, 1]} : vector<2x128xf32> to vector<2x32xf32>
    %895 = vector.extract_strided_slice %883 {offsets = [0, 96], sizes = [2, 32], strides = [1, 1]} : vector<2x128xf32> to vector<2x32xf32>
    %cst_376 = arith.constant 5.000000e-01 : f32
    %896 = vector.broadcast %cst_376 : f32 to vector<2x32xf32>
    %897 = arith.mulf %896, %895 : vector<2x32xf32>
    %cst_377 = arith.constant 5.000000e-01 : f32
    %898 = vector.broadcast %cst_377 : f32 to vector<2x32xf32>
    %899 = arith.addf %897, %898 : vector<2x32xf32>
    %900 = arith.mulf %893, %869 : vector<2x32xf32>
    %901 = arith.mulf %888, %894 : vector<2x32xf32>
    %902 = arith.addf %900, %901 : vector<2x32xf32>
    %903 = math.tanh %902 : vector<2x32xf32>
    %904 = arith.mulf %899, %903 : vector<2x32xf32>
    %905 = vector.extract_strided_slice %904 {offsets = [0, 0], sizes = [2, 16], strides = [1, 1]} : vector<2x32xf32> to vector<2x16xf32>
    %906 = vector.shape_cast %905 : vector<2x16xf32> to vector<2x1x16xf32>
    %c0_378 = arith.constant 0 : index
    %c7_379 = arith.constant 7 : index
    %c0_380 = arith.constant 0 : index
    %907 = vector.load %arg11[%c0_378, %c7_379, %c0_380] : memref<2x16x32xf32, #tpu.memory_space<vmem>>, vector<2x1x16xf32>
    tpu.vector_store %arg11[%c0_378, %c7_379, %c0_380], %906 {strides = array<i32>} : memref<2x16x32xf32, #tpu.memory_space<vmem>>, vector<2x1x16xf32>,
    %908 = vector.extract_strided_slice %904 {offsets = [0, 16], sizes = [2, 16], strides = [1, 1]} : vector<2x32xf32> to vector<2x16xf32>
    %909 = vector.shape_cast %908 : vector<2x16xf32> to vector<2x1x16xf32>
    %c0_381 = arith.constant 0 : index
    %c8_382 = arith.constant 8 : index
    %c16_383 = arith.constant 16 : index
    %910 = vector.load %arg11[%c0_381, %c8_382, %c16_383] : memref<2x16x32xf32, #tpu.memory_space<vmem>>, vector<2x1x16xf32>
    tpu.vector_store %arg11[%c0_381, %c8_382, %c16_383], %909 {strides = array<i32>} : memref<2x16x32xf32, #tpu.memory_space<vmem>>, vector<2x1x16xf32>,
    %911 = vector.extract_strided_slice %644 {offsets = [0, 8, 0], sizes = [2, 1, 128], strides = [1, 1, 1]} : vector<2x16x128xf32> to vector<2x1x128xf32>
    %912 = vector.shape_cast %911 : vector<2x1x128xf32> to vector<2x128xf32>
    %913 = arith.truncf %904 : vector<2x32xf32> to vector<2x32xbf16>
    %cst_384 = arith.constant dense<0.000000e+00> : vector<2x128xf32>
    %914 = tpu.matmul %913, %628, %cst_384 {dimension_numbers = #tpu.dot_dimension_numbers<[1], [0], [0], [1], [0, 0, 1, 1], [], []>} : vector<2x32xbf16>, vector<32x128xbf16>, vector<2x128xf32> -> vector<2x128xf32>
    %915 = arith.addf %912, %914 : vector<2x128xf32>
    %916 = math.tanh %915 : vector<2x128xf32>
    %917 = vector.extract_strided_slice %916 {offsets = [0, 0], sizes = [2, 32], strides = [1, 1]} : vector<2x128xf32> to vector<2x32xf32>
    %cst_385 = arith.constant 5.000000e-01 : f32
    %918 = vector.broadcast %cst_385 : f32 to vector<2x32xf32>
    %919 = arith.mulf %918, %917 : vector<2x32xf32>
    %cst_386 = arith.constant 5.000000e-01 : f32
    %920 = vector.broadcast %cst_386 : f32 to vector<2x32xf32>
    %921 = arith.addf %919, %920 : vector<2x32xf32>
    %922 = vector.extract_strided_slice %916 {offsets = [0, 32], sizes = [2, 32], strides = [1, 1]} : vector<2x128xf32> to vector<2x32xf32>
    %cst_387 = arith.constant 5.000000e-01 : f32
    %923 = vector.broadcast %cst_387 : f32 to vector<2x32xf32>
    %924 = arith.mulf %923, %922 : vector<2x32xf32>
    %cst_388 = arith.constant 5.000000e-01 : f32
    %925 = vector.broadcast %cst_388 : f32 to vector<2x32xf32>
    %926 = arith.addf %924, %925 : vector<2x32xf32>
    %927 = vector.extract_strided_slice %916 {offsets = [0, 64], sizes = [2, 32], strides = [1, 1]} : vector<2x128xf32> to vector<2x32xf32>
    %928 = vector.extract_strided_slice %916 {offsets = [0, 96], sizes = [2, 32], strides = [1, 1]} : vector<2x128xf32> to vector<2x32xf32>
    %cst_389 = arith.constant 5.000000e-01 : f32
    %929 = vector.broadcast %cst_389 : f32 to vector<2x32xf32>
    %930 = arith.mulf %929, %928 : vector<2x32xf32>
    %cst_390 = arith.constant 5.000000e-01 : f32
    %931 = vector.broadcast %cst_390 : f32 to vector<2x32xf32>
    %932 = arith.addf %930, %931 : vector<2x32xf32>
    %933 = arith.mulf %926, %902 : vector<2x32xf32>
    %934 = arith.mulf %921, %927 : vector<2x32xf32>
    %935 = arith.addf %933, %934 : vector<2x32xf32>
    %936 = math.tanh %935 : vector<2x32xf32>
    %937 = arith.mulf %932, %936 : vector<2x32xf32>
    %938 = vector.extract_strided_slice %937 {offsets = [0, 0], sizes = [2, 16], strides = [1, 1]} : vector<2x32xf32> to vector<2x16xf32>
    %939 = vector.shape_cast %938 : vector<2x16xf32> to vector<2x1x16xf32>
    %c0_391 = arith.constant 0 : index
    %c8_392 = arith.constant 8 : index
    %c0_393 = arith.constant 0 : index
    %940 = vector.load %arg11[%c0_391, %c8_392, %c0_393] : memref<2x16x32xf32, #tpu.memory_space<vmem>>, vector<2x1x16xf32>
    tpu.vector_store %arg11[%c0_391, %c8_392, %c0_393], %939 {strides = array<i32>} : memref<2x16x32xf32, #tpu.memory_space<vmem>>, vector<2x1x16xf32>,
    %941 = vector.extract_strided_slice %937 {offsets = [0, 16], sizes = [2, 16], strides = [1, 1]} : vector<2x32xf32> to vector<2x16xf32>
    %942 = vector.shape_cast %941 : vector<2x16xf32> to vector<2x1x16xf32>
    %c0_394 = arith.constant 0 : index
    %c7_395 = arith.constant 7 : index
    %c16_396 = arith.constant 16 : index
    %943 = vector.load %arg11[%c0_394, %c7_395, %c16_396] : memref<2x16x32xf32, #tpu.memory_space<vmem>>, vector<2x1x16xf32>
    tpu.vector_store %arg11[%c0_394, %c7_395, %c16_396], %942 {strides = array<i32>} : memref<2x16x32xf32, #tpu.memory_space<vmem>>, vector<2x1x16xf32>,
    %944 = vector.extract_strided_slice %644 {offsets = [0, 9, 0], sizes = [2, 1, 128], strides = [1, 1, 1]} : vector<2x16x128xf32> to vector<2x1x128xf32>
    %945 = vector.shape_cast %944 : vector<2x1x128xf32> to vector<2x128xf32>
    %946 = arith.truncf %937 : vector<2x32xf32> to vector<2x32xbf16>
    %cst_397 = arith.constant dense<0.000000e+00> : vector<2x128xf32>
    %947 = tpu.matmul %946, %628, %cst_397 {dimension_numbers = #tpu.dot_dimension_numbers<[1], [0], [0], [1], [0, 0, 1, 1], [], []>} : vector<2x32xbf16>, vector<32x128xbf16>, vector<2x128xf32> -> vector<2x128xf32>
    %948 = arith.addf %945, %947 : vector<2x128xf32>
    %949 = math.tanh %948 : vector<2x128xf32>
    %950 = vector.extract_strided_slice %949 {offsets = [0, 0], sizes = [2, 32], strides = [1, 1]} : vector<2x128xf32> to vector<2x32xf32>
    %cst_398 = arith.constant 5.000000e-01 : f32
    %951 = vector.broadcast %cst_398 : f32 to vector<2x32xf32>
    %952 = arith.mulf %951, %950 : vector<2x32xf32>
    %cst_399 = arith.constant 5.000000e-01 : f32
    %953 = vector.broadcast %cst_399 : f32 to vector<2x32xf32>
    %954 = arith.addf %952, %953 : vector<2x32xf32>
    %955 = vector.extract_strided_slice %949 {offsets = [0, 32], sizes = [2, 32], strides = [1, 1]} : vector<2x128xf32> to vector<2x32xf32>
    %cst_400 = arith.constant 5.000000e-01 : f32
    %956 = vector.broadcast %cst_400 : f32 to vector<2x32xf32>
    %957 = arith.mulf %956, %955 : vector<2x32xf32>
    %cst_401 = arith.constant 5.000000e-01 : f32
    %958 = vector.broadcast %cst_401 : f32 to vector<2x32xf32>
    %959 = arith.addf %957, %958 : vector<2x32xf32>
    %960 = vector.extract_strided_slice %949 {offsets = [0, 64], sizes = [2, 32], strides = [1, 1]} : vector<2x128xf32> to vector<2x32xf32>
    %961 = vector.extract_strided_slice %949 {offsets = [0, 96], sizes = [2, 32], strides = [1, 1]} : vector<2x128xf32> to vector<2x32xf32>
    %cst_402 = arith.constant 5.000000e-01 : f32
    %962 = vector.broadcast %cst_402 : f32 to vector<2x32xf32>
    %963 = arith.mulf %962, %961 : vector<2x32xf32>
    %cst_403 = arith.constant 5.000000e-01 : f32
    %964 = vector.broadcast %cst_403 : f32 to vector<2x32xf32>
    %965 = arith.addf %963, %964 : vector<2x32xf32>
    %966 = arith.mulf %959, %935 : vector<2x32xf32>
    %967 = arith.mulf %954, %960 : vector<2x32xf32>
    %968 = arith.addf %966, %967 : vector<2x32xf32>
    %969 = math.tanh %968 : vector<2x32xf32>
    %970 = arith.mulf %965, %969 : vector<2x32xf32>
    %971 = vector.extract_strided_slice %970 {offsets = [0, 0], sizes = [2, 16], strides = [1, 1]} : vector<2x32xf32> to vector<2x16xf32>
    %972 = vector.shape_cast %971 : vector<2x16xf32> to vector<2x1x16xf32>
    %c0_404 = arith.constant 0 : index
    %c9_405 = arith.constant 9 : index
    %c0_406 = arith.constant 0 : index
    %973 = vector.load %arg11[%c0_404, %c9_405, %c0_406] : memref<2x16x32xf32, #tpu.memory_space<vmem>>, vector<2x1x16xf32>
    tpu.vector_store %arg11[%c0_404, %c9_405, %c0_406], %972 {strides = array<i32>} : memref<2x16x32xf32, #tpu.memory_space<vmem>>, vector<2x1x16xf32>,
    %974 = vector.extract_strided_slice %970 {offsets = [0, 16], sizes = [2, 16], strides = [1, 1]} : vector<2x32xf32> to vector<2x16xf32>
    %975 = vector.shape_cast %974 : vector<2x16xf32> to vector<2x1x16xf32>
    %c0_407 = arith.constant 0 : index
    %c6_408 = arith.constant 6 : index
    %c16_409 = arith.constant 16 : index
    %976 = vector.load %arg11[%c0_407, %c6_408, %c16_409] : memref<2x16x32xf32, #tpu.memory_space<vmem>>, vector<2x1x16xf32>
    tpu.vector_store %arg11[%c0_407, %c6_408, %c16_409], %975 {strides = array<i32>} : memref<2x16x32xf32, #tpu.memory_space<vmem>>, vector<2x1x16xf32>,
    %977 = vector.extract_strided_slice %644 {offsets = [0, 10, 0], sizes = [2, 1, 128], strides = [1, 1, 1]} : vector<2x16x128xf32> to vector<2x1x128xf32>
    %978 = vector.shape_cast %977 : vector<2x1x128xf32> to vector<2x128xf32>
    %979 = arith.truncf %970 : vector<2x32xf32> to vector<2x32xbf16>
    %cst_410 = arith.constant dense<0.000000e+00> : vector<2x128xf32>
    %980 = tpu.matmul %979, %628, %cst_410 {dimension_numbers = #tpu.dot_dimension_numbers<[1], [0], [0], [1], [0, 0, 1, 1], [], []>} : vector<2x32xbf16>, vector<32x128xbf16>, vector<2x128xf32> -> vector<2x128xf32>
    %981 = arith.addf %978, %980 : vector<2x128xf32>
    %982 = math.tanh %981 : vector<2x128xf32>
    %983 = vector.extract_strided_slice %982 {offsets = [0, 0], sizes = [2, 32], strides = [1, 1]} : vector<2x128xf32> to vector<2x32xf32>
    %cst_411 = arith.constant 5.000000e-01 : f32
    %984 = vector.broadcast %cst_411 : f32 to vector<2x32xf32>
    %985 = arith.mulf %984, %983 : vector<2x32xf32>
    %cst_412 = arith.constant 5.000000e-01 : f32
    %986 = vector.broadcast %cst_412 : f32 to vector<2x32xf32>
    %987 = arith.addf %985, %986 : vector<2x32xf32>
    %988 = vector.extract_strided_slice %982 {offsets = [0, 32], sizes = [2, 32], strides = [1, 1]} : vector<2x128xf32> to vector<2x32xf32>
    %cst_413 = arith.constant 5.000000e-01 : f32
    %989 = vector.broadcast %cst_413 : f32 to vector<2x32xf32>
    %990 = arith.mulf %989, %988 : vector<2x32xf32>
    %cst_414 = arith.constant 5.000000e-01 : f32
    %991 = vector.broadcast %cst_414 : f32 to vector<2x32xf32>
    %992 = arith.addf %990, %991 : vector<2x32xf32>
    %993 = vector.extract_strided_slice %982 {offsets = [0, 64], sizes = [2, 32], strides = [1, 1]} : vector<2x128xf32> to vector<2x32xf32>
    %994 = vector.extract_strided_slice %982 {offsets = [0, 96], sizes = [2, 32], strides = [1, 1]} : vector<2x128xf32> to vector<2x32xf32>
    %cst_415 = arith.constant 5.000000e-01 : f32
    %995 = vector.broadcast %cst_415 : f32 to vector<2x32xf32>
    %996 = arith.mulf %995, %994 : vector<2x32xf32>
    %cst_416 = arith.constant 5.000000e-01 : f32
    %997 = vector.broadcast %cst_416 : f32 to vector<2x32xf32>
    %998 = arith.addf %996, %997 : vector<2x32xf32>
    %999 = arith.mulf %992, %968 : vector<2x32xf32>
    %1000 = arith.mulf %987, %993 : vector<2x32xf32>
    %1001 = arith.addf %999, %1000 : vector<2x32xf32>
    %1002 = math.tanh %1001 : vector<2x32xf32>
    %1003 = arith.mulf %998, %1002 : vector<2x32xf32>
    %1004 = vector.extract_strided_slice %1003 {offsets = [0, 0], sizes = [2, 16], strides = [1, 1]} : vector<2x32xf32> to vector<2x16xf32>
    %1005 = vector.shape_cast %1004 : vector<2x16xf32> to vector<2x1x16xf32>
    %c0_417 = arith.constant 0 : index
    %c10_418 = arith.constant 10 : index
    %c0_419 = arith.constant 0 : index
    %1006 = vector.load %arg11[%c0_417, %c10_418, %c0_419] : memref<2x16x32xf32, #tpu.memory_space<vmem>>, vector<2x1x16xf32>
    tpu.vector_store %arg11[%c0_417, %c10_418, %c0_419], %1005 {strides = array<i32>} : memref<2x16x32xf32, #tpu.memory_space<vmem>>, vector<2x1x16xf32>,
    %1007 = vector.extract_strided_slice %1003 {offsets = [0, 16], sizes = [2, 16], strides = [1, 1]} : vector<2x32xf32> to vector<2x16xf32>
    %1008 = vector.shape_cast %1007 : vector<2x16xf32> to vector<2x1x16xf32>
    %c0_420 = arith.constant 0 : index
    %c5_421 = arith.constant 5 : index
    %c16_422 = arith.constant 16 : index
    %1009 = vector.load %arg11[%c0_420, %c5_421, %c16_422] : memref<2x16x32xf32, #tpu.memory_space<vmem>>, vector<2x1x16xf32>
    tpu.vector_store %arg11[%c0_420, %c5_421, %c16_422], %1008 {strides = array<i32>} : memref<2x16x32xf32, #tpu.memory_space<vmem>>, vector<2x1x16xf32>,
    %1010 = vector.extract_strided_slice %644 {offsets = [0, 11, 0], sizes = [2, 1, 128], strides = [1, 1, 1]} : vector<2x16x128xf32> to vector<2x1x128xf32>
    %1011 = vector.shape_cast %1010 : vector<2x1x128xf32> to vector<2x128xf32>
    %1012 = arith.truncf %1003 : vector<2x32xf32> to vector<2x32xbf16>
    %cst_423 = arith.constant dense<0.000000e+00> : vector<2x128xf32>
    %1013 = tpu.matmul %1012, %628, %cst_423 {dimension_numbers = #tpu.dot_dimension_numbers<[1], [0], [0], [1], [0, 0, 1, 1], [], []>} : vector<2x32xbf16>, vector<32x128xbf16>, vector<2x128xf32> -> vector<2x128xf32>
    %1014 = arith.addf %1011, %1013 : vector<2x128xf32>
    %1015 = math.tanh %1014 : vector<2x128xf32>
    %1016 = vector.extract_strided_slice %1015 {offsets = [0, 0], sizes = [2, 32], strides = [1, 1]} : vector<2x128xf32> to vector<2x32xf32>
    %cst_424 = arith.constant 5.000000e-01 : f32
    %1017 = vector.broadcast %cst_424 : f32 to vector<2x32xf32>
    %1018 = arith.mulf %1017, %1016 : vector<2x32xf32>
    %cst_425 = arith.constant 5.000000e-01 : f32
    %1019 = vector.broadcast %cst_425 : f32 to vector<2x32xf32>
    %1020 = arith.addf %1018, %1019 : vector<2x32xf32>
    %1021 = vector.extract_strided_slice %1015 {offsets = [0, 32], sizes = [2, 32], strides = [1, 1]} : vector<2x128xf32> to vector<2x32xf32>
    %cst_426 = arith.constant 5.000000e-01 : f32
    %1022 = vector.broadcast %cst_426 : f32 to vector<2x32xf32>
    %1023 = arith.mulf %1022, %1021 : vector<2x32xf32>
    %cst_427 = arith.constant 5.000000e-01 : f32
    %1024 = vector.broadcast %cst_427 : f32 to vector<2x32xf32>
    %1025 = arith.addf %1023, %1024 : vector<2x32xf32>
    %1026 = vector.extract_strided_slice %1015 {offsets = [0, 64], sizes = [2, 32], strides = [1, 1]} : vector<2x128xf32> to vector<2x32xf32>
    %1027 = vector.extract_strided_slice %1015 {offsets = [0, 96], sizes = [2, 32], strides = [1, 1]} : vector<2x128xf32> to vector<2x32xf32>
    %cst_428 = arith.constant 5.000000e-01 : f32
    %1028 = vector.broadcast %cst_428 : f32 to vector<2x32xf32>
    %1029 = arith.mulf %1028, %1027 : vector<2x32xf32>
    %cst_429 = arith.constant 5.000000e-01 : f32
    %1030 = vector.broadcast %cst_429 : f32 to vector<2x32xf32>
    %1031 = arith.addf %1029, %1030 : vector<2x32xf32>
    %1032 = arith.mulf %1025, %1001 : vector<2x32xf32>
    %1033 = arith.mulf %1020, %1026 : vector<2x32xf32>
    %1034 = arith.addf %1032, %1033 : vector<2x32xf32>
    %1035 = math.tanh %1034 : vector<2x32xf32>
    %1036 = arith.mulf %1031, %1035 : vector<2x32xf32>
    %1037 = vector.extract_strided_slice %1036 {offsets = [0, 0], sizes = [2, 16], strides = [1, 1]} : vector<2x32xf32> to vector<2x16xf32>
    %1038 = vector.shape_cast %1037 : vector<2x16xf32> to vector<2x1x16xf32>
    %c0_430 = arith.constant 0 : index
    %c11_431 = arith.constant 11 : index
    %c0_432 = arith.constant 0 : index
    %1039 = vector.load %arg11[%c0_430, %c11_431, %c0_432] : memref<2x16x32xf32, #tpu.memory_space<vmem>>, vector<2x1x16xf32>
    tpu.vector_store %arg11[%c0_430, %c11_431, %c0_432], %1038 {strides = array<i32>} : memref<2x16x32xf32, #tpu.memory_space<vmem>>, vector<2x1x16xf32>,
    %1040 = vector.extract_strided_slice %1036 {offsets = [0, 16], sizes = [2, 16], strides = [1, 1]} : vector<2x32xf32> to vector<2x16xf32>
    %1041 = vector.shape_cast %1040 : vector<2x16xf32> to vector<2x1x16xf32>
    %c0_433 = arith.constant 0 : index
    %c4_434 = arith.constant 4 : index
    %c16_435 = arith.constant 16 : index
    %1042 = vector.load %arg11[%c0_433, %c4_434, %c16_435] : memref<2x16x32xf32, #tpu.memory_space<vmem>>, vector<2x1x16xf32>
    tpu.vector_store %arg11[%c0_433, %c4_434, %c16_435], %1041 {strides = array<i32>} : memref<2x16x32xf32, #tpu.memory_space<vmem>>, vector<2x1x16xf32>,
    %1043 = vector.extract_strided_slice %644 {offsets = [0, 12, 0], sizes = [2, 1, 128], strides = [1, 1, 1]} : vector<2x16x128xf32> to vector<2x1x128xf32>
    %1044 = vector.shape_cast %1043 : vector<2x1x128xf32> to vector<2x128xf32>
    %1045 = arith.truncf %1036 : vector<2x32xf32> to vector<2x32xbf16>
    %cst_436 = arith.constant dense<0.000000e+00> : vector<2x128xf32>
    %1046 = tpu.matmul %1045, %628, %cst_436 {dimension_numbers = #tpu.dot_dimension_numbers<[1], [0], [0], [1], [0, 0, 1, 1], [], []>} : vector<2x32xbf16>, vector<32x128xbf16>, vector<2x128xf32> -> vector<2x128xf32>
    %1047 = arith.addf %1044, %1046 : vector<2x128xf32>
    %1048 = math.tanh %1047 : vector<2x128xf32>
    %1049 = vector.extract_strided_slice %1048 {offsets = [0, 0], sizes = [2, 32], strides = [1, 1]} : vector<2x128xf32> to vector<2x32xf32>
    %cst_437 = arith.constant 5.000000e-01 : f32
    %1050 = vector.broadcast %cst_437 : f32 to vector<2x32xf32>
    %1051 = arith.mulf %1050, %1049 : vector<2x32xf32>
    %cst_438 = arith.constant 5.000000e-01 : f32
    %1052 = vector.broadcast %cst_438 : f32 to vector<2x32xf32>
    %1053 = arith.addf %1051, %1052 : vector<2x32xf32>
    %1054 = vector.extract_strided_slice %1048 {offsets = [0, 32], sizes = [2, 32], strides = [1, 1]} : vector<2x128xf32> to vector<2x32xf32>
    %cst_439 = arith.constant 5.000000e-01 : f32
    %1055 = vector.broadcast %cst_439 : f32 to vector<2x32xf32>
    %1056 = arith.mulf %1055, %1054 : vector<2x32xf32>
    %cst_440 = arith.constant 5.000000e-01 : f32
    %1057 = vector.broadcast %cst_440 : f32 to vector<2x32xf32>
    %1058 = arith.addf %1056, %1057 : vector<2x32xf32>
    %1059 = vector.extract_strided_slice %1048 {offsets = [0, 64], sizes = [2, 32], strides = [1, 1]} : vector<2x128xf32> to vector<2x32xf32>
    %1060 = vector.extract_strided_slice %1048 {offsets = [0, 96], sizes = [2, 32], strides = [1, 1]} : vector<2x128xf32> to vector<2x32xf32>
    %cst_441 = arith.constant 5.000000e-01 : f32
    %1061 = vector.broadcast %cst_441 : f32 to vector<2x32xf32>
    %1062 = arith.mulf %1061, %1060 : vector<2x32xf32>
    %cst_442 = arith.constant 5.000000e-01 : f32
    %1063 = vector.broadcast %cst_442 : f32 to vector<2x32xf32>
    %1064 = arith.addf %1062, %1063 : vector<2x32xf32>
    %1065 = arith.mulf %1058, %1034 : vector<2x32xf32>
    %1066 = arith.mulf %1053, %1059 : vector<2x32xf32>
    %1067 = arith.addf %1065, %1066 : vector<2x32xf32>
    %1068 = math.tanh %1067 : vector<2x32xf32>
    %1069 = arith.mulf %1064, %1068 : vector<2x32xf32>
    %1070 = vector.extract_strided_slice %1069 {offsets = [0, 0], sizes = [2, 16], strides = [1, 1]} : vector<2x32xf32> to vector<2x16xf32>
    %1071 = vector.shape_cast %1070 : vector<2x16xf32> to vector<2x1x16xf32>
    %c0_443 = arith.constant 0 : index
    %c12_444 = arith.constant 12 : index
    %c0_445 = arith.constant 0 : index
    %1072 = vector.load %arg11[%c0_443, %c12_444, %c0_445] : memref<2x16x32xf32, #tpu.memory_space<vmem>>, vector<2x1x16xf32>
    tpu.vector_store %arg11[%c0_443, %c12_444, %c0_445], %1071 {strides = array<i32>} : memref<2x16x32xf32, #tpu.memory_space<vmem>>, vector<2x1x16xf32>,
    %1073 = vector.extract_strided_slice %1069 {offsets = [0, 16], sizes = [2, 16], strides = [1, 1]} : vector<2x32xf32> to vector<2x16xf32>
    %1074 = vector.shape_cast %1073 : vector<2x16xf32> to vector<2x1x16xf32>
    %c0_446 = arith.constant 0 : index
    %c3_447 = arith.constant 3 : index
    %c16_448 = arith.constant 16 : index
    %1075 = vector.load %arg11[%c0_446, %c3_447, %c16_448] : memref<2x16x32xf32, #tpu.memory_space<vmem>>, vector<2x1x16xf32>
    tpu.vector_store %arg11[%c0_446, %c3_447, %c16_448], %1074 {strides = array<i32>} : memref<2x16x32xf32, #tpu.memory_space<vmem>>, vector<2x1x16xf32>,
    %1076 = vector.extract_strided_slice %644 {offsets = [0, 13, 0], sizes = [2, 1, 128], strides = [1, 1, 1]} : vector<2x16x128xf32> to vector<2x1x128xf32>
    %1077 = vector.shape_cast %1076 : vector<2x1x128xf32> to vector<2x128xf32>
    %1078 = arith.truncf %1069 : vector<2x32xf32> to vector<2x32xbf16>
    %cst_449 = arith.constant dense<0.000000e+00> : vector<2x128xf32>
    %1079 = tpu.matmul %1078, %628, %cst_449 {dimension_numbers = #tpu.dot_dimension_numbers<[1], [0], [0], [1], [0, 0, 1, 1], [], []>} : vector<2x32xbf16>, vector<32x128xbf16>, vector<2x128xf32> -> vector<2x128xf32>
    %1080 = arith.addf %1077, %1079 : vector<2x128xf32>
    %1081 = math.tanh %1080 : vector<2x128xf32>
    %1082 = vector.extract_strided_slice %1081 {offsets = [0, 0], sizes = [2, 32], strides = [1, 1]} : vector<2x128xf32> to vector<2x32xf32>
    %cst_450 = arith.constant 5.000000e-01 : f32
    %1083 = vector.broadcast %cst_450 : f32 to vector<2x32xf32>
    %1084 = arith.mulf %1083, %1082 : vector<2x32xf32>
    %cst_451 = arith.constant 5.000000e-01 : f32
    %1085 = vector.broadcast %cst_451 : f32 to vector<2x32xf32>
    %1086 = arith.addf %1084, %1085 : vector<2x32xf32>
    %1087 = vector.extract_strided_slice %1081 {offsets = [0, 32], sizes = [2, 32], strides = [1, 1]} : vector<2x128xf32> to vector<2x32xf32>
    %cst_452 = arith.constant 5.000000e-01 : f32
    %1088 = vector.broadcast %cst_452 : f32 to vector<2x32xf32>
    %1089 = arith.mulf %1088, %1087 : vector<2x32xf32>
    %cst_453 = arith.constant 5.000000e-01 : f32
    %1090 = vector.broadcast %cst_453 : f32 to vector<2x32xf32>
    %1091 = arith.addf %1089, %1090 : vector<2x32xf32>
    %1092 = vector.extract_strided_slice %1081 {offsets = [0, 64], sizes = [2, 32], strides = [1, 1]} : vector<2x128xf32> to vector<2x32xf32>
    %1093 = vector.extract_strided_slice %1081 {offsets = [0, 96], sizes = [2, 32], strides = [1, 1]} : vector<2x128xf32> to vector<2x32xf32>
    %cst_454 = arith.constant 5.000000e-01 : f32
    %1094 = vector.broadcast %cst_454 : f32 to vector<2x32xf32>
    %1095 = arith.mulf %1094, %1093 : vector<2x32xf32>
    %cst_455 = arith.constant 5.000000e-01 : f32
    %1096 = vector.broadcast %cst_455 : f32 to vector<2x32xf32>
    %1097 = arith.addf %1095, %1096 : vector<2x32xf32>
    %1098 = arith.mulf %1091, %1067 : vector<2x32xf32>
    %1099 = arith.mulf %1086, %1092 : vector<2x32xf32>
    %1100 = arith.addf %1098, %1099 : vector<2x32xf32>
    %1101 = math.tanh %1100 : vector<2x32xf32>
    %1102 = arith.mulf %1097, %1101 : vector<2x32xf32>
    %1103 = vector.extract_strided_slice %1102 {offsets = [0, 0], sizes = [2, 16], strides = [1, 1]} : vector<2x32xf32> to vector<2x16xf32>
    %1104 = vector.shape_cast %1103 : vector<2x16xf32> to vector<2x1x16xf32>
    %c0_456 = arith.constant 0 : index
    %c13_457 = arith.constant 13 : index
    %c0_458 = arith.constant 0 : index
    %1105 = vector.load %arg11[%c0_456, %c13_457, %c0_458] : memref<2x16x32xf32, #tpu.memory_space<vmem>>, vector<2x1x16xf32>
    tpu.vector_store %arg11[%c0_456, %c13_457, %c0_458], %1104 {strides = array<i32>} : memref<2x16x32xf32, #tpu.memory_space<vmem>>, vector<2x1x16xf32>,
    %1106 = vector.extract_strided_slice %1102 {offsets = [0, 16], sizes = [2, 16], strides = [1, 1]} : vector<2x32xf32> to vector<2x16xf32>
    %1107 = vector.shape_cast %1106 : vector<2x16xf32> to vector<2x1x16xf32>
    %c0_459 = arith.constant 0 : index
    %c2_460 = arith.constant 2 : index
    %c16_461 = arith.constant 16 : index
    %1108 = vector.load %arg11[%c0_459, %c2_460, %c16_461] : memref<2x16x32xf32, #tpu.memory_space<vmem>>, vector<2x1x16xf32>
    tpu.vector_store %arg11[%c0_459, %c2_460, %c16_461], %1107 {strides = array<i32>} : memref<2x16x32xf32, #tpu.memory_space<vmem>>, vector<2x1x16xf32>,
    %1109 = vector.extract_strided_slice %644 {offsets = [0, 14, 0], sizes = [2, 1, 128], strides = [1, 1, 1]} : vector<2x16x128xf32> to vector<2x1x128xf32>
    %1110 = vector.shape_cast %1109 : vector<2x1x128xf32> to vector<2x128xf32>
    %1111 = arith.truncf %1102 : vector<2x32xf32> to vector<2x32xbf16>
    %cst_462 = arith.constant dense<0.000000e+00> : vector<2x128xf32>
    %1112 = tpu.matmul %1111, %628, %cst_462 {dimension_numbers = #tpu.dot_dimension_numbers<[1], [0], [0], [1], [0, 0, 1, 1], [], []>} : vector<2x32xbf16>, vector<32x128xbf16>, vector<2x128xf32> -> vector<2x128xf32>
    %1113 = arith.addf %1110, %1112 : vector<2x128xf32>
    %1114 = math.tanh %1113 : vector<2x128xf32>
    %1115 = vector.extract_strided_slice %1114 {offsets = [0, 0], sizes = [2, 32], strides = [1, 1]} : vector<2x128xf32> to vector<2x32xf32>
    %cst_463 = arith.constant 5.000000e-01 : f32
    %1116 = vector.broadcast %cst_463 : f32 to vector<2x32xf32>
    %1117 = arith.mulf %1116, %1115 : vector<2x32xf32>
    %cst_464 = arith.constant 5.000000e-01 : f32
    %1118 = vector.broadcast %cst_464 : f32 to vector<2x32xf32>
    %1119 = arith.addf %1117, %1118 : vector<2x32xf32>
    %1120 = vector.extract_strided_slice %1114 {offsets = [0, 32], sizes = [2, 32], strides = [1, 1]} : vector<2x128xf32> to vector<2x32xf32>
    %cst_465 = arith.constant 5.000000e-01 : f32
    %1121 = vector.broadcast %cst_465 : f32 to vector<2x32xf32>
    %1122 = arith.mulf %1121, %1120 : vector<2x32xf32>
    %cst_466 = arith.constant 5.000000e-01 : f32
    %1123 = vector.broadcast %cst_466 : f32 to vector<2x32xf32>
    %1124 = arith.addf %1122, %1123 : vector<2x32xf32>
    %1125 = vector.extract_strided_slice %1114 {offsets = [0, 64], sizes = [2, 32], strides = [1, 1]} : vector<2x128xf32> to vector<2x32xf32>
    %1126 = vector.extract_strided_slice %1114 {offsets = [0, 96], sizes = [2, 32], strides = [1, 1]} : vector<2x128xf32> to vector<2x32xf32>
    %cst_467 = arith.constant 5.000000e-01 : f32
    %1127 = vector.broadcast %cst_467 : f32 to vector<2x32xf32>
    %1128 = arith.mulf %1127, %1126 : vector<2x32xf32>
    %cst_468 = arith.constant 5.000000e-01 : f32
    %1129 = vector.broadcast %cst_468 : f32 to vector<2x32xf32>
    %1130 = arith.addf %1128, %1129 : vector<2x32xf32>
    %1131 = arith.mulf %1124, %1100 : vector<2x32xf32>
    %1132 = arith.mulf %1119, %1125 : vector<2x32xf32>
    %1133 = arith.addf %1131, %1132 : vector<2x32xf32>
    %1134 = math.tanh %1133 : vector<2x32xf32>
    %1135 = arith.mulf %1130, %1134 : vector<2x32xf32>
    %1136 = vector.extract_strided_slice %1135 {offsets = [0, 0], sizes = [2, 16], strides = [1, 1]} : vector<2x32xf32> to vector<2x16xf32>
    %1137 = vector.shape_cast %1136 : vector<2x16xf32> to vector<2x1x16xf32>
    %c0_469 = arith.constant 0 : index
    %c14_470 = arith.constant 14 : index
    %c0_471 = arith.constant 0 : index
    %1138 = vector.load %arg11[%c0_469, %c14_470, %c0_471] : memref<2x16x32xf32, #tpu.memory_space<vmem>>, vector<2x1x16xf32>
    tpu.vector_store %arg11[%c0_469, %c14_470, %c0_471], %1137 {strides = array<i32>} : memref<2x16x32xf32, #tpu.memory_space<vmem>>, vector<2x1x16xf32>,
    %1139 = vector.extract_strided_slice %1135 {offsets = [0, 16], sizes = [2, 16], strides = [1, 1]} : vector<2x32xf32> to vector<2x16xf32>
    %1140 = vector.shape_cast %1139 : vector<2x16xf32> to vector<2x1x16xf32>
    %c0_472 = arith.constant 0 : index
    %c1_473 = arith.constant 1 : index
    %c16_474 = arith.constant 16 : index
    %1141 = vector.load %arg11[%c0_472, %c1_473, %c16_474] : memref<2x16x32xf32, #tpu.memory_space<vmem>>, vector<2x1x16xf32>
    tpu.vector_store %arg11[%c0_472, %c1_473, %c16_474], %1140 {strides = array<i32>} : memref<2x16x32xf32, #tpu.memory_space<vmem>>, vector<2x1x16xf32>,
    %1142 = vector.extract_strided_slice %644 {offsets = [0, 15, 0], sizes = [2, 1, 128], strides = [1, 1, 1]} : vector<2x16x128xf32> to vector<2x1x128xf32>
    %1143 = vector.shape_cast %1142 : vector<2x1x128xf32> to vector<2x128xf32>
    %1144 = arith.truncf %1135 : vector<2x32xf32> to vector<2x32xbf16>
    %cst_475 = arith.constant dense<0.000000e+00> : vector<2x128xf32>
    %1145 = tpu.matmul %1144, %628, %cst_475 {dimension_numbers = #tpu.dot_dimension_numbers<[1], [0], [0], [1], [0, 0, 1, 1], [], []>} : vector<2x32xbf16>, vector<32x128xbf16>, vector<2x128xf32> -> vector<2x128xf32>
    %1146 = arith.addf %1143, %1145 : vector<2x128xf32>
    %1147 = math.tanh %1146 : vector<2x128xf32>
    %1148 = vector.extract_strided_slice %1147 {offsets = [0, 0], sizes = [2, 32], strides = [1, 1]} : vector<2x128xf32> to vector<2x32xf32>
    %cst_476 = arith.constant 5.000000e-01 : f32
    %1149 = vector.broadcast %cst_476 : f32 to vector<2x32xf32>
    %1150 = arith.mulf %1149, %1148 : vector<2x32xf32>
    %cst_477 = arith.constant 5.000000e-01 : f32
    %1151 = vector.broadcast %cst_477 : f32 to vector<2x32xf32>
    %1152 = arith.addf %1150, %1151 : vector<2x32xf32>
    %1153 = vector.extract_strided_slice %1147 {offsets = [0, 32], sizes = [2, 32], strides = [1, 1]} : vector<2x128xf32> to vector<2x32xf32>
    %cst_478 = arith.constant 5.000000e-01 : f32
    %1154 = vector.broadcast %cst_478 : f32 to vector<2x32xf32>
    %1155 = arith.mulf %1154, %1153 : vector<2x32xf32>
    %cst_479 = arith.constant 5.000000e-01 : f32
    %1156 = vector.broadcast %cst_479 : f32 to vector<2x32xf32>
    %1157 = arith.addf %1155, %1156 : vector<2x32xf32>
    %1158 = vector.extract_strided_slice %1147 {offsets = [0, 64], sizes = [2, 32], strides = [1, 1]} : vector<2x128xf32> to vector<2x32xf32>
    %1159 = vector.extract_strided_slice %1147 {offsets = [0, 96], sizes = [2, 32], strides = [1, 1]} : vector<2x128xf32> to vector<2x32xf32>
    %cst_480 = arith.constant 5.000000e-01 : f32
    %1160 = vector.broadcast %cst_480 : f32 to vector<2x32xf32>
    %1161 = arith.mulf %1160, %1159 : vector<2x32xf32>
    %cst_481 = arith.constant 5.000000e-01 : f32
    %1162 = vector.broadcast %cst_481 : f32 to vector<2x32xf32>
    %1163 = arith.addf %1161, %1162 : vector<2x32xf32>
    %1164 = arith.mulf %1157, %1133 : vector<2x32xf32>
    %1165 = arith.mulf %1152, %1158 : vector<2x32xf32>
    %1166 = arith.addf %1164, %1165 : vector<2x32xf32>
    %1167 = math.tanh %1166 : vector<2x32xf32>
    %1168 = arith.mulf %1163, %1167 : vector<2x32xf32>
    %1169 = vector.extract_strided_slice %1168 {offsets = [0, 0], sizes = [2, 16], strides = [1, 1]} : vector<2x32xf32> to vector<2x16xf32>
    %1170 = vector.shape_cast %1169 : vector<2x16xf32> to vector<2x1x16xf32>
    %c0_482 = arith.constant 0 : index
    %c15_483 = arith.constant 15 : index
    %c0_484 = arith.constant 0 : index
    %1171 = vector.load %arg11[%c0_482, %c15_483, %c0_484] : memref<2x16x32xf32, #tpu.memory_space<vmem>>, vector<2x1x16xf32>
    tpu.vector_store %arg11[%c0_482, %c15_483, %c0_484], %1170 {strides = array<i32>} : memref<2x16x32xf32, #tpu.memory_space<vmem>>, vector<2x1x16xf32>,
    %1172 = vector.extract_strided_slice %1168 {offsets = [0, 16], sizes = [2, 16], strides = [1, 1]} : vector<2x32xf32> to vector<2x16xf32>
    %1173 = vector.shape_cast %1172 : vector<2x16xf32> to vector<2x1x16xf32>
    %c0_485 = arith.constant 0 : index
    %c0_486 = arith.constant 0 : index
    %c16_487 = arith.constant 16 : index
    %1174 = vector.load %arg11[%c0_485, %c0_486, %c16_487] : memref<2x16x32xf32, #tpu.memory_space<vmem>>, vector<2x1x16xf32>
    tpu.vector_store %arg11[%c0_485, %c0_486, %c16_487], %1173 {strides = array<i32>} : memref<2x16x32xf32, #tpu.memory_space<vmem>>, vector<2x1x16xf32>,
    %c0_488 = arith.constant 0 : index
    %c0_489 = arith.constant 0 : index
    %c0_490 = arith.constant 0 : index
    %1175 = vector.load %arg11[%c0_488, %c0_489, %c0_490] : memref<2x16x32xf32, #tpu.memory_space<vmem>>, vector<2x16x32xf32>
    %c0_491 = arith.constant 0 : index
    %c0_492 = arith.constant 0 : index
    %c0_493 = arith.constant 0 : index
    %1176 = vector.load %arg10[%c0_491, %c0_492, %c0_493] : memref<2x16x32xf32, #tpu.memory_space<vmem>>, vector<2x16x32xf32>
    tpu.vector_store %arg10[%c0_491, %c0_492, %c0_493], %1175 {strides = array<i32>} : memref<2x16x32xf32, #tpu.memory_space<vmem>>, vector<2x16x32xf32>,
    return
  }
}

</mosaic_0001>

<llo_original>
// kernel: encoder_forward.1
$region0: #{encoder_forward.1}
  #allocation0 [shape = 'u32[]', space=smem, size = 0x4, offset = 0x4, fixed_abs, tag = 'smem constant byte address 0x4 - core index']
  #allocation1 [shape = 'u32[144,128]{1,0:T(1,128)}', space=vmem, size = 0x12000, scoped, tag = 'internal scratch']
  #allocation2 [shape = 'f32[2,16,32]{2,1,0:T(8,128)}', space=vmem, size = 0x4000, scoped, tag = 'scratch operand']
  %s0 = inlined_call_operand.vmem [shape: f32[2,16,16], index: 0, kind: input, shape index: {}]
  %s1 = inlined_call_operand.vmem [shape: bf16[5,16,32], index: 1, kind: input, shape index: {}]
  %s2 = inlined_call_operand.hbm [shape: bf16[5,32,32], index: 2, kind: input, shape index: {}]
  %s3 = inlined_call_operand.hbm [shape: f32[1,32], index: 3, kind: input, shape index: {}]
  %s4 = inlined_call_operand.hbm [shape: f32[1,32], index: 4, kind: input, shape index: {}]
  %s5 = inlined_call_operand.vmem [shape: bf16[2,32,128], index: 5, kind: input, shape index: {}]
  %s6 = inlined_call_operand.hbm [shape: bf16[2,32,128], index: 6, kind: input, shape index: {}]
  %s7 = inlined_call_operand.hbm [shape: bf16[2,32,128], index: 7, kind: input, shape index: {}]
  %s8 = inlined_call_operand.vmem [shape: f32[2,1,128], index: 8, kind: input, shape index: {}]
  %s9 = inlined_call_operand.hbm [shape: bf16[32,32], index: 9, kind: input, shape index: {}]
  %s10 = inlined_call_operand.hbm [shape: f32[2,16,32], index: 10, kind: output, shape index: {}]
  %s11 = sld [smem:[#allocation0]]
  $region74: #{encoder_forward.1} parent=0
    _
  %s13 = ssub.s32 1, %s11
  %s14 = scalar_select 0, %s13, %s11
  $region1: #{encoder_forward.1} parent=0
    #allocation3 [shape = 'u8[40960]{0}', space=vmem, size = 0xa000, scoped, tag = 'input window, operand 2, single buffered']
    #allocation4 [shape = 's32[1]{0}', space=sflag, size = 0x4, scoped, tag = 'scoped memory for encoder_forward.1']
    #allocation5 [shape = 's32[1]{0}', space=sflag, size = 0x4, scoped, tag = 'scoped memory for encoder_forward.1']
    #allocation6 [shape = 'u8[512]{0}', space=vmem, size = 0x400, scoped, tag = 'input window, operand 3, single buffered']
    #allocation7 [shape = 's32[1]{0}', space=sflag, size = 0x4, scoped, tag = 'scoped memory for encoder_forward.1']
    #allocation8 [shape = 'u8[512]{0}', space=vmem, size = 0x400, scoped, tag = 'input window, operand 4, single buffered']
    #allocation9 [shape = 'u8[16384]{0}', space=vmem, size = 0x4000, scoped, tag = 'input window, operand 6, single buffered']
    #allocation10 [shape = 's32[1]{0}', space=sflag, size = 0x4, scoped, tag = 'scoped memory for encoder_forward.1']
    #allocation11 [shape = 'u8[16384]{0}', space=vmem, size = 0x4000, scoped, tag = 'input window, operand 7, single buffered']
    #allocation12 [shape = 'u8[8192]{0}', space=vmem, size = 0x2000, scoped, tag = 'input window, operand 9, single buffered']
    #allocation13 [shape = 's32[1]{0}', space=sflag, size = 0x4, scoped, tag = 'scoped memory for encoder_forward.1']
    #allocation14 [shape = 'u8[16384]{0}', space=vmem, size = 0x4000, scoped, tag = 'output window, operand 0, single buffered']
    %15 = vsyncpa [#allocation4], 0
    %16 = vsyncpa [#allocation7], 0
    %17 = vsyncpa [#allocation10], 0
    %18 = vsyncpa [#allocation13], 0
    %19 = vsyncpa [#allocation5], 0
    // Predicated region
    $region2: #{encoder_forward.1} parent=1 // pred_check
      _
    $region3: #{encoder_forward.1} parent=1 // pred_check_branch
      %21 = sbr.rel (0) target = $region5
    $region4: #{encoder_forward.1} parent=1 // pred_region
      _
    $region5: #{encoder_forward.1} parent=1 // pred_fallthru
      _
    // Predicated region
    $region6: #{encoder_forward.1} parent=1 // pred_check
      _
    $region7: #{encoder_forward.1} parent=1 // pred_check_branch
      %23 = sbr.rel (0) target = $region9
    $region8: #{encoder_forward.1} parent=1 // pred_region
      _
    $region9: #{encoder_forward.1} parent=1 // pred_fallthru
      _
    // Predicated region
    $region10: #{encoder_forward.1} parent=1 // pred_check
      _
    $region11: #{encoder_forward.1} parent=1 // pred_check_branch
      %25 = sbr.rel (0) target = $region13
    $region12: #{encoder_forward.1} parent=1 // pred_region
      %s27 = ssub.s32 1280, 1280
      %28 = vsyncadd [#allocation4], %s27
      %s29 = sshll.u32 [#allocation3], 4
      %s30 = int_to_ptr.vmem [resolvable:$true] %s29
      %35 = dma.hbm_to_vmem [thread:$0]  %s2, 1280, %s30, [#allocation4], 64, 64, 4
    $region13: #{encoder_forward.1} parent=1 // pred_fallthru
      _
    // Predicated region
    $region14: #{encoder_forward.1} parent=1 // pred_check
      _
    $region15: #{encoder_forward.1} parent=1 // pred_check_branch
      %37 = sbr.rel (0) target = $region17
    $region16: #{encoder_forward.1} parent=1 // pred_region
      %s39 = ssub.s32 16, 16
      %40 = vsyncadd [#allocation7], %s39
      %s42 = sshll.u32 [#allocation6], 4
      %s43 = int_to_ptr.vmem [resolvable:$true] %s42
      %45 = dma.hbm_to_vmem [thread:$0]  %s3, 16, %s43, [#allocation7]
    $region17: #{encoder_forward.1} parent=1 // pred_fallthru
      _
    // Predicated region
    $region18: #{encoder_forward.1} parent=1 // pred_check
      _
    $region19: #{encoder_forward.1} parent=1 // pred_check_branch
      %47 = sbr.rel (0) target = $region21
    $region20: #{encoder_forward.1} parent=1 // pred_region
      %s49 = ssub.s32 16, 16
      %50 = vsyncadd [#allocation7], %s49
      %s52 = sshll.u32 [#allocation8], 4
      %s53 = int_to_ptr.vmem [resolvable:$true] %s52
      %55 = dma.hbm_to_vmem [thread:$0]  %s4, 16, %s53, [#allocation7]
    $region21: #{encoder_forward.1} parent=1 // pred_fallthru
      _
    // Predicated region
    $region22: #{encoder_forward.1} parent=1 // pred_check
      _
    $region23: #{encoder_forward.1} parent=1 // pred_check_branch
      %57 = sbr.rel (0) target = $region25
    $region24: #{encoder_forward.1} parent=1 // pred_region
      _
    $region25: #{encoder_forward.1} parent=1 // pred_fallthru
      _
    // Predicated region
    $region26: #{encoder_forward.1} parent=1 // pred_check
      _
    $region27: #{encoder_forward.1} parent=1 // pred_check_branch
      %59 = sbr.rel (0) target = $region29
    $region28: #{encoder_forward.1} parent=1 // pred_region
      %s61 = ssub.s32 512, 512
      %62 = vsyncadd [#allocation10], %s61
      %s63 = sshll.u32 [#allocation9], 4
      %s64 = int_to_ptr.vmem [resolvable:$true] %s63
      %69 = dma.hbm_to_vmem [thread:$0]  %s6, 512, %s64, [#allocation10], 64, 64, 4
    $region29: #{encoder_forward.1} parent=1 // pred_fallthru
      _
    // Predicated region
    $region30: #{encoder_forward.1} parent=1 // pred_check
      _
    $region31: #{encoder_forward.1} parent=1 // pred_check_branch
      %71 = sbr.rel (0) target = $region33
    $region32: #{encoder_forward.1} parent=1 // pred_region
      %s73 = ssub.s32 512, 512
      %74 = vsyncadd [#allocation10], %s73
      %s75 = sshll.u32 [#allocation11], 4
      %s76 = int_to_ptr.vmem [resolvable:$true] %s75
      %81 = dma.hbm_to_vmem [thread:$0]  %s7, 512, %s76, [#allocation10], 64, 64, 4
    $region33: #{encoder_forward.1} parent=1 // pred_fallthru
      _
    // Predicated region
    $region34: #{encoder_forward.1} parent=1 // pred_check
      _
    $region35: #{encoder_forward.1} parent=1 // pred_check_branch
      %83 = sbr.rel (0) target = $region37
    $region36: #{encoder_forward.1} parent=1 // pred_region
      _
    $region37: #{encoder_forward.1} parent=1 // pred_fallthru
      _
    // Predicated region
    $region38: #{encoder_forward.1} parent=1 // pred_check
      _
    $region39: #{encoder_forward.1} parent=1 // pred_check_branch
      %85 = sbr.rel (0) target = $region41
    $region40: #{encoder_forward.1} parent=1 // pred_region
      %s87 = ssub.s32 256, 256
      %88 = vsyncadd [#allocation13], %s87
      %s89 = sshll.u32 [#allocation12], 4
      %s90 = int_to_ptr.vmem [resolvable:$true] %s89
      %95 = dma.hbm_to_vmem [thread:$0]  %s9, 256, %s90, [#allocation13], 64, 64, 4
    $region41: #{encoder_forward.1} parent=1 // pred_fallthru
      _
    // Predicated region
    $region42: #{encoder_forward.1} parent=1 // pred_check
      _
    $region43: #{encoder_forward.1} parent=1 // pred_check_branch
      %97 = sbr.rel (0) target = $region45
    $region44: #{encoder_forward.1} parent=1 // pred_region
      %98 = dma.done [#allocation4], 1280
    $region45: #{encoder_forward.1} parent=1 // pred_fallthru
      _
    // Predicated region
    $region46: #{encoder_forward.1} parent=1 // pred_check
      _
    $region47: #{encoder_forward.1} parent=1 // pred_check_branch
      %100 = sbr.rel (0) target = $region49
    $region48: #{encoder_forward.1} parent=1 // pred_region
      %101 = dma.done [#allocation7], 16
    $region49: #{encoder_forward.1} parent=1 // pred_fallthru
      _
    // Predicated region
    $region50: #{encoder_forward.1} parent=1 // pred_check
      _
    $region51: #{encoder_forward.1} parent=1 // pred_check_branch
      %103 = sbr.rel (0) target = $region53
    $region52: #{encoder_forward.1} parent=1 // pred_region
      %104 = dma.done [#allocation7], 16
    $region53: #{encoder_forward.1} parent=1 // pred_fallthru
      _
    // Predicated region
    $region54: #{encoder_forward.1} parent=1 // pred_check
      _
    $region55: #{encoder_forward.1} parent=1 // pred_check_branch
      %106 = sbr.rel (0) target = $region57
    $region56: #{encoder_forward.1} parent=1 // pred_region
      %107 = dma.done [#allocation10], 512
    $region57: #{encoder_forward.1} parent=1 // pred_fallthru
      _
    // Predicated region
    $region58: #{encoder_forward.1} parent=1 // pred_check
      _
    $region59: #{encoder_forward.1} parent=1 // pred_check_branch
      %109 = sbr.rel (0) target = $region61
    $region60: #{encoder_forward.1} parent=1 // pred_region
      %110 = dma.done [#allocation10], 512
    $region61: #{encoder_forward.1} parent=1 // pred_fallthru
      _
    // Predicated region
    $region62: #{encoder_forward.1} parent=1 // pred_check
      _
    $region63: #{encoder_forward.1} parent=1 // pred_check_branch
      %112 = sbr.rel (0) target = $region65
    $region64: #{encoder_forward.1} parent=1 // pred_region
      %113 = dma.done [#allocation13], 256
    $region65: #{encoder_forward.1} parent=1 // pred_fallthru
      _
    %v115 = vld [vmem:[%s0] sm:$0xff]
    %v116 = vld [vmem:[%s0 + $0x8] sm:$0xff]
    %v117 = vld [vmem:[%s0 + $0x10] sm:$0xff]
    %v118 = vld [vmem:[%s0 + $0x18] sm:$0xff]
    %v119 = vpack.c.bf16 %v116, %v115
    %v120 = vpack.c.bf16 %v118, %v117
    %v123 = vrot.slane %v119, 7
    %v124 = vrot.slane %v120, 7
    %vm125 = vcmask 1040384
    %v128 = vsel %vm125, 0, %v123
    %v130 = vsel %vm125, 0, %v124
    %v131 = vsel %vm125, %v123, 0
    %v132 = vsel %vm125, %v124, 0
    %v133 = vld [vmem:[#allocation6] sm:$0x1]
    %v134 = vld [vmem:[%s1] sm:$0xf]
    %v135 = vld [vmem:[%s1 + $0x4] sm:$0xf]
    %v138 = vunpack.c.l.b16 %v134
    %v139 = vunpack.c.l.b16 %v135
    %v140 = vpack.c.b16 %v139, %v138
    %vm142 = vcmask 130048
    %v143 = vsel %vm142, %v128, 0
    %v145 = vsel %vm142, %v130, 0
    %147 = vmatprep.subr.bf16.mxu0 0
    %148 = vmatpush1.bf16.msra.mxu0 0
    %149 = vmatprep.subr.bf16.mxu0 0
    %150 = vmatpush1.bf16.msra.mxu0 0
    %151 = vmatprep.subr.bf16.mxu0 0
    %152 = vmatpush1.bf16.msra.mxu0 0
    %153 = vmatprep.subr.bf16.mxu0 0
    %154 = vmatpush1.bf16.msra.mxu0 0
    %155 = vmatprep.subr.bf16.mxu0 0
    %156 = vmatpush1.bf16.msra.mxu0 0
    %157 = vmatprep.subr.bf16.mxu0 0
    %158 = vmatpush1.bf16.msra.mxu0 0
    %159 = vmatprep.subr.bf16.mxu0 0
    %160 = vmatpush1.bf16.msra.mxu0 0
    %161 = vmatprep.subr.bf16.mxu0 0
    %162 = vmatpush1.bf16.msra.mxu0 %v140
    %163 = vmatprep.subr.bf16.mxu0 0
    %164 = vmatpush2.bf16.msra.mxu0 0
    %165 = vmatprep.subr.bf16.mxu0 0
    %166 = vmatpush2.bf16.msra.mxu0 0
    %167 = vmatprep.subr.bf16.mxu0 0
    %168 = vmatpush2.bf16.msra.mxu0 0
    %169 = vmatprep.subr.bf16.mxu0 0
    %170 = vmatpush2.bf16.msra.mxu0 0
    %171 = vmatprep.subr.bf16.mxu0 0
    %172 = vmatpush2.bf16.msra.mxu0 0
    %173 = vmatprep.subr.bf16.mxu0 0
    %174 = vmatpush2.bf16.msra.mxu0 0
    %175 = vmatprep.subr.bf16.mxu0 0
    %176 = vmatpush2.bf16.msra.mxu0 0
    %177 = vmatprep.subr.bf16.mxu0 0
    %178 = vmatpush2.bf16.msra.mxu0 0
    %179 = vmatprep.mubr.bf16.mxu0 0
    %180 = vmatmul.mubr.bf16.gmra.mxu0 %v143
    %v181 = vpop.f32.mrf.mxu0
    %v182 = vadd.f32 0.0, %v181
    %v183 = vpop.f32.mrf.mxu0
    %v184 = vpop.f32.mrf.mxu0
    %v185 = vadd.f32 0.0, %v184
    %v186 = vpop.f32.mrf.mxu0
    %187 = vmatprep.mubr.bf16.mxu0 0
    %188 = vmatmul.mubr.bf16.gmra.mxu0 %v145
    %v189 = vpop.f32.mrf.mxu0
    %v190 = vadd.f32 0.0, %v189
    %v191 = vpop.f32.mrf.mxu0
    %v192 = vpop.f32.mrf.mxu0
    %v193 = vadd.f32 0.0, %v192
    %v194 = vpop.f32.mrf.mxu0
    %195 = vdwg.mxu0
    %v197 = vlaneseq
    %v198 = vshrl.u32 %v197, 7
    %v199 = vsub.s32 0, %v198
    %v200 = vrot.slane %v133, %v199
    %v202 = vadd.f32 %v200, %v182
    %v203 = vadd.f32 %v200, %v185
    %v204 = vadd.f32 %v200, %v190
    %v205 = vadd.f32 %v200, %v193
    %vm206 = vsmask.f32 7424
    %v207 = vshrl.u32 %v128, 16
    %v209 = vshll.u32 %v128, 16
    %v211 = vrot.slane %v209, 1
    %v212 = vor.u32 %v207, %v211
    %v213 = vshll.u32 %v131, 16
    %v215 = vrot.slane %v213, 1
    %v216 = vsel %vm206, %v212, %v215
    %v217 = vshrl.u32 %v130, 16
    %v219 = vshll.u32 %v130, 16
    %v221 = vrot.slane %v219, 1
    %v222 = vor.u32 %v217, %v221
    %v223 = vshll.u32 %v132, 16
    %v225 = vrot.slane %v223, 1
    %v226 = vsel %vm206, %v222, %v225
    %s227 = scalar_lea.vmem %s1, 8
    %v228 = vld [vmem:[%s227] sm:$0xf]
    %v229 = vld [vmem:[%s227 + $0x4] sm:$0xf]
    %v232 = vunpack.c.l.b16 %v228
    %v233 = vunpack.c.l.b16 %v229
    %v234 = vpack.c.b16 %v233, %v232
    %v237 = vsel %vm142, %v216, 0
    %v240 = vsel %vm142, %v226, 0
    %242 = vmatprep.subr.bf16.mxu0 0
    %243 = vmatpush1.bf16.msra.mxu0 0
    %244 = vmatprep.subr.bf16.mxu0 0
    %245 = vmatpush1.bf16.msra.mxu0 0
    %246 = vmatprep.subr.bf16.mxu0 0
    %247 = vmatpush1.bf16.msra.mxu0 0
    %248 = vmatprep.subr.bf16.mxu0 0
    %249 = vmatpush1.bf16.msra.mxu0 0
    %250 = vmatprep.subr.bf16.mxu0 0
    %251 = vmatpush1.bf16.msra.mxu0 0
    %252 = vmatprep.subr.bf16.mxu0 0
    %253 = vmatpush1.bf16.msra.mxu0 0
    %254 = vmatprep.subr.bf16.mxu0 0
    %255 = vmatpush1.bf16.msra.mxu0 0
    %256 = vmatprep.subr.bf16.mxu0 0
    %257 = vmatpush1.bf16.msra.mxu0 %v234
    %258 = vmatprep.subr.bf16.mxu0 0
    %259 = vmatpush2.bf16.msra.mxu0 0
    %260 = vmatprep.subr.bf16.mxu0 0
    %261 = vmatpush2.bf16.msra.mxu0 0
    %262 = vmatprep.subr.bf16.mxu0 0
    %263 = vmatpush2.bf16.msra.mxu0 0
    %264 = vmatprep.subr.bf16.mxu0 0
    %265 = vmatpush2.bf16.msra.mxu0 0
    %266 = vmatprep.subr.bf16.mxu0 0
    %267 = vmatpush2.bf16.msra.mxu0 0
    %268 = vmatprep.subr.bf16.mxu0 0
    %269 = vmatpush2.bf16.msra.mxu0 0
    %270 = vmatprep.subr.bf16.mxu0 0
    %271 = vmatpush2.bf16.msra.mxu0 0
    %272 = vmatprep.subr.bf16.mxu0 0
    %273 = vmatpush2.bf16.msra.mxu0 0
    %274 = vmatprep.mubr.bf16.mxu0 0
    %275 = vmatmul.mubr.bf16.gmra.mxu0 %v237
    %v276 = vpop.f32.mrf.mxu0
    %v277 = vadd.f32 0.0, %v276
    %v278 = vpop.f32.mrf.mxu0
    %v279 = vpop.f32.mrf.mxu0
    %v280 = vadd.f32 0.0, %v279
    %v281 = vpop.f32.mrf.mxu0
    %282 = vmatprep.mubr.bf16.mxu0 0
    %283 = vmatmul.mubr.bf16.gmra.mxu0 %v240
    %v284 = vpop.f32.mrf.mxu0
    %v285 = vadd.f32 0.0, %v284
    %v286 = vpop.f32.mrf.mxu0
    %v287 = vpop.f32.mrf.mxu0
    %v288 = vadd.f32 0.0, %v287
    %v289 = vpop.f32.mrf.mxu0
    %290 = vdwg.mxu0
    %v291 = vadd.f32 %v202, %v277
    %v292 = vadd.f32 %v203, %v280
    %v293 = vadd.f32 %v204, %v285
    %v294 = vadd.f32 %v205, %v288
    %vm299 = vcmask 1046528
    %v300 = vrot.slane %v128, 1
    %v301 = vrot.slane %v131, 1
    %v302 = vsel %vm299, %v300, %v301
    %v303 = vrot.slane %v130, 1
    %v304 = vrot.slane %v132, 1
    %v305 = vsel %vm299, %v303, %v304
    %s306 = scalar_lea.vmem %s1, 16
    %v307 = vld [vmem:[%s306] sm:$0xf]
    %v308 = vld [vmem:[%s306 + $0x4] sm:$0xf]
    %v311 = vunpack.c.l.b16 %v307
    %v312 = vunpack.c.l.b16 %v308
    %v313 = vpack.c.b16 %v312, %v311
    %v316 = vsel %vm142, %v302, 0
    %v319 = vsel %vm142, %v305, 0
    %321 = vmatprep.subr.bf16.mxu0 0
    %322 = vmatpush1.bf16.msra.mxu0 0
    %323 = vmatprep.subr.bf16.mxu0 0
    %324 = vmatpush1.bf16.msra.mxu0 0
    %325 = vmatprep.subr.bf16.mxu0 0
    %326 = vmatpush1.bf16.msra.mxu0 0
    %327 = vmatprep.subr.bf16.mxu0 0
    %328 = vmatpush1.bf16.msra.mxu0 0
    %329 = vmatprep.subr.bf16.mxu0 0
    %330 = vmatpush1.bf16.msra.mxu0 0
    %331 = vmatprep.subr.bf16.mxu0 0
    %332 = vmatpush1.bf16.msra.mxu0 0
    %333 = vmatprep.subr.bf16.mxu0 0
    %334 = vmatpush1.bf16.msra.mxu0 0
    %335 = vmatprep.subr.bf16.mxu0 0
    %336 = vmatpush1.bf16.msra.mxu0 %v313
    %337 = vmatprep.subr.bf16.mxu0 0
    %338 = vmatpush2.bf16.msra.mxu0 0
    %339 = vmatprep.subr.bf16.mxu0 0
    %340 = vmatpush2.bf16.msra.mxu0 0
    %341 = vmatprep.subr.bf16.mxu0 0
    %342 = vmatpush2.bf16.msra.mxu0 0
    %343 = vmatprep.subr.bf16.mxu0 0
    %344 = vmatpush2.bf16.msra.mxu0 0
    %345 = vmatprep.subr.bf16.mxu0 0
    %346 = vmatpush2.bf16.msra.mxu0 0
    %347 = vmatprep.subr.bf16.mxu0 0
    %348 = vmatpush2.bf16.msra.mxu0 0
    %349 = vmatprep.subr.bf16.mxu0 0
    %350 = vmatpush2.bf16.msra.mxu0 0
    %351 = vmatprep.subr.bf16.mxu0 0
    %352 = vmatpush2.bf16.msra.mxu0 0
    %353 = vmatprep.mubr.bf16.mxu0 0
    %354 = vmatmul.mubr.bf16.gmra.mxu0 %v316
    %v355 = vpop.f32.mrf.mxu0
    %v356 = vadd.f32 0.0, %v355
    %v357 = vpop.f32.mrf.mxu0
    %v358 = vpop.f32.mrf.mxu0
    %v359 = vadd.f32 0.0, %v358
    %v360 = vpop.f32.mrf.mxu0
    %361 = vmatprep.mubr.bf16.mxu0 0
    %362 = vmatmul.mubr.bf16.gmra.mxu0 %v319
    %v363 = vpop.f32.mrf.mxu0
    %v364 = vadd.f32 0.0, %v363
    %v365 = vpop.f32.mrf.mxu0
    %v366 = vpop.f32.mrf.mxu0
    %v367 = vadd.f32 0.0, %v366
    %v368 = vpop.f32.mrf.mxu0
    %369 = vdwg.mxu0
    %v370 = vadd.f32 %v291, %v356
    %v371 = vadd.f32 %v292, %v359
    %v372 = vadd.f32 %v293, %v364
    %v373 = vadd.f32 %v294, %v367
    %vm374 = vsmask.f32 6400
    %v375 = vrot.slane %v207, 1
    %v376 = vrot.slane %v209, 2
    %v377 = vor.u32 %v375, %v376
    %v378 = vshrl.u32 %v131, 16
    %v380 = vrot.slane %v378, 1
    %v381 = vrot.slane %v213, 2
    %v382 = vor.u32 %v380, %v381
    %v383 = vsel %vm374, %v377, %v382
    %v384 = vrot.slane %v217, 1
    %v385 = vrot.slane %v219, 2
    %v386 = vor.u32 %v384, %v385
    %v387 = vshrl.u32 %v132, 16
    %v389 = vrot.slane %v387, 1
    %v390 = vrot.slane %v223, 2
    %v391 = vor.u32 %v389, %v390
    %v392 = vsel %vm374, %v386, %v391
    %s393 = scalar_lea.vmem %s1, 24
    %v394 = vld [vmem:[%s393] sm:$0xf]
    %v395 = vld [vmem:[%s393 + $0x4] sm:$0xf]
    %v398 = vunpack.c.l.b16 %v394
    %v399 = vunpack.c.l.b16 %v395
    %v400 = vpack.c.b16 %v399, %v398
    %v403 = vsel %vm142, %v383, 0
    %v406 = vsel %vm142, %v392, 0
    %408 = vmatprep.subr.bf16.mxu0 0
    %409 = vmatpush1.bf16.msra.mxu0 0
    %410 = vmatprep.subr.bf16.mxu0 0
    %411 = vmatpush1.bf16.msra.mxu0 0
    %412 = vmatprep.subr.bf16.mxu0 0
    %413 = vmatpush1.bf16.msra.mxu0 0
    %414 = vmatprep.subr.bf16.mxu0 0
    %415 = vmatpush1.bf16.msra.mxu0 0
    %416 = vmatprep.subr.bf16.mxu0 0
    %417 = vmatpush1.bf16.msra.mxu0 0
    %418 = vmatprep.subr.bf16.mxu0 0
    %419 = vmatpush1.bf16.msra.mxu0 0
    %420 = vmatprep.subr.bf16.mxu0 0
    %421 = vmatpush1.bf16.msra.mxu0 0
    %422 = vmatprep.subr.bf16.mxu0 0
    %423 = vmatpush1.bf16.msra.mxu0 %v400
    %424 = vmatprep.subr.bf16.mxu0 0
    %425 = vmatpush2.bf16.msra.mxu0 0
    %426 = vmatprep.subr.bf16.mxu0 0
    %427 = vmatpush2.bf16.msra.mxu0 0
    %428 = vmatprep.subr.bf16.mxu0 0
    %429 = vmatpush2.bf16.msra.mxu0 0
    %430 = vmatprep.subr.bf16.mxu0 0
    %431 = vmatpush2.bf16.msra.mxu0 0
    %432 = vmatprep.subr.bf16.mxu0 0
    %433 = vmatpush2.bf16.msra.mxu0 0
    %434 = vmatprep.subr.bf16.mxu0 0
    %435 = vmatpush2.bf16.msra.mxu0 0
    %436 = vmatprep.subr.bf16.mxu0 0
    %437 = vmatpush2.bf16.msra.mxu0 0
    %438 = vmatprep.subr.bf16.mxu0 0
    %439 = vmatpush2.bf16.msra.mxu0 0
    %440 = vmatprep.mubr.bf16.mxu0 0
    %441 = vmatmul.mubr.bf16.gmra.mxu0 %v403
    %v442 = vpop.f32.mrf.mxu0
    %v443 = vadd.f32 0.0, %v442
    %v444 = vpop.f32.mrf.mxu0
    %v445 = vpop.f32.mrf.mxu0
    %v446 = vadd.f32 0.0, %v445
    %v447 = vpop.f32.mrf.mxu0
    %448 = vmatprep.mubr.bf16.mxu0 0
    %449 = vmatmul.mubr.bf16.gmra.mxu0 %v406
    %v450 = vpop.f32.mrf.mxu0
    %v451 = vadd.f32 0.0, %v450
    %v452 = vpop.f32.mrf.mxu0
    %v453 = vpop.f32.mrf.mxu0
    %v454 = vadd.f32 0.0, %v453
    %v455 = vpop.f32.mrf.mxu0
    %456 = vdwg.mxu0
    %v457 = vadd.f32 %v370, %v443
    %v458 = vadd.f32 %v371, %v446
    %v459 = vadd.f32 %v372, %v451
    %v460 = vadd.f32 %v373, %v454
    %vm461 = vcmask 1045504
    %v462 = vrot.slane %v128, 2
    %v463 = vrot.slane %v131, 2
    %v464 = vsel %vm461, %v462, %v463
    %v465 = vrot.slane %v130, 2
    %v466 = vrot.slane %v132, 2
    %v467 = vsel %vm461, %v465, %v466
    %s468 = scalar_lea.vmem %s1, 32
    %v469 = vld [vmem:[%s468] sm:$0xf]
    %v470 = vld [vmem:[%s468 + $0x4] sm:$0xf]
    %v473 = vunpack.c.l.b16 %v469
    %v474 = vunpack.c.l.b16 %v470
    %v475 = vpack.c.b16 %v474, %v473
    %v478 = vsel %vm142, %v464, 0
    %v481 = vsel %vm142, %v467, 0
    %483 = vmatprep.subr.bf16.mxu0 0
    %484 = vmatpush1.bf16.msra.mxu0 0
    %485 = vmatprep.subr.bf16.mxu0 0
    %486 = vmatpush1.bf16.msra.mxu0 0
    %487 = vmatprep.subr.bf16.mxu0 0
    %488 = vmatpush1.bf16.msra.mxu0 0
    %489 = vmatprep.subr.bf16.mxu0 0
    %490 = vmatpush1.bf16.msra.mxu0 0
    %491 = vmatprep.subr.bf16.mxu0 0
    %492 = vmatpush1.bf16.msra.mxu0 0
    %493 = vmatprep.subr.bf16.mxu0 0
    %494 = vmatpush1.bf16.msra.mxu0 0
    %495 = vmatprep.subr.bf16.mxu0 0
    %496 = vmatpush1.bf16.msra.mxu0 0
    %497 = vmatprep.subr.bf16.mxu0 0
    %498 = vmatpush1.bf16.msra.mxu0 %v475
    %499 = vmatprep.subr.bf16.mxu0 0
    %500 = vmatpush2.bf16.msra.mxu0 0
    %501 = vmatprep.subr.bf16.mxu0 0
    %502 = vmatpush2.bf16.msra.mxu0 0
    %503 = vmatprep.subr.bf16.mxu0 0
    %504 = vmatpush2.bf16.msra.mxu0 0
    %505 = vmatprep.subr.bf16.mxu0 0
    %506 = vmatpush2.bf16.msra.mxu0 0
    %507 = vmatprep.subr.bf16.mxu0 0
    %508 = vmatpush2.bf16.msra.mxu0 0
    %509 = vmatprep.subr.bf16.mxu0 0
    %510 = vmatpush2.bf16.msra.mxu0 0
    %511 = vmatprep.subr.bf16.mxu0 0
    %512 = vmatpush2.bf16.msra.mxu0 0
    %513 = vmatprep.subr.bf16.mxu0 0
    %514 = vmatpush2.bf16.msra.mxu0 0
    %515 = vmatprep.mubr.bf16.mxu0 0
    %516 = vmatmul.mubr.bf16.gmra.mxu0 %v478
    %v517 = vpop.f32.mrf.mxu0
    %v518 = vadd.f32 0.0, %v517
    %v519 = vpop.f32.mrf.mxu0
    %v520 = vpop.f32.mrf.mxu0
    %v521 = vadd.f32 0.0, %v520
    %v522 = vpop.f32.mrf.mxu0
    %523 = vmatprep.mubr.bf16.mxu0 0
    %524 = vmatmul.mubr.bf16.gmra.mxu0 %v481
    %v525 = vpop.f32.mrf.mxu0
    %v526 = vadd.f32 0.0, %v525
    %v527 = vpop.f32.mrf.mxu0
    %v528 = vpop.f32.mrf.mxu0
    %v529 = vadd.f32 0.0, %v528
    %v530 = vpop.f32.mrf.mxu0
    %531 = vdwg.mxu0
    %v532 = vadd.f32 %v457, %v518
    %v533 = vadd.f32 %v458, %v521
    %v534 = vadd.f32 %v459, %v526
    %v535 = vadd.f32 %v460, %v529
    %v536 = vmax.f32 %v532, 0.0
    %v537 = vmax.f32 %v533, 0.0
    %v538 = vmax.f32 %v534, 0.0
    %v539 = vmax.f32 %v535, 0.0
    %v540 = vpack.c.bf16 %v537, %v536
    %v541 = vpack.c.bf16 %v539, %v538
    %v544 = vrot.slane %v540, 7
    %v545 = vrot.slane %v541, 7
    %v547 = vsel %vm125, 0, %v544
    %v549 = vsel %vm125, 0, %v545
    %v550 = vsel %vm125, %v544, 0
    %v551 = vsel %vm125, %v545, 0
    %v552 = vld [vmem:[#allocation8] sm:$0x1]
    %v553 = vld [vmem:[#allocation3] sm:$0xf]
    %v554 = vld [vmem:[#allocation3 + $0x4] sm:$0xf]
    %v555 = vld [vmem:[#allocation3 + $0x8] sm:$0xf]
    %v556 = vld [vmem:[#allocation3 + $0xc] sm:$0xf]
    %v561 = vunpack.c.l.b16 %v553
    %v562 = vunpack.c.l.b16 %v554
    %v563 = vunpack.c.l.b16 %v555
    %v564 = vunpack.c.l.b16 %v556
    %v565 = vpack.c.b16 %v562, %v561
    %v566 = vpack.c.b16 %v564, %v563
    %vm569 = vcmask 261120
    %v570 = vsel %vm569, %v547, 0
    %v572 = vsel %vm569, %v549, 0
    %574 = vmatprep.subr.bf16.mxu0 0
    %575 = vmatpush1.bf16.msra.mxu0 0
    %576 = vmatprep.subr.bf16.mxu0 0
    %577 = vmatpush1.bf16.msra.mxu0 0
    %578 = vmatprep.subr.bf16.mxu0 0
    %579 = vmatpush1.bf16.msra.mxu0 0
    %580 = vmatprep.subr.bf16.mxu0 0
    %581 = vmatpush1.bf16.msra.mxu0 0
    %582 = vmatprep.subr.bf16.mxu0 0
    %583 = vmatpush1.bf16.msra.mxu0 0
    %584 = vmatprep.subr.bf16.mxu0 0
    %585 = vmatpush1.bf16.msra.mxu0 0
    %586 = vmatprep.subr.bf16.mxu0 0
    %587 = vmatpush1.bf16.msra.mxu0 %v566
    %588 = vmatprep.subr.bf16.mxu0 0
    %589 = vmatpush1.bf16.msra.mxu0 %v565
    %590 = vmatprep.subr.bf16.mxu0 0
    %591 = vmatpush2.bf16.msra.mxu0 0
    %592 = vmatprep.subr.bf16.mxu0 0
    %593 = vmatpush2.bf16.msra.mxu0 0
    %594 = vmatprep.subr.bf16.mxu0 0
    %595 = vmatpush2.bf16.msra.mxu0 0
    %596 = vmatprep.subr.bf16.mxu0 0
    %597 = vmatpush2.bf16.msra.mxu0 0
    %598 = vmatprep.subr.bf16.mxu0 0
    %599 = vmatpush2.bf16.msra.mxu0 0
    %600 = vmatprep.subr.bf16.mxu0 0
    %601 = vmatpush2.bf16.msra.mxu0 0
    %602 = vmatprep.subr.bf16.mxu0 0
    %603 = vmatpush2.bf16.msra.mxu0 0
    %604 = vmatprep.subr.bf16.mxu0 0
    %605 = vmatpush2.bf16.msra.mxu0 0
    %606 = vmatprep.mubr.bf16.mxu0 0
    %607 = vmatmul.mubr.bf16.gmra.mxu0 %v570
    %v608 = vpop.f32.mrf.mxu0
    %v609 = vadd.f32 0.0, %v608
    %v610 = vpop.f32.mrf.mxu0
    %v611 = vpop.f32.mrf.mxu0
    %v612 = vadd.f32 0.0, %v611
    %v613 = vpop.f32.mrf.mxu0
    %614 = vmatprep.mubr.bf16.mxu0 0
    %615 = vmatmul.mubr.bf16.gmra.mxu0 %v572
    %v616 = vpop.f32.mrf.mxu0
    %v617 = vadd.f32 0.0, %v616
    %v618 = vpop.f32.mrf.mxu0
    %v619 = vpop.f32.mrf.mxu0
    %v620 = vadd.f32 0.0, %v619
    %v621 = vpop.f32.mrf.mxu0
    %622 = vdwg.mxu0
    %v624 = vlaneseq
    %v625 = vshrl.u32 %v624, 7
    %v626 = vsub.s32 0, %v625
    %v627 = vrot.slane %v552, %v626
    %v629 = vadd.f32 %v627, %v609
    %v630 = vadd.f32 %v627, %v612
    %v631 = vadd.f32 %v627, %v617
    %v632 = vadd.f32 %v627, %v620
    %v633 = vshrl.u32 %v547, 16
    %v635 = vshll.u32 %v547, 16
    %v637 = vrot.slane %v635, 1
    %v638 = vor.u32 %v633, %v637
    %v639 = vshll.u32 %v550, 16
    %v641 = vrot.slane %v639, 1
    %v642 = vsel %vm206, %v638, %v641
    %v643 = vshrl.u32 %v549, 16
    %v645 = vshll.u32 %v549, 16
    %v647 = vrot.slane %v645, 1
    %v648 = vor.u32 %v643, %v647
    %v649 = vshll.u32 %v551, 16
    %v651 = vrot.slane %v649, 1
    %v652 = vsel %vm206, %v648, %v651
    %s653 = scalar_lea.vmem [#allocation3], 16
    %v654 = vld [vmem:[%s653] sm:$0xf]
    %v655 = vld [vmem:[%s653 + $0x4] sm:$0xf]
    %v656 = vld [vmem:[%s653 + $0x8] sm:$0xf]
    %v657 = vld [vmem:[%s653 + $0xc] sm:$0xf]
    %v662 = vunpack.c.l.b16 %v654
    %v663 = vunpack.c.l.b16 %v655
    %v664 = vunpack.c.l.b16 %v656
    %v665 = vunpack.c.l.b16 %v657
    %v666 = vpack.c.b16 %v663, %v662
    %v667 = vpack.c.b16 %v665, %v664
    %v671 = vsel %vm569, %v642, 0
    %v674 = vsel %vm569, %v652, 0
    %676 = vmatprep.subr.bf16.mxu0 0
    %677 = vmatpush1.bf16.msra.mxu0 0
    %678 = vmatprep.subr.bf16.mxu0 0
    %679 = vmatpush1.bf16.msra.mxu0 0
    %680 = vmatprep.subr.bf16.mxu0 0
    %681 = vmatpush1.bf16.msra.mxu0 0
    %682 = vmatprep.subr.bf16.mxu0 0
    %683 = vmatpush1.bf16.msra.mxu0 0
    %684 = vmatprep.subr.bf16.mxu0 0
    %685 = vmatpush1.bf16.msra.mxu0 0
    %686 = vmatprep.subr.bf16.mxu0 0
    %687 = vmatpush1.bf16.msra.mxu0 0
    %688 = vmatprep.subr.bf16.mxu0 0
    %689 = vmatpush1.bf16.msra.mxu0 %v667
    %690 = vmatprep.subr.bf16.mxu0 0
    %691 = vmatpush1.bf16.msra.mxu0 %v666
    %692 = vmatprep.subr.bf16.mxu0 0
    %693 = vmatpush2.bf16.msra.mxu0 0
    %694 = vmatprep.subr.bf16.mxu0 0
    %695 = vmatpush2.bf16.msra.mxu0 0
    %696 = vmatprep.subr.bf16.mxu0 0
    %697 = vmatpush2.bf16.msra.mxu0 0
    %698 = vmatprep.subr.bf16.mxu0 0
    %699 = vmatpush2.bf16.msra.mxu0 0
    %700 = vmatprep.subr.bf16.mxu0 0
    %701 = vmatpush2.bf16.msra.mxu0 0
    %702 = vmatprep.subr.bf16.mxu0 0
    %703 = vmatpush2.bf16.msra.mxu0 0
    %704 = vmatprep.subr.bf16.mxu0 0
    %705 = vmatpush2.bf16.msra.mxu0 0
    %706 = vmatprep.subr.bf16.mxu0 0
    %707 = vmatpush2.bf16.msra.mxu0 0
    %708 = vmatprep.mubr.bf16.mxu0 0
    %709 = vmatmul.mubr.bf16.gmra.mxu0 %v671
    %v710 = vpop.f32.mrf.mxu0
    %v711 = vadd.f32 0.0, %v710
    %v712 = vpop.f32.mrf.mxu0
    %v713 = vpop.f32.mrf.mxu0
    %v714 = vadd.f32 0.0, %v713
    %v715 = vpop.f32.mrf.mxu0
    %716 = vmatprep.mubr.bf16.mxu0 0
    %717 = vmatmul.mubr.bf16.gmra.mxu0 %v674
    %v718 = vpop.f32.mrf.mxu0
    %v719 = vadd.f32 0.0, %v718
    %v720 = vpop.f32.mrf.mxu0
    %v721 = vpop.f32.mrf.mxu0
    %v722 = vadd.f32 0.0, %v721
    %v723 = vpop.f32.mrf.mxu0
    %724 = vdwg.mxu0
    %v725 = vadd.f32 %v629, %v711
    %v726 = vadd.f32 %v630, %v714
    %v727 = vadd.f32 %v631, %v719
    %v728 = vadd.f32 %v632, %v722
    %v733 = vrot.slane %v547, 1
    %v734 = vrot.slane %v550, 1
    %v735 = vsel %vm299, %v733, %v734
    %v736 = vrot.slane %v549, 1
    %v737 = vrot.slane %v551, 1
    %v738 = vsel %vm299, %v736, %v737
    %s739 = scalar_lea.vmem [#allocation3], 32
    %v740 = vld [vmem:[%s739] sm:$0xf]
    %v741 = vld [vmem:[%s739 + $0x4] sm:$0xf]
    %v742 = vld [vmem:[%s739 + $0x8] sm:$0xf]
    %v743 = vld [vmem:[%s739 + $0xc] sm:$0xf]
    %v748 = vunpack.c.l.b16 %v740
    %v749 = vunpack.c.l.b16 %v741
    %v750 = vunpack.c.l.b16 %v742
    %v751 = vunpack.c.l.b16 %v743
    %v752 = vpack.c.b16 %v749, %v748
    %v753 = vpack.c.b16 %v751, %v750
    %v757 = vsel %vm569, %v735, 0
    %v760 = vsel %vm569, %v738, 0
    %762 = vmatprep.subr.bf16.mxu0 0
    %763 = vmatpush1.bf16.msra.mxu0 0
    %764 = vmatprep.subr.bf16.mxu0 0
    %765 = vmatpush1.bf16.msra.mxu0 0
    %766 = vmatprep.subr.bf16.mxu0 0
    %767 = vmatpush1.bf16.msra.mxu0 0
    %768 = vmatprep.subr.bf16.mxu0 0
    %769 = vmatpush1.bf16.msra.mxu0 0
    %770 = vmatprep.subr.bf16.mxu0 0
    %771 = vmatpush1.bf16.msra.mxu0 0
    %772 = vmatprep.subr.bf16.mxu0 0
    %773 = vmatpush1.bf16.msra.mxu0 0
    %774 = vmatprep.subr.bf16.mxu0 0
    %775 = vmatpush1.bf16.msra.mxu0 %v753
    %776 = vmatprep.subr.bf16.mxu0 0
    %777 = vmatpush1.bf16.msra.mxu0 %v752
    %778 = vmatprep.subr.bf16.mxu0 0
    %779 = vmatpush2.bf16.msra.mxu0 0
    %780 = vmatprep.subr.bf16.mxu0 0
    %781 = vmatpush2.bf16.msra.mxu0 0
    %782 = vmatprep.subr.bf16.mxu0 0
    %783 = vmatpush2.bf16.msra.mxu0 0
    %784 = vmatprep.subr.bf16.mxu0 0
    %785 = vmatpush2.bf16.msra.mxu0 0
    %786 = vmatprep.subr.bf16.mxu0 0
    %787 = vmatpush2.bf16.msra.mxu0 0
    %788 = vmatprep.subr.bf16.mxu0 0
    %789 = vmatpush2.bf16.msra.mxu0 0
    %790 = vmatprep.subr.bf16.mxu0 0
    %791 = vmatpush2.bf16.msra.mxu0 0
    %792 = vmatprep.subr.bf16.mxu0 0
    %793 = vmatpush2.bf16.msra.mxu0 0
    %794 = vmatprep.mubr.bf16.mxu0 0
    %795 = vmatmul.mubr.bf16.gmra.mxu0 %v757
    %v796 = vpop.f32.mrf.mxu0
    %v797 = vadd.f32 0.0, %v796
    %v798 = vpop.f32.mrf.mxu0
    %v799 = vpop.f32.mrf.mxu0
    %v800 = vadd.f32 0.0, %v799
    %v801 = vpop.f32.mrf.mxu0
    %802 = vmatprep.mubr.bf16.mxu0 0
    %803 = vmatmul.mubr.bf16.gmra.mxu0 %v760
    %v804 = vpop.f32.mrf.mxu0
    %v805 = vadd.f32 0.0, %v804
    %v806 = vpop.f32.mrf.mxu0
    %v807 = vpop.f32.mrf.mxu0
    %v808 = vadd.f32 0.0, %v807
    %v809 = vpop.f32.mrf.mxu0
    %810 = vdwg.mxu0
    %v811 = vadd.f32 %v725, %v797
    %v812 = vadd.f32 %v726, %v800
    %v813 = vadd.f32 %v727, %v805
    %v814 = vadd.f32 %v728, %v808
    %v815 = vrot.slane %v633, 1
    %v816 = vrot.slane %v635, 2
    %v817 = vor.u32 %v815, %v816
    %v818 = vshrl.u32 %v550, 16
    %v820 = vrot.slane %v818, 1
    %v821 = vrot.slane %v639, 2
    %v822 = vor.u32 %v820, %v821
    %v823 = vsel %vm374, %v817, %v822
    %v824 = vrot.slane %v643, 1
    %v825 = vrot.slane %v645, 2
    %v826 = vor.u32 %v824, %v825
    %v827 = vshrl.u32 %v551, 16
    %v829 = vrot.slane %v827, 1
    %v830 = vrot.slane %v649, 2
    %v831 = vor.u32 %v829, %v830
    %v832 = vsel %vm374, %v826, %v831
    %s833 = scalar_lea.vmem [#allocation3], 48
    %v834 = vld [vmem:[%s833] sm:$0xf]
    %v835 = vld [vmem:[%s833 + $0x4] sm:$0xf]
    %v836 = vld [vmem:[%s833 + $0x8] sm:$0xf]
    %v837 = vld [vmem:[%s833 + $0xc] sm:$0xf]
    %v842 = vunpack.c.l.b16 %v834
    %v843 = vunpack.c.l.b16 %v835
    %v844 = vunpack.c.l.b16 %v836
    %v845 = vunpack.c.l.b16 %v837
    %v846 = vpack.c.b16 %v843, %v842
    %v847 = vpack.c.b16 %v845, %v844
    %v851 = vsel %vm569, %v823, 0
    %v854 = vsel %vm569, %v832, 0
    %856 = vmatprep.subr.bf16.mxu0 0
    %857 = vmatpush1.bf16.msra.mxu0 0
    %858 = vmatprep.subr.bf16.mxu0 0
    %859 = vmatpush1.bf16.msra.mxu0 0
    %860 = vmatprep.subr.bf16.mxu0 0
    %861 = vmatpush1.bf16.msra.mxu0 0
    %862 = vmatprep.subr.bf16.mxu0 0
    %863 = vmatpush1.bf16.msra.mxu0 0
    %864 = vmatprep.subr.bf16.mxu0 0
    %865 = vmatpush1.bf16.msra.mxu0 0
    %866 = vmatprep.subr.bf16.mxu0 0
    %867 = vmatpush1.bf16.msra.mxu0 0
    %868 = vmatprep.subr.bf16.mxu0 0
    %869 = vmatpush1.bf16.msra.mxu0 %v847
    %870 = vmatprep.subr.bf16.mxu0 0
    %871 = vmatpush1.bf16.msra.mxu0 %v846
    %872 = vmatprep.subr.bf16.mxu0 0
    %873 = vmatpush2.bf16.msra.mxu0 0
    %874 = vmatprep.subr.bf16.mxu0 0
    %875 = vmatpush2.bf16.msra.mxu0 0
    %876 = vmatprep.subr.bf16.mxu0 0
    %877 = vmatpush2.bf16.msra.mxu0 0
    %878 = vmatprep.subr.bf16.mxu0 0
    %879 = vmatpush2.bf16.msra.mxu0 0
    %880 = vmatprep.subr.bf16.mxu0 0
    %881 = vmatpush2.bf16.msra.mxu0 0
    %882 = vmatprep.subr.bf16.mxu0 0
    %883 = vmatpush2.bf16.msra.mxu0 0
    %884 = vmatprep.subr.bf16.mxu0 0
    %885 = vmatpush2.bf16.msra.mxu0 0
    %886 = vmatprep.subr.bf16.mxu0 0
    %887 = vmatpush2.bf16.msra.mxu0 0
    %888 = vmatprep.mubr.bf16.mxu0 0
    %889 = vmatmul.mubr.bf16.gmra.mxu0 %v851
    %v890 = vpop.f32.mrf.mxu0
    %v891 = vadd.f32 0.0, %v890
    %v892 = vpop.f32.mrf.mxu0
    %v893 = vpop.f32.mrf.mxu0
    %v894 = vadd.f32 0.0, %v893
    %v895 = vpop.f32.mrf.mxu0
    %896 = vmatprep.mubr.bf16.mxu0 0
    %897 = vmatmul.mubr.bf16.gmra.mxu0 %v854
    %v898 = vpop.f32.mrf.mxu0
    %v899 = vadd.f32 0.0, %v898
    %v900 = vpop.f32.mrf.mxu0
    %v901 = vpop.f32.mrf.mxu0
    %v902 = vadd.f32 0.0, %v901
    %v903 = vpop.f32.mrf.mxu0
    %904 = vdwg.mxu0
    %v905 = vadd.f32 %v811, %v891
    %v906 = vadd.f32 %v812, %v894
    %v907 = vadd.f32 %v813, %v899
    %v908 = vadd.f32 %v814, %v902
    %v909 = vrot.slane %v547, 2
    %v910 = vrot.slane %v550, 2
    %v911 = vsel %vm461, %v909, %v910
    %v912 = vrot.slane %v549, 2
    %v913 = vrot.slane %v551, 2
    %v914 = vsel %vm461, %v912, %v913
    %s915 = scalar_lea.vmem [#allocation3], 64
    %v916 = vld [vmem:[%s915] sm:$0xf]
    %v917 = vld [vmem:[%s915 + $0x4] sm:$0xf]
    %v918 = vld [vmem:[%s915 + $0x8] sm:$0xf]
    %v919 = vld [vmem:[%s915 + $0xc] sm:$0xf]
    %v924 = vunpack.c.l.b16 %v916
    %v925 = vunpack.c.l.b16 %v917
    %v926 = vunpack.c.l.b16 %v918
    %v927 = vunpack.c.l.b16 %v919
    %v928 = vpack.c.b16 %v925, %v924
    %v929 = vpack.c.b16 %v927, %v926
    %v933 = vsel %vm569, %v911, 0
    %v936 = vsel %vm569, %v914, 0
    %938 = vmatprep.subr.bf16.mxu0 0
    %939 = vmatpush1.bf16.msra.mxu0 0
    %940 = vmatprep.subr.bf16.mxu0 0
    %941 = vmatpush1.bf16.msra.mxu0 0
    %942 = vmatprep.subr.bf16.mxu0 0
    %943 = vmatpush1.bf16.msra.mxu0 0
    %944 = vmatprep.subr.bf16.mxu0 0
    %945 = vmatpush1.bf16.msra.mxu0 0
    %946 = vmatprep.subr.bf16.mxu0 0
    %947 = vmatpush1.bf16.msra.mxu0 0
    %948 = vmatprep.subr.bf16.mxu0 0
    %949 = vmatpush1.bf16.msra.mxu0 0
    %950 = vmatprep.subr.bf16.mxu0 0
    %951 = vmatpush1.bf16.msra.mxu0 %v929
    %952 = vmatprep.subr.bf16.mxu0 0
    %953 = vmatpush1.bf16.msra.mxu0 %v928
    %954 = vmatprep.subr.bf16.mxu0 0
    %955 = vmatpush2.bf16.msra.mxu0 0
    %956 = vmatprep.subr.bf16.mxu0 0
    %957 = vmatpush2.bf16.msra.mxu0 0
    %958 = vmatprep.subr.bf16.mxu0 0
    %959 = vmatpush2.bf16.msra.mxu0 0
    %960 = vmatprep.subr.bf16.mxu0 0
    %961 = vmatpush2.bf16.msra.mxu0 0
    %962 = vmatprep.subr.bf16.mxu0 0
    %963 = vmatpush2.bf16.msra.mxu0 0
    %964 = vmatprep.subr.bf16.mxu0 0
    %965 = vmatpush2.bf16.msra.mxu0 0
    %966 = vmatprep.subr.bf16.mxu0 0
    %967 = vmatpush2.bf16.msra.mxu0 0
    %968 = vmatprep.subr.bf16.mxu0 0
    %969 = vmatpush2.bf16.msra.mxu0 0
    %970 = vmatprep.mubr.bf16.mxu0 0
    %971 = vmatmul.mubr.bf16.gmra.mxu0 %v933
    %v972 = vpop.f32.mrf.mxu0
    %v973 = vadd.f32 0.0, %v972
    %v974 = vpop.f32.mrf.mxu0
    %v975 = vpop.f32.mrf.mxu0
    %v976 = vadd.f32 0.0, %v975
    %v977 = vpop.f32.mrf.mxu0
    %978 = vmatprep.mubr.bf16.mxu0 0
    %979 = vmatmul.mubr.bf16.gmra.mxu0 %v936
    %v980 = vpop.f32.mrf.mxu0
    %v981 = vadd.f32 0.0, %v980
    %v982 = vpop.f32.mrf.mxu0
    %v983 = vpop.f32.mrf.mxu0
    %v984 = vadd.f32 0.0, %v983
    %v985 = vpop.f32.mrf.mxu0
    %986 = vdwg.mxu0
    %v987 = vadd.f32 %v905, %v973
    %v988 = vadd.f32 %v906, %v976
    %v989 = vadd.f32 %v907, %v981
    %v990 = vadd.f32 %v908, %v984
    %v991 = vmax.f32 %v987, 0.0
    %v992 = vmax.f32 %v988, 0.0
    %v993 = vmax.f32 %v989, 0.0
    %v994 = vmax.f32 %v990, 0.0
    %v995 = vld [vmem:[#allocation12] sm:$0xf]
    %v996 = vld [vmem:[#allocation12 + $0x4] sm:$0xf]
    %v997 = vld [vmem:[#allocation12 + $0x8] sm:$0xf]
    %v998 = vld [vmem:[#allocation12 + $0xc] sm:$0xf]
    %v999 = vld [vmem:[#allocation11] sm:$0xf]
    %v1000 = vld [vmem:[#allocation11 + $0x4] sm:$0xf]
    %v1001 = vld [vmem:[#allocation11 + $0x8] sm:$0xf]
    %v1002 = vld [vmem:[#allocation11 + $0xc] sm:$0xf]
    %v1003 = vld [vmem:[%s8] sm:$0x1]
    %v1004 = vpack.c.bf16 %v992, %v991
    %v1005 = vpack.c.bf16 %v994, %v993
    %v1010 = vunpack.c.l.b16 %v995
    %v1011 = vunpack.c.l.b16 %v996
    %v1012 = vunpack.c.l.b16 %v997
    %v1013 = vunpack.c.l.b16 %v998
    %v1014 = vpack.c.b16 %v1011, %v1010
    %v1015 = vpack.c.b16 %v1013, %v1012
    %v1017 = vsel %vm569, %v1014, 0
    %v1020 = vsel %vm569, %v1015, 0
    %1022 = vmatprep.subr.bf16.mxu0 0
    %1023 = vmatpush1.bf16.msra.mxu0 0
    %1024 = vmatprep.subr.bf16.mxu0 0
    %1025 = vmatpush1.bf16.msra.mxu0 0
    %1026 = vmatprep.subr.bf16.mxu0 0
    %1027 = vmatpush1.bf16.msra.mxu0 0
    %1028 = vmatprep.subr.bf16.mxu0 0
    %1029 = vmatpush1.bf16.msra.mxu0 0
    %1030 = vmatprep.subr.bf16.mxu0 0
    %1031 = vmatpush1.bf16.msra.mxu0 0
    %1032 = vmatprep.subr.bf16.mxu0 0
    %1033 = vmatpush1.bf16.msra.mxu0 0
    %1034 = vmatprep.subr.bf16.mxu0 0
    %1035 = vmatpush1.bf16.msra.mxu0 %v1005
    %1036 = vmatprep.subr.bf16.mxu0 0
    %1037 = vmatpush1.bf16.msra.mxu0 %v1004
    %1038 = vmatprep.subr.bf16.mxu0 0
    %1039 = vmatpush2.bf16.msra.mxu0 0
    %1040 = vmatprep.subr.bf16.mxu0 0
    %1041 = vmatpush2.bf16.msra.mxu0 0
    %1042 = vmatprep.subr.bf16.mxu0 0
    %1043 = vmatpush2.bf16.msra.mxu0 0
    %1044 = vmatprep.subr.bf16.mxu0 0
    %1045 = vmatpush2.bf16.msra.mxu0 0
    %1046 = vmatprep.subr.bf16.mxu0 0
    %1047 = vmatpush2.bf16.msra.mxu0 0
    %1048 = vmatprep.subr.bf16.mxu0 0
    %1049 = vmatpush2.bf16.msra.mxu0 0
    %1050 = vmatprep.subr.bf16.mxu0 0
    %1051 = vmatpush2.bf16.msra.mxu0 0
    %1052 = vmatprep.subr.bf16.mxu0 0
    %1053 = vmatpush2.bf16.msra.mxu0 0
    %1054 = vmatprep.mubr.bf16.mxu0 0
    %1055 = vmatmul.mubr.bf16.gmra.mxu0 %v1017
    %v1056 = vpop.f32.mrf.mxu0
    %v1057 = vadd.f32 0.0, %v1056
    %v1058 = vpop.f32.mrf.mxu0
    %v1059 = vpop.f32.mrf.mxu0
    %v1060 = vadd.f32 0.0, %v1059
    %v1061 = vpop.f32.mrf.mxu0
    %1062 = vmatprep.mubr.bf16.mxu0 0
    %1063 = vmatmul.mubr.bf16.gmra.mxu0 %v1020
    %v1064 = vpop.f32.mrf.mxu0
    %v1065 = vadd.f32 0.0, %v1064
    %v1066 = vpop.f32.mrf.mxu0
    %v1067 = vpop.f32.mrf.mxu0
    %v1068 = vadd.f32 0.0, %v1067
    %v1069 = vpop.f32.mrf.mxu0
    %1070 = vdwg.mxu0
    %v1071 = vpack.c.bf16 %v1060, %v1057
    %v1072 = vpack.c.bf16 %v1068, %v1065
    %v1073 = vld [vmem:[%s5] sm:$0xf]
    %v1074 = vld [vmem:[%s5 + $0x4] sm:$0xf]
    %v1075 = vld [vmem:[%s5 + $0x8] sm:$0xf]
    %v1076 = vld [vmem:[%s5 + $0xc] sm:$0xf]
    %v1077 = vld [vmem:[#allocation9] sm:$0xf]
    %v1078 = vld [vmem:[#allocation9 + $0x4] sm:$0xf]
    %v1079 = vld [vmem:[#allocation9 + $0x8] sm:$0xf]
    %v1080 = vld [vmem:[#allocation9 + $0xc] sm:$0xf]
    %v1085 = vunpack.c.l.b16 %v1077
    %v1086 = vunpack.c.l.b16 %v1078
    %v1087 = vunpack.c.l.b16 %v1079
    %v1088 = vunpack.c.l.b16 %v1080
    %v1089 = vpack.c.b16 %v1086, %v1085
    %v1090 = vpack.c.b16 %v1088, %v1087
    %v1094 = vsel %vm569, %v1071, 0
    %v1097 = vsel %vm569, %v1072, 0
    %1099 = vmatprep.subr.bf16.mxu0 0
    %1100 = vmatpush1.bf16.msra.mxu0 0
    %1101 = vmatprep.subr.bf16.mxu0 0
    %1102 = vmatpush1.bf16.msra.mxu0 0
    %1103 = vmatprep.subr.bf16.mxu0 0
    %1104 = vmatpush1.bf16.msra.mxu0 0
    %1105 = vmatprep.subr.bf16.mxu0 0
    %1106 = vmatpush1.bf16.msra.mxu0 0
    %1107 = vmatprep.subr.bf16.mxu0 0
    %1108 = vmatpush1.bf16.msra.mxu0 0
    %1109 = vmatprep.subr.bf16.mxu0 0
    %1110 = vmatpush1.bf16.msra.mxu0 0
    %1111 = vmatprep.subr.bf16.mxu0 0
    %1112 = vmatpush1.bf16.msra.mxu0 %v1090
    %1113 = vmatprep.subr.bf16.mxu0 0
    %1114 = vmatpush1.bf16.msra.mxu0 %v1089
    %1115 = vmatprep.subr.bf16.mxu0 0
    %1116 = vmatpush2.bf16.msra.mxu0 0
    %1117 = vmatprep.subr.bf16.mxu0 0
    %1118 = vmatpush2.bf16.msra.mxu0 0
    %1119 = vmatprep.subr.bf16.mxu0 0
    %1120 = vmatpush2.bf16.msra.mxu0 0
    %1121 = vmatprep.subr.bf16.mxu0 0
    %1122 = vmatpush2.bf16.msra.mxu0 0
    %1123 = vmatprep.subr.bf16.mxu0 0
    %1124 = vmatpush2.bf16.msra.mxu0 0
    %1125 = vmatprep.subr.bf16.mxu0 0
    %1126 = vmatpush2.bf16.msra.mxu0 0
    %1127 = vmatprep.subr.bf16.mxu0 0
    %1128 = vmatpush2.bf16.msra.mxu0 0
    %1129 = vmatprep.subr.bf16.mxu0 0
    %1130 = vmatpush2.bf16.msra.mxu0 0
    %1131 = vmatprep.mubr.bf16.mxu0 0
    %1132 = vmatmul.mubr.bf16.gmra.mxu0 %v1094
    %v1133 = vpop.f32.mrf.mxu0
    %v1134 = vadd.f32 0.0, %v1133
    %v1135 = vpop.f32.mrf.mxu0
    %v1136 = vpop.f32.mrf.mxu0
    %v1137 = vadd.f32 0.0, %v1136
    %v1138 = vpop.f32.mrf.mxu0
    %1139 = vmatprep.mubr.bf16.mxu0 0
    %1140 = vmatmul.mubr.bf16.gmra.mxu0 %v1097
    %v1141 = vpop.f32.mrf.mxu0
    %v1142 = vadd.f32 0.0, %v1141
    %v1143 = vpop.f32.mrf.mxu0
    %v1144 = vpop.f32.mrf.mxu0
    %v1145 = vadd.f32 0.0, %v1144
    %v1146 = vpop.f32.mrf.mxu0
    %1147 = vdwg.mxu0
    %v1152 = vunpack.c.l.b16 %v1073
    %v1153 = vunpack.c.l.b16 %v1074
    %v1154 = vunpack.c.l.b16 %v1075
    %v1155 = vunpack.c.l.b16 %v1076
    %v1156 = vpack.c.b16 %v1153, %v1152
    %v1157 = vpack.c.b16 %v1155, %v1154
    %v1161 = vsel %vm569, %v1004, 0
    %v1164 = vsel %vm569, %v1005, 0
    %1166 = vmatprep.subr.bf16.mxu0 0
    %1167 = vmatpush1.bf16.msra.mxu0 0
    %1168 = vmatprep.subr.bf16.mxu0 0
    %1169 = vmatpush1.bf16.msra.mxu0 0
    %1170 = vmatprep.subr.bf16.mxu0 0
    %1171 = vmatpush1.bf16.msra.mxu0 0
    %1172 = vmatprep.subr.bf16.mxu0 0
    %1173 = vmatpush1.bf16.msra.mxu0 0
    %1174 = vmatprep.subr.bf16.mxu0 0
    %1175 = vmatpush1.bf16.msra.mxu0 0
    %1176 = vmatprep.subr.bf16.mxu0 0
    %1177 = vmatpush1.bf16.msra.mxu0 0
    %1178 = vmatprep.subr.bf16.mxu0 0
    %1179 = vmatpush1.bf16.msra.mxu0 %v1157
    %1180 = vmatprep.subr.bf16.mxu0 0
    %1181 = vmatpush1.bf16.msra.mxu0 %v1156
    %1182 = vmatprep.subr.bf16.mxu0 0
    %1183 = vmatpush2.bf16.msra.mxu0 0
    %1184 = vmatprep.subr.bf16.mxu0 0
    %1185 = vmatpush2.bf16.msra.mxu0 0
    %1186 = vmatprep.subr.bf16.mxu0 0
    %1187 = vmatpush2.bf16.msra.mxu0 0
    %1188 = vmatprep.subr.bf16.mxu0 0
    %1189 = vmatpush2.bf16.msra.mxu0 0
    %1190 = vmatprep.subr.bf16.mxu0 0
    %1191 = vmatpush2.bf16.msra.mxu0 0
    %1192 = vmatprep.subr.bf16.mxu0 0
    %1193 = vmatpush2.bf16.msra.mxu0 0
    %1194 = vmatprep.subr.bf16.mxu0 0
    %1195 = vmatpush2.bf16.msra.mxu0 0
    %1196 = vmatprep.subr.bf16.mxu0 0
    %1197 = vmatpush2.bf16.msra.mxu0 0
    %1198 = vmatprep.mubr.bf16.mxu0 0
    %1199 = vmatmul.mubr.bf16.gmra.mxu0 %v1161
    %v1200 = vpop.f32.mrf.mxu0
    %v1201 = vadd.f32 %v1134, %v1200
    %v1202 = vpop.f32.mrf.mxu0
    %v1203 = vpop.f32.mrf.mxu0
    %v1204 = vadd.f32 %v1137, %v1203
    %v1205 = vpop.f32.mrf.mxu0
    %1206 = vmatprep.mubr.bf16.mxu0 0
    %1207 = vmatmul.mubr.bf16.gmra.mxu0 %v1164
    %v1208 = vpop.f32.mrf.mxu0
    %v1209 = vadd.f32 %v1142, %v1208
    %v1210 = vpop.f32.mrf.mxu0
    %v1211 = vpop.f32.mrf.mxu0
    %v1212 = vadd.f32 %v1145, %v1211
    %v1213 = vpop.f32.mrf.mxu0
    %1214 = vdwg.mxu0
    %v1216 = vlaneseq
    %v1217 = vshrl.u32 %v1216, 7
    %v1218 = vsub.s32 0, %v1217
    %v1219 = vrot.slane %v1003, %v1218
    %v1221 = vadd.f32 %v1201, %v1219
    %v1222 = vadd.f32 %v1204, %v1219
    %v1223 = vadd.f32 %v1209, %v1219
    %v1224 = vadd.f32 %v1212, %v1219
    %v1229 = vunpack.c.l.b16 %v999
    %v1230 = vunpack.c.l.b16 %v1000
    %v1231 = vunpack.c.l.b16 %v1001
    %v1232 = vunpack.c.l.b16 %v1002
    %v1233 = vpack.c.b16 %v1230, %v1229
    %v1234 = vpack.c.b16 %v1232, %v1231
    %v1237 = vsel %vm569, 0, 0
    %1239 = vmatprep.subr.bf16.mxu0 0
    %1240 = vmatpush1.bf16.msra.mxu0 0
    %1241 = vmatprep.subr.bf16.mxu0 0
    %1242 = vmatpush1.bf16.msra.mxu0 0
    %1243 = vmatprep.subr.bf16.mxu0 0
    %1244 = vmatpush1.bf16.msra.mxu0 0
    %1245 = vmatprep.subr.bf16.mxu0 0
    %1246 = vmatpush1.bf16.msra.mxu0 0
    %1247 = vmatprep.subr.bf16.mxu0 0
    %1248 = vmatpush1.bf16.msra.mxu0 0
    %1249 = vmatprep.subr.bf16.mxu0 0
    %1250 = vmatpush1.bf16.msra.mxu0 0
    %1251 = vmatprep.subr.bf16.mxu0 0
    %1252 = vmatpush1.bf16.msra.mxu0 %v1234
    %1253 = vmatprep.subr.bf16.mxu0 0
    %1254 = vmatpush1.bf16.msra.mxu0 %v1233
    %1255 = vmatprep.subr.bf16.mxu0 0
    %1256 = vmatpush2.bf16.msra.mxu0 0
    %1257 = vmatprep.subr.bf16.mxu0 0
    %1258 = vmatpush2.bf16.msra.mxu0 0
    %1259 = vmatprep.subr.bf16.mxu0 0
    %1260 = vmatpush2.bf16.msra.mxu0 0
    %1261 = vmatprep.subr.bf16.mxu0 0
    %1262 = vmatpush2.bf16.msra.mxu0 0
    %1263 = vmatprep.subr.bf16.mxu0 0
    %1264 = vmatpush2.bf16.msra.mxu0 0
    %1265 = vmatprep.subr.bf16.mxu0 0
    %1266 = vmatpush2.bf16.msra.mxu0 0
    %1267 = vmatprep.subr.bf16.mxu0 0
    %1268 = vmatpush2.bf16.msra.mxu0 0
    %1269 = vmatprep.subr.bf16.mxu0 0
    %1270 = vmatpush2.bf16.msra.mxu0 0
    %1271 = vmatprep.mubr.bf16.mxu0 0
    %1272 = vmatmul.mubr.bf16.gmra.mxu0 %v1237
    %v1273 = vpop.f32.mrf.mxu0
    %v1274 = vadd.f32 0.0, %v1273
    %v1275 = vpop.f32.mrf.mxu0
    %v1276 = vpop.f32.mrf.mxu0
    %v1277 = vpop.f32.mrf.mxu0
    %1278 = vdwg.mxu0
    %v1280 = vrot.slane %v1274, 1
    %v1283 = vadd.f32 %v1221, %v1274
    %v1284 = vadd.f32 %v1223, %v1280
    %v1285 = vtanh.pop %v1283
    %v1286 = vtanh.pop %v1284
    %v1287 = vmul.f32 %v1285, 0.5
    %v1288 = vmul.f32 %v1286, 0.5
    %v1289 = vadd.f32 %v1287, 0.5
    %v1290 = vadd.f32 %v1288, 0.5
    %v1291 = vmul.f32 %v1289, 0.0
    %v1292 = vmul.f32 %v1290, 0.0
    %1295 = vrot.lane.b32.xlu0 %v1285, 64
    %v1296 = vpop.permute.xlu0 %1295
    %1297 = vrot.lane.b32.xlu0 %v1286, 64
    %v1298 = vpop.permute.xlu0 %1297
    %v1301 = vmul.f32 %v1289, %v1296
    %v1302 = vmul.f32 %v1290, %v1298
    %1305 = vrot.lane.b32.xlu0 %v1301, 32
    %v1306 = vpop.permute.xlu0 %1305
    %1307 = vrot.lane.b32.xlu0 %v1302, 32
    %v1308 = vpop.permute.xlu0 %1307
    %v1311 = vadd.f32 %v1291, %v1306
    %v1312 = vadd.f32 %v1292, %v1308
    %v1313 = vtanh.pop %v1311
    %v1314 = vtanh.pop %v1312
    %1317 = vrot.lane.b32.xlu0 %v1313, 64
    %v1318 = vpop.permute.xlu0 %1317
    %1319 = vrot.lane.b32.xlu0 %v1314, 64
    %v1320 = vpop.permute.xlu0 %1319
    %v1323 = vmul.f32 %v1289, %v1318
    %v1324 = vmul.f32 %v1290, %v1320
    %1327 = vrot.lane.b32.xlu0 %v1323, 32
    %v1328 = vpop.permute.xlu0 %1327
    %1329 = vrot.lane.b32.xlu0 %v1324, 32
    %v1330 = vpop.permute.xlu0 %1329
    %vm1333 = vcmask 122880
    %1334 = vst.msk [vmem:[#allocation2] sm:$0x1] %vm1333, %v1328
    %1335 = vst.msk [vmem:[#allocation2 + $0x10] sm:$0x1] %vm1333, %v1330
    %vm1336 = vcmask 254080
    %1337 = vst.msk [vmem:[#allocation2 + $0xf] sm:$0x1] %vm1336, %v1328
    %1338 = vst.msk [vmem:[#allocation2 + $0x1f] sm:$0x1] %vm1336, %v1330
    %v1339 = vpack.c.bf16 %v1323, %v1323
    %v1340 = vpack.c.bf16 %v1324, %v1324
    %v1343 = vunpack.c.l.b16 %v1339
    %v1344 = vunpack.c.l.b16 %v1340
    %v1345 = vrot.slane %v1344, 7
    %vm1346 = vcmask 1041409
    %v1347 = vsel %vm1346, %v1345, %v1343
    %v1348 = vpack.c.b16 %v1347, %v1347
    %1349 = vrot.lane.b32.xlu0 %v1348, 32
    %v1350 = vpop.permute.xlu0 %1349
    %v1352 = vsel %vm569, %v1350, 0
    %1354 = vmatprep.subr.bf16.mxu0 0
    %1355 = vmatpush1.bf16.msra.mxu0 0
    %1356 = vmatprep.subr.bf16.mxu0 0
    %1357 = vmatpush1.bf16.msra.mxu0 0
    %1358 = vmatprep.subr.bf16.mxu0 0
    %1359 = vmatpush1.bf16.msra.mxu0 0
    %1360 = vmatprep.subr.bf16.mxu0 0
    %1361 = vmatpush1.bf16.msra.mxu0 0
    %1362 = vmatprep.subr.bf16.mxu0 0
    %1363 = vmatpush1.bf16.msra.mxu0 0
    %1364 = vmatprep.subr.bf16.mxu0 0
    %1365 = vmatpush1.bf16.msra.mxu0 0
    %1366 = vmatprep.subr.bf16.mxu0 0
    %1367 = vmatpush1.bf16.msra.mxu0 %v1234
    %1368 = vmatprep.subr.bf16.mxu0 0
    %1369 = vmatpush1.bf16.msra.mxu0 %v1233
    %1370 = vmatprep.subr.bf16.mxu0 0
    %1371 = vmatpush2.bf16.msra.mxu0 0
    %1372 = vmatprep.subr.bf16.mxu0 0
    %1373 = vmatpush2.bf16.msra.mxu0 0
    %1374 = vmatprep.subr.bf16.mxu0 0
    %1375 = vmatpush2.bf16.msra.mxu0 0
    %1376 = vmatprep.subr.bf16.mxu0 0
    %1377 = vmatpush2.bf16.msra.mxu0 0
    %1378 = vmatprep.subr.bf16.mxu0 0
    %1379 = vmatpush2.bf16.msra.mxu0 0
    %1380 = vmatprep.subr.bf16.mxu0 0
    %1381 = vmatpush2.bf16.msra.mxu0 0
    %1382 = vmatprep.subr.bf16.mxu0 0
    %1383 = vmatpush2.bf16.msra.mxu0 0
    %1384 = vmatprep.subr.bf16.mxu0 0
    %1385 = vmatpush2.bf16.msra.mxu0 0
    %1386 = vmatprep.mubr.bf16.mxu0 0
    %1387 = vmatmul.mubr.bf16.gmra.mxu0 %v1352
    %v1388 = vpop.f32.mrf.mxu0
    %v1389 = vadd.f32 0.0, %v1388
    %v1390 = vpop.f32.mrf.mxu0
    %v1391 = vpop.f32.mrf.mxu0
    %v1392 = vpop.f32.mrf.mxu0
    %1393 = vdwg.mxu0
    %v1395 = vrot.slane %v1389, 7
    %v1398 = vadd.f32 %v1221, %v1395
    %v1399 = vadd.f32 %v1223, %v1389
    %v1400 = vtanh.pop %v1398
    %v1401 = vtanh.pop %v1399
    %v1402 = vmul.f32 %v1400, 0.5
    %v1403 = vmul.f32 %v1401, 0.5
    %v1404 = vadd.f32 %v1402, 0.5
    %v1405 = vadd.f32 %v1403, 0.5
    %v1408 = vrot.slane %v1311, 7
    %v1409 = vrot.slane %v1312, 7
    %v1412 = vmul.f32 %v1404, %v1408
    %v1413 = vmul.f32 %v1405, %v1409
    %1416 = vrot.lane.b32.xlu0 %v1400, 64
    %v1417 = vpop.permute.xlu0 %1416
    %1418 = vrot.lane.b32.xlu0 %v1401, 64
    %v1419 = vpop.permute.xlu0 %1418
    %v1422 = vmul.f32 %v1404, %v1417
    %v1423 = vmul.f32 %v1405, %v1419
    %1426 = vrot.lane.b32.xlu0 %v1422, 32
    %v1427 = vpop.permute.xlu0 %1426
    %1428 = vrot.lane.b32.xlu0 %v1423, 32
    %v1429 = vpop.permute.xlu0 %1428
    %v1432 = vadd.f32 %v1412, %v1427
    %v1433 = vadd.f32 %v1413, %v1429
    %v1434 = vtanh.pop %v1432
    %v1435 = vtanh.pop %v1433
    %1438 = vrot.lane.b32.xlu0 %v1434, 64
    %v1439 = vpop.permute.xlu0 %1438
    %1440 = vrot.lane.b32.xlu0 %v1435, 64
    %v1441 = vpop.permute.xlu0 %1440
    %v1444 = vmul.f32 %v1404, %v1439
    %v1445 = vmul.f32 %v1405, %v1441
    %1448 = vrot.lane.b32.xlu0 %v1444, 32
    %v1449 = vpop.permute.xlu0 %1448
    %1450 = vrot.lane.b32.xlu0 %v1445, 32
    %v1451 = vpop.permute.xlu0 %1450
    %vm1454 = vcmask 123905
    %1455 = vst.msk [vmem:[#allocation2] sm:$0x2] %vm1454, %v1449
    %1456 = vst.msk [vmem:[#allocation2 + $0x10] sm:$0x2] %vm1454, %v1451
    %vm1457 = vcmask 255105
    %1458 = vst.msk [vmem:[#allocation2 + $0xd] sm:$0x2] %vm1457, %v1449
    %1459 = vst.msk [vmem:[#allocation2 + $0x1d] sm:$0x2] %vm1457, %v1451
    %v1460 = vpack.c.bf16 %v1444, %v1444
    %v1461 = vpack.c.bf16 %v1445, %v1445
    %v1464 = vunpack.c.l.b16 %v1460
    %v1465 = vunpack.c.l.b16 %v1461
    %v1466 = vrot.slane %v1464, 1
    %v1467 = vsel %vm1346, %v1465, %v1466
    %v1468 = vpack.c.b16 %v1467, %v1467
    %1469 = vrot.lane.b32.xlu0 %v1468, 32
    %v1470 = vpop.permute.xlu0 %1469
    %v1472 = vsel %vm569, %v1470, 0
    %1474 = vmatprep.subr.bf16.mxu0 0
    %1475 = vmatpush1.bf16.msra.mxu0 0
    %1476 = vmatprep.subr.bf16.mxu0 0
    %1477 = vmatpush1.bf16.msra.mxu0 0
    %1478 = vmatprep.subr.bf16.mxu0 0
    %1479 = vmatpush1.bf16.msra.mxu0 0
    %1480 = vmatprep.subr.bf16.mxu0 0
    %1481 = vmatpush1.bf16.msra.mxu0 0
    %1482 = vmatprep.subr.bf16.mxu0 0
    %1483 = vmatpush1.bf16.msra.mxu0 0
    %1484 = vmatprep.subr.bf16.mxu0 0
    %1485 = vmatpush1.bf16.msra.mxu0 0
    %1486 = vmatprep.subr.bf16.mxu0 0
    %1487 = vmatpush1.bf16.msra.mxu0 %v1234
    %1488 = vmatprep.subr.bf16.mxu0 0
    %1489 = vmatpush1.bf16.msra.mxu0 %v1233
    %1490 = vmatprep.subr.bf16.mxu0 0
    %1491 = vmatpush2.bf16.msra.mxu0 0
    %1492 = vmatprep.subr.bf16.mxu0 0
    %1493 = vmatpush2.bf16.msra.mxu0 0
    %1494 = vmatprep.subr.bf16.mxu0 0
    %1495 = vmatpush2.bf16.msra.mxu0 0
    %1496 = vmatprep.subr.bf16.mxu0 0
    %1497 = vmatpush2.bf16.msra.mxu0 0
    %1498 = vmatprep.subr.bf16.mxu0 0
    %1499 = vmatpush2.bf16.msra.mxu0 0
    %1500 = vmatprep.subr.bf16.mxu0 0
    %1501 = vmatpush2.bf16.msra.mxu0 0
    %1502 = vmatprep.subr.bf16.mxu0 0
    %1503 = vmatpush2.bf16.msra.mxu0 0
    %1504 = vmatprep.subr.bf16.mxu0 0
    %1505 = vmatpush2.bf16.msra.mxu0 0
    %1506 = vmatprep.mubr.bf16.mxu0 0
    %1507 = vmatmul.mubr.bf16.gmra.mxu0 %v1472
    %v1508 = vpop.f32.mrf.mxu0
    %v1509 = vadd.f32 0.0, %v1508
    %v1510 = vpop.f32.mrf.mxu0
    %v1511 = vpop.f32.mrf.mxu0
    %v1512 = vpop.f32.mrf.mxu0
    %1513 = vdwg.mxu0
    %v1515 = vrot.slane %v1509, 6
    %v1516 = vrot.slane %v1509, 7
    %v1519 = vadd.f32 %v1221, %v1515
    %v1520 = vadd.f32 %v1223, %v1516
    %v1521 = vtanh.pop %v1519
    %v1522 = vtanh.pop %v1520
    %v1523 = vmul.f32 %v1521, 0.5
    %v1524 = vmul.f32 %v1522, 0.5
    %v1525 = vadd.f32 %v1523, 0.5
    %v1526 = vadd.f32 %v1524, 0.5
    %v1529 = vrot.slane %v1432, 7
    %v1530 = vrot.slane %v1433, 7
    %v1533 = vmul.f32 %v1525, %v1529
    %v1534 = vmul.f32 %v1526, %v1530
    %1537 = vrot.lane.b32.xlu0 %v1521, 64
    %v1538 = vpop.permute.xlu0 %1537
    %1539 = vrot.lane.b32.xlu0 %v1522, 64
    %v1540 = vpop.permute.xlu0 %1539
    %v1543 = vmul.f32 %v1525, %v1538
    %v1544 = vmul.f32 %v1526, %v1540
    %1547 = vrot.lane.b32.xlu0 %v1543, 32
    %v1548 = vpop.permute.xlu0 %1547
    %1549 = vrot.lane.b32.xlu0 %v1544, 32
    %v1550 = vpop.permute.xlu0 %1549
    %v1553 = vadd.f32 %v1533, %v1548
    %v1554 = vadd.f32 %v1534, %v1550
    %v1555 = vtanh.pop %v1553
    %v1556 = vtanh.pop %v1554
    %1559 = vrot.lane.b32.xlu0 %v1555, 64
    %v1560 = vpop.permute.xlu0 %1559
    %1561 = vrot.lane.b32.xlu0 %v1556, 64
    %v1562 = vpop.permute.xlu0 %1561
    %v1565 = vmul.f32 %v1525, %v1560
    %v1566 = vmul.f32 %v1526, %v1562
    %1569 = vrot.lane.b32.xlu0 %v1565, 32
    %v1570 = vpop.permute.xlu0 %1569
    %1571 = vrot.lane.b32.xlu0 %v1566, 32
    %v1572 = vpop.permute.xlu0 %1571
    %vm1575 = vcmask 124930
    %1576 = vst.msk [vmem:[#allocation2] sm:$0x4] %vm1575, %v1570
    %1577 = vst.msk [vmem:[#allocation2 + $0x10] sm:$0x4] %vm1575, %v1572
    %vm1578 = vcmask 256130
    %1579 = vst.msk [vmem:[#allocation2 + $0xb] sm:$0x4] %vm1578, %v1570
    %1580 = vst.msk [vmem:[#allocation2 + $0x1b] sm:$0x4] %vm1578, %v1572
    %v1581 = vpack.c.bf16 %v1565, %v1565
    %v1582 = vpack.c.bf16 %v1566, %v1566
    %v1585 = vunpack.c.l.b16 %v1581
    %v1586 = vunpack.c.l.b16 %v1582
    %v1587 = vrot.slane %v1585, 2
    %v1588 = vrot.slane %v1586, 1
    %v1589 = vsel %vm1346, %v1588, %v1587
    %v1590 = vpack.c.b16 %v1589, %v1589
    %1591 = vrot.lane.b32.xlu0 %v1590, 32
    %v1592 = vpop.permute.xlu0 %1591
    %v1594 = vsel %vm569, %v1592, 0
    %1596 = vmatprep.subr.bf16.mxu0 0
    %1597 = vmatpush1.bf16.msra.mxu0 0
    %1598 = vmatprep.subr.bf16.mxu0 0
    %1599 = vmatpush1.bf16.msra.mxu0 0
    %1600 = vmatprep.subr.bf16.mxu0 0
    %1601 = vmatpush1.bf16.msra.mxu0 0
    %1602 = vmatprep.subr.bf16.mxu0 0
    %1603 = vmatpush1.bf16.msra.mxu0 0
    %1604 = vmatprep.subr.bf16.mxu0 0
    %1605 = vmatpush1.bf16.msra.mxu0 0
    %1606 = vmatprep.subr.bf16.mxu0 0
    %1607 = vmatpush1.bf16.msra.mxu0 0
    %1608 = vmatprep.subr.bf16.mxu0 0
    %1609 = vmatpush1.bf16.msra.mxu0 %v1234
    %1610 = vmatprep.subr.bf16.mxu0 0
    %1611 = vmatpush1.bf16.msra.mxu0 %v1233
    %1612 = vmatprep.subr.bf16.mxu0 0
    %1613 = vmatpush2.bf16.msra.mxu0 0
    %1614 = vmatprep.subr.bf16.mxu0 0
    %1615 = vmatpush2.bf16.msra.mxu0 0
    %1616 = vmatprep.subr.bf16.mxu0 0
    %1617 = vmatpush2.bf16.msra.mxu0 0
    %1618 = vmatprep.subr.bf16.mxu0 0
    %1619 = vmatpush2.bf16.msra.mxu0 0
    %1620 = vmatprep.subr.bf16.mxu0 0
    %1621 = vmatpush2.bf16.msra.mxu0 0
    %1622 = vmatprep.subr.bf16.mxu0 0
    %1623 = vmatpush2.bf16.msra.mxu0 0
    %1624 = vmatprep.subr.bf16.mxu0 0
    %1625 = vmatpush2.bf16.msra.mxu0 0
    %1626 = vmatprep.subr.bf16.mxu0 0
    %1627 = vmatpush2.bf16.msra.mxu0 0
    %1628 = vmatprep.mubr.bf16.mxu0 0
    %1629 = vmatmul.mubr.bf16.gmra.mxu0 %v1594
    %v1630 = vpop.f32.mrf.mxu0
    %v1631 = vadd.f32 0.0, %v1630
    %v1632 = vpop.f32.mrf.mxu0
    %v1633 = vpop.f32.mrf.mxu0
    %v1634 = vpop.f32.mrf.mxu0
    %1635 = vdwg.mxu0
    %v1637 = vrot.slane %v1631, 5
    %v1638 = vrot.slane %v1631, 6
    %v1641 = vadd.f32 %v1221, %v1637
    %v1642 = vadd.f32 %v1223, %v1638
    %v1643 = vtanh.pop %v1641
    %v1644 = vtanh.pop %v1642
    %v1645 = vmul.f32 %v1643, 0.5
    %v1646 = vmul.f32 %v1644, 0.5
    %v1647 = vadd.f32 %v1645, 0.5
    %v1648 = vadd.f32 %v1646, 0.5
    %v1651 = vrot.slane %v1553, 7
    %v1652 = vrot.slane %v1554, 7
    %v1655 = vmul.f32 %v1647, %v1651
    %v1656 = vmul.f32 %v1648, %v1652
    %1659 = vrot.lane.b32.xlu0 %v1643, 64
    %v1660 = vpop.permute.xlu0 %1659
    %1661 = vrot.lane.b32.xlu0 %v1644, 64
    %v1662 = vpop.permute.xlu0 %1661
    %v1665 = vmul.f32 %v1647, %v1660
    %v1666 = vmul.f32 %v1648, %v1662
    %1669 = vrot.lane.b32.xlu0 %v1665, 32
    %v1670 = vpop.permute.xlu0 %1669
    %1671 = vrot.lane.b32.xlu0 %v1666, 32
    %v1672 = vpop.permute.xlu0 %1671
    %v1675 = vadd.f32 %v1655, %v1670
    %v1676 = vadd.f32 %v1656, %v1672
    %v1677 = vtanh.pop %v1675
    %v1678 = vtanh.pop %v1676
    %1681 = vrot.lane.b32.xlu0 %v1677, 64
    %v1682 = vpop.permute.xlu0 %1681
    %1683 = vrot.lane.b32.xlu0 %v1678, 64
    %v1684 = vpop.permute.xlu0 %1683
    %v1687 = vmul.f32 %v1647, %v1682
    %v1688 = vmul.f32 %v1648, %v1684
    %1691 = vrot.lane.b32.xlu0 %v1687, 32
    %v1692 = vpop.permute.xlu0 %1691
    %1693 = vrot.lane.b32.xlu0 %v1688, 32
    %v1694 = vpop.permute.xlu0 %1693
    %vm1697 = vcmask 125955
    %1698 = vst.msk [vmem:[#allocation2] sm:$0x8] %vm1697, %v1692
    %1699 = vst.msk [vmem:[#allocation2 + $0x10] sm:$0x8] %vm1697, %v1694
    %vm1700 = vcmask 257155
    %1701 = vst.msk [vmem:[#allocation2 + $0x9] sm:$0x8] %vm1700, %v1692
    %1702 = vst.msk [vmem:[#allocation2 + $0x19] sm:$0x8] %vm1700, %v1694
    %v1703 = vpack.c.bf16 %v1687, %v1687
    %v1704 = vpack.c.bf16 %v1688, %v1688
    %v1707 = vunpack.c.l.b16 %v1703
    %v1708 = vunpack.c.l.b16 %v1704
    %v1709 = vrot.slane %v1707, 3
    %v1710 = vrot.slane %v1708, 2
    %v1711 = vsel %vm1346, %v1710, %v1709
    %v1712 = vpack.c.b16 %v1711, %v1711
    %1713 = vrot.lane.b32.xlu0 %v1712, 32
    %v1714 = vpop.permute.xlu0 %1713
    %v1716 = vsel %vm569, %v1714, 0
    %1718 = vmatprep.subr.bf16.mxu0 0
    %1719 = vmatpush1.bf16.msra.mxu0 0
    %1720 = vmatprep.subr.bf16.mxu0 0
    %1721 = vmatpush1.bf16.msra.mxu0 0
    %1722 = vmatprep.subr.bf16.mxu0 0
    %1723 = vmatpush1.bf16.msra.mxu0 0
    %1724 = vmatprep.subr.bf16.mxu0 0
    %1725 = vmatpush1.bf16.msra.mxu0 0
    %1726 = vmatprep.subr.bf16.mxu0 0
    %1727 = vmatpush1.bf16.msra.mxu0 0
    %1728 = vmatprep.subr.bf16.mxu0 0
    %1729 = vmatpush1.bf16.msra.mxu0 0
    %1730 = vmatprep.subr.bf16.mxu0 0
    %1731 = vmatpush1.bf16.msra.mxu0 %v1234
    %1732 = vmatprep.subr.bf16.mxu0 0
    %1733 = vmatpush1.bf16.msra.mxu0 %v1233
    %1734 = vmatprep.subr.bf16.mxu0 0
    %1735 = vmatpush2.bf16.msra.mxu0 0
    %1736 = vmatprep.subr.bf16.mxu0 0
    %1737 = vmatpush2.bf16.msra.mxu0 0
    %1738 = vmatprep.subr.bf16.mxu0 0
    %1739 = vmatpush2.bf16.msra.mxu0 0
    %1740 = vmatprep.subr.bf16.mxu0 0
    %1741 = vmatpush2.bf16.msra.mxu0 0
    %1742 = vmatprep.subr.bf16.mxu0 0
    %1743 = vmatpush2.bf16.msra.mxu0 0
    %1744 = vmatprep.subr.bf16.mxu0 0
    %1745 = vmatpush2.bf16.msra.mxu0 0
    %1746 = vmatprep.subr.bf16.mxu0 0
    %1747 = vmatpush2.bf16.msra.mxu0 0
    %1748 = vmatprep.subr.bf16.mxu0 0
    %1749 = vmatpush2.bf16.msra.mxu0 0
    %1750 = vmatprep.mubr.bf16.mxu0 0
    %1751 = vmatmul.mubr.bf16.gmra.mxu0 %v1716
    %v1752 = vpop.f32.mrf.mxu0
    %v1753 = vadd.f32 0.0, %v1752
    %v1754 = vpop.f32.mrf.mxu0
    %v1755 = vpop.f32.mrf.mxu0
    %v1756 = vpop.f32.mrf.mxu0
    %1757 = vdwg.mxu0
    %v1759 = vrot.slane %v1753, 4
    %v1760 = vrot.slane %v1753, 5
    %v1763 = vadd.f32 %v1221, %v1759
    %v1764 = vadd.f32 %v1223, %v1760
    %v1765 = vtanh.pop %v1763
    %v1766 = vtanh.pop %v1764
    %v1767 = vmul.f32 %v1765, 0.5
    %v1768 = vmul.f32 %v1766, 0.5
    %v1769 = vadd.f32 %v1767, 0.5
    %v1770 = vadd.f32 %v1768, 0.5
    %v1773 = vrot.slane %v1675, 7
    %v1774 = vrot.slane %v1676, 7
    %v1777 = vmul.f32 %v1769, %v1773
    %v1778 = vmul.f32 %v1770, %v1774
    %1781 = vrot.lane.b32.xlu0 %v1765, 64
    %v1782 = vpop.permute.xlu0 %1781
    %1783 = vrot.lane.b32.xlu0 %v1766, 64
    %v1784 = vpop.permute.xlu0 %1783
    %v1787 = vmul.f32 %v1769, %v1782
    %v1788 = vmul.f32 %v1770, %v1784
    %1791 = vrot.lane.b32.xlu0 %v1787, 32
    %v1792 = vpop.permute.xlu0 %1791
    %1793 = vrot.lane.b32.xlu0 %v1788, 32
    %v1794 = vpop.permute.xlu0 %1793
    %v1797 = vadd.f32 %v1777, %v1792
    %v1798 = vadd.f32 %v1778, %v1794
    %v1799 = vtanh.pop %v1797
    %v1800 = vtanh.pop %v1798
    %1803 = vrot.lane.b32.xlu0 %v1799, 64
    %v1804 = vpop.permute.xlu0 %1803
    %1805 = vrot.lane.b32.xlu0 %v1800, 64
    %v1806 = vpop.permute.xlu0 %1805
    %v1809 = vmul.f32 %v1769, %v1804
    %v1810 = vmul.f32 %v1770, %v1806
    %1813 = vrot.lane.b32.xlu0 %v1809, 32
    %v1814 = vpop.permute.xlu0 %1813
    %1815 = vrot.lane.b32.xlu0 %v1810, 32
    %v1816 = vpop.permute.xlu0 %1815
    %vm1819 = vcmask 126980
    %1820 = vst.msk [vmem:[#allocation2] sm:$0x10] %vm1819, %v1814
    %1821 = vst.msk [vmem:[#allocation2 + $0x10] sm:$0x10] %vm1819, %v1816
    %vm1822 = vcmask 258180
    %1823 = vst.msk [vmem:[#allocation2 + $0x7] sm:$0x10] %vm1822, %v1814
    %1824 = vst.msk [vmem:[#allocation2 + $0x17] sm:$0x10] %vm1822, %v1816
    %v1825 = vpack.c.bf16 %v1809, %v1809
    %v1826 = vpack.c.bf16 %v1810, %v1810
    %v1829 = vunpack.c.l.b16 %v1825
    %v1830 = vunpack.c.l.b16 %v1826
    %v1831 = vrot.slane %v1829, 4
    %v1832 = vrot.slane %v1830, 3
    %v1833 = vsel %vm1346, %v1832, %v1831
    %v1834 = vpack.c.b16 %v1833, %v1833
    %1835 = vrot.lane.b32.xlu0 %v1834, 32
    %v1836 = vpop.permute.xlu0 %1835
    %v1838 = vsel %vm569, %v1836, 0
    %1840 = vmatprep.subr.bf16.mxu0 0
    %1841 = vmatpush1.bf16.msra.mxu0 0
    %1842 = vmatprep.subr.bf16.mxu0 0
    %1843 = vmatpush1.bf16.msra.mxu0 0
    %1844 = vmatprep.subr.bf16.mxu0 0
    %1845 = vmatpush1.bf16.msra.mxu0 0
    %1846 = vmatprep.subr.bf16.mxu0 0
    %1847 = vmatpush1.bf16.msra.mxu0 0
    %1848 = vmatprep.subr.bf16.mxu0 0
    %1849 = vmatpush1.bf16.msra.mxu0 0
    %1850 = vmatprep.subr.bf16.mxu0 0
    %1851 = vmatpush1.bf16.msra.mxu0 0
    %1852 = vmatprep.subr.bf16.mxu0 0
    %1853 = vmatpush1.bf16.msra.mxu0 %v1234
    %1854 = vmatprep.subr.bf16.mxu0 0
    %1855 = vmatpush1.bf16.msra.mxu0 %v1233
    %1856 = vmatprep.subr.bf16.mxu0 0
    %1857 = vmatpush2.bf16.msra.mxu0 0
    %1858 = vmatprep.subr.bf16.mxu0 0
    %1859 = vmatpush2.bf16.msra.mxu0 0
    %1860 = vmatprep.subr.bf16.mxu0 0
    %1861 = vmatpush2.bf16.msra.mxu0 0
    %1862 = vmatprep.subr.bf16.mxu0 0
    %1863 = vmatpush2.bf16.msra.mxu0 0
    %1864 = vmatprep.subr.bf16.mxu0 0
    %1865 = vmatpush2.bf16.msra.mxu0 0
    %1866 = vmatprep.subr.bf16.mxu0 0
    %1867 = vmatpush2.bf16.msra.mxu0 0
    %1868 = vmatprep.subr.bf16.mxu0 0
    %1869 = vmatpush2.bf16.msra.mxu0 0
    %1870 = vmatprep.subr.bf16.mxu0 0
    %1871 = vmatpush2.bf16.msra.mxu0 0
    %1872 = vmatprep.mubr.bf16.mxu0 0
    %1873 = vmatmul.mubr.bf16.gmra.mxu0 %v1838
    %v1874 = vpop.f32.mrf.mxu0
    %v1875 = vadd.f32 0.0, %v1874
    %v1876 = vpop.f32.mrf.mxu0
    %v1877 = vpop.f32.mrf.mxu0
    %v1878 = vpop.f32.mrf.mxu0
    %1879 = vdwg.mxu0
    %v1881 = vrot.slane %v1875, 3
    %v1882 = vrot.slane %v1875, 4
    %v1885 = vadd.f32 %v1221, %v1881
    %v1886 = vadd.f32 %v1223, %v1882
    %v1887 = vtanh.pop %v1885
    %v1888 = vtanh.pop %v1886
    %v1889 = vmul.f32 %v1887, 0.5
    %v1890 = vmul.f32 %v1888, 0.5
    %v1891 = vadd.f32 %v1889, 0.5
    %v1892 = vadd.f32 %v1890, 0.5
    %v1895 = vrot.slane %v1797, 7
    %v1896 = vrot.slane %v1798, 7
    %v1899 = vmul.f32 %v1891, %v1895
    %v1900 = vmul.f32 %v1892, %v1896
    %1903 = vrot.lane.b32.xlu0 %v1887, 64
    %v1904 = vpop.permute.xlu0 %1903
    %1905 = vrot.lane.b32.xlu0 %v1888, 64
    %v1906 = vpop.permute.xlu0 %1905
    %v1909 = vmul.f32 %v1891, %v1904
    %v1910 = vmul.f32 %v1892, %v1906
    %1913 = vrot.lane.b32.xlu0 %v1909, 32
    %v1914 = vpop.permute.xlu0 %1913
    %1915 = vrot.lane.b32.xlu0 %v1910, 32
    %v1916 = vpop.permute.xlu0 %1915
    %v1919 = vadd.f32 %v1899, %v1914
    %v1920 = vadd.f32 %v1900, %v1916
    %v1921 = vtanh.pop %v1919
    %v1922 = vtanh.pop %v1920
    %1925 = vrot.lane.b32.xlu0 %v1921, 64
    %v1926 = vpop.permute.xlu0 %1925
    %1927 = vrot.lane.b32.xlu0 %v1922, 64
    %v1928 = vpop.permute.xlu0 %1927
    %v1931 = vmul.f32 %v1891, %v1926
    %v1932 = vmul.f32 %v1892, %v1928
    %1935 = vrot.lane.b32.xlu0 %v1931, 32
    %v1936 = vpop.permute.xlu0 %1935
    %1937 = vrot.lane.b32.xlu0 %v1932, 32
    %v1938 = vpop.permute.xlu0 %1937
    %vm1941 = vcmask 128005
    %1942 = vst.msk [vmem:[#allocation2] sm:$0x20] %vm1941, %v1936
    %1943 = vst.msk [vmem:[#allocation2 + $0x10] sm:$0x20] %vm1941, %v1938
    %vm1944 = vcmask 259205
    %1945 = vst.msk [vmem:[#allocation2 + $0x5] sm:$0x20] %vm1944, %v1936
    %1946 = vst.msk [vmem:[#allocation2 + $0x15] sm:$0x20] %vm1944, %v1938
    %v1947 = vpack.c.bf16 %v1931, %v1931
    %v1948 = vpack.c.bf16 %v1932, %v1932
    %v1951 = vunpack.c.l.b16 %v1947
    %v1952 = vunpack.c.l.b16 %v1948
    %v1953 = vrot.slane %v1951, 5
    %v1954 = vrot.slane %v1952, 4
    %v1955 = vsel %vm1346, %v1954, %v1953
    %v1956 = vpack.c.b16 %v1955, %v1955
    %1957 = vrot.lane.b32.xlu0 %v1956, 32
    %v1958 = vpop.permute.xlu0 %1957
    %v1960 = vsel %vm569, %v1958, 0
    %1962 = vmatprep.subr.bf16.mxu0 0
    %1963 = vmatpush1.bf16.msra.mxu0 0
    %1964 = vmatprep.subr.bf16.mxu0 0
    %1965 = vmatpush1.bf16.msra.mxu0 0
    %1966 = vmatprep.subr.bf16.mxu0 0
    %1967 = vmatpush1.bf16.msra.mxu0 0
    %1968 = vmatprep.subr.bf16.mxu0 0
    %1969 = vmatpush1.bf16.msra.mxu0 0
    %1970 = vmatprep.subr.bf16.mxu0 0
    %1971 = vmatpush1.bf16.msra.mxu0 0
    %1972 = vmatprep.subr.bf16.mxu0 0
    %1973 = vmatpush1.bf16.msra.mxu0 0
    %1974 = vmatprep.subr.bf16.mxu0 0
    %1975 = vmatpush1.bf16.msra.mxu0 %v1234
    %1976 = vmatprep.subr.bf16.mxu0 0
    %1977 = vmatpush1.bf16.msra.mxu0 %v1233
    %1978 = vmatprep.subr.bf16.mxu0 0
    %1979 = vmatpush2.bf16.msra.mxu0 0
    %1980 = vmatprep.subr.bf16.mxu0 0
    %1981 = vmatpush2.bf16.msra.mxu0 0
    %1982 = vmatprep.subr.bf16.mxu0 0
    %1983 = vmatpush2.bf16.msra.mxu0 0
    %1984 = vmatprep.subr.bf16.mxu0 0
    %1985 = vmatpush2.bf16.msra.mxu0 0
    %1986 = vmatprep.subr.bf16.mxu0 0
    %1987 = vmatpush2.bf16.msra.mxu0 0
    %1988 = vmatprep.subr.bf16.mxu0 0
    %1989 = vmatpush2.bf16.msra.mxu0 0
    %1990 = vmatprep.subr.bf16.mxu0 0
    %1991 = vmatpush2.bf16.msra.mxu0 0
    %1992 = vmatprep.subr.bf16.mxu0 0
    %1993 = vmatpush2.bf16.msra.mxu0 0
    %1994 = vmatprep.mubr.bf16.mxu0 0
    %1995 = vmatmul.mubr.bf16.gmra.mxu0 %v1960
    %v1996 = vpop.f32.mrf.mxu0
    %v1997 = vadd.f32 0.0, %v1996
    %v1998 = vpop.f32.mrf.mxu0
    %v1999 = vpop.f32.mrf.mxu0
    %v2000 = vpop.f32.mrf.mxu0
    %2001 = vdwg.mxu0
    %v2003 = vrot.slane %v1997, 2
    %v2004 = vrot.slane %v1997, 3
    %v2007 = vadd.f32 %v1221, %v2003
    %v2008 = vadd.f32 %v1223, %v2004
    %v2009 = vtanh.pop %v2007
    %v2010 = vtanh.pop %v2008
    %v2011 = vmul.f32 %v2009, 0.5
    %v2012 = vmul.f32 %v2010, 0.5
    %v2013 = vadd.f32 %v2011, 0.5
    %v2014 = vadd.f32 %v2012, 0.5
    %v2017 = vrot.slane %v1919, 7
    %v2018 = vrot.slane %v1920, 7
    %v2021 = vmul.f32 %v2013, %v2017
    %v2022 = vmul.f32 %v2014, %v2018
    %2025 = vrot.lane.b32.xlu0 %v2009, 64
    %v2026 = vpop.permute.xlu0 %2025
    %2027 = vrot.lane.b32.xlu0 %v2010, 64
    %v2028 = vpop.permute.xlu0 %2027
    %v2031 = vmul.f32 %v2013, %v2026
    %v2032 = vmul.f32 %v2014, %v2028
    %2035 = vrot.lane.b32.xlu0 %v2031, 32
    %v2036 = vpop.permute.xlu0 %2035
    %2037 = vrot.lane.b32.xlu0 %v2032, 32
    %v2038 = vpop.permute.xlu0 %2037
    %v2041 = vadd.f32 %v2021, %v2036
    %v2042 = vadd.f32 %v2022, %v2038
    %v2043 = vtanh.pop %v2041
    %v2044 = vtanh.pop %v2042
    %2047 = vrot.lane.b32.xlu0 %v2043, 64
    %v2048 = vpop.permute.xlu0 %2047
    %2049 = vrot.lane.b32.xlu0 %v2044, 64
    %v2050 = vpop.permute.xlu0 %2049
    %v2053 = vmul.f32 %v2013, %v2048
    %v2054 = vmul.f32 %v2014, %v2050
    %2057 = vrot.lane.b32.xlu0 %v2053, 32
    %v2058 = vpop.permute.xlu0 %2057
    %2059 = vrot.lane.b32.xlu0 %v2054, 32
    %v2060 = vpop.permute.xlu0 %2059
    %vm2063 = vcmask 129030
    %2064 = vst.msk [vmem:[#allocation2] sm:$0x40] %vm2063, %v2058
    %2065 = vst.msk [vmem:[#allocation2 + $0x10] sm:$0x40] %vm2063, %v2060
    %vm2066 = vcmask 260230
    %2067 = vst.msk [vmem:[#allocation2 + $0x3] sm:$0x40] %vm2066, %v2058
    %2068 = vst.msk [vmem:[#allocation2 + $0x13] sm:$0x40] %vm2066, %v2060
    %v2069 = vpack.c.bf16 %v2053, %v2053
    %v2070 = vpack.c.bf16 %v2054, %v2054
    %v2073 = vunpack.c.l.b16 %v2069
    %v2074 = vunpack.c.l.b16 %v2070
    %v2075 = vrot.slane %v2073, 6
    %v2076 = vrot.slane %v2074, 5
    %v2077 = vsel %vm1346, %v2076, %v2075
    %v2078 = vpack.c.b16 %v2077, %v2077
    %2079 = vrot.lane.b32.xlu0 %v2078, 32
    %v2080 = vpop.permute.xlu0 %2079
    %v2082 = vsel %vm569, %v2080, 0
    %2084 = vmatprep.subr.bf16.mxu0 0
    %2085 = vmatpush1.bf16.msra.mxu0 0
    %2086 = vmatprep.subr.bf16.mxu0 0
    %2087 = vmatpush1.bf16.msra.mxu0 0
    %2088 = vmatprep.subr.bf16.mxu0 0
    %2089 = vmatpush1.bf16.msra.mxu0 0
    %2090 = vmatprep.subr.bf16.mxu0 0
    %2091 = vmatpush1.bf16.msra.mxu0 0
    %2092 = vmatprep.subr.bf16.mxu0 0
    %2093 = vmatpush1.bf16.msra.mxu0 0
    %2094 = vmatprep.subr.bf16.mxu0 0
    %2095 = vmatpush1.bf16.msra.mxu0 0
    %2096 = vmatprep.subr.bf16.mxu0 0
    %2097 = vmatpush1.bf16.msra.mxu0 %v1234
    %2098 = vmatprep.subr.bf16.mxu0 0
    %2099 = vmatpush1.bf16.msra.mxu0 %v1233
    %2100 = vmatprep.subr.bf16.mxu0 0
    %2101 = vmatpush2.bf16.msra.mxu0 0
    %2102 = vmatprep.subr.bf16.mxu0 0
    %2103 = vmatpush2.bf16.msra.mxu0 0
    %2104 = vmatprep.subr.bf16.mxu0 0
    %2105 = vmatpush2.bf16.msra.mxu0 0
    %2106 = vmatprep.subr.bf16.mxu0 0
    %2107 = vmatpush2.bf16.msra.mxu0 0
    %2108 = vmatprep.subr.bf16.mxu0 0
    %2109 = vmatpush2.bf16.msra.mxu0 0
    %2110 = vmatprep.subr.bf16.mxu0 0
    %2111 = vmatpush2.bf16.msra.mxu0 0
    %2112 = vmatprep.subr.bf16.mxu0 0
    %2113 = vmatpush2.bf16.msra.mxu0 0
    %2114 = vmatprep.subr.bf16.mxu0 0
    %2115 = vmatpush2.bf16.msra.mxu0 0
    %2116 = vmatprep.mubr.bf16.mxu0 0
    %2117 = vmatmul.mubr.bf16.gmra.mxu0 %v2082
    %v2118 = vpop.f32.mrf.mxu0
    %v2119 = vadd.f32 0.0, %v2118
    %v2120 = vpop.f32.mrf.mxu0
    %v2121 = vpop.f32.mrf.mxu0
    %v2122 = vpop.f32.mrf.mxu0
    %2123 = vdwg.mxu0
    %v2125 = vrot.slane %v2119, 1
    %v2126 = vrot.slane %v2119, 2
    %v2129 = vadd.f32 %v1221, %v2125
    %v2130 = vadd.f32 %v1223, %v2126
    %v2131 = vtanh.pop %v2129
    %v2132 = vtanh.pop %v2130
    %v2133 = vmul.f32 %v2131, 0.5
    %v2134 = vmul.f32 %v2132, 0.5
    %v2135 = vadd.f32 %v2133, 0.5
    %v2136 = vadd.f32 %v2134, 0.5
    %v2139 = vrot.slane %v2041, 7
    %v2140 = vrot.slane %v2042, 7
    %v2143 = vmul.f32 %v2135, %v2139
    %v2144 = vmul.f32 %v2136, %v2140
    %2147 = vrot.lane.b32.xlu0 %v2131, 64
    %v2148 = vpop.permute.xlu0 %2147
    %2149 = vrot.lane.b32.xlu0 %v2132, 64
    %v2150 = vpop.permute.xlu0 %2149
    %v2153 = vmul.f32 %v2135, %v2148
    %v2154 = vmul.f32 %v2136, %v2150
    %2157 = vrot.lane.b32.xlu0 %v2153, 32
    %v2158 = vpop.permute.xlu0 %2157
    %2159 = vrot.lane.b32.xlu0 %v2154, 32
    %v2160 = vpop.permute.xlu0 %2159
    %v2163 = vadd.f32 %v2143, %v2158
    %v2164 = vadd.f32 %v2144, %v2160
    %v2165 = vtanh.pop %v2163
    %v2166 = vtanh.pop %v2164
    %2169 = vrot.lane.b32.xlu0 %v2165, 64
    %v2170 = vpop.permute.xlu0 %2169
    %2171 = vrot.lane.b32.xlu0 %v2166, 64
    %v2172 = vpop.permute.xlu0 %2171
    %v2175 = vmul.f32 %v2135, %v2170
    %v2176 = vmul.f32 %v2136, %v2172
    %2179 = vrot.lane.b32.xlu0 %v2175, 32
    %v2180 = vpop.permute.xlu0 %2179
    %2181 = vrot.lane.b32.xlu0 %v2176, 32
    %v2182 = vpop.permute.xlu0 %2181
    %vm2185 = vcmask 130055
    %2186 = vst.msk [vmem:[#allocation2] sm:$0x80] %vm2185, %v2180
    %2187 = vst.msk [vmem:[#allocation2 + $0x10] sm:$0x80] %vm2185, %v2182
    %vm2188 = vcmask 261255
    %2189 = vst.msk [vmem:[#allocation2 + $0x1] sm:$0x80] %vm2188, %v2180
    %2190 = vst.msk [vmem:[#allocation2 + $0x11] sm:$0x80] %vm2188, %v2182
    %v2191 = vpack.c.bf16 %v2175, %v2175
    %v2192 = vpack.c.bf16 %v2176, %v2176
    %v2195 = vunpack.c.l.b16 %v2191
    %v2196 = vunpack.c.l.b16 %v2192
    %v2197 = vrot.slane %v2195, 7
    %v2198 = vrot.slane %v2196, 6
    %v2199 = vsel %vm1346, %v2198, %v2197
    %v2200 = vpack.c.b16 %v2199, %v2199
    %2201 = vrot.lane.b32.xlu0 %v2200, 32
    %v2202 = vpop.permute.xlu0 %2201
    %v2204 = vsel %vm569, %v2202, 0
    %2206 = vmatprep.subr.bf16.mxu0 0
    %2207 = vmatpush1.bf16.msra.mxu0 0
    %2208 = vmatprep.subr.bf16.mxu0 0
    %2209 = vmatpush1.bf16.msra.mxu0 0
    %2210 = vmatprep.subr.bf16.mxu0 0
    %2211 = vmatpush1.bf16.msra.mxu0 0
    %2212 = vmatprep.subr.bf16.mxu0 0
    %2213 = vmatpush1.bf16.msra.mxu0 0
    %2214 = vmatprep.subr.bf16.mxu0 0
    %2215 = vmatpush1.bf16.msra.mxu0 0
    %2216 = vmatprep.subr.bf16.mxu0 0
    %2217 = vmatpush1.bf16.msra.mxu0 0
    %2218 = vmatprep.subr.bf16.mxu0 0
    %2219 = vmatpush1.bf16.msra.mxu0 %v1234
    %2220 = vmatprep.subr.bf16.mxu0 0
    %2221 = vmatpush1.bf16.msra.mxu0 %v1233
    %2222 = vmatprep.subr.bf16.mxu0 0
    %2223 = vmatpush2.bf16.msra.mxu0 0
    %2224 = vmatprep.subr.bf16.mxu0 0
    %2225 = vmatpush2.bf16.msra.mxu0 0
    %2226 = vmatprep.subr.bf16.mxu0 0
    %2227 = vmatpush2.bf16.msra.mxu0 0
    %2228 = vmatprep.subr.bf16.mxu0 0
    %2229 = vmatpush2.bf16.msra.mxu0 0
    %2230 = vmatprep.subr.bf16.mxu0 0
    %2231 = vmatpush2.bf16.msra.mxu0 0
    %2232 = vmatprep.subr.bf16.mxu0 0
    %2233 = vmatpush2.bf16.msra.mxu0 0
    %2234 = vmatprep.subr.bf16.mxu0 0
    %2235 = vmatpush2.bf16.msra.mxu0 0
    %2236 = vmatprep.subr.bf16.mxu0 0
    %2237 = vmatpush2.bf16.msra.mxu0 0
    %2238 = vmatprep.mubr.bf16.mxu0 0
    %2239 = vmatmul.mubr.bf16.gmra.mxu0 %v2204
    %v2240 = vpop.f32.mrf.mxu0
    %v2241 = vadd.f32 0.0, %v2240
    %v2242 = vpop.f32.mrf.mxu0
    %v2243 = vpop.f32.mrf.mxu0
    %v2244 = vpop.f32.mrf.mxu0
    %2245 = vdwg.mxu0
    %v2247 = vrot.slane %v2241, 1
    %v2250 = vadd.f32 %v1222, %v2241
    %v2251 = vadd.f32 %v1224, %v2247
    %v2252 = vtanh.pop %v2250
    %v2253 = vtanh.pop %v2251
    %v2254 = vmul.f32 %v2252, 0.5
    %v2255 = vmul.f32 %v2253, 0.5
    %v2256 = vadd.f32 %v2254, 0.5
    %v2257 = vadd.f32 %v2255, 0.5
    %v2260 = vrot.slane %v2163, 7
    %v2261 = vrot.slane %v2164, 7
    %v2264 = vmul.f32 %v2256, %v2260
    %v2265 = vmul.f32 %v2257, %v2261
    %2268 = vrot.lane.b32.xlu0 %v2252, 64
    %v2269 = vpop.permute.xlu0 %2268
    %2270 = vrot.lane.b32.xlu0 %v2253, 64
    %v2271 = vpop.permute.xlu0 %2270
    %v2274 = vmul.f32 %v2256, %v2269
    %v2275 = vmul.f32 %v2257, %v2271
    %2278 = vrot.lane.b32.xlu0 %v2274, 32
    %v2279 = vpop.permute.xlu0 %2278
    %2280 = vrot.lane.b32.xlu0 %v2275, 32
    %v2281 = vpop.permute.xlu0 %2280
    %v2284 = vadd.f32 %v2264, %v2279
    %v2285 = vadd.f32 %v2265, %v2281
    %v2286 = vtanh.pop %v2284
    %v2287 = vtanh.pop %v2285
    %2290 = vrot.lane.b32.xlu0 %v2286, 64
    %v2291 = vpop.permute.xlu0 %2290
    %2292 = vrot.lane.b32.xlu0 %v2287, 64
    %v2293 = vpop.permute.xlu0 %2292
    %v2296 = vmul.f32 %v2256, %v2291
    %v2297 = vmul.f32 %v2257, %v2293
    %2300 = vrot.lane.b32.xlu0 %v2296, 32
    %v2301 = vpop.permute.xlu0 %2300
    %2302 = vrot.lane.b32.xlu0 %v2297, 32
    %v2303 = vpop.permute.xlu0 %2302
    %2306 = vst.msk [vmem:[#allocation2 + $0x8] sm:$0x1] %vm1333, %v2301
    %2307 = vst.msk [vmem:[#allocation2 + $0x18] sm:$0x1] %vm1333, %v2303
    %2308 = vst.msk [vmem:[#allocation2 + $0x7] sm:$0x1] %vm1336, %v2301
    %2309 = vst.msk [vmem:[#allocation2 + $0x17] sm:$0x1] %vm1336, %v2303
    %v2310 = vpack.c.bf16 %v2296, %v2296
    %v2311 = vpack.c.bf16 %v2297, %v2297
    %v2314 = vunpack.c.l.b16 %v2310
    %v2315 = vunpack.c.l.b16 %v2311
    %v2316 = vrot.slane %v2315, 7
    %v2317 = vsel %vm1346, %v2316, %v2314
    %v2318 = vpack.c.b16 %v2317, %v2317
    %2319 = vrot.lane.b32.xlu0 %v2318, 32
    %v2320 = vpop.permute.xlu0 %2319
    %v2322 = vsel %vm569, %v2320, 0
    %2324 = vmatprep.subr.bf16.mxu0 0
    %2325 = vmatpush1.bf16.msra.mxu0 0
    %2326 = vmatprep.subr.bf16.mxu0 0
    %2327 = vmatpush1.bf16.msra.mxu0 0
    %2328 = vmatprep.subr.bf16.mxu0 0
    %2329 = vmatpush1.bf16.msra.mxu0 0
    %2330 = vmatprep.subr.bf16.mxu0 0
    %2331 = vmatpush1.bf16.msra.mxu0 0
    %2332 = vmatprep.subr.bf16.mxu0 0
    %2333 = vmatpush1.bf16.msra.mxu0 0
    %2334 = vmatprep.subr.bf16.mxu0 0
    %2335 = vmatpush1.bf16.msra.mxu0 0
    %2336 = vmatprep.subr.bf16.mxu0 0
    %2337 = vmatpush1.bf16.msra.mxu0 %v1234
    %2338 = vmatprep.subr.bf16.mxu0 0
    %2339 = vmatpush1.bf16.msra.mxu0 %v1233
    %2340 = vmatprep.subr.bf16.mxu0 0
    %2341 = vmatpush2.bf16.msra.mxu0 0
    %2342 = vmatprep.subr.bf16.mxu0 0
    %2343 = vmatpush2.bf16.msra.mxu0 0
    %2344 = vmatprep.subr.bf16.mxu0 0
    %2345 = vmatpush2.bf16.msra.mxu0 0
    %2346 = vmatprep.subr.bf16.mxu0 0
    %2347 = vmatpush2.bf16.msra.mxu0 0
    %2348 = vmatprep.subr.bf16.mxu0 0
    %2349 = vmatpush2.bf16.msra.mxu0 0
    %2350 = vmatprep.subr.bf16.mxu0 0
    %2351 = vmatpush2.bf16.msra.mxu0 0
    %2352 = vmatprep.subr.bf16.mxu0 0
    %2353 = vmatpush2.bf16.msra.mxu0 0
    %2354 = vmatprep.subr.bf16.mxu0 0
    %2355 = vmatpush2.bf16.msra.mxu0 0
    %2356 = vmatprep.mubr.bf16.mxu0 0
    %2357 = vmatmul.mubr.bf16.gmra.mxu0 %v2322
    %v2358 = vpop.f32.mrf.mxu0
    %v2359 = vadd.f32 0.0, %v2358
    %v2360 = vpop.f32.mrf.mxu0
    %v2361 = vpop.f32.mrf.mxu0
    %v2362 = vpop.f32.mrf.mxu0
    %2363 = vdwg.mxu0
    %v2365 = vrot.slane %v2359, 7
    %v2368 = vadd.f32 %v1222, %v2365
    %v2369 = vadd.f32 %v1224, %v2359
    %v2370 = vtanh.pop %v2368
    %v2371 = vtanh.pop %v2369
    %v2372 = vmul.f32 %v2370, 0.5
    %v2373 = vmul.f32 %v2371, 0.5
    %v2374 = vadd.f32 %v2372, 0.5
    %v2375 = vadd.f32 %v2373, 0.5
    %v2378 = vrot.slane %v2284, 7
    %v2379 = vrot.slane %v2285, 7
    %v2382 = vmul.f32 %v2374, %v2378
    %v2383 = vmul.f32 %v2375, %v2379
    %2386 = vrot.lane.b32.xlu0 %v2370, 64
    %v2387 = vpop.permute.xlu0 %2386
    %2388 = vrot.lane.b32.xlu0 %v2371, 64
    %v2389 = vpop.permute.xlu0 %2388
    %v2392 = vmul.f32 %v2374, %v2387
    %v2393 = vmul.f32 %v2375, %v2389
    %2396 = vrot.lane.b32.xlu0 %v2392, 32
    %v2397 = vpop.permute.xlu0 %2396
    %2398 = vrot.lane.b32.xlu0 %v2393, 32
    %v2399 = vpop.permute.xlu0 %2398
    %v2402 = vadd.f32 %v2382, %v2397
    %v2403 = vadd.f32 %v2383, %v2399
    %v2404 = vtanh.pop %v2402
    %v2405 = vtanh.pop %v2403
    %2408 = vrot.lane.b32.xlu0 %v2404, 64
    %v2409 = vpop.permute.xlu0 %2408
    %2410 = vrot.lane.b32.xlu0 %v2405, 64
    %v2411 = vpop.permute.xlu0 %2410
    %v2414 = vmul.f32 %v2374, %v2409
    %v2415 = vmul.f32 %v2375, %v2411
    %2418 = vrot.lane.b32.xlu0 %v2414, 32
    %v2419 = vpop.permute.xlu0 %2418
    %2420 = vrot.lane.b32.xlu0 %v2415, 32
    %v2421 = vpop.permute.xlu0 %2420
    %2424 = vst.msk [vmem:[#allocation2 + $0x8] sm:$0x2] %vm1454, %v2419
    %2425 = vst.msk [vmem:[#allocation2 + $0x18] sm:$0x2] %vm1454, %v2421
    %2426 = vst.msk [vmem:[#allocation2 + $0x5] sm:$0x2] %vm1457, %v2419
    %2427 = vst.msk [vmem:[#allocation2 + $0x15] sm:$0x2] %vm1457, %v2421
    %v2428 = vpack.c.bf16 %v2414, %v2414
    %v2429 = vpack.c.bf16 %v2415, %v2415
    %v2432 = vunpack.c.l.b16 %v2428
    %v2433 = vunpack.c.l.b16 %v2429
    %v2434 = vrot.slane %v2432, 1
    %v2435 = vsel %vm1346, %v2433, %v2434
    %v2436 = vpack.c.b16 %v2435, %v2435
    %2437 = vrot.lane.b32.xlu0 %v2436, 32
    %v2438 = vpop.permute.xlu0 %2437
    %v2440 = vsel %vm569, %v2438, 0
    %2442 = vmatprep.subr.bf16.mxu0 0
    %2443 = vmatpush1.bf16.msra.mxu0 0
    %2444 = vmatprep.subr.bf16.mxu0 0
    %2445 = vmatpush1.bf16.msra.mxu0 0
    %2446 = vmatprep.subr.bf16.mxu0 0
    %2447 = vmatpush1.bf16.msra.mxu0 0
    %2448 = vmatprep.subr.bf16.mxu0 0
    %2449 = vmatpush1.bf16.msra.mxu0 0
    %2450 = vmatprep.subr.bf16.mxu0 0
    %2451 = vmatpush1.bf16.msra.mxu0 0
    %2452 = vmatprep.subr.bf16.mxu0 0
    %2453 = vmatpush1.bf16.msra.mxu0 0
    %2454 = vmatprep.subr.bf16.mxu0 0
    %2455 = vmatpush1.bf16.msra.mxu0 %v1234
    %2456 = vmatprep.subr.bf16.mxu0 0
    %2457 = vmatpush1.bf16.msra.mxu0 %v1233
    %2458 = vmatprep.subr.bf16.mxu0 0
    %2459 = vmatpush2.bf16.msra.mxu0 0
    %2460 = vmatprep.subr.bf16.mxu0 0
    %2461 = vmatpush2.bf16.msra.mxu0 0
    %2462 = vmatprep.subr.bf16.mxu0 0
    %2463 = vmatpush2.bf16.msra.mxu0 0
    %2464 = vmatprep.subr.bf16.mxu0 0
    %2465 = vmatpush2.bf16.msra.mxu0 0
    %2466 = vmatprep.subr.bf16.mxu0 0
    %2467 = vmatpush2.bf16.msra.mxu0 0
    %2468 = vmatprep.subr.bf16.mxu0 0
    %2469 = vmatpush2.bf16.msra.mxu0 0
    %2470 = vmatprep.subr.bf16.mxu0 0
    %2471 = vmatpush2.bf16.msra.mxu0 0
    %2472 = vmatprep.subr.bf16.mxu0 0
    %2473 = vmatpush2.bf16.msra.mxu0 0
    %2474 = vmatprep.mubr.bf16.mxu0 0
    %2475 = vmatmul.mubr.bf16.gmra.mxu0 %v2440
    %v2476 = vpop.f32.mrf.mxu0
    %v2477 = vadd.f32 0.0, %v2476
    %v2478 = vpop.f32.mrf.mxu0
    %v2479 = vpop.f32.mrf.mxu0
    %v2480 = vpop.f32.mrf.mxu0
    %2481 = vdwg.mxu0
    %v2483 = vrot.slane %v2477, 6
    %v2484 = vrot.slane %v2477, 7
    %v2487 = vadd.f32 %v1222, %v2483
    %v2488 = vadd.f32 %v1224, %v2484
    %v2489 = vtanh.pop %v2487
    %v2490 = vtanh.pop %v2488
    %v2491 = vmul.f32 %v2489, 0.5
    %v2492 = vmul.f32 %v2490, 0.5
    %v2493 = vadd.f32 %v2491, 0.5
    %v2494 = vadd.f32 %v2492, 0.5
    %v2497 = vrot.slane %v2402, 7
    %v2498 = vrot.slane %v2403, 7
    %v2501 = vmul.f32 %v2493, %v2497
    %v2502 = vmul.f32 %v2494, %v2498
    %2505 = vrot.lane.b32.xlu0 %v2489, 64
    %v2506 = vpop.permute.xlu0 %2505
    %2507 = vrot.lane.b32.xlu0 %v2490, 64
    %v2508 = vpop.permute.xlu0 %2507
    %v2511 = vmul.f32 %v2493, %v2506
    %v2512 = vmul.f32 %v2494, %v2508
    %2515 = vrot.lane.b32.xlu0 %v2511, 32
    %v2516 = vpop.permute.xlu0 %2515
    %2517 = vrot.lane.b32.xlu0 %v2512, 32
    %v2518 = vpop.permute.xlu0 %2517
    %v2521 = vadd.f32 %v2501, %v2516
    %v2522 = vadd.f32 %v2502, %v2518
    %v2523 = vtanh.pop %v2521
    %v2524 = vtanh.pop %v2522
    %2527 = vrot.lane.b32.xlu0 %v2523, 64
    %v2528 = vpop.permute.xlu0 %2527
    %2529 = vrot.lane.b32.xlu0 %v2524, 64
    %v2530 = vpop.permute.xlu0 %2529
    %v2533 = vmul.f32 %v2493, %v2528
    %v2534 = vmul.f32 %v2494, %v2530
    %2537 = vrot.lane.b32.xlu0 %v2533, 32
    %v2538 = vpop.permute.xlu0 %2537
    %2539 = vrot.lane.b32.xlu0 %v2534, 32
    %v2540 = vpop.permute.xlu0 %2539
    %2543 = vst.msk [vmem:[#allocation2 + $0x8] sm:$0x4] %vm1575, %v2538
    %2544 = vst.msk [vmem:[#allocation2 + $0x18] sm:$0x4] %vm1575, %v2540
    %2545 = vst.msk [vmem:[#allocation2 + $0x3] sm:$0x4] %vm1578, %v2538
    %2546 = vst.msk [vmem:[#allocation2 + $0x13] sm:$0x4] %vm1578, %v2540
    %v2547 = vpack.c.bf16 %v2533, %v2533
    %v2548 = vpack.c.bf16 %v2534, %v2534
    %v2551 = vunpack.c.l.b16 %v2547
    %v2552 = vunpack.c.l.b16 %v2548
    %v2553 = vrot.slane %v2551, 2
    %v2554 = vrot.slane %v2552, 1
    %v2555 = vsel %vm1346, %v2554, %v2553
    %v2556 = vpack.c.b16 %v2555, %v2555
    %2557 = vrot.lane.b32.xlu0 %v2556, 32
    %v2558 = vpop.permute.xlu0 %2557
    %v2560 = vsel %vm569, %v2558, 0
    %2562 = vmatprep.subr.bf16.mxu0 0
    %2563 = vmatpush1.bf16.msra.mxu0 0
    %2564 = vmatprep.subr.bf16.mxu0 0
    %2565 = vmatpush1.bf16.msra.mxu0 0
    %2566 = vmatprep.subr.bf16.mxu0 0
    %2567 = vmatpush1.bf16.msra.mxu0 0
    %2568 = vmatprep.subr.bf16.mxu0 0
    %2569 = vmatpush1.bf16.msra.mxu0 0
    %2570 = vmatprep.subr.bf16.mxu0 0
    %2571 = vmatpush1.bf16.msra.mxu0 0
    %2572 = vmatprep.subr.bf16.mxu0 0
    %2573 = vmatpush1.bf16.msra.mxu0 0
    %2574 = vmatprep.subr.bf16.mxu0 0
    %2575 = vmatpush1.bf16.msra.mxu0 %v1234
    %2576 = vmatprep.subr.bf16.mxu0 0
    %2577 = vmatpush1.bf16.msra.mxu0 %v1233
    %2578 = vmatprep.subr.bf16.mxu0 0
    %2579 = vmatpush2.bf16.msra.mxu0 0
    %2580 = vmatprep.subr.bf16.mxu0 0
    %2581 = vmatpush2.bf16.msra.mxu0 0
    %2582 = vmatprep.subr.bf16.mxu0 0
    %2583 = vmatpush2.bf16.msra.mxu0 0
    %2584 = vmatprep.subr.bf16.mxu0 0
    %2585 = vmatpush2.bf16.msra.mxu0 0
    %2586 = vmatprep.subr.bf16.mxu0 0
    %2587 = vmatpush2.bf16.msra.mxu0 0
    %2588 = vmatprep.subr.bf16.mxu0 0
    %2589 = vmatpush2.bf16.msra.mxu0 0
    %2590 = vmatprep.subr.bf16.mxu0 0
    %2591 = vmatpush2.bf16.msra.mxu0 0
    %2592 = vmatprep.subr.bf16.mxu0 0
    %2593 = vmatpush2.bf16.msra.mxu0 0
    %2594 = vmatprep.mubr.bf16.mxu0 0
    %2595 = vmatmul.mubr.bf16.gmra.mxu0 %v2560
    %v2596 = vpop.f32.mrf.mxu0
    %v2597 = vadd.f32 0.0, %v2596
    %v2598 = vpop.f32.mrf.mxu0
    %v2599 = vpop.f32.mrf.mxu0
    %v2600 = vpop.f32.mrf.mxu0
    %2601 = vdwg.mxu0
    %v2603 = vrot.slane %v2597, 5
    %v2604 = vrot.slane %v2597, 6
    %v2607 = vadd.f32 %v1222, %v2603
    %v2608 = vadd.f32 %v1224, %v2604
    %v2609 = vtanh.pop %v2607
    %v2610 = vtanh.pop %v2608
    %v2611 = vmul.f32 %v2609, 0.5
    %v2612 = vmul.f32 %v2610, 0.5
    %v2613 = vadd.f32 %v2611, 0.5
    %v2614 = vadd.f32 %v2612, 0.5
    %v2617 = vrot.slane %v2521, 7
    %v2618 = vrot.slane %v2522, 7
    %v2621 = vmul.f32 %v2613, %v2617
    %v2622 = vmul.f32 %v2614, %v2618
    %2625 = vrot.lane.b32.xlu0 %v2609, 64
    %v2626 = vpop.permute.xlu0 %2625
    %2627 = vrot.lane.b32.xlu0 %v2610, 64
    %v2628 = vpop.permute.xlu0 %2627
    %v2631 = vmul.f32 %v2613, %v2626
    %v2632 = vmul.f32 %v2614, %v2628
    %2635 = vrot.lane.b32.xlu0 %v2631, 32
    %v2636 = vpop.permute.xlu0 %2635
    %2637 = vrot.lane.b32.xlu0 %v2632, 32
    %v2638 = vpop.permute.xlu0 %2637
    %v2641 = vadd.f32 %v2621, %v2636
    %v2642 = vadd.f32 %v2622, %v2638
    %v2643 = vtanh.pop %v2641
    %v2644 = vtanh.pop %v2642
    %2647 = vrot.lane.b32.xlu0 %v2643, 64
    %v2648 = vpop.permute.xlu0 %2647
    %2649 = vrot.lane.b32.xlu0 %v2644, 64
    %v2650 = vpop.permute.xlu0 %2649
    %v2653 = vmul.f32 %v2613, %v2648
    %v2654 = vmul.f32 %v2614, %v2650
    %2657 = vrot.lane.b32.xlu0 %v2653, 32
    %v2658 = vpop.permute.xlu0 %2657
    %2659 = vrot.lane.b32.xlu0 %v2654, 32
    %v2660 = vpop.permute.xlu0 %2659
    %2663 = vst.msk [vmem:[#allocation2 + $0x8] sm:$0x8] %vm1697, %v2658
    %2664 = vst.msk [vmem:[#allocation2 + $0x18] sm:$0x8] %vm1697, %v2660
    %2665 = vst.msk [vmem:[#allocation2 + $0x1] sm:$0x8] %vm1700, %v2658
    %2666 = vst.msk [vmem:[#allocation2 + $0x11] sm:$0x8] %vm1700, %v2660
    %v2667 = vpack.c.bf16 %v2653, %v2653
    %v2668 = vpack.c.bf16 %v2654, %v2654
    %v2671 = vunpack.c.l.b16 %v2667
    %v2672 = vunpack.c.l.b16 %v2668
    %v2673 = vrot.slane %v2671, 3
    %v2674 = vrot.slane %v2672, 2
    %v2675 = vsel %vm1346, %v2674, %v2673
    %v2676 = vpack.c.b16 %v2675, %v2675
    %2677 = vrot.lane.b32.xlu0 %v2676, 32
    %v2678 = vpop.permute.xlu0 %2677
    %v2680 = vsel %vm569, %v2678, 0
    %2682 = vmatprep.subr.bf16.mxu0 0
    %2683 = vmatpush1.bf16.msra.mxu0 0
    %2684 = vmatprep.subr.bf16.mxu0 0
    %2685 = vmatpush1.bf16.msra.mxu0 0
    %2686 = vmatprep.subr.bf16.mxu0 0
    %2687 = vmatpush1.bf16.msra.mxu0 0
    %2688 = vmatprep.subr.bf16.mxu0 0
    %2689 = vmatpush1.bf16.msra.mxu0 0
    %2690 = vmatprep.subr.bf16.mxu0 0
    %2691 = vmatpush1.bf16.msra.mxu0 0
    %2692 = vmatprep.subr.bf16.mxu0 0
    %2693 = vmatpush1.bf16.msra.mxu0 0
    %2694 = vmatprep.subr.bf16.mxu0 0
    %2695 = vmatpush1.bf16.msra.mxu0 %v1234
    %2696 = vmatprep.subr.bf16.mxu0 0
    %2697 = vmatpush1.bf16.msra.mxu0 %v1233
    %2698 = vmatprep.subr.bf16.mxu0 0
    %2699 = vmatpush2.bf16.msra.mxu0 0
    %2700 = vmatprep.subr.bf16.mxu0 0
    %2701 = vmatpush2.bf16.msra.mxu0 0
    %2702 = vmatprep.subr.bf16.mxu0 0
    %2703 = vmatpush2.bf16.msra.mxu0 0
    %2704 = vmatprep.subr.bf16.mxu0 0
    %2705 = vmatpush2.bf16.msra.mxu0 0
    %2706 = vmatprep.subr.bf16.mxu0 0
    %2707 = vmatpush2.bf16.msra.mxu0 0
    %2708 = vmatprep.subr.bf16.mxu0 0
    %2709 = vmatpush2.bf16.msra.mxu0 0
    %2710 = vmatprep.subr.bf16.mxu0 0
    %2711 = vmatpush2.bf16.msra.mxu0 0
    %2712 = vmatprep.subr.bf16.mxu0 0
    %2713 = vmatpush2.bf16.msra.mxu0 0
    %2714 = vmatprep.mubr.bf16.mxu0 0
    %2715 = vmatmul.mubr.bf16.gmra.mxu0 %v2680
    %v2716 = vpop.f32.mrf.mxu0
    %v2717 = vadd.f32 0.0, %v2716
    %v2718 = vpop.f32.mrf.mxu0
    %v2719 = vpop.f32.mrf.mxu0
    %v2720 = vpop.f32.mrf.mxu0
    %2721 = vdwg.mxu0
    %v2723 = vrot.slane %v2717, 4
    %v2724 = vrot.slane %v2717, 5
    %v2727 = vadd.f32 %v1222, %v2723
    %v2728 = vadd.f32 %v1224, %v2724
    %v2729 = vtanh.pop %v2727
    %v2730 = vtanh.pop %v2728
    %v2731 = vmul.f32 %v2729, 0.5
    %v2732 = vmul.f32 %v2730, 0.5
    %v2733 = vadd.f32 %v2731, 0.5
    %v2734 = vadd.f32 %v2732, 0.5
    %v2737 = vrot.slane %v2641, 7
    %v2738 = vrot.slane %v2642, 7
    %v2741 = vmul.f32 %v2733, %v2737
    %v2742 = vmul.f32 %v2734, %v2738
    %2745 = vrot.lane.b32.xlu0 %v2729, 64
    %v2746 = vpop.permute.xlu0 %2745
    %2747 = vrot.lane.b32.xlu0 %v2730, 64
    %v2748 = vpop.permute.xlu0 %2747
    %v2751 = vmul.f32 %v2733, %v2746
    %v2752 = vmul.f32 %v2734, %v2748
    %2755 = vrot.lane.b32.xlu0 %v2751, 32
    %v2756 = vpop.permute.xlu0 %2755
    %2757 = vrot.lane.b32.xlu0 %v2752, 32
    %v2758 = vpop.permute.xlu0 %2757
    %v2761 = vadd.f32 %v2741, %v2756
    %v2762 = vadd.f32 %v2742, %v2758
    %v2763 = vtanh.pop %v2761
    %v2764 = vtanh.pop %v2762
    %2767 = vrot.lane.b32.xlu0 %v2763, 64
    %v2768 = vpop.permute.xlu0 %2767
    %2769 = vrot.lane.b32.xlu0 %v2764, 64
    %v2770 = vpop.permute.xlu0 %2769
    %v2773 = vmul.f32 %v2733, %v2768
    %v2774 = vmul.f32 %v2734, %v2770
    %2777 = vrot.lane.b32.xlu0 %v2773, 32
    %v2778 = vpop.permute.xlu0 %2777
    %2779 = vrot.lane.b32.xlu0 %v2774, 32
    %v2780 = vpop.permute.xlu0 %2779
    %2783 = vst.msk [vmem:[#allocation2 + $0x8] sm:$0x10] %vm1819, %v2778
    %2784 = vst.msk [vmem:[#allocation2 + $0x18] sm:$0x10] %vm1819, %v2780
    %2785 = vst.msk [vmem:[#allocation2 - $0x1] sm:$0x10] %vm1822, %v2778
    %2786 = vst.msk [vmem:[#allocation2 + $0xf] sm:$0x10] %vm1822, %v2780
    %v2787 = vpack.c.bf16 %v2773, %v2773
    %v2788 = vpack.c.bf16 %v2774, %v2774
    %v2791 = vunpack.c.l.b16 %v2787
    %v2792 = vunpack.c.l.b16 %v2788
    %v2793 = vrot.slane %v2791, 4
    %v2794 = vrot.slane %v2792, 3
    %v2795 = vsel %vm1346, %v2794, %v2793
    %v2796 = vpack.c.b16 %v2795, %v2795
    %2797 = vrot.lane.b32.xlu0 %v2796, 32
    %v2798 = vpop.permute.xlu0 %2797
    %v2800 = vsel %vm569, %v2798, 0
    %2802 = vmatprep.subr.bf16.mxu0 0
    %2803 = vmatpush1.bf16.msra.mxu0 0
    %2804 = vmatprep.subr.bf16.mxu0 0
    %2805 = vmatpush1.bf16.msra.mxu0 0
    %2806 = vmatprep.subr.bf16.mxu0 0
    %2807 = vmatpush1.bf16.msra.mxu0 0
    %2808 = vmatprep.subr.bf16.mxu0 0
    %2809 = vmatpush1.bf16.msra.mxu0 0
    %2810 = vmatprep.subr.bf16.mxu0 0
    %2811 = vmatpush1.bf16.msra.mxu0 0
    %2812 = vmatprep.subr.bf16.mxu0 0
    %2813 = vmatpush1.bf16.msra.mxu0 0
    %2814 = vmatprep.subr.bf16.mxu0 0
    %2815 = vmatpush1.bf16.msra.mxu0 %v1234
    %2816 = vmatprep.subr.bf16.mxu0 0
    %2817 = vmatpush1.bf16.msra.mxu0 %v1233
    %2818 = vmatprep.subr.bf16.mxu0 0
    %2819 = vmatpush2.bf16.msra.mxu0 0
    %2820 = vmatprep.subr.bf16.mxu0 0
    %2821 = vmatpush2.bf16.msra.mxu0 0
    %2822 = vmatprep.subr.bf16.mxu0 0
    %2823 = vmatpush2.bf16.msra.mxu0 0
    %2824 = vmatprep.subr.bf16.mxu0 0
    %2825 = vmatpush2.bf16.msra.mxu0 0
    %2826 = vmatprep.subr.bf16.mxu0 0
    %2827 = vmatpush2.bf16.msra.mxu0 0
    %2828 = vmatprep.subr.bf16.mxu0 0
    %2829 = vmatpush2.bf16.msra.mxu0 0
    %2830 = vmatprep.subr.bf16.mxu0 0
    %2831 = vmatpush2.bf16.msra.mxu0 0
    %2832 = vmatprep.subr.bf16.mxu0 0
    %2833 = vmatpush2.bf16.msra.mxu0 0
    %2834 = vmatprep.mubr.bf16.mxu0 0
    %2835 = vmatmul.mubr.bf16.gmra.mxu0 %v2800
    %v2836 = vpop.f32.mrf.mxu0
    %v2837 = vadd.f32 0.0, %v2836
    %v2838 = vpop.f32.mrf.mxu0
    %v2839 = vpop.f32.mrf.mxu0
    %v2840 = vpop.f32.mrf.mxu0
    %2841 = vdwg.mxu0
    %v2843 = vrot.slane %v2837, 3
    %v2844 = vrot.slane %v2837, 4
    %v2847 = vadd.f32 %v1222, %v2843
    %v2848 = vadd.f32 %v1224, %v2844
    %v2849 = vtanh.pop %v2847
    %v2850 = vtanh.pop %v2848
    %v2851 = vmul.f32 %v2849, 0.5
    %v2852 = vmul.f32 %v2850, 0.5
    %v2853 = vadd.f32 %v2851, 0.5
    %v2854 = vadd.f32 %v2852, 0.5
    %v2857 = vrot.slane %v2761, 7
    %v2858 = vrot.slane %v2762, 7
    %v2861 = vmul.f32 %v2853, %v2857
    %v2862 = vmul.f32 %v2854, %v2858
    %2865 = vrot.lane.b32.xlu0 %v2849, 64
    %v2866 = vpop.permute.xlu0 %2865
    %2867 = vrot.lane.b32.xlu0 %v2850, 64
    %v2868 = vpop.permute.xlu0 %2867
    %v2871 = vmul.f32 %v2853, %v2866
    %v2872 = vmul.f32 %v2854, %v2868
    %2875 = vrot.lane.b32.xlu0 %v2871, 32
    %v2876 = vpop.permute.xlu0 %2875
    %2877 = vrot.lane.b32.xlu0 %v2872, 32
    %v2878 = vpop.permute.xlu0 %2877
    %v2881 = vadd.f32 %v2861, %v2876
    %v2882 = vadd.f32 %v2862, %v2878
    %v2883 = vtanh.pop %v2881
    %v2884 = vtanh.pop %v2882
    %2887 = vrot.lane.b32.xlu0 %v2883, 64
    %v2888 = vpop.permute.xlu0 %2887
    %2889 = vrot.lane.b32.xlu0 %v2884, 64
    %v2890 = vpop.permute.xlu0 %2889
    %v2893 = vmul.f32 %v2853, %v2888
    %v2894 = vmul.f32 %v2854, %v2890
    %2897 = vrot.lane.b32.xlu0 %v2893, 32
    %v2898 = vpop.permute.xlu0 %2897
    %2899 = vrot.lane.b32.xlu0 %v2894, 32
    %v2900 = vpop.permute.xlu0 %2899
    %2903 = vst.msk [vmem:[#allocation2 + $0x8] sm:$0x20] %vm1941, %v2898
    %2904 = vst.msk [vmem:[#allocation2 + $0x18] sm:$0x20] %vm1941, %v2900
    %2905 = vst.msk [vmem:[#allocation2 - $0x3] sm:$0x20] %vm1944, %v2898
    %2906 = vst.msk [vmem:[#allocation2 + $0xd] sm:$0x20] %vm1944, %v2900
    %v2907 = vpack.c.bf16 %v2893, %v2893
    %v2908 = vpack.c.bf16 %v2894, %v2894
    %v2911 = vunpack.c.l.b16 %v2907
    %v2912 = vunpack.c.l.b16 %v2908
    %v2913 = vrot.slane %v2911, 5
    %v2914 = vrot.slane %v2912, 4
    %v2915 = vsel %vm1346, %v2914, %v2913
    %v2916 = vpack.c.b16 %v2915, %v2915
    %2917 = vrot.lane.b32.xlu0 %v2916, 32
    %v2918 = vpop.permute.xlu0 %2917
    %v2920 = vsel %vm569, %v2918, 0
    %2922 = vmatprep.subr.bf16.mxu0 0
    %2923 = vmatpush1.bf16.msra.mxu0 0
    %2924 = vmatprep.subr.bf16.mxu0 0
    %2925 = vmatpush1.bf16.msra.mxu0 0
    %2926 = vmatprep.subr.bf16.mxu0 0
    %2927 = vmatpush1.bf16.msra.mxu0 0
    %2928 = vmatprep.subr.bf16.mxu0 0
    %2929 = vmatpush1.bf16.msra.mxu0 0
    %2930 = vmatprep.subr.bf16.mxu0 0
    %2931 = vmatpush1.bf16.msra.mxu0 0
    %2932 = vmatprep.subr.bf16.mxu0 0
    %2933 = vmatpush1.bf16.msra.mxu0 0
    %2934 = vmatprep.subr.bf16.mxu0 0
    %2935 = vmatpush1.bf16.msra.mxu0 %v1234
    %2936 = vmatprep.subr.bf16.mxu0 0
    %2937 = vmatpush1.bf16.msra.mxu0 %v1233
    %2938 = vmatprep.subr.bf16.mxu0 0
    %2939 = vmatpush2.bf16.msra.mxu0 0
    %2940 = vmatprep.subr.bf16.mxu0 0
    %2941 = vmatpush2.bf16.msra.mxu0 0
    %2942 = vmatprep.subr.bf16.mxu0 0
    %2943 = vmatpush2.bf16.msra.mxu0 0
    %2944 = vmatprep.subr.bf16.mxu0 0
    %2945 = vmatpush2.bf16.msra.mxu0 0
    %2946 = vmatprep.subr.bf16.mxu0 0
    %2947 = vmatpush2.bf16.msra.mxu0 0
    %2948 = vmatprep.subr.bf16.mxu0 0
    %2949 = vmatpush2.bf16.msra.mxu0 0
    %2950 = vmatprep.subr.bf16.mxu0 0
    %2951 = vmatpush2.bf16.msra.mxu0 0
    %2952 = vmatprep.subr.bf16.mxu0 0
    %2953 = vmatpush2.bf16.msra.mxu0 0
    %2954 = vmatprep.mubr.bf16.mxu0 0
    %2955 = vmatmul.mubr.bf16.gmra.mxu0 %v2920
    %v2956 = vpop.f32.mrf.mxu0
    %v2957 = vadd.f32 0.0, %v2956
    %v2958 = vpop.f32.mrf.mxu0
    %v2959 = vpop.f32.mrf.mxu0
    %v2960 = vpop.f32.mrf.mxu0
    %2961 = vdwg.mxu0
    %v2963 = vrot.slane %v2957, 2
    %v2964 = vrot.slane %v2957, 3
    %v2967 = vadd.f32 %v1222, %v2963
    %v2968 = vadd.f32 %v1224, %v2964
    %v2969 = vtanh.pop %v2967
    %v2970 = vtanh.pop %v2968
    %v2971 = vmul.f32 %v2969, 0.5
    %v2972 = vmul.f32 %v2970, 0.5
    %v2973 = vadd.f32 %v2971, 0.5
    %v2974 = vadd.f32 %v2972, 0.5
    %v2977 = vrot.slane %v2881, 7
    %v2978 = vrot.slane %v2882, 7
    %v2981 = vmul.f32 %v2973, %v2977
    %v2982 = vmul.f32 %v2974, %v2978
    %2985 = vrot.lane.b32.xlu0 %v2969, 64
    %v2986 = vpop.permute.xlu0 %2985
    %2987 = vrot.lane.b32.xlu0 %v2970, 64
    %v2988 = vpop.permute.xlu0 %2987
    %v2991 = vmul.f32 %v2973, %v2986
    %v2992 = vmul.f32 %v2974, %v2988
    %2995 = vrot.lane.b32.xlu0 %v2991, 32
    %v2996 = vpop.permute.xlu0 %2995
    %2997 = vrot.lane.b32.xlu0 %v2992, 32
    %v2998 = vpop.permute.xlu0 %2997
    %v3001 = vadd.f32 %v2981, %v2996
    %v3002 = vadd.f32 %v2982, %v2998
    %v3003 = vtanh.pop %v3001
    %v3004 = vtanh.pop %v3002
    %3007 = vrot.lane.b32.xlu0 %v3003, 64
    %v3008 = vpop.permute.xlu0 %3007
    %3009 = vrot.lane.b32.xlu0 %v3004, 64
    %v3010 = vpop.permute.xlu0 %3009
    %v3013 = vmul.f32 %v2973, %v3008
    %v3014 = vmul.f32 %v2974, %v3010
    %3017 = vrot.lane.b32.xlu0 %v3013, 32
    %v3018 = vpop.permute.xlu0 %3017
    %3019 = vrot.lane.b32.xlu0 %v3014, 32
    %v3020 = vpop.permute.xlu0 %3019
    %3023 = vst.msk [vmem:[#allocation2 + $0x8] sm:$0x40] %vm2063, %v3018
    %3024 = vst.msk [vmem:[#allocation2 + $0x18] sm:$0x40] %vm2063, %v3020
    %3025 = vst.msk [vmem:[#allocation2 - $0x5] sm:$0x40] %vm2066, %v3018
    %3026 = vst.msk [vmem:[#allocation2 + $0xb] sm:$0x40] %vm2066, %v3020
    %v3027 = vpack.c.bf16 %v3013, %v3013
    %v3028 = vpack.c.bf16 %v3014, %v3014
    %v3031 = vunpack.c.l.b16 %v3027
    %v3032 = vunpack.c.l.b16 %v3028
    %v3033 = vrot.slane %v3031, 6
    %v3034 = vrot.slane %v3032, 5
    %v3035 = vsel %vm1346, %v3034, %v3033
    %v3036 = vpack.c.b16 %v3035, %v3035
    %3037 = vrot.lane.b32.xlu0 %v3036, 32
    %v3038 = vpop.permute.xlu0 %3037
    %v3040 = vsel %vm569, %v3038, 0
    %3042 = vmatprep.subr.bf16.mxu0 0
    %3043 = vmatpush1.bf16.msra.mxu0 0
    %3044 = vmatprep.subr.bf16.mxu0 0
    %3045 = vmatpush1.bf16.msra.mxu0 0
    %3046 = vmatprep.subr.bf16.mxu0 0
    %3047 = vmatpush1.bf16.msra.mxu0 0
    %3048 = vmatprep.subr.bf16.mxu0 0
    %3049 = vmatpush1.bf16.msra.mxu0 0
    %3050 = vmatprep.subr.bf16.mxu0 0
    %3051 = vmatpush1.bf16.msra.mxu0 0
    %3052 = vmatprep.subr.bf16.mxu0 0
    %3053 = vmatpush1.bf16.msra.mxu0 0
    %3054 = vmatprep.subr.bf16.mxu0 0
    %3055 = vmatpush1.bf16.msra.mxu0 %v1234
    %3056 = vmatprep.subr.bf16.mxu0 0
    %3057 = vmatpush1.bf16.msra.mxu0 %v1233
    %3058 = vmatprep.subr.bf16.mxu0 0
    %3059 = vmatpush2.bf16.msra.mxu0 0
    %3060 = vmatprep.subr.bf16.mxu0 0
    %3061 = vmatpush2.bf16.msra.mxu0 0
    %3062 = vmatprep.subr.bf16.mxu0 0
    %3063 = vmatpush2.bf16.msra.mxu0 0
    %3064 = vmatprep.subr.bf16.mxu0 0
    %3065 = vmatpush2.bf16.msra.mxu0 0
    %3066 = vmatprep.subr.bf16.mxu0 0
    %3067 = vmatpush2.bf16.msra.mxu0 0
    %3068 = vmatprep.subr.bf16.mxu0 0
    %3069 = vmatpush2.bf16.msra.mxu0 0
    %3070 = vmatprep.subr.bf16.mxu0 0
    %3071 = vmatpush2.bf16.msra.mxu0 0
    %3072 = vmatprep.subr.bf16.mxu0 0
    %3073 = vmatpush2.bf16.msra.mxu0 0
    %3074 = vmatprep.mubr.bf16.mxu0 0
    %3075 = vmatmul.mubr.bf16.gmra.mxu0 %v3040
    %v3076 = vpop.f32.mrf.mxu0
    %v3077 = vadd.f32 0.0, %v3076
    %v3078 = vpop.f32.mrf.mxu0
    %v3079 = vpop.f32.mrf.mxu0
    %v3080 = vpop.f32.mrf.mxu0
    %3081 = vdwg.mxu0
    %v3083 = vrot.slane %v3077, 1
    %v3084 = vrot.slane %v3077, 2
    %v3087 = vadd.f32 %v1222, %v3083
    %v3088 = vadd.f32 %v1224, %v3084
    %v3089 = vtanh.pop %v3087
    %v3090 = vtanh.pop %v3088
    %v3091 = vmul.f32 %v3089, 0.5
    %v3092 = vmul.f32 %v3090, 0.5
    %v3093 = vadd.f32 %v3091, 0.5
    %v3094 = vadd.f32 %v3092, 0.5
    %v3097 = vrot.slane %v3001, 7
    %v3098 = vrot.slane %v3002, 7
    %v3101 = vmul.f32 %v3093, %v3097
    %v3102 = vmul.f32 %v3094, %v3098
    %3105 = vrot.lane.b32.xlu0 %v3089, 64
    %v3106 = vpop.permute.xlu0 %3105
    %3107 = vrot.lane.b32.xlu0 %v3090, 64
    %v3108 = vpop.permute.xlu0 %3107
    %v3111 = vmul.f32 %v3093, %v3106
    %v3112 = vmul.f32 %v3094, %v3108
    %3115 = vrot.lane.b32.xlu0 %v3111, 32
    %v3116 = vpop.permute.xlu0 %3115
    %3117 = vrot.lane.b32.xlu0 %v3112, 32
    %v3118 = vpop.permute.xlu0 %3117
    %v3121 = vadd.f32 %v3101, %v3116
    %v3122 = vadd.f32 %v3102, %v3118
    %v3123 = vtanh.pop %v3121
    %v3124 = vtanh.pop %v3122
    %3127 = vrot.lane.b32.xlu0 %v3123, 64
    %v3128 = vpop.permute.xlu0 %3127
    %3129 = vrot.lane.b32.xlu0 %v3124, 64
    %v3130 = vpop.permute.xlu0 %3129
    %v3133 = vmul.f32 %v3093, %v3128
    %v3134 = vmul.f32 %v3094, %v3130
    %3137 = vrot.lane.b32.xlu0 %v3133, 32
    %v3138 = vpop.permute.xlu0 %3137
    %3139 = vrot.lane.b32.xlu0 %v3134, 32
    %v3140 = vpop.permute.xlu0 %3139
    %3143 = vst.msk [vmem:[#allocation2 + $0x8] sm:$0x80] %vm2185, %v3138
    %3144 = vst.msk [vmem:[#allocation2 + $0x18] sm:$0x80] %vm2185, %v3140
    %3145 = vst.msk [vmem:[#allocation2 - $0x7] sm:$0x80] %vm2188, %v3138
    %3146 = vst.msk [vmem:[#allocation2 + $0x9] sm:$0x80] %vm2188, %v3140
    %v3147 = vld [vmem:[#allocation2] sm:$0xff]
    %v3148 = vld [vmem:[#allocation2 + $0x8] sm:$0xff]
    %v3149 = vld [vmem:[#allocation2 + $0x10] sm:$0xff]
    %v3150 = vld [vmem:[#allocation2 + $0x18] sm:$0xff]
    %s3151 = scalar_lea.vmem [#allocation11], 16
    %v3152 = vld [vmem:[%s3151] sm:$0xf]
    %v3153 = vld [vmem:[%s3151 + $0x4] sm:$0xf]
    %v3154 = vld [vmem:[%s3151 + $0x8] sm:$0xf]
    %v3155 = vld [vmem:[%s3151 + $0xc] sm:$0xf]
    %s3156 = scalar_lea.vmem %s8, 1
    %v3157 = vld [vmem:[%s3156] sm:$0x1]
    %v3158 = vpack.c.bf16 %v3148, %v3147
    %v3159 = vpack.c.bf16 %v3150, %v3149
    %3160 = vmatprep.subr.bf16.mxu0 0
    %3161 = vmatpush1.bf16.msra.mxu0 0
    %3162 = vmatprep.subr.bf16.mxu0 0
    %3163 = vmatpush1.bf16.msra.mxu0 0
    %3164 = vmatprep.subr.bf16.mxu0 0
    %3165 = vmatpush1.bf16.msra.mxu0 0
    %3166 = vmatprep.subr.bf16.mxu0 0
    %3167 = vmatpush1.bf16.msra.mxu0 0
    %3168 = vmatprep.subr.bf16.mxu0 0
    %3169 = vmatpush1.bf16.msra.mxu0 0
    %3170 = vmatprep.subr.bf16.mxu0 0
    %3171 = vmatpush1.bf16.msra.mxu0 0
    %3172 = vmatprep.subr.bf16.mxu0 0
    %3173 = vmatpush1.bf16.msra.mxu0 %v3159
    %3174 = vmatprep.subr.bf16.mxu0 0
    %3175 = vmatpush1.bf16.msra.mxu0 %v3158
    %3176 = vmatprep.subr.bf16.mxu0 0
    %3177 = vmatpush2.bf16.msra.mxu0 0
    %3178 = vmatprep.subr.bf16.mxu0 0
    %3179 = vmatpush2.bf16.msra.mxu0 0
    %3180 = vmatprep.subr.bf16.mxu0 0
    %3181 = vmatpush2.bf16.msra.mxu0 0
    %3182 = vmatprep.subr.bf16.mxu0 0
    %3183 = vmatpush2.bf16.msra.mxu0 0
    %3184 = vmatprep.subr.bf16.mxu0 0
    %3185 = vmatpush2.bf16.msra.mxu0 0
    %3186 = vmatprep.subr.bf16.mxu0 0
    %3187 = vmatpush2.bf16.msra.mxu0 0
    %3188 = vmatprep.subr.bf16.mxu0 0
    %3189 = vmatpush2.bf16.msra.mxu0 0
    %3190 = vmatprep.subr.bf16.mxu0 0
    %3191 = vmatpush2.bf16.msra.mxu0 0
    %3192 = vmatprep.mubr.bf16.mxu0 0
    %3193 = vmatmul.mubr.bf16.gmra.mxu0 %v1017
    %v3194 = vpop.f32.mrf.mxu0
    %v3195 = vadd.f32 0.0, %v3194
    %v3196 = vpop.f32.mrf.mxu0
    %v3197 = vpop.f32.mrf.mxu0
    %v3198 = vadd.f32 0.0, %v3197
    %v3199 = vpop.f32.mrf.mxu0
    %3200 = vmatprep.mubr.bf16.mxu0 0
    %3201 = vmatmul.mubr.bf16.gmra.mxu0 %v1020
    %v3202 = vpop.f32.mrf.mxu0
    %v3203 = vadd.f32 0.0, %v3202
    %v3204 = vpop.f32.mrf.mxu0
    %v3205 = vpop.f32.mrf.mxu0
    %v3206 = vadd.f32 0.0, %v3205
    %v3207 = vpop.f32.mrf.mxu0
    %3208 = vdwg.mxu0
    %v3209 = vpack.c.bf16 %v3198, %v3195
    %v3210 = vpack.c.bf16 %v3206, %v3203
    %s3211 = scalar_lea.vmem %s5, 16
    %v3212 = vld [vmem:[%s3211] sm:$0xf]
    %v3213 = vld [vmem:[%s3211 + $0x4] sm:$0xf]
    %v3214 = vld [vmem:[%s3211 + $0x8] sm:$0xf]
    %v3215 = vld [vmem:[%s3211 + $0xc] sm:$0xf]
    %s3216 = scalar_lea.vmem [#allocation9], 16
    %v3217 = vld [vmem:[%s3216] sm:$0xf]
    %v3218 = vld [vmem:[%s3216 + $0x4] sm:$0xf]
    %v3219 = vld [vmem:[%s3216 + $0x8] sm:$0xf]
    %v3220 = vld [vmem:[%s3216 + $0xc] sm:$0xf]
    %v3225 = vunpack.c.l.b16 %v3217
    %v3226 = vunpack.c.l.b16 %v3218
    %v3227 = vunpack.c.l.b16 %v3219
    %v3228 = vunpack.c.l.b16 %v3220
    %v3229 = vpack.c.b16 %v3226, %v3225
    %v3230 = vpack.c.b16 %v3228, %v3227
    %v3234 = vsel %vm569, %v3209, 0
    %v3237 = vsel %vm569, %v3210, 0
    %3239 = vmatprep.subr.bf16.mxu0 0
    %3240 = vmatpush1.bf16.msra.mxu0 0
    %3241 = vmatprep.subr.bf16.mxu0 0
    %3242 = vmatpush1.bf16.msra.mxu0 0
    %3243 = vmatprep.subr.bf16.mxu0 0
    %3244 = vmatpush1.bf16.msra.mxu0 0
    %3245 = vmatprep.subr.bf16.mxu0 0
    %3246 = vmatpush1.bf16.msra.mxu0 0
    %3247 = vmatprep.subr.bf16.mxu0 0
    %3248 = vmatpush1.bf16.msra.mxu0 0
    %3249 = vmatprep.subr.bf16.mxu0 0
    %3250 = vmatpush1.bf16.msra.mxu0 0
    %3251 = vmatprep.subr.bf16.mxu0 0
    %3252 = vmatpush1.bf16.msra.mxu0 %v3230
    %3253 = vmatprep.subr.bf16.mxu0 0
    %3254 = vmatpush1.bf16.msra.mxu0 %v3229
    %3255 = vmatprep.subr.bf16.mxu0 0
    %3256 = vmatpush2.bf16.msra.mxu0 0
    %3257 = vmatprep.subr.bf16.mxu0 0
    %3258 = vmatpush2.bf16.msra.mxu0 0
    %3259 = vmatprep.subr.bf16.mxu0 0
    %3260 = vmatpush2.bf16.msra.mxu0 0
    %3261 = vmatprep.subr.bf16.mxu0 0
    %3262 = vmatpush2.bf16.msra.mxu0 0
    %3263 = vmatprep.subr.bf16.mxu0 0
    %3264 = vmatpush2.bf16.msra.mxu0 0
    %3265 = vmatprep.subr.bf16.mxu0 0
    %3266 = vmatpush2.bf16.msra.mxu0 0
    %3267 = vmatprep.subr.bf16.mxu0 0
    %3268 = vmatpush2.bf16.msra.mxu0 0
    %3269 = vmatprep.subr.bf16.mxu0 0
    %3270 = vmatpush2.bf16.msra.mxu0 0
    %3271 = vmatprep.mubr.bf16.mxu0 0
    %3272 = vmatmul.mubr.bf16.gmra.mxu0 %v3234
    %v3273 = vpop.f32.mrf.mxu0
    %v3274 = vadd.f32 0.0, %v3273
    %v3275 = vpop.f32.mrf.mxu0
    %v3276 = vpop.f32.mrf.mxu0
    %v3277 = vadd.f32 0.0, %v3276
    %v3278 = vpop.f32.mrf.mxu0
    %3279 = vmatprep.mubr.bf16.mxu0 0
    %3280 = vmatmul.mubr.bf16.gmra.mxu0 %v3237
    %v3281 = vpop.f32.mrf.mxu0
    %v3282 = vadd.f32 0.0, %v3281
    %v3283 = vpop.f32.mrf.mxu0
    %v3284 = vpop.f32.mrf.mxu0
    %v3285 = vadd.f32 0.0, %v3284
    %v3286 = vpop.f32.mrf.mxu0
    %3287 = vdwg.mxu0
    %v3292 = vunpack.c.l.b16 %v3212
    %v3293 = vunpack.c.l.b16 %v3213
    %v3294 = vunpack.c.l.b16 %v3214
    %v3295 = vunpack.c.l.b16 %v3215
    %v3296 = vpack.c.b16 %v3293, %v3292
    %v3297 = vpack.c.b16 %v3295, %v3294
    %v3301 = vsel %vm569, %v3158, 0
    %v3304 = vsel %vm569, %v3159, 0
    %3306 = vmatprep.subr.bf16.mxu0 0
    %3307 = vmatpush1.bf16.msra.mxu0 0
    %3308 = vmatprep.subr.bf16.mxu0 0
    %3309 = vmatpush1.bf16.msra.mxu0 0
    %3310 = vmatprep.subr.bf16.mxu0 0
    %3311 = vmatpush1.bf16.msra.mxu0 0
    %3312 = vmatprep.subr.bf16.mxu0 0
    %3313 = vmatpush1.bf16.msra.mxu0 0
    %3314 = vmatprep.subr.bf16.mxu0 0
    %3315 = vmatpush1.bf16.msra.mxu0 0
    %3316 = vmatprep.subr.bf16.mxu0 0
    %3317 = vmatpush1.bf16.msra.mxu0 0
    %3318 = vmatprep.subr.bf16.mxu0 0
    %3319 = vmatpush1.bf16.msra.mxu0 %v3297
    %3320 = vmatprep.subr.bf16.mxu0 0
    %3321 = vmatpush1.bf16.msra.mxu0 %v3296
    %3322 = vmatprep.subr.bf16.mxu0 0
    %3323 = vmatpush2.bf16.msra.mxu0 0
    %3324 = vmatprep.subr.bf16.mxu0 0
    %3325 = vmatpush2.bf16.msra.mxu0 0
    %3326 = vmatprep.subr.bf16.mxu0 0
    %3327 = vmatpush2.bf16.msra.mxu0 0
    %3328 = vmatprep.subr.bf16.mxu0 0
    %3329 = vmatpush2.bf16.msra.mxu0 0
    %3330 = vmatprep.subr.bf16.mxu0 0
    %3331 = vmatpush2.bf16.msra.mxu0 0
    %3332 = vmatprep.subr.bf16.mxu0 0
    %3333 = vmatpush2.bf16.msra.mxu0 0
    %3334 = vmatprep.subr.bf16.mxu0 0
    %3335 = vmatpush2.bf16.msra.mxu0 0
    %3336 = vmatprep.subr.bf16.mxu0 0
    %3337 = vmatpush2.bf16.msra.mxu0 0
    %3338 = vmatprep.mubr.bf16.mxu0 0
    %3339 = vmatmul.mubr.bf16.gmra.mxu0 %v3301
    %v3340 = vpop.f32.mrf.mxu0
    %v3341 = vadd.f32 %v3274, %v3340
    %v3342 = vpop.f32.mrf.mxu0
    %v3343 = vpop.f32.mrf.mxu0
    %v3344 = vadd.f32 %v3277, %v3343
    %v3345 = vpop.f32.mrf.mxu0
    %3346 = vmatprep.mubr.bf16.mxu0 0
    %3347 = vmatmul.mubr.bf16.gmra.mxu0 %v3304
    %v3348 = vpop.f32.mrf.mxu0
    %v3349 = vadd.f32 %v3282, %v3348
    %v3350 = vpop.f32.mrf.mxu0
    %v3351 = vpop.f32.mrf.mxu0
    %v3352 = vadd.f32 %v3285, %v3351
    %v3353 = vpop.f32.mrf.mxu0
    %3354 = vdwg.mxu0
    %v3356 = vlaneseq
    %v3357 = vshrl.u32 %v3356, 7
    %v3358 = vsub.s32 0, %v3357
    %v3359 = vrot.slane %v3157, %v3358
    %v3361 = vadd.f32 %v3341, %v3359
    %v3362 = vadd.f32 %v3344, %v3359
    %v3363 = vadd.f32 %v3349, %v3359
    %v3364 = vadd.f32 %v3352, %v3359
    %v3369 = vunpack.c.l.b16 %v3152
    %v3370 = vunpack.c.l.b16 %v3153
    %v3371 = vunpack.c.l.b16 %v3154
    %v3372 = vunpack.c.l.b16 %v3155
    %v3373 = vpack.c.b16 %v3370, %v3369
    %v3374 = vpack.c.b16 %v3372, %v3371
    %3377 = vmatprep.subr.bf16.mxu0 0
    %3378 = vmatpush1.bf16.msra.mxu0 0
    %3379 = vmatprep.subr.bf16.mxu0 0
    %3380 = vmatpush1.bf16.msra.mxu0 0
    %3381 = vmatprep.subr.bf16.mxu0 0
    %3382 = vmatpush1.bf16.msra.mxu0 0
    %3383 = vmatprep.subr.bf16.mxu0 0
    %3384 = vmatpush1.bf16.msra.mxu0 0
    %3385 = vmatprep.subr.bf16.mxu0 0
    %3386 = vmatpush1.bf16.msra.mxu0 0
    %3387 = vmatprep.subr.bf16.mxu0 0
    %3388 = vmatpush1.bf16.msra.mxu0 0
    %3389 = vmatprep.subr.bf16.mxu0 0
    %3390 = vmatpush1.bf16.msra.mxu0 %v3374
    %3391 = vmatprep.subr.bf16.mxu0 0
    %3392 = vmatpush1.bf16.msra.mxu0 %v3373
    %3393 = vmatprep.subr.bf16.mxu0 0
    %3394 = vmatpush2.bf16.msra.mxu0 0
    %3395 = vmatprep.subr.bf16.mxu0 0
    %3396 = vmatpush2.bf16.msra.mxu0 0
    %3397 = vmatprep.subr.bf16.mxu0 0
    %3398 = vmatpush2.bf16.msra.mxu0 0
    %3399 = vmatprep.subr.bf16.mxu0 0
    %3400 = vmatpush2.bf16.msra.mxu0 0
    %3401 = vmatprep.subr.bf16.mxu0 0
    %3402 = vmatpush2.bf16.msra.mxu0 0
    %3403 = vmatprep.subr.bf16.mxu0 0
    %3404 = vmatpush2.bf16.msra.mxu0 0
    %3405 = vmatprep.subr.bf16.mxu0 0
    %3406 = vmatpush2.bf16.msra.mxu0 0
    %3407 = vmatprep.subr.bf16.mxu0 0
    %3408 = vmatpush2.bf16.msra.mxu0 0
    %3409 = vmatprep.mubr.bf16.mxu0 0
    %3410 = vmatmul.mubr.bf16.gmra.mxu0 %v1237
    %v3411 = vpop.f32.mrf.mxu0
    %v3412 = vadd.f32 0.0, %v3411
    %v3413 = vpop.f32.mrf.mxu0
    %v3414 = vpop.f32.mrf.mxu0
    %v3415 = vpop.f32.mrf.mxu0
    %3416 = vdwg.mxu0
    %v3418 = vrot.slane %v3412, 1
    %v3421 = vadd.f32 %v3361, %v3412
    %v3422 = vadd.f32 %v3363, %v3418
    %v3423 = vtanh.pop %v3421
    %v3424 = vtanh.pop %v3422
    %v3425 = vmul.f32 %v3423, 0.5
    %v3426 = vmul.f32 %v3424, 0.5
    %v3427 = vadd.f32 %v3425, 0.5
    %v3428 = vadd.f32 %v3426, 0.5
    %v3429 = vmul.f32 %v3427, 0.0
    %v3430 = vmul.f32 %v3428, 0.0
    %3433 = vrot.lane.b32.xlu0 %v3423, 64
    %v3434 = vpop.permute.xlu0 %3433
    %3435 = vrot.lane.b32.xlu0 %v3424, 64
    %v3436 = vpop.permute.xlu0 %3435
    %v3439 = vmul.f32 %v3427, %v3434
    %v3440 = vmul.f32 %v3428, %v3436
    %3443 = vrot.lane.b32.xlu0 %v3439, 32
    %v3444 = vpop.permute.xlu0 %3443
    %3445 = vrot.lane.b32.xlu0 %v3440, 32
    %v3446 = vpop.permute.xlu0 %3445
    %v3449 = vadd.f32 %v3429, %v3444
    %v3450 = vadd.f32 %v3430, %v3446
    %v3451 = vtanh.pop %v3449
    %v3452 = vtanh.pop %v3450
    %3455 = vrot.lane.b32.xlu0 %v3451, 64
    %v3456 = vpop.permute.xlu0 %3455
    %3457 = vrot.lane.b32.xlu0 %v3452, 64
    %v3458 = vpop.permute.xlu0 %3457
    %v3461 = vmul.f32 %v3427, %v3456
    %v3462 = vmul.f32 %v3428, %v3458
    %3465 = vrot.lane.b32.xlu0 %v3461, 32
    %v3466 = vpop.permute.xlu0 %3465
    %3467 = vrot.lane.b32.xlu0 %v3462, 32
    %v3468 = vpop.permute.xlu0 %3467
    %3471 = vst.msk [vmem:[#allocation2] sm:$0x1] %vm1333, %v3466
    %3472 = vst.msk [vmem:[#allocation2 + $0x10] sm:$0x1] %vm1333, %v3468
    %3473 = vst.msk [vmem:[#allocation2 + $0xf] sm:$0x1] %vm1336, %v3466
    %3474 = vst.msk [vmem:[#allocation2 + $0x1f] sm:$0x1] %vm1336, %v3468
    %v3475 = vpack.c.bf16 %v3461, %v3461
    %v3476 = vpack.c.bf16 %v3462, %v3462
    %v3479 = vunpack.c.l.b16 %v3475
    %v3480 = vunpack.c.l.b16 %v3476
    %v3481 = vrot.slane %v3480, 7
    %v3482 = vsel %vm1346, %v3481, %v3479
    %v3483 = vpack.c.b16 %v3482, %v3482
    %3484 = vrot.lane.b32.xlu0 %v3483, 32
    %v3485 = vpop.permute.xlu0 %3484
    %v3487 = vsel %vm569, %v3485, 0
    %3489 = vmatprep.subr.bf16.mxu0 0
    %3490 = vmatpush1.bf16.msra.mxu0 0
    %3491 = vmatprep.subr.bf16.mxu0 0
    %3492 = vmatpush1.bf16.msra.mxu0 0
    %3493 = vmatprep.subr.bf16.mxu0 0
    %3494 = vmatpush1.bf16.msra.mxu0 0
    %3495 = vmatprep.subr.bf16.mxu0 0
    %3496 = vmatpush1.bf16.msra.mxu0 0
    %3497 = vmatprep.subr.bf16.mxu0 0
    %3498 = vmatpush1.bf16.msra.mxu0 0
    %3499 = vmatprep.subr.bf16.mxu0 0
    %3500 = vmatpush1.bf16.msra.mxu0 0
    %3501 = vmatprep.subr.bf16.mxu0 0
    %3502 = vmatpush1.bf16.msra.mxu0 %v3374
    %3503 = vmatprep.subr.bf16.mxu0 0
    %3504 = vmatpush1.bf16.msra.mxu0 %v3373
    %3505 = vmatprep.subr.bf16.mxu0 0
    %3506 = vmatpush2.bf16.msra.mxu0 0
    %3507 = vmatprep.subr.bf16.mxu0 0
    %3508 = vmatpush2.bf16.msra.mxu0 0
    %3509 = vmatprep.subr.bf16.mxu0 0
    %3510 = vmatpush2.bf16.msra.mxu0 0
    %3511 = vmatprep.subr.bf16.mxu0 0
    %3512 = vmatpush2.bf16.msra.mxu0 0
    %3513 = vmatprep.subr.bf16.mxu0 0
    %3514 = vmatpush2.bf16.msra.mxu0 0
    %3515 = vmatprep.subr.bf16.mxu0 0
    %3516 = vmatpush2.bf16.msra.mxu0 0
    %3517 = vmatprep.subr.bf16.mxu0 0
    %3518 = vmatpush2.bf16.msra.mxu0 0
    %3519 = vmatprep.subr.bf16.mxu0 0
    %3520 = vmatpush2.bf16.msra.mxu0 0
    %3521 = vmatprep.mubr.bf16.mxu0 0
    %3522 = vmatmul.mubr.bf16.gmra.mxu0 %v3487
    %v3523 = vpop.f32.mrf.mxu0
    %v3524 = vadd.f32 0.0, %v3523
    %v3525 = vpop.f32.mrf.mxu0
    %v3526 = vpop.f32.mrf.mxu0
    %v3527 = vpop.f32.mrf.mxu0
    %3528 = vdwg.mxu0
    %v3530 = vrot.slane %v3524, 7
    %v3533 = vadd.f32 %v3361, %v3530
    %v3534 = vadd.f32 %v3363, %v3524
    %v3535 = vtanh.pop %v3533
    %v3536 = vtanh.pop %v3534
    %v3537 = vmul.f32 %v3535, 0.5
    %v3538 = vmul.f32 %v3536, 0.5
    %v3539 = vadd.f32 %v3537, 0.5
    %v3540 = vadd.f32 %v3538, 0.5
    %v3543 = vrot.slane %v3449, 7
    %v3544 = vrot.slane %v3450, 7
    %v3547 = vmul.f32 %v3539, %v3543
    %v3548 = vmul.f32 %v3540, %v3544
    %3551 = vrot.lane.b32.xlu0 %v3535, 64
    %v3552 = vpop.permute.xlu0 %3551
    %3553 = vrot.lane.b32.xlu0 %v3536, 64
    %v3554 = vpop.permute.xlu0 %3553
    %v3557 = vmul.f32 %v3539, %v3552
    %v3558 = vmul.f32 %v3540, %v3554
    %3561 = vrot.lane.b32.xlu0 %v3557, 32
    %v3562 = vpop.permute.xlu0 %3561
    %3563 = vrot.lane.b32.xlu0 %v3558, 32
    %v3564 = vpop.permute.xlu0 %3563
    %v3567 = vadd.f32 %v3547, %v3562
    %v3568 = vadd.f32 %v3548, %v3564
    %v3569 = vtanh.pop %v3567
    %v3570 = vtanh.pop %v3568
    %3573 = vrot.lane.b32.xlu0 %v3569, 64
    %v3574 = vpop.permute.xlu0 %3573
    %3575 = vrot.lane.b32.xlu0 %v3570, 64
    %v3576 = vpop.permute.xlu0 %3575
    %v3579 = vmul.f32 %v3539, %v3574
    %v3580 = vmul.f32 %v3540, %v3576
    %3583 = vrot.lane.b32.xlu0 %v3579, 32
    %v3584 = vpop.permute.xlu0 %3583
    %3585 = vrot.lane.b32.xlu0 %v3580, 32
    %v3586 = vpop.permute.xlu0 %3585
    %3589 = vst.msk [vmem:[#allocation2] sm:$0x2] %vm1454, %v3584
    %3590 = vst.msk [vmem:[#allocation2 + $0x10] sm:$0x2] %vm1454, %v3586
    %3591 = vst.msk [vmem:[#allocation2 + $0xd] sm:$0x2] %vm1457, %v3584
    %3592 = vst.msk [vmem:[#allocation2 + $0x1d] sm:$0x2] %vm1457, %v3586
    %v3593 = vpack.c.bf16 %v3579, %v3579
    %v3594 = vpack.c.bf16 %v3580, %v3580
    %v3597 = vunpack.c.l.b16 %v3593
    %v3598 = vunpack.c.l.b16 %v3594
    %v3599 = vrot.slane %v3597, 1
    %v3600 = vsel %vm1346, %v3598, %v3599
    %v3601 = vpack.c.b16 %v3600, %v3600
    %3602 = vrot.lane.b32.xlu0 %v3601, 32
    %v3603 = vpop.permute.xlu0 %3602
    %v3605 = vsel %vm569, %v3603, 0
    %3607 = vmatprep.subr.bf16.mxu0 0
    %3608 = vmatpush1.bf16.msra.mxu0 0
    %3609 = vmatprep.subr.bf16.mxu0 0
    %3610 = vmatpush1.bf16.msra.mxu0 0
    %3611 = vmatprep.subr.bf16.mxu0 0
    %3612 = vmatpush1.bf16.msra.mxu0 0
    %3613 = vmatprep.subr.bf16.mxu0 0
    %3614 = vmatpush1.bf16.msra.mxu0 0
    %3615 = vmatprep.subr.bf16.mxu0 0
    %3616 = vmatpush1.bf16.msra.mxu0 0
    %3617 = vmatprep.subr.bf16.mxu0 0
    %3618 = vmatpush1.bf16.msra.mxu0 0
    %3619 = vmatprep.subr.bf16.mxu0 0
    %3620 = vmatpush1.bf16.msra.mxu0 %v3374
    %3621 = vmatprep.subr.bf16.mxu0 0
    %3622 = vmatpush1.bf16.msra.mxu0 %v3373
    %3623 = vmatprep.subr.bf16.mxu0 0
    %3624 = vmatpush2.bf16.msra.mxu0 0
    %3625 = vmatprep.subr.bf16.mxu0 0
    %3626 = vmatpush2.bf16.msra.mxu0 0
    %3627 = vmatprep.subr.bf16.mxu0 0
    %3628 = vmatpush2.bf16.msra.mxu0 0
    %3629 = vmatprep.subr.bf16.mxu0 0
    %3630 = vmatpush2.bf16.msra.mxu0 0
    %3631 = vmatprep.subr.bf16.mxu0 0
    %3632 = vmatpush2.bf16.msra.mxu0 0
    %3633 = vmatprep.subr.bf16.mxu0 0
    %3634 = vmatpush2.bf16.msra.mxu0 0
    %3635 = vmatprep.subr.bf16.mxu0 0
    %3636 = vmatpush2.bf16.msra.mxu0 0
    %3637 = vmatprep.subr.bf16.mxu0 0
    %3638 = vmatpush2.bf16.msra.mxu0 0
    %3639 = vmatprep.mubr.bf16.mxu0 0
    %3640 = vmatmul.mubr.bf16.gmra.mxu0 %v3605
    %v3641 = vpop.f32.mrf.mxu0
    %v3642 = vadd.f32 0.0, %v3641
    %v3643 = vpop.f32.mrf.mxu0
    %v3644 = vpop.f32.mrf.mxu0
    %v3645 = vpop.f32.mrf.mxu0
    %3646 = vdwg.mxu0
    %v3648 = vrot.slane %v3642, 6
    %v3649 = vrot.slane %v3642, 7
    %v3652 = vadd.f32 %v3361, %v3648
    %v3653 = vadd.f32 %v3363, %v3649
    %v3654 = vtanh.pop %v3652
    %v3655 = vtanh.pop %v3653
    %v3656 = vmul.f32 %v3654, 0.5
    %v3657 = vmul.f32 %v3655, 0.5
    %v3658 = vadd.f32 %v3656, 0.5
    %v3659 = vadd.f32 %v3657, 0.5
    %v3662 = vrot.slane %v3567, 7
    %v3663 = vrot.slane %v3568, 7
    %v3666 = vmul.f32 %v3658, %v3662
    %v3667 = vmul.f32 %v3659, %v3663
    %3670 = vrot.lane.b32.xlu0 %v3654, 64
    %v3671 = vpop.permute.xlu0 %3670
    %3672 = vrot.lane.b32.xlu0 %v3655, 64
    %v3673 = vpop.permute.xlu0 %3672
    %v3676 = vmul.f32 %v3658, %v3671
    %v3677 = vmul.f32 %v3659, %v3673
    %3680 = vrot.lane.b32.xlu0 %v3676, 32
    %v3681 = vpop.permute.xlu0 %3680
    %3682 = vrot.lane.b32.xlu0 %v3677, 32
    %v3683 = vpop.permute.xlu0 %3682
    %v3686 = vadd.f32 %v3666, %v3681
    %v3687 = vadd.f32 %v3667, %v3683
    %v3688 = vtanh.pop %v3686
    %v3689 = vtanh.pop %v3687
    %3692 = vrot.lane.b32.xlu0 %v3688, 64
    %v3693 = vpop.permute.xlu0 %3692
    %3694 = vrot.lane.b32.xlu0 %v3689, 64
    %v3695 = vpop.permute.xlu0 %3694
    %v3698 = vmul.f32 %v3658, %v3693
    %v3699 = vmul.f32 %v3659, %v3695
    %3702 = vrot.lane.b32.xlu0 %v3698, 32
    %v3703 = vpop.permute.xlu0 %3702
    %3704 = vrot.lane.b32.xlu0 %v3699, 32
    %v3705 = vpop.permute.xlu0 %3704
    %3708 = vst.msk [vmem:[#allocation2] sm:$0x4] %vm1575, %v3703
    %3709 = vst.msk [vmem:[#allocation2 + $0x10] sm:$0x4] %vm1575, %v3705
    %3710 = vst.msk [vmem:[#allocation2 + $0xb] sm:$0x4] %vm1578, %v3703
    %3711 = vst.msk [vmem:[#allocation2 + $0x1b] sm:$0x4] %vm1578, %v3705
    %v3712 = vpack.c.bf16 %v3698, %v3698
    %v3713 = vpack.c.bf16 %v3699, %v3699
    %v3716 = vunpack.c.l.b16 %v3712
    %v3717 = vunpack.c.l.b16 %v3713
    %v3718 = vrot.slane %v3716, 2
    %v3719 = vrot.slane %v3717, 1
    %v3720 = vsel %vm1346, %v3719, %v3718
    %v3721 = vpack.c.b16 %v3720, %v3720
    %3722 = vrot.lane.b32.xlu0 %v3721, 32
    %v3723 = vpop.permute.xlu0 %3722
    %v3725 = vsel %vm569, %v3723, 0
    %3727 = vmatprep.subr.bf16.mxu0 0
    %3728 = vmatpush1.bf16.msra.mxu0 0
    %3729 = vmatprep.subr.bf16.mxu0 0
    %3730 = vmatpush1.bf16.msra.mxu0 0
    %3731 = vmatprep.subr.bf16.mxu0 0
    %3732 = vmatpush1.bf16.msra.mxu0 0
    %3733 = vmatprep.subr.bf16.mxu0 0
    %3734 = vmatpush1.bf16.msra.mxu0 0
    %3735 = vmatprep.subr.bf16.mxu0 0
    %3736 = vmatpush1.bf16.msra.mxu0 0
    %3737 = vmatprep.subr.bf16.mxu0 0
    %3738 = vmatpush1.bf16.msra.mxu0 0
    %3739 = vmatprep.subr.bf16.mxu0 0
    %3740 = vmatpush1.bf16.msra.mxu0 %v3374
    %3741 = vmatprep.subr.bf16.mxu0 0
    %3742 = vmatpush1.bf16.msra.mxu0 %v3373
    %3743 = vmatprep.subr.bf16.mxu0 0
    %3744 = vmatpush2.bf16.msra.mxu0 0
    %3745 = vmatprep.subr.bf16.mxu0 0
    %3746 = vmatpush2.bf16.msra.mxu0 0
    %3747 = vmatprep.subr.bf16.mxu0 0
    %3748 = vmatpush2.bf16.msra.mxu0 0
    %3749 = vmatprep.subr.bf16.mxu0 0
    %3750 = vmatpush2.bf16.msra.mxu0 0
    %3751 = vmatprep.subr.bf16.mxu0 0
    %3752 = vmatpush2.bf16.msra.mxu0 0
    %3753 = vmatprep.subr.bf16.mxu0 0
    %3754 = vmatpush2.bf16.msra.mxu0 0
    %3755 = vmatprep.subr.bf16.mxu0 0
    %3756 = vmatpush2.bf16.msra.mxu0 0
    %3757 = vmatprep.subr.bf16.mxu0 0
    %3758 = vmatpush2.bf16.msra.mxu0 0
    %3759 = vmatprep.mubr.bf16.mxu0 0
    %3760 = vmatmul.mubr.bf16.gmra.mxu0 %v3725
    %v3761 = vpop.f32.mrf.mxu0
    %v3762 = vadd.f32 0.0, %v3761
    %v3763 = vpop.f32.mrf.mxu0
    %v3764 = vpop.f32.mrf.mxu0
    %v3765 = vpop.f32.mrf.mxu0
    %3766 = vdwg.mxu0
    %v3768 = vrot.slane %v3762, 5
    %v3769 = vrot.slane %v3762, 6
    %v3772 = vadd.f32 %v3361, %v3768
    %v3773 = vadd.f32 %v3363, %v3769
    %v3774 = vtanh.pop %v3772
    %v3775 = vtanh.pop %v3773
    %v3776 = vmul.f32 %v3774, 0.5
    %v3777 = vmul.f32 %v3775, 0.5
    %v3778 = vadd.f32 %v3776, 0.5
    %v3779 = vadd.f32 %v3777, 0.5
    %v3782 = vrot.slane %v3686, 7
    %v3783 = vrot.slane %v3687, 7
    %v3786 = vmul.f32 %v3778, %v3782
    %v3787 = vmul.f32 %v3779, %v3783
    %3790 = vrot.lane.b32.xlu0 %v3774, 64
    %v3791 = vpop.permute.xlu0 %3790
    %3792 = vrot.lane.b32.xlu0 %v3775, 64
    %v3793 = vpop.permute.xlu0 %3792
    %v3796 = vmul.f32 %v3778, %v3791
    %v3797 = vmul.f32 %v3779, %v3793
    %3800 = vrot.lane.b32.xlu0 %v3796, 32
    %v3801 = vpop.permute.xlu0 %3800
    %3802 = vrot.lane.b32.xlu0 %v3797, 32
    %v3803 = vpop.permute.xlu0 %3802
    %v3806 = vadd.f32 %v3786, %v3801
    %v3807 = vadd.f32 %v3787, %v3803
    %v3808 = vtanh.pop %v3806
    %v3809 = vtanh.pop %v3807
    %3812 = vrot.lane.b32.xlu0 %v3808, 64
    %v3813 = vpop.permute.xlu0 %3812
    %3814 = vrot.lane.b32.xlu0 %v3809, 64
    %v3815 = vpop.permute.xlu0 %3814
    %v3818 = vmul.f32 %v3778, %v3813
    %v3819 = vmul.f32 %v3779, %v3815
    %3822 = vrot.lane.b32.xlu0 %v3818, 32
    %v3823 = vpop.permute.xlu0 %3822
    %3824 = vrot.lane.b32.xlu0 %v3819, 32
    %v3825 = vpop.permute.xlu0 %3824
    %3828 = vst.msk [vmem:[#allocation2] sm:$0x8] %vm1697, %v3823
    %3829 = vst.msk [vmem:[#allocation2 + $0x10] sm:$0x8] %vm1697, %v3825
    %3830 = vst.msk [vmem:[#allocation2 + $0x9] sm:$0x8] %vm1700, %v3823
    %3831 = vst.msk [vmem:[#allocation2 + $0x19] sm:$0x8] %vm1700, %v3825
    %v3832 = vpack.c.bf16 %v3818, %v3818
    %v3833 = vpack.c.bf16 %v3819, %v3819
    %v3836 = vunpack.c.l.b16 %v3832
    %v3837 = vunpack.c.l.b16 %v3833
    %v3838 = vrot.slane %v3836, 3
    %v3839 = vrot.slane %v3837, 2
    %v3840 = vsel %vm1346, %v3839, %v3838
    %v3841 = vpack.c.b16 %v3840, %v3840
    %3842 = vrot.lane.b32.xlu0 %v3841, 32
    %v3843 = vpop.permute.xlu0 %3842
    %v3845 = vsel %vm569, %v3843, 0
    %3847 = vmatprep.subr.bf16.mxu0 0
    %3848 = vmatpush1.bf16.msra.mxu0 0
    %3849 = vmatprep.subr.bf16.mxu0 0
    %3850 = vmatpush1.bf16.msra.mxu0 0
    %3851 = vmatprep.subr.bf16.mxu0 0
    %3852 = vmatpush1.bf16.msra.mxu0 0
    %3853 = vmatprep.subr.bf16.mxu0 0
    %3854 = vmatpush1.bf16.msra.mxu0 0
    %3855 = vmatprep.subr.bf16.mxu0 0
    %3856 = vmatpush1.bf16.msra.mxu0 0
    %3857 = vmatprep.subr.bf16.mxu0 0
    %3858 = vmatpush1.bf16.msra.mxu0 0
    %3859 = vmatprep.subr.bf16.mxu0 0
    %3860 = vmatpush1.bf16.msra.mxu0 %v3374
    %3861 = vmatprep.subr.bf16.mxu0 0
    %3862 = vmatpush1.bf16.msra.mxu0 %v3373
    %3863 = vmatprep.subr.bf16.mxu0 0
    %3864 = vmatpush2.bf16.msra.mxu0 0
    %3865 = vmatprep.subr.bf16.mxu0 0
    %3866 = vmatpush2.bf16.msra.mxu0 0
    %3867 = vmatprep.subr.bf16.mxu0 0
    %3868 = vmatpush2.bf16.msra.mxu0 0
    %3869 = vmatprep.subr.bf16.mxu0 0
    %3870 = vmatpush2.bf16.msra.mxu0 0
    %3871 = vmatprep.subr.bf16.mxu0 0
    %3872 = vmatpush2.bf16.msra.mxu0 0
    %3873 = vmatprep.subr.bf16.mxu0 0
    %3874 = vmatpush2.bf16.msra.mxu0 0
    %3875 = vmatprep.subr.bf16.mxu0 0
    %3876 = vmatpush2.bf16.msra.mxu0 0
    %3877 = vmatprep.subr.bf16.mxu0 0
    %3878 = vmatpush2.bf16.msra.mxu0 0
    %3879 = vmatprep.mubr.bf16.mxu0 0
    %3880 = vmatmul.mubr.bf16.gmra.mxu0 %v3845
    %v3881 = vpop.f32.mrf.mxu0
    %v3882 = vadd.f32 0.0, %v3881
    %v3883 = vpop.f32.mrf.mxu0
    %v3884 = vpop.f32.mrf.mxu0
    %v3885 = vpop.f32.mrf.mxu0
    %3886 = vdwg.mxu0
    %v3888 = vrot.slane %v3882, 4
    %v3889 = vrot.slane %v3882, 5
    %v3892 = vadd.f32 %v3361, %v3888
    %v3893 = vadd.f32 %v3363, %v3889
    %v3894 = vtanh.pop %v3892
    %v3895 = vtanh.pop %v3893
    %v3896 = vmul.f32 %v3894, 0.5
    %v3897 = vmul.f32 %v3895, 0.5
    %v3898 = vadd.f32 %v3896, 0.5
    %v3899 = vadd.f32 %v3897, 0.5
    %v3902 = vrot.slane %v3806, 7
    %v3903 = vrot.slane %v3807, 7
    %v3906 = vmul.f32 %v3898, %v3902
    %v3907 = vmul.f32 %v3899, %v3903
    %3910 = vrot.lane.b32.xlu0 %v3894, 64
    %v3911 = vpop.permute.xlu0 %3910
    %3912 = vrot.lane.b32.xlu0 %v3895, 64
    %v3913 = vpop.permute.xlu0 %3912
    %v3916 = vmul.f32 %v3898, %v3911
    %v3917 = vmul.f32 %v3899, %v3913
    %3920 = vrot.lane.b32.xlu0 %v3916, 32
    %v3921 = vpop.permute.xlu0 %3920
    %3922 = vrot.lane.b32.xlu0 %v3917, 32
    %v3923 = vpop.permute.xlu0 %3922
    %v3926 = vadd.f32 %v3906, %v3921
    %v3927 = vadd.f32 %v3907, %v3923
    %v3928 = vtanh.pop %v3926
    %v3929 = vtanh.pop %v3927
    %3932 = vrot.lane.b32.xlu0 %v3928, 64
    %v3933 = vpop.permute.xlu0 %3932
    %3934 = vrot.lane.b32.xlu0 %v3929, 64
    %v3935 = vpop.permute.xlu0 %3934
    %v3938 = vmul.f32 %v3898, %v3933
    %v3939 = vmul.f32 %v3899, %v3935
    %3942 = vrot.lane.b32.xlu0 %v3938, 32
    %v3943 = vpop.permute.xlu0 %3942
    %3944 = vrot.lane.b32.xlu0 %v3939, 32
    %v3945 = vpop.permute.xlu0 %3944
    %3948 = vst.msk [vmem:[#allocation2] sm:$0x10] %vm1819, %v3943
    %3949 = vst.msk [vmem:[#allocation2 + $0x10] sm:$0x10] %vm1819, %v3945
    %3950 = vst.msk [vmem:[#allocation2 + $0x7] sm:$0x10] %vm1822, %v3943
    %3951 = vst.msk [vmem:[#allocation2 + $0x17] sm:$0x10] %vm1822, %v3945
    %v3952 = vpack.c.bf16 %v3938, %v3938
    %v3953 = vpack.c.bf16 %v3939, %v3939
    %v3956 = vunpack.c.l.b16 %v3952
    %v3957 = vunpack.c.l.b16 %v3953
    %v3958 = vrot.slane %v3956, 4
    %v3959 = vrot.slane %v3957, 3
    %v3960 = vsel %vm1346, %v3959, %v3958
    %v3961 = vpack.c.b16 %v3960, %v3960
    %3962 = vrot.lane.b32.xlu0 %v3961, 32
    %v3963 = vpop.permute.xlu0 %3962
    %v3965 = vsel %vm569, %v3963, 0
    %3967 = vmatprep.subr.bf16.mxu0 0
    %3968 = vmatpush1.bf16.msra.mxu0 0
    %3969 = vmatprep.subr.bf16.mxu0 0
    %3970 = vmatpush1.bf16.msra.mxu0 0
    %3971 = vmatprep.subr.bf16.mxu0 0
    %3972 = vmatpush1.bf16.msra.mxu0 0
    %3973 = vmatprep.subr.bf16.mxu0 0
    %3974 = vmatpush1.bf16.msra.mxu0 0
    %3975 = vmatprep.subr.bf16.mxu0 0
    %3976 = vmatpush1.bf16.msra.mxu0 0
    %3977 = vmatprep.subr.bf16.mxu0 0
    %3978 = vmatpush1.bf16.msra.mxu0 0
    %3979 = vmatprep.subr.bf16.mxu0 0
    %3980 = vmatpush1.bf16.msra.mxu0 %v3374
    %3981 = vmatprep.subr.bf16.mxu0 0
    %3982 = vmatpush1.bf16.msra.mxu0 %v3373
    %3983 = vmatprep.subr.bf16.mxu0 0
    %3984 = vmatpush2.bf16.msra.mxu0 0
    %3985 = vmatprep.subr.bf16.mxu0 0
    %3986 = vmatpush2.bf16.msra.mxu0 0
    %3987 = vmatprep.subr.bf16.mxu0 0
    %3988 = vmatpush2.bf16.msra.mxu0 0
    %3989 = vmatprep.subr.bf16.mxu0 0
    %3990 = vmatpush2.bf16.msra.mxu0 0
    %3991 = vmatprep.subr.bf16.mxu0 0
    %3992 = vmatpush2.bf16.msra.mxu0 0
    %3993 = vmatprep.subr.bf16.mxu0 0
    %3994 = vmatpush2.bf16.msra.mxu0 0
    %3995 = vmatprep.subr.bf16.mxu0 0
    %3996 = vmatpush2.bf16.msra.mxu0 0
    %3997 = vmatprep.subr.bf16.mxu0 0
    %3998 = vmatpush2.bf16.msra.mxu0 0
    %3999 = vmatprep.mubr.bf16.mxu0 0
    %4000 = vmatmul.mubr.bf16.gmra.mxu0 %v3965
    %v4001 = vpop.f32.mrf.mxu0
    %v4002 = vadd.f32 0.0, %v4001
    %v4003 = vpop.f32.mrf.mxu0
    %v4004 = vpop.f32.mrf.mxu0
    %v4005 = vpop.f32.mrf.mxu0
    %4006 = vdwg.mxu0
    %v4008 = vrot.slane %v4002, 3
    %v4009 = vrot.slane %v4002, 4
    %v4012 = vadd.f32 %v3361, %v4008
    %v4013 = vadd.f32 %v3363, %v4009
    %v4014 = vtanh.pop %v4012
    %v4015 = vtanh.pop %v4013
    %v4016 = vmul.f32 %v4014, 0.5
    %v4017 = vmul.f32 %v4015, 0.5
    %v4018 = vadd.f32 %v4016, 0.5
    %v4019 = vadd.f32 %v4017, 0.5
    %v4022 = vrot.slane %v3926, 7
    %v4023 = vrot.slane %v3927, 7
    %v4026 = vmul.f32 %v4018, %v4022
    %v4027 = vmul.f32 %v4019, %v4023
    %4030 = vrot.lane.b32.xlu0 %v4014, 64
    %v4031 = vpop.permute.xlu0 %4030
    %4032 = vrot.lane.b32.xlu0 %v4015, 64
    %v4033 = vpop.permute.xlu0 %4032
    %v4036 = vmul.f32 %v4018, %v4031
    %v4037 = vmul.f32 %v4019, %v4033
    %4040 = vrot.lane.b32.xlu0 %v4036, 32
    %v4041 = vpop.permute.xlu0 %4040
    %4042 = vrot.lane.b32.xlu0 %v4037, 32
    %v4043 = vpop.permute.xlu0 %4042
    %v4046 = vadd.f32 %v4026, %v4041
    %v4047 = vadd.f32 %v4027, %v4043
    %v4048 = vtanh.pop %v4046
    %v4049 = vtanh.pop %v4047
    %4052 = vrot.lane.b32.xlu0 %v4048, 64
    %v4053 = vpop.permute.xlu0 %4052
    %4054 = vrot.lane.b32.xlu0 %v4049, 64
    %v4055 = vpop.permute.xlu0 %4054
    %v4058 = vmul.f32 %v4018, %v4053
    %v4059 = vmul.f32 %v4019, %v4055
    %4062 = vrot.lane.b32.xlu0 %v4058, 32
    %v4063 = vpop.permute.xlu0 %4062
    %4064 = vrot.lane.b32.xlu0 %v4059, 32
    %v4065 = vpop.permute.xlu0 %4064
    %4068 = vst.msk [vmem:[#allocation2] sm:$0x20] %vm1941, %v4063
    %4069 = vst.msk [vmem:[#allocation2 + $0x10] sm:$0x20] %vm1941, %v4065
    %4070 = vst.msk [vmem:[#allocation2 + $0x5] sm:$0x20] %vm1944, %v4063
    %4071 = vst.msk [vmem:[#allocation2 + $0x15] sm:$0x20] %vm1944, %v4065
    %v4072 = vpack.c.bf16 %v4058, %v4058
    %v4073 = vpack.c.bf16 %v4059, %v4059
    %v4076 = vunpack.c.l.b16 %v4072
    %v4077 = vunpack.c.l.b16 %v4073
    %v4078 = vrot.slane %v4076, 5
    %v4079 = vrot.slane %v4077, 4
    %v4080 = vsel %vm1346, %v4079, %v4078
    %v4081 = vpack.c.b16 %v4080, %v4080
    %4082 = vrot.lane.b32.xlu0 %v4081, 32
    %v4083 = vpop.permute.xlu0 %4082
    %v4085 = vsel %vm569, %v4083, 0
    %4087 = vmatprep.subr.bf16.mxu0 0
    %4088 = vmatpush1.bf16.msra.mxu0 0
    %4089 = vmatprep.subr.bf16.mxu0 0
    %4090 = vmatpush1.bf16.msra.mxu0 0
    %4091 = vmatprep.subr.bf16.mxu0 0
    %4092 = vmatpush1.bf16.msra.mxu0 0
    %4093 = vmatprep.subr.bf16.mxu0 0
    %4094 = vmatpush1.bf16.msra.mxu0 0
    %4095 = vmatprep.subr.bf16.mxu0 0
    %4096 = vmatpush1.bf16.msra.mxu0 0
    %4097 = vmatprep.subr.bf16.mxu0 0
    %4098 = vmatpush1.bf16.msra.mxu0 0
    %4099 = vmatprep.subr.bf16.mxu0 0
    %4100 = vmatpush1.bf16.msra.mxu0 %v3374
    %4101 = vmatprep.subr.bf16.mxu0 0
    %4102 = vmatpush1.bf16.msra.mxu0 %v3373
    %4103 = vmatprep.subr.bf16.mxu0 0
    %4104 = vmatpush2.bf16.msra.mxu0 0
    %4105 = vmatprep.subr.bf16.mxu0 0
    %4106 = vmatpush2.bf16.msra.mxu0 0
    %4107 = vmatprep.subr.bf16.mxu0 0
    %4108 = vmatpush2.bf16.msra.mxu0 0
    %4109 = vmatprep.subr.bf16.mxu0 0
    %4110 = vmatpush2.bf16.msra.mxu0 0
    %4111 = vmatprep.subr.bf16.mxu0 0
    %4112 = vmatpush2.bf16.msra.mxu0 0
    %4113 = vmatprep.subr.bf16.mxu0 0
    %4114 = vmatpush2.bf16.msra.mxu0 0
    %4115 = vmatprep.subr.bf16.mxu0 0
    %4116 = vmatpush2.bf16.msra.mxu0 0
    %4117 = vmatprep.subr.bf16.mxu0 0
    %4118 = vmatpush2.bf16.msra.mxu0 0
    %4119 = vmatprep.mubr.bf16.mxu0 0
    %4120 = vmatmul.mubr.bf16.gmra.mxu0 %v4085
    %v4121 = vpop.f32.mrf.mxu0
    %v4122 = vadd.f32 0.0, %v4121
    %v4123 = vpop.f32.mrf.mxu0
    %v4124 = vpop.f32.mrf.mxu0
    %v4125 = vpop.f32.mrf.mxu0
    %4126 = vdwg.mxu0
    %v4128 = vrot.slane %v4122, 2
    %v4129 = vrot.slane %v4122, 3
    %v4132 = vadd.f32 %v3361, %v4128
    %v4133 = vadd.f32 %v3363, %v4129
    %v4134 = vtanh.pop %v4132
    %v4135 = vtanh.pop %v4133
    %v4136 = vmul.f32 %v4134, 0.5
    %v4137 = vmul.f32 %v4135, 0.5
    %v4138 = vadd.f32 %v4136, 0.5
    %v4139 = vadd.f32 %v4137, 0.5
    %v4142 = vrot.slane %v4046, 7
    %v4143 = vrot.slane %v4047, 7
    %v4146 = vmul.f32 %v4138, %v4142
    %v4147 = vmul.f32 %v4139, %v4143
    %4150 = vrot.lane.b32.xlu0 %v4134, 64
    %v4151 = vpop.permute.xlu0 %4150
    %4152 = vrot.lane.b32.xlu0 %v4135, 64
    %v4153 = vpop.permute.xlu0 %4152
    %v4156 = vmul.f32 %v4138, %v4151
    %v4157 = vmul.f32 %v4139, %v4153
    %4160 = vrot.lane.b32.xlu0 %v4156, 32
    %v4161 = vpop.permute.xlu0 %4160
    %4162 = vrot.lane.b32.xlu0 %v4157, 32
    %v4163 = vpop.permute.xlu0 %4162
    %v4166 = vadd.f32 %v4146, %v4161
    %v4167 = vadd.f32 %v4147, %v4163
    %v4168 = vtanh.pop %v4166
    %v4169 = vtanh.pop %v4167
    %4172 = vrot.lane.b32.xlu0 %v4168, 64
    %v4173 = vpop.permute.xlu0 %4172
    %4174 = vrot.lane.b32.xlu0 %v4169, 64
    %v4175 = vpop.permute.xlu0 %4174
    %v4178 = vmul.f32 %v4138, %v4173
    %v4179 = vmul.f32 %v4139, %v4175
    %4182 = vrot.lane.b32.xlu0 %v4178, 32
    %v4183 = vpop.permute.xlu0 %4182
    %4184 = vrot.lane.b32.xlu0 %v4179, 32
    %v4185 = vpop.permute.xlu0 %4184
    %4188 = vst.msk [vmem:[#allocation2] sm:$0x40] %vm2063, %v4183
    %4189 = vst.msk [vmem:[#allocation2 + $0x10] sm:$0x40] %vm2063, %v4185
    %4190 = vst.msk [vmem:[#allocation2 + $0x3] sm:$0x40] %vm2066, %v4183
    %4191 = vst.msk [vmem:[#allocation2 + $0x13] sm:$0x40] %vm2066, %v4185
    %v4192 = vpack.c.bf16 %v4178, %v4178
    %v4193 = vpack.c.bf16 %v4179, %v4179
    %v4196 = vunpack.c.l.b16 %v4192
    %v4197 = vunpack.c.l.b16 %v4193
    %v4198 = vrot.slane %v4196, 6
    %v4199 = vrot.slane %v4197, 5
    %v4200 = vsel %vm1346, %v4199, %v4198
    %v4201 = vpack.c.b16 %v4200, %v4200
    %4202 = vrot.lane.b32.xlu0 %v4201, 32
    %v4203 = vpop.permute.xlu0 %4202
    %v4205 = vsel %vm569, %v4203, 0
    %4207 = vmatprep.subr.bf16.mxu0 0
    %4208 = vmatpush1.bf16.msra.mxu0 0
    %4209 = vmatprep.subr.bf16.mxu0 0
    %4210 = vmatpush1.bf16.msra.mxu0 0
    %4211 = vmatprep.subr.bf16.mxu0 0
    %4212 = vmatpush1.bf16.msra.mxu0 0
    %4213 = vmatprep.subr.bf16.mxu0 0
    %4214 = vmatpush1.bf16.msra.mxu0 0
    %4215 = vmatprep.subr.bf16.mxu0 0
    %4216 = vmatpush1.bf16.msra.mxu0 0
    %4217 = vmatprep.subr.bf16.mxu0 0
    %4218 = vmatpush1.bf16.msra.mxu0 0
    %4219 = vmatprep.subr.bf16.mxu0 0
    %4220 = vmatpush1.bf16.msra.mxu0 %v3374
    %4221 = vmatprep.subr.bf16.mxu0 0
    %4222 = vmatpush1.bf16.msra.mxu0 %v3373
    %4223 = vmatprep.subr.bf16.mxu0 0
    %4224 = vmatpush2.bf16.msra.mxu0 0
    %4225 = vmatprep.subr.bf16.mxu0 0
    %4226 = vmatpush2.bf16.msra.mxu0 0
    %4227 = vmatprep.subr.bf16.mxu0 0
    %4228 = vmatpush2.bf16.msra.mxu0 0
    %4229 = vmatprep.subr.bf16.mxu0 0
    %4230 = vmatpush2.bf16.msra.mxu0 0
    %4231 = vmatprep.subr.bf16.mxu0 0
    %4232 = vmatpush2.bf16.msra.mxu0 0
    %4233 = vmatprep.subr.bf16.mxu0 0
    %4234 = vmatpush2.bf16.msra.mxu0 0
    %4235 = vmatprep.subr.bf16.mxu0 0
    %4236 = vmatpush2.bf16.msra.mxu0 0
    %4237 = vmatprep.subr.bf16.mxu0 0
    %4238 = vmatpush2.bf16.msra.mxu0 0
    %4239 = vmatprep.mubr.bf16.mxu0 0
    %4240 = vmatmul.mubr.bf16.gmra.mxu0 %v4205
    %v4241 = vpop.f32.mrf.mxu0
    %v4242 = vadd.f32 0.0, %v4241
    %v4243 = vpop.f32.mrf.mxu0
    %v4244 = vpop.f32.mrf.mxu0
    %v4245 = vpop.f32.mrf.mxu0
    %4246 = vdwg.mxu0
    %v4248 = vrot.slane %v4242, 1
    %v4249 = vrot.slane %v4242, 2
    %v4252 = vadd.f32 %v3361, %v4248
    %v4253 = vadd.f32 %v3363, %v4249
    %v4254 = vtanh.pop %v4252
    %v4255 = vtanh.pop %v4253
    %v4256 = vmul.f32 %v4254, 0.5
    %v4257 = vmul.f32 %v4255, 0.5
    %v4258 = vadd.f32 %v4256, 0.5
    %v4259 = vadd.f32 %v4257, 0.5
    %v4262 = vrot.slane %v4166, 7
    %v4263 = vrot.slane %v4167, 7
    %v4266 = vmul.f32 %v4258, %v4262
    %v4267 = vmul.f32 %v4259, %v4263
    %4270 = vrot.lane.b32.xlu0 %v4254, 64
    %v4271 = vpop.permute.xlu0 %4270
    %4272 = vrot.lane.b32.xlu0 %v4255, 64
    %v4273 = vpop.permute.xlu0 %4272
    %v4276 = vmul.f32 %v4258, %v4271
    %v4277 = vmul.f32 %v4259, %v4273
    %4280 = vrot.lane.b32.xlu0 %v4276, 32
    %v4281 = vpop.permute.xlu0 %4280
    %4282 = vrot.lane.b32.xlu0 %v4277, 32
    %v4283 = vpop.permute.xlu0 %4282
    %v4286 = vadd.f32 %v4266, %v4281
    %v4287 = vadd.f32 %v4267, %v4283
    %v4288 = vtanh.pop %v4286
    %v4289 = vtanh.pop %v4287
    %4292 = vrot.lane.b32.xlu0 %v4288, 64
    %v4293 = vpop.permute.xlu0 %4292
    %4294 = vrot.lane.b32.xlu0 %v4289, 64
    %v4295 = vpop.permute.xlu0 %4294
    %v4298 = vmul.f32 %v4258, %v4293
    %v4299 = vmul.f32 %v4259, %v4295
    %4302 = vrot.lane.b32.xlu0 %v4298, 32
    %v4303 = vpop.permute.xlu0 %4302
    %4304 = vrot.lane.b32.xlu0 %v4299, 32
    %v4305 = vpop.permute.xlu0 %4304
    %4308 = vst.msk [vmem:[#allocation2] sm:$0x80] %vm2185, %v4303
    %4309 = vst.msk [vmem:[#allocation2 + $0x10] sm:$0x80] %vm2185, %v4305
    %4310 = vst.msk [vmem:[#allocation2 + $0x1] sm:$0x80] %vm2188, %v4303
    %4311 = vst.msk [vmem:[#allocation2 + $0x11] sm:$0x80] %vm2188, %v4305
    %v4312 = vpack.c.bf16 %v4298, %v4298
    %v4313 = vpack.c.bf16 %v4299, %v4299
    %v4316 = vunpack.c.l.b16 %v4312
    %v4317 = vunpack.c.l.b16 %v4313
    %v4318 = vrot.slane %v4316, 7
    %v4319 = vrot.slane %v4317, 6
    %v4320 = vsel %vm1346, %v4319, %v4318
    %v4321 = vpack.c.b16 %v4320, %v4320
    %4322 = vrot.lane.b32.xlu0 %v4321, 32
    %v4323 = vpop.permute.xlu0 %4322
    %v4325 = vsel %vm569, %v4323, 0
    %4327 = vmatprep.subr.bf16.mxu0 0
    %4328 = vmatpush1.bf16.msra.mxu0 0
    %4329 = vmatprep.subr.bf16.mxu0 0
    %4330 = vmatpush1.bf16.msra.mxu0 0
    %4331 = vmatprep.subr.bf16.mxu0 0
    %4332 = vmatpush1.bf16.msra.mxu0 0
    %4333 = vmatprep.subr.bf16.mxu0 0
    %4334 = vmatpush1.bf16.msra.mxu0 0
    %4335 = vmatprep.subr.bf16.mxu0 0
    %4336 = vmatpush1.bf16.msra.mxu0 0
    %4337 = vmatprep.subr.bf16.mxu0 0
    %4338 = vmatpush1.bf16.msra.mxu0 0
    %4339 = vmatprep.subr.bf16.mxu0 0
    %4340 = vmatpush1.bf16.msra.mxu0 %v3374
    %4341 = vmatprep.subr.bf16.mxu0 0
    %4342 = vmatpush1.bf16.msra.mxu0 %v3373
    %4343 = vmatprep.subr.bf16.mxu0 0
    %4344 = vmatpush2.bf16.msra.mxu0 0
    %4345 = vmatprep.subr.bf16.mxu0 0
    %4346 = vmatpush2.bf16.msra.mxu0 0
    %4347 = vmatprep.subr.bf16.mxu0 0
    %4348 = vmatpush2.bf16.msra.mxu0 0
    %4349 = vmatprep.subr.bf16.mxu0 0
    %4350 = vmatpush2.bf16.msra.mxu0 0
    %4351 = vmatprep.subr.bf16.mxu0 0
    %4352 = vmatpush2.bf16.msra.mxu0 0
    %4353 = vmatprep.subr.bf16.mxu0 0
    %4354 = vmatpush2.bf16.msra.mxu0 0
    %4355 = vmatprep.subr.bf16.mxu0 0
    %4356 = vmatpush2.bf16.msra.mxu0 0
    %4357 = vmatprep.subr.bf16.mxu0 0
    %4358 = vmatpush2.bf16.msra.mxu0 0
    %4359 = vmatprep.mubr.bf16.mxu0 0
    %4360 = vmatmul.mubr.bf16.gmra.mxu0 %v4325
    %v4361 = vpop.f32.mrf.mxu0
    %v4362 = vadd.f32 0.0, %v4361
    %v4363 = vpop.f32.mrf.mxu0
    %v4364 = vpop.f32.mrf.mxu0
    %v4365 = vpop.f32.mrf.mxu0
    %4366 = vdwg.mxu0
    %v4368 = vrot.slane %v4362, 1
    %v4371 = vadd.f32 %v3362, %v4362
    %v4372 = vadd.f32 %v3364, %v4368
    %v4373 = vtanh.pop %v4371
    %v4374 = vtanh.pop %v4372
    %v4375 = vmul.f32 %v4373, 0.5
    %v4376 = vmul.f32 %v4374, 0.5
    %v4377 = vadd.f32 %v4375, 0.5
    %v4378 = vadd.f32 %v4376, 0.5
    %v4381 = vrot.slane %v4286, 7
    %v4382 = vrot.slane %v4287, 7
    %v4385 = vmul.f32 %v4377, %v4381
    %v4386 = vmul.f32 %v4378, %v4382
    %4389 = vrot.lane.b32.xlu0 %v4373, 64
    %v4390 = vpop.permute.xlu0 %4389
    %4391 = vrot.lane.b32.xlu0 %v4374, 64
    %v4392 = vpop.permute.xlu0 %4391
    %v4395 = vmul.f32 %v4377, %v4390
    %v4396 = vmul.f32 %v4378, %v4392
    %4399 = vrot.lane.b32.xlu0 %v4395, 32
    %v4400 = vpop.permute.xlu0 %4399
    %4401 = vrot.lane.b32.xlu0 %v4396, 32
    %v4402 = vpop.permute.xlu0 %4401
    %v4405 = vadd.f32 %v4385, %v4400
    %v4406 = vadd.f32 %v4386, %v4402
    %v4407 = vtanh.pop %v4405
    %v4408 = vtanh.pop %v4406
    %4411 = vrot.lane.b32.xlu0 %v4407, 64
    %v4412 = vpop.permute.xlu0 %4411
    %4413 = vrot.lane.b32.xlu0 %v4408, 64
    %v4414 = vpop.permute.xlu0 %4413
    %v4417 = vmul.f32 %v4377, %v4412
    %v4418 = vmul.f32 %v4378, %v4414
    %4421 = vrot.lane.b32.xlu0 %v4417, 32
    %v4422 = vpop.permute.xlu0 %4421
    %4423 = vrot.lane.b32.xlu0 %v4418, 32
    %v4424 = vpop.permute.xlu0 %4423
    %4427 = vst.msk [vmem:[#allocation2 + $0x8] sm:$0x1] %vm1333, %v4422
    %4428 = vst.msk [vmem:[#allocation2 + $0x18] sm:$0x1] %vm1333, %v4424
    %4429 = vst.msk [vmem:[#allocation2 + $0x7] sm:$0x1] %vm1336, %v4422
    %4430 = vst.msk [vmem:[#allocation2 + $0x17] sm:$0x1] %vm1336, %v4424
    %v4431 = vpack.c.bf16 %v4417, %v4417
    %v4432 = vpack.c.bf16 %v4418, %v4418
    %v4435 = vunpack.c.l.b16 %v4431
    %v4436 = vunpack.c.l.b16 %v4432
    %v4437 = vrot.slane %v4436, 7
    %v4438 = vsel %vm1346, %v4437, %v4435
    %v4439 = vpack.c.b16 %v4438, %v4438
    %4440 = vrot.lane.b32.xlu0 %v4439, 32
    %v4441 = vpop.permute.xlu0 %4440
    %v4443 = vsel %vm569, %v4441, 0
    %4445 = vmatprep.subr.bf16.mxu0 0
    %4446 = vmatpush1.bf16.msra.mxu0 0
    %4447 = vmatprep.subr.bf16.mxu0 0
    %4448 = vmatpush1.bf16.msra.mxu0 0
    %4449 = vmatprep.subr.bf16.mxu0 0
    %4450 = vmatpush1.bf16.msra.mxu0 0
    %4451 = vmatprep.subr.bf16.mxu0 0
    %4452 = vmatpush1.bf16.msra.mxu0 0
    %4453 = vmatprep.subr.bf16.mxu0 0
    %4454 = vmatpush1.bf16.msra.mxu0 0
    %4455 = vmatprep.subr.bf16.mxu0 0
    %4456 = vmatpush1.bf16.msra.mxu0 0
    %4457 = vmatprep.subr.bf16.mxu0 0
    %4458 = vmatpush1.bf16.msra.mxu0 %v3374
    %4459 = vmatprep.subr.bf16.mxu0 0
    %4460 = vmatpush1.bf16.msra.mxu0 %v3373
    %4461 = vmatprep.subr.bf16.mxu0 0
    %4462 = vmatpush2.bf16.msra.mxu0 0
    %4463 = vmatprep.subr.bf16.mxu0 0
    %4464 = vmatpush2.bf16.msra.mxu0 0
    %4465 = vmatprep.subr.bf16.mxu0 0
    %4466 = vmatpush2.bf16.msra.mxu0 0
    %4467 = vmatprep.subr.bf16.mxu0 0
    %4468 = vmatpush2.bf16.msra.mxu0 0
    %4469 = vmatprep.subr.bf16.mxu0 0
    %4470 = vmatpush2.bf16.msra.mxu0 0
    %4471 = vmatprep.subr.bf16.mxu0 0
    %4472 = vmatpush2.bf16.msra.mxu0 0
    %4473 = vmatprep.subr.bf16.mxu0 0
    %4474 = vmatpush2.bf16.msra.mxu0 0
    %4475 = vmatprep.subr.bf16.mxu0 0
    %4476 = vmatpush2.bf16.msra.mxu0 0
    %4477 = vmatprep.mubr.bf16.mxu0 0
    %4478 = vmatmul.mubr.bf16.gmra.mxu0 %v4443
    %v4479 = vpop.f32.mrf.mxu0
    %v4480 = vadd.f32 0.0, %v4479
    %v4481 = vpop.f32.mrf.mxu0
    %v4482 = vpop.f32.mrf.mxu0
    %v4483 = vpop.f32.mrf.mxu0
    %4484 = vdwg.mxu0
    %v4486 = vrot.slane %v4480, 7
    %v4489 = vadd.f32 %v3362, %v4486
    %v4490 = vadd.f32 %v3364, %v4480
    %v4491 = vtanh.pop %v4489
    %v4492 = vtanh.pop %v4490
    %v4493 = vmul.f32 %v4491, 0.5
    %v4494 = vmul.f32 %v4492, 0.5
    %v4495 = vadd.f32 %v4493, 0.5
    %v4496 = vadd.f32 %v4494, 0.5
    %v4499 = vrot.slane %v4405, 7
    %v4500 = vrot.slane %v4406, 7
    %v4503 = vmul.f32 %v4495, %v4499
    %v4504 = vmul.f32 %v4496, %v4500
    %4507 = vrot.lane.b32.xlu0 %v4491, 64
    %v4508 = vpop.permute.xlu0 %4507
    %4509 = vrot.lane.b32.xlu0 %v4492, 64
    %v4510 = vpop.permute.xlu0 %4509
    %v4513 = vmul.f32 %v4495, %v4508
    %v4514 = vmul.f32 %v4496, %v4510
    %4517 = vrot.lane.b32.xlu0 %v4513, 32
    %v4518 = vpop.permute.xlu0 %4517
    %4519 = vrot.lane.b32.xlu0 %v4514, 32
    %v4520 = vpop.permute.xlu0 %4519
    %v4523 = vadd.f32 %v4503, %v4518
    %v4524 = vadd.f32 %v4504, %v4520
    %v4525 = vtanh.pop %v4523
    %v4526 = vtanh.pop %v4524
    %4529 = vrot.lane.b32.xlu0 %v4525, 64
    %v4530 = vpop.permute.xlu0 %4529
    %4531 = vrot.lane.b32.xlu0 %v4526, 64
    %v4532 = vpop.permute.xlu0 %4531
    %v4535 = vmul.f32 %v4495, %v4530
    %v4536 = vmul.f32 %v4496, %v4532
    %4539 = vrot.lane.b32.xlu0 %v4535, 32
    %v4540 = vpop.permute.xlu0 %4539
    %4541 = vrot.lane.b32.xlu0 %v4536, 32
    %v4542 = vpop.permute.xlu0 %4541
    %4545 = vst.msk [vmem:[#allocation2 + $0x8] sm:$0x2] %vm1454, %v4540
    %4546 = vst.msk [vmem:[#allocation2 + $0x18] sm:$0x2] %vm1454, %v4542
    %4547 = vst.msk [vmem:[#allocation2 + $0x5] sm:$0x2] %vm1457, %v4540
    %4548 = vst.msk [vmem:[#allocation2 + $0x15] sm:$0x2] %vm1457, %v4542
    %v4549 = vpack.c.bf16 %v4535, %v4535
    %v4550 = vpack.c.bf16 %v4536, %v4536
    %v4553 = vunpack.c.l.b16 %v4549
    %v4554 = vunpack.c.l.b16 %v4550
    %v4555 = vrot.slane %v4553, 1
    %v4556 = vsel %vm1346, %v4554, %v4555
    %v4557 = vpack.c.b16 %v4556, %v4556
    %4558 = vrot.lane.b32.xlu0 %v4557, 32
    %v4559 = vpop.permute.xlu0 %4558
    %v4561 = vsel %vm569, %v4559, 0
    %4563 = vmatprep.subr.bf16.mxu0 0
    %4564 = vmatpush1.bf16.msra.mxu0 0
    %4565 = vmatprep.subr.bf16.mxu0 0
    %4566 = vmatpush1.bf16.msra.mxu0 0
    %4567 = vmatprep.subr.bf16.mxu0 0
    %4568 = vmatpush1.bf16.msra.mxu0 0
    %4569 = vmatprep.subr.bf16.mxu0 0
    %4570 = vmatpush1.bf16.msra.mxu0 0
    %4571 = vmatprep.subr.bf16.mxu0 0
    %4572 = vmatpush1.bf16.msra.mxu0 0
    %4573 = vmatprep.subr.bf16.mxu0 0
    %4574 = vmatpush1.bf16.msra.mxu0 0
    %4575 = vmatprep.subr.bf16.mxu0 0
    %4576 = vmatpush1.bf16.msra.mxu0 %v3374
    %4577 = vmatprep.subr.bf16.mxu0 0
    %4578 = vmatpush1.bf16.msra.mxu0 %v3373
    %4579 = vmatprep.subr.bf16.mxu0 0
    %4580 = vmatpush2.bf16.msra.mxu0 0
    %4581 = vmatprep.subr.bf16.mxu0 0
    %4582 = vmatpush2.bf16.msra.mxu0 0
    %4583 = vmatprep.subr.bf16.mxu0 0
    %4584 = vmatpush2.bf16.msra.mxu0 0
    %4585 = vmatprep.subr.bf16.mxu0 0
    %4586 = vmatpush2.bf16.msra.mxu0 0
    %4587 = vmatprep.subr.bf16.mxu0 0
    %4588 = vmatpush2.bf16.msra.mxu0 0
    %4589 = vmatprep.subr.bf16.mxu0 0
    %4590 = vmatpush2.bf16.msra.mxu0 0
    %4591 = vmatprep.subr.bf16.mxu0 0
    %4592 = vmatpush2.bf16.msra.mxu0 0
    %4593 = vmatprep.subr.bf16.mxu0 0
    %4594 = vmatpush2.bf16.msra.mxu0 0
    %4595 = vmatprep.mubr.bf16.mxu0 0
    %4596 = vmatmul.mubr.bf16.gmra.mxu0 %v4561
    %v4597 = vpop.f32.mrf.mxu0
    %v4598 = vadd.f32 0.0, %v4597
    %v4599 = vpop.f32.mrf.mxu0
    %v4600 = vpop.f32.mrf.mxu0
    %v4601 = vpop.f32.mrf.mxu0
    %4602 = vdwg.mxu0
    %v4604 = vrot.slane %v4598, 6
    %v4605 = vrot.slane %v4598, 7
    %v4608 = vadd.f32 %v3362, %v4604
    %v4609 = vadd.f32 %v3364, %v4605
    %v4610 = vtanh.pop %v4608
    %v4611 = vtanh.pop %v4609
    %v4612 = vmul.f32 %v4610, 0.5
    %v4613 = vmul.f32 %v4611, 0.5
    %v4614 = vadd.f32 %v4612, 0.5
    %v4615 = vadd.f32 %v4613, 0.5
    %v4618 = vrot.slane %v4523, 7
    %v4619 = vrot.slane %v4524, 7
    %v4622 = vmul.f32 %v4614, %v4618
    %v4623 = vmul.f32 %v4615, %v4619
    %4626 = vrot.lane.b32.xlu0 %v4610, 64
    %v4627 = vpop.permute.xlu0 %4626
    %4628 = vrot.lane.b32.xlu0 %v4611, 64
    %v4629 = vpop.permute.xlu0 %4628
    %v4632 = vmul.f32 %v4614, %v4627
    %v4633 = vmul.f32 %v4615, %v4629
    %4636 = vrot.lane.b32.xlu0 %v4632, 32
    %v4637 = vpop.permute.xlu0 %4636
    %4638 = vrot.lane.b32.xlu0 %v4633, 32
    %v4639 = vpop.permute.xlu0 %4638
    %v4642 = vadd.f32 %v4622, %v4637
    %v4643 = vadd.f32 %v4623, %v4639
    %v4644 = vtanh.pop %v4642
    %v4645 = vtanh.pop %v4643
    %4648 = vrot.lane.b32.xlu0 %v4644, 64
    %v4649 = vpop.permute.xlu0 %4648
    %4650 = vrot.lane.b32.xlu0 %v4645, 64
    %v4651 = vpop.permute.xlu0 %4650
    %v4654 = vmul.f32 %v4614, %v4649
    %v4655 = vmul.f32 %v4615, %v4651
    %4658 = vrot.lane.b32.xlu0 %v4654, 32
    %v4659 = vpop.permute.xlu0 %4658
    %4660 = vrot.lane.b32.xlu0 %v4655, 32
    %v4661 = vpop.permute.xlu0 %4660
    %4664 = vst.msk [vmem:[#allocation2 + $0x8] sm:$0x4] %vm1575, %v4659
    %4665 = vst.msk [vmem:[#allocation2 + $0x18] sm:$0x4] %vm1575, %v4661
    %4666 = vst.msk [vmem:[#allocation2 + $0x3] sm:$0x4] %vm1578, %v4659
    %4667 = vst.msk [vmem:[#allocation2 + $0x13] sm:$0x4] %vm1578, %v4661
    %v4668 = vpack.c.bf16 %v4654, %v4654
    %v4669 = vpack.c.bf16 %v4655, %v4655
    %v4672 = vunpack.c.l.b16 %v4668
    %v4673 = vunpack.c.l.b16 %v4669
    %v4674 = vrot.slane %v4672, 2
    %v4675 = vrot.slane %v4673, 1
    %v4676 = vsel %vm1346, %v4675, %v4674
    %v4677 = vpack.c.b16 %v4676, %v4676
    %4678 = vrot.lane.b32.xlu0 %v4677, 32
    %v4679 = vpop.permute.xlu0 %4678
    %v4681 = vsel %vm569, %v4679, 0
    %4683 = vmatprep.subr.bf16.mxu0 0
    %4684 = vmatpush1.bf16.msra.mxu0 0
    %4685 = vmatprep.subr.bf16.mxu0 0
    %4686 = vmatpush1.bf16.msra.mxu0 0
    %4687 = vmatprep.subr.bf16.mxu0 0
    %4688 = vmatpush1.bf16.msra.mxu0 0
    %4689 = vmatprep.subr.bf16.mxu0 0
    %4690 = vmatpush1.bf16.msra.mxu0 0
    %4691 = vmatprep.subr.bf16.mxu0 0
    %4692 = vmatpush1.bf16.msra.mxu0 0
    %4693 = vmatprep.subr.bf16.mxu0 0
    %4694 = vmatpush1.bf16.msra.mxu0 0
    %4695 = vmatprep.subr.bf16.mxu0 0
    %4696 = vmatpush1.bf16.msra.mxu0 %v3374
    %4697 = vmatprep.subr.bf16.mxu0 0
    %4698 = vmatpush1.bf16.msra.mxu0 %v3373
    %4699 = vmatprep.subr.bf16.mxu0 0
    %4700 = vmatpush2.bf16.msra.mxu0 0
    %4701 = vmatprep.subr.bf16.mxu0 0
    %4702 = vmatpush2.bf16.msra.mxu0 0
    %4703 = vmatprep.subr.bf16.mxu0 0
    %4704 = vmatpush2.bf16.msra.mxu0 0
    %4705 = vmatprep.subr.bf16.mxu0 0
    %4706 = vmatpush2.bf16.msra.mxu0 0
    %4707 = vmatprep.subr.bf16.mxu0 0
    %4708 = vmatpush2.bf16.msra.mxu0 0
    %4709 = vmatprep.subr.bf16.mxu0 0
    %4710 = vmatpush2.bf16.msra.mxu0 0
    %4711 = vmatprep.subr.bf16.mxu0 0
    %4712 = vmatpush2.bf16.msra.mxu0 0
    %4713 = vmatprep.subr.bf16.mxu0 0
    %4714 = vmatpush2.bf16.msra.mxu0 0
    %4715 = vmatprep.mubr.bf16.mxu0 0
    %4716 = vmatmul.mubr.bf16.gmra.mxu0 %v4681
    %v4717 = vpop.f32.mrf.mxu0
    %v4718 = vadd.f32 0.0, %v4717
    %v4719 = vpop.f32.mrf.mxu0
    %v4720 = vpop.f32.mrf.mxu0
    %v4721 = vpop.f32.mrf.mxu0
    %4722 = vdwg.mxu0
    %v4724 = vrot.slane %v4718, 5
    %v4725 = vrot.slane %v4718, 6
    %v4728 = vadd.f32 %v3362, %v4724
    %v4729 = vadd.f32 %v3364, %v4725
    %v4730 = vtanh.pop %v4728
    %v4731 = vtanh.pop %v4729
    %v4732 = vmul.f32 %v4730, 0.5
    %v4733 = vmul.f32 %v4731, 0.5
    %v4734 = vadd.f32 %v4732, 0.5
    %v4735 = vadd.f32 %v4733, 0.5
    %v4738 = vrot.slane %v4642, 7
    %v4739 = vrot.slane %v4643, 7
    %v4742 = vmul.f32 %v4734, %v4738
    %v4743 = vmul.f32 %v4735, %v4739
    %4746 = vrot.lane.b32.xlu0 %v4730, 64
    %v4747 = vpop.permute.xlu0 %4746
    %4748 = vrot.lane.b32.xlu0 %v4731, 64
    %v4749 = vpop.permute.xlu0 %4748
    %v4752 = vmul.f32 %v4734, %v4747
    %v4753 = vmul.f32 %v4735, %v4749
    %4756 = vrot.lane.b32.xlu0 %v4752, 32
    %v4757 = vpop.permute.xlu0 %4756
    %4758 = vrot.lane.b32.xlu0 %v4753, 32
    %v4759 = vpop.permute.xlu0 %4758
    %v4762 = vadd.f32 %v4742, %v4757
    %v4763 = vadd.f32 %v4743, %v4759
    %v4764 = vtanh.pop %v4762
    %v4765 = vtanh.pop %v4763
    %4768 = vrot.lane.b32.xlu0 %v4764, 64
    %v4769 = vpop.permute.xlu0 %4768
    %4770 = vrot.lane.b32.xlu0 %v4765, 64
    %v4771 = vpop.permute.xlu0 %4770
    %v4774 = vmul.f32 %v4734, %v4769
    %v4775 = vmul.f32 %v4735, %v4771
    %4778 = vrot.lane.b32.xlu0 %v4774, 32
    %v4779 = vpop.permute.xlu0 %4778
    %4780 = vrot.lane.b32.xlu0 %v4775, 32
    %v4781 = vpop.permute.xlu0 %4780
    %4784 = vst.msk [vmem:[#allocation2 + $0x8] sm:$0x8] %vm1697, %v4779
    %4785 = vst.msk [vmem:[#allocation2 + $0x18] sm:$0x8] %vm1697, %v4781
    %4786 = vst.msk [vmem:[#allocation2 + $0x1] sm:$0x8] %vm1700, %v4779
    %4787 = vst.msk [vmem:[#allocation2 + $0x11] sm:$0x8] %vm1700, %v4781
    %v4788 = vpack.c.bf16 %v4774, %v4774
    %v4789 = vpack.c.bf16 %v4775, %v4775
    %v4792 = vunpack.c.l.b16 %v4788
    %v4793 = vunpack.c.l.b16 %v4789
    %v4794 = vrot.slane %v4792, 3
    %v4795 = vrot.slane %v4793, 2
    %v4796 = vsel %vm1346, %v4795, %v4794
    %v4797 = vpack.c.b16 %v4796, %v4796
    %4798 = vrot.lane.b32.xlu0 %v4797, 32
    %v4799 = vpop.permute.xlu0 %4798
    %v4801 = vsel %vm569, %v4799, 0
    %4803 = vmatprep.subr.bf16.mxu0 0
    %4804 = vmatpush1.bf16.msra.mxu0 0
    %4805 = vmatprep.subr.bf16.mxu0 0
    %4806 = vmatpush1.bf16.msra.mxu0 0
    %4807 = vmatprep.subr.bf16.mxu0 0
    %4808 = vmatpush1.bf16.msra.mxu0 0
    %4809 = vmatprep.subr.bf16.mxu0 0
    %4810 = vmatpush1.bf16.msra.mxu0 0
    %4811 = vmatprep.subr.bf16.mxu0 0
    %4812 = vmatpush1.bf16.msra.mxu0 0
    %4813 = vmatprep.subr.bf16.mxu0 0
    %4814 = vmatpush1.bf16.msra.mxu0 0
    %4815 = vmatprep.subr.bf16.mxu0 0
    %4816 = vmatpush1.bf16.msra.mxu0 %v3374
    %4817 = vmatprep.subr.bf16.mxu0 0
    %4818 = vmatpush1.bf16.msra.mxu0 %v3373
    %4819 = vmatprep.subr.bf16.mxu0 0
    %4820 = vmatpush2.bf16.msra.mxu0 0
    %4821 = vmatprep.subr.bf16.mxu0 0
    %4822 = vmatpush2.bf16.msra.mxu0 0
    %4823 = vmatprep.subr.bf16.mxu0 0
    %4824 = vmatpush2.bf16.msra.mxu0 0
    %4825 = vmatprep.subr.bf16.mxu0 0
    %4826 = vmatpush2.bf16.msra.mxu0 0
    %4827 = vmatprep.subr.bf16.mxu0 0
    %4828 = vmatpush2.bf16.msra.mxu0 0
    %4829 = vmatprep.subr.bf16.mxu0 0
    %4830 = vmatpush2.bf16.msra.mxu0 0
    %4831 = vmatprep.subr.bf16.mxu0 0
    %4832 = vmatpush2.bf16.msra.mxu0 0
    %4833 = vmatprep.subr.bf16.mxu0 0
    %4834 = vmatpush2.bf16.msra.mxu0 0
    %4835 = vmatprep.mubr.bf16.mxu0 0
    %4836 = vmatmul.mubr.bf16.gmra.mxu0 %v4801
    %v4837 = vpop.f32.mrf.mxu0
    %v4838 = vadd.f32 0.0, %v4837
    %v4839 = vpop.f32.mrf.mxu0
    %v4840 = vpop.f32.mrf.mxu0
    %v4841 = vpop.f32.mrf.mxu0
    %4842 = vdwg.mxu0
    %v4844 = vrot.slane %v4838, 4
    %v4845 = vrot.slane %v4838, 5
    %v4848 = vadd.f32 %v3362, %v4844
    %v4849 = vadd.f32 %v3364, %v4845
    %v4850 = vtanh.pop %v4848
    %v4851 = vtanh.pop %v4849
    %v4852 = vmul.f32 %v4850, 0.5
    %v4853 = vmul.f32 %v4851, 0.5
    %v4854 = vadd.f32 %v4852, 0.5
    %v4855 = vadd.f32 %v4853, 0.5
    %v4858 = vrot.slane %v4762, 7
    %v4859 = vrot.slane %v4763, 7
    %v4862 = vmul.f32 %v4854, %v4858
    %v4863 = vmul.f32 %v4855, %v4859
    %4866 = vrot.lane.b32.xlu0 %v4850, 64
    %v4867 = vpop.permute.xlu0 %4866
    %4868 = vrot.lane.b32.xlu0 %v4851, 64
    %v4869 = vpop.permute.xlu0 %4868
    %v4872 = vmul.f32 %v4854, %v4867
    %v4873 = vmul.f32 %v4855, %v4869
    %4876 = vrot.lane.b32.xlu0 %v4872, 32
    %v4877 = vpop.permute.xlu0 %4876
    %4878 = vrot.lane.b32.xlu0 %v4873, 32
    %v4879 = vpop.permute.xlu0 %4878
    %v4882 = vadd.f32 %v4862, %v4877
    %v4883 = vadd.f32 %v4863, %v4879
    %v4884 = vtanh.pop %v4882
    %v4885 = vtanh.pop %v4883
    %4888 = vrot.lane.b32.xlu0 %v4884, 64
    %v4889 = vpop.permute.xlu0 %4888
    %4890 = vrot.lane.b32.xlu0 %v4885, 64
    %v4891 = vpop.permute.xlu0 %4890
    %v4894 = vmul.f32 %v4854, %v4889
    %v4895 = vmul.f32 %v4855, %v4891
    %4898 = vrot.lane.b32.xlu0 %v4894, 32
    %v4899 = vpop.permute.xlu0 %4898
    %4900 = vrot.lane.b32.xlu0 %v4895, 32
    %v4901 = vpop.permute.xlu0 %4900
    %4904 = vst.msk [vmem:[#allocation2 + $0x8] sm:$0x10] %vm1819, %v4899
    %4905 = vst.msk [vmem:[#allocation2 + $0x18] sm:$0x10] %vm1819, %v4901
    %4906 = vst.msk [vmem:[#allocation2 - $0x1] sm:$0x10] %vm1822, %v4899
    %4907 = vst.msk [vmem:[#allocation2 + $0xf] sm:$0x10] %vm1822, %v4901
    %v4908 = vpack.c.bf16 %v4894, %v4894
    %v4909 = vpack.c.bf16 %v4895, %v4895
    %v4912 = vunpack.c.l.b16 %v4908
    %v4913 = vunpack.c.l.b16 %v4909
    %v4914 = vrot.slane %v4912, 4
    %v4915 = vrot.slane %v4913, 3
    %v4916 = vsel %vm1346, %v4915, %v4914
    %v4917 = vpack.c.b16 %v4916, %v4916
    %4918 = vrot.lane.b32.xlu0 %v4917, 32
    %v4919 = vpop.permute.xlu0 %4918
    %v4921 = vsel %vm569, %v4919, 0
    %4923 = vmatprep.subr.bf16.mxu0 0
    %4924 = vmatpush1.bf16.msra.mxu0 0
    %4925 = vmatprep.subr.bf16.mxu0 0
    %4926 = vmatpush1.bf16.msra.mxu0 0
    %4927 = vmatprep.subr.bf16.mxu0 0
    %4928 = vmatpush1.bf16.msra.mxu0 0
    %4929 = vmatprep.subr.bf16.mxu0 0
    %4930 = vmatpush1.bf16.msra.mxu0 0
    %4931 = vmatprep.subr.bf16.mxu0 0
    %4932 = vmatpush1.bf16.msra.mxu0 0
    %4933 = vmatprep.subr.bf16.mxu0 0
    %4934 = vmatpush1.bf16.msra.mxu0 0
    %4935 = vmatprep.subr.bf16.mxu0 0
    %4936 = vmatpush1.bf16.msra.mxu0 %v3374
    %4937 = vmatprep.subr.bf16.mxu0 0
    %4938 = vmatpush1.bf16.msra.mxu0 %v3373
    %4939 = vmatprep.subr.bf16.mxu0 0
    %4940 = vmatpush2.bf16.msra.mxu0 0
    %4941 = vmatprep.subr.bf16.mxu0 0
    %4942 = vmatpush2.bf16.msra.mxu0 0
    %4943 = vmatprep.subr.bf16.mxu0 0
    %4944 = vmatpush2.bf16.msra.mxu0 0
    %4945 = vmatprep.subr.bf16.mxu0 0
    %4946 = vmatpush2.bf16.msra.mxu0 0
    %4947 = vmatprep.subr.bf16.mxu0 0
    %4948 = vmatpush2.bf16.msra.mxu0 0
    %4949 = vmatprep.subr.bf16.mxu0 0
    %4950 = vmatpush2.bf16.msra.mxu0 0
    %4951 = vmatprep.subr.bf16.mxu0 0
    %4952 = vmatpush2.bf16.msra.mxu0 0
    %4953 = vmatprep.subr.bf16.mxu0 0
    %4954 = vmatpush2.bf16.msra.mxu0 0
    %4955 = vmatprep.mubr.bf16.mxu0 0
    %4956 = vmatmul.mubr.bf16.gmra.mxu0 %v4921
    %v4957 = vpop.f32.mrf.mxu0
    %v4958 = vadd.f32 0.0, %v4957
    %v4959 = vpop.f32.mrf.mxu0
    %v4960 = vpop.f32.mrf.mxu0
    %v4961 = vpop.f32.mrf.mxu0
    %4962 = vdwg.mxu0
    %v4964 = vrot.slane %v4958, 3
    %v4965 = vrot.slane %v4958, 4
    %v4968 = vadd.f32 %v3362, %v4964
    %v4969 = vadd.f32 %v3364, %v4965
    %v4970 = vtanh.pop %v4968
    %v4971 = vtanh.pop %v4969
    %v4972 = vmul.f32 %v4970, 0.5
    %v4973 = vmul.f32 %v4971, 0.5
    %v4974 = vadd.f32 %v4972, 0.5
    %v4975 = vadd.f32 %v4973, 0.5
    %v4978 = vrot.slane %v4882, 7
    %v4979 = vrot.slane %v4883, 7
    %v4982 = vmul.f32 %v4974, %v4978
    %v4983 = vmul.f32 %v4975, %v4979
    %4986 = vrot.lane.b32.xlu0 %v4970, 64
    %v4987 = vpop.permute.xlu0 %4986
    %4988 = vrot.lane.b32.xlu0 %v4971, 64
    %v4989 = vpop.permute.xlu0 %4988
    %v4992 = vmul.f32 %v4974, %v4987
    %v4993 = vmul.f32 %v4975, %v4989
    %4996 = vrot.lane.b32.xlu0 %v4992, 32
    %v4997 = vpop.permute.xlu0 %4996
    %4998 = vrot.lane.b32.xlu0 %v4993, 32
    %v4999 = vpop.permute.xlu0 %4998
    %v5002 = vadd.f32 %v4982, %v4997
    %v5003 = vadd.f32 %v4983, %v4999
    %v5004 = vtanh.pop %v5002
    %v5005 = vtanh.pop %v5003
    %5008 = vrot.lane.b32.xlu0 %v5004, 64
    %v5009 = vpop.permute.xlu0 %5008
    %5010 = vrot.lane.b32.xlu0 %v5005, 64
    %v5011 = vpop.permute.xlu0 %5010
    %v5014 = vmul.f32 %v4974, %v5009
    %v5015 = vmul.f32 %v4975, %v5011
    %5018 = vrot.lane.b32.xlu0 %v5014, 32
    %v5019 = vpop.permute.xlu0 %5018
    %5020 = vrot.lane.b32.xlu0 %v5015, 32
    %v5021 = vpop.permute.xlu0 %5020
    %5024 = vst.msk [vmem:[#allocation2 + $0x8] sm:$0x20] %vm1941, %v5019
    %5025 = vst.msk [vmem:[#allocation2 + $0x18] sm:$0x20] %vm1941, %v5021
    %5026 = vst.msk [vmem:[#allocation2 - $0x3] sm:$0x20] %vm1944, %v5019
    %5027 = vst.msk [vmem:[#allocation2 + $0xd] sm:$0x20] %vm1944, %v5021
    %v5028 = vpack.c.bf16 %v5014, %v5014
    %v5029 = vpack.c.bf16 %v5015, %v5015
    %v5032 = vunpack.c.l.b16 %v5028
    %v5033 = vunpack.c.l.b16 %v5029
    %v5034 = vrot.slane %v5032, 5
    %v5035 = vrot.slane %v5033, 4
    %v5036 = vsel %vm1346, %v5035, %v5034
    %v5037 = vpack.c.b16 %v5036, %v5036
    %5038 = vrot.lane.b32.xlu0 %v5037, 32
    %v5039 = vpop.permute.xlu0 %5038
    %v5041 = vsel %vm569, %v5039, 0
    %5043 = vmatprep.subr.bf16.mxu0 0
    %5044 = vmatpush1.bf16.msra.mxu0 0
    %5045 = vmatprep.subr.bf16.mxu0 0
    %5046 = vmatpush1.bf16.msra.mxu0 0
    %5047 = vmatprep.subr.bf16.mxu0 0
    %5048 = vmatpush1.bf16.msra.mxu0 0
    %5049 = vmatprep.subr.bf16.mxu0 0
    %5050 = vmatpush1.bf16.msra.mxu0 0
    %5051 = vmatprep.subr.bf16.mxu0 0
    %5052 = vmatpush1.bf16.msra.mxu0 0
    %5053 = vmatprep.subr.bf16.mxu0 0
    %5054 = vmatpush1.bf16.msra.mxu0 0
    %5055 = vmatprep.subr.bf16.mxu0 0
    %5056 = vmatpush1.bf16.msra.mxu0 %v3374
    %5057 = vmatprep.subr.bf16.mxu0 0
    %5058 = vmatpush1.bf16.msra.mxu0 %v3373
    %5059 = vmatprep.subr.bf16.mxu0 0
    %5060 = vmatpush2.bf16.msra.mxu0 0
    %5061 = vmatprep.subr.bf16.mxu0 0
    %5062 = vmatpush2.bf16.msra.mxu0 0
    %5063 = vmatprep.subr.bf16.mxu0 0
    %5064 = vmatpush2.bf16.msra.mxu0 0
    %5065 = vmatprep.subr.bf16.mxu0 0
    %5066 = vmatpush2.bf16.msra.mxu0 0
    %5067 = vmatprep.subr.bf16.mxu0 0
    %5068 = vmatpush2.bf16.msra.mxu0 0
    %5069 = vmatprep.subr.bf16.mxu0 0
    %5070 = vmatpush2.bf16.msra.mxu0 0
    %5071 = vmatprep.subr.bf16.mxu0 0
    %5072 = vmatpush2.bf16.msra.mxu0 0
    %5073 = vmatprep.subr.bf16.mxu0 0
    %5074 = vmatpush2.bf16.msra.mxu0 0
    %5075 = vmatprep.mubr.bf16.mxu0 0
    %5076 = vmatmul.mubr.bf16.gmra.mxu0 %v5041
    %v5077 = vpop.f32.mrf.mxu0
    %v5078 = vadd.f32 0.0, %v5077
    %v5079 = vpop.f32.mrf.mxu0
    %v5080 = vpop.f32.mrf.mxu0
    %v5081 = vpop.f32.mrf.mxu0
    %5082 = vdwg.mxu0
    %v5084 = vrot.slane %v5078, 2
    %v5085 = vrot.slane %v5078, 3
    %v5088 = vadd.f32 %v3362, %v5084
    %v5089 = vadd.f32 %v3364, %v5085
    %v5090 = vtanh.pop %v5088
    %v5091 = vtanh.pop %v5089
    %v5092 = vmul.f32 %v5090, 0.5
    %v5093 = vmul.f32 %v5091, 0.5
    %v5094 = vadd.f32 %v5092, 0.5
    %v5095 = vadd.f32 %v5093, 0.5
    %v5098 = vrot.slane %v5002, 7
    %v5099 = vrot.slane %v5003, 7
    %v5102 = vmul.f32 %v5094, %v5098
    %v5103 = vmul.f32 %v5095, %v5099
    %5106 = vrot.lane.b32.xlu0 %v5090, 64
    %v5107 = vpop.permute.xlu0 %5106
    %5108 = vrot.lane.b32.xlu0 %v5091, 64
    %v5109 = vpop.permute.xlu0 %5108
    %v5112 = vmul.f32 %v5094, %v5107
    %v5113 = vmul.f32 %v5095, %v5109
    %5116 = vrot.lane.b32.xlu0 %v5112, 32
    %v5117 = vpop.permute.xlu0 %5116
    %5118 = vrot.lane.b32.xlu0 %v5113, 32
    %v5119 = vpop.permute.xlu0 %5118
    %v5122 = vadd.f32 %v5102, %v5117
    %v5123 = vadd.f32 %v5103, %v5119
    %v5124 = vtanh.pop %v5122
    %v5125 = vtanh.pop %v5123
    %5128 = vrot.lane.b32.xlu0 %v5124, 64
    %v5129 = vpop.permute.xlu0 %5128
    %5130 = vrot.lane.b32.xlu0 %v5125, 64
    %v5131 = vpop.permute.xlu0 %5130
    %v5134 = vmul.f32 %v5094, %v5129
    %v5135 = vmul.f32 %v5095, %v5131
    %5138 = vrot.lane.b32.xlu0 %v5134, 32
    %v5139 = vpop.permute.xlu0 %5138
    %5140 = vrot.lane.b32.xlu0 %v5135, 32
    %v5141 = vpop.permute.xlu0 %5140
    %5144 = vst.msk [vmem:[#allocation2 + $0x8] sm:$0x40] %vm2063, %v5139
    %5145 = vst.msk [vmem:[#allocation2 + $0x18] sm:$0x40] %vm2063, %v5141
    %5146 = vst.msk [vmem:[#allocation2 - $0x5] sm:$0x40] %vm2066, %v5139
    %5147 = vst.msk [vmem:[#allocation2 + $0xb] sm:$0x40] %vm2066, %v5141
    %v5148 = vpack.c.bf16 %v5134, %v5134
    %v5149 = vpack.c.bf16 %v5135, %v5135
    %v5152 = vunpack.c.l.b16 %v5148
    %v5153 = vunpack.c.l.b16 %v5149
    %v5154 = vrot.slane %v5152, 6
    %v5155 = vrot.slane %v5153, 5
    %v5156 = vsel %vm1346, %v5155, %v5154
    %v5157 = vpack.c.b16 %v5156, %v5156
    %5158 = vrot.lane.b32.xlu0 %v5157, 32
    %v5159 = vpop.permute.xlu0 %5158
    %v5161 = vsel %vm569, %v5159, 0
    %5163 = vmatprep.subr.bf16.mxu0 0
    %5164 = vmatpush1.bf16.msra.mxu0 0
    %5165 = vmatprep.subr.bf16.mxu0 0
    %5166 = vmatpush1.bf16.msra.mxu0 0
    %5167 = vmatprep.subr.bf16.mxu0 0
    %5168 = vmatpush1.bf16.msra.mxu0 0
    %5169 = vmatprep.subr.bf16.mxu0 0
    %5170 = vmatpush1.bf16.msra.mxu0 0
    %5171 = vmatprep.subr.bf16.mxu0 0
    %5172 = vmatpush1.bf16.msra.mxu0 0
    %5173 = vmatprep.subr.bf16.mxu0 0
    %5174 = vmatpush1.bf16.msra.mxu0 0
    %5175 = vmatprep.subr.bf16.mxu0 0
    %5176 = vmatpush1.bf16.msra.mxu0 %v3374
    %5177 = vmatprep.subr.bf16.mxu0 0
    %5178 = vmatpush1.bf16.msra.mxu0 %v3373
    %5179 = vmatprep.subr.bf16.mxu0 0
    %5180 = vmatpush2.bf16.msra.mxu0 0
    %5181 = vmatprep.subr.bf16.mxu0 0
    %5182 = vmatpush2.bf16.msra.mxu0 0
    %5183 = vmatprep.subr.bf16.mxu0 0
    %5184 = vmatpush2.bf16.msra.mxu0 0
    %5185 = vmatprep.subr.bf16.mxu0 0
    %5186 = vmatpush2.bf16.msra.mxu0 0
    %5187 = vmatprep.subr.bf16.mxu0 0
    %5188 = vmatpush2.bf16.msra.mxu0 0
    %5189 = vmatprep.subr.bf16.mxu0 0
    %5190 = vmatpush2.bf16.msra.mxu0 0
    %5191 = vmatprep.subr.bf16.mxu0 0
    %5192 = vmatpush2.bf16.msra.mxu0 0
    %5193 = vmatprep.subr.bf16.mxu0 0
    %5194 = vmatpush2.bf16.msra.mxu0 0
    %5195 = vmatprep.mubr.bf16.mxu0 0
    %5196 = vmatmul.mubr.bf16.gmra.mxu0 %v5161
    %v5197 = vpop.f32.mrf.mxu0
    %v5198 = vadd.f32 0.0, %v5197
    %v5199 = vpop.f32.mrf.mxu0
    %v5200 = vpop.f32.mrf.mxu0
    %v5201 = vpop.f32.mrf.mxu0
    %5202 = vdwg.mxu0
    %v5204 = vrot.slane %v5198, 1
    %v5205 = vrot.slane %v5198, 2
    %v5208 = vadd.f32 %v3362, %v5204
    %v5209 = vadd.f32 %v3364, %v5205
    %v5210 = vtanh.pop %v5208
    %v5211 = vtanh.pop %v5209
    %v5212 = vmul.f32 %v5210, 0.5
    %v5213 = vmul.f32 %v5211, 0.5
    %v5214 = vadd.f32 %v5212, 0.5
    %v5215 = vadd.f32 %v5213, 0.5
    %v5218 = vrot.slane %v5122, 7
    %v5219 = vrot.slane %v5123, 7
    %v5222 = vmul.f32 %v5214, %v5218
    %v5223 = vmul.f32 %v5215, %v5219
    %5226 = vrot.lane.b32.xlu0 %v5210, 64
    %v5227 = vpop.permute.xlu0 %5226
    %5228 = vrot.lane.b32.xlu0 %v5211, 64
    %v5229 = vpop.permute.xlu0 %5228
    %v5232 = vmul.f32 %v5214, %v5227
    %v5233 = vmul.f32 %v5215, %v5229
    %5236 = vrot.lane.b32.xlu0 %v5232, 32
    %v5237 = vpop.permute.xlu0 %5236
    %5238 = vrot.lane.b32.xlu0 %v5233, 32
    %v5239 = vpop.permute.xlu0 %5238
    %v5242 = vadd.f32 %v5222, %v5237
    %v5243 = vadd.f32 %v5223, %v5239
    %v5244 = vtanh.pop %v5242
    %v5245 = vtanh.pop %v5243
    %5248 = vrot.lane.b32.xlu0 %v5244, 64
    %v5249 = vpop.permute.xlu0 %5248
    %5250 = vrot.lane.b32.xlu0 %v5245, 64
    %v5251 = vpop.permute.xlu0 %5250
    %v5254 = vmul.f32 %v5214, %v5249
    %v5255 = vmul.f32 %v5215, %v5251
    %5258 = vrot.lane.b32.xlu0 %v5254, 32
    %v5259 = vpop.permute.xlu0 %5258
    %5260 = vrot.lane.b32.xlu0 %v5255, 32
    %v5261 = vpop.permute.xlu0 %5260
    %5264 = vst.msk [vmem:[#allocation2 + $0x8] sm:$0x80] %vm2185, %v5259
    %5265 = vst.msk [vmem:[#allocation2 + $0x18] sm:$0x80] %vm2185, %v5261
    %5266 = vst.msk [vmem:[#allocation2 - $0x7] sm:$0x80] %vm2188, %v5259
    %5267 = vst.msk [vmem:[#allocation2 + $0x9] sm:$0x80] %vm2188, %v5261
    %v5268 = vld [vmem:[#allocation2] sm:$0xff]
    %v5269 = vld [vmem:[#allocation2 + $0x8] sm:$0xff]
    %v5270 = vld [vmem:[#allocation2 + $0x10] sm:$0xff]
    %v5271 = vld [vmem:[#allocation2 + $0x18] sm:$0xff]
    %5272 = vst.msk [vmem:[#allocation14] sm:$0xff] %vm569, %v5268
    %5273 = vst.msk [vmem:[#allocation14 + $0x8] sm:$0xff] %vm569, %v5269
    %5274 = vst.msk [vmem:[#allocation14 + $0x10] sm:$0xff] %vm569, %v5270
    %5275 = vst.msk [vmem:[#allocation14 + $0x18] sm:$0xff] %vm569, %v5271
    // Predicated region
    $region66: #{encoder_forward.1} parent=1 // pred_check
      _
    $region67: #{encoder_forward.1} parent=1 // pred_check_branch
      %5277 = sbr.rel (0) target = $region69
    $region68: #{encoder_forward.1} parent=1 // pred_region
      %s5279 = ssub.s32 512, 512
      %5280 = vsyncadd [#allocation5], %s5279
      %s5281 = sshll.u32 [#allocation14], 4
      %s5282 = int_to_ptr.vmem [resolvable:$true] %s5281
      %5287 = dma.vmem_to_hbm [thread:$0]  %s5282, 512, %s10, [#allocation5], 128, 128, 8
    $region69: #{encoder_forward.1} parent=1 // pred_fallthru
      _
    // Predicated region
    $region70: #{encoder_forward.1} parent=1 // pred_check
      _
    $region71: #{encoder_forward.1} parent=1 // pred_check_branch
      %5289 = sbr.rel (0) target = $region73
    $region72: #{encoder_forward.1} parent=1 // pred_region
      %5290 = dma.done [#allocation5], 512
    $region73: #{encoder_forward.1} parent=1 // pred_fallthru
      _
    %5291 = vsyncpa [#allocation4], 1
    %5292 = vsyncpa [#allocation7], 1
    %5293 = vsyncpa [#allocation10], 1
    %5294 = vsyncpa [#allocation13], 1
    %5295 = vsyncpa [#allocation5], 1

</llo_original>
